<compile_context>
chip_gen: v7x
topology: tpu7x:2x2x1
jax: 0.10.0
libtpu: 0.0.40
codegen_flags: <defaults>
</compile_context>

<pallas_src>
import jax
import jax.numpy as jnp
from jax.experimental import pallas as pl
from jax.experimental.pallas import tpu as pltpu


NEURONS = 128
CONV_CHANNELS = [(3, 32), (32, 64), (64, 128)]   # (Cin, Cout) per conv stage


# ----------------------------------------------------------------------------
# In-kernel helpers
# ----------------------------------------------------------------------------
def _relu_bias_pool(acc, b_ref, B, Hc, Wc):
    """bias + ReLU + 2x2 max-pool on an (B*Hc*Wc, Cout) f32 accumulator."""
    Cout = acc.shape[-1]
    y = jnp.maximum(acc + b_ref[...], 0.0)
    y = y.reshape(B * Hc, Wc, Cout)
    y = jnp.max(y.reshape(B * Hc // 2, 2, Wc, Cout), axis=1)        # pool rows
    y = jnp.max(y.reshape(B * Hc // 2, Wc // 2, 2, Cout), axis=2)   # pool cols
    return y.reshape(B, Hc // 2, Wc // 2, Cout)


def _conv_block(pad_ref, act_f32, w_ref, b_ref):
    """3x3 same-conv + bias + ReLU + 2x2 max-pool, batch stacked into M.

    pad_ref : (B, Hc+2, Wc+2, Cin) f32 VMEM scratch (zero halo, interior = act)
    act_f32 : (B, Hc, Wc, Cin)     f32 value
    w_ref   : (3, 3*Cin, Cout)     bf16 ref; rows of w_ref[dh] ordered (dw, cin)
    b_ref   : (1, Cout)            f32 ref
    returns : (B, Hc//2, Wc//2, Cout) f32
    """
    B, Hc, Wc, Cin = act_f32.shape
    Cout = w_ref.shape[2]
    M = B * Hc * Wc

    # Interior is fully rewritten every grid step; only the halo needs zeros.
    # (Done every step: scratch is per-core, so a program_id==0 guard would be
    #  unsafe under megacore.)
    pad_ref[:, 1:Hc + 1, 1:Wc + 1, :] = act_f32
    zrow = jnp.zeros((B, 1, Wc + 2, Cin), jnp.float32)
    zcol = jnp.zeros((B, Hc, 1, Cin), jnp.float32)
    pad_ref[:, 0:1, :, :] = zrow
    pad_ref[:, Hc + 1:Hc + 2, :, :] = zrow
    pad_ref[:, 1:Hc + 1, 0:1, :] = zcol
    pad_ref[:, 1:Hc + 1, Wc + 1:Wc + 2, :] = zcol

    # Fattened conv: one (M, 3*Cin) x (3*Cin, Cout) matmul per kernel row.
    acc = jnp.zeros((M, Cout), jnp.float32)
    for dh in range(3):
        patch = jnp.concatenate(
            [pad_ref[:, dh:dh + Hc, dw:dw + Wc, :].reshape(M, Cin)
             for dw in range(3)], axis=-1)                 # (M, 3*Cin) f32
        acc += jnp.dot(patch.astype(jnp.bfloat16), w_ref[dh],
                       preferred_element_type=jnp.float32)

    return _relu_bias_pool(acc, b_ref, B, Hc, Wc)


# ----------------------------------------------------------------------------
# Fully fused network kernel: 3 conv stages + 4-layer MLP head.
# ----------------------------------------------------------------------------
def _cnn_fused_kernel(x_ref,
                      cw1, cb1, cw2, cb2, cw3, cb3,
                      fw1, fb1, fw2, fb2, fw3, fb3, fw4, fb4,
                      o_ref,
                      pad2_ref, pad3_ref):
    bt, H, W, K1 = x_ref.shape

    # ---- stage 1: pre-im2col'd input -> single (bt*H*W, 27) x (27, 32) matmul
    a1 = jnp.dot(x_ref[...].reshape(bt * H * W, K1), cw1[...],
                 preferred_element_type=jnp.float32)
    p1 = _relu_bias_pool(a1, cb1, bt, H, W)               # (bt, H/2, W/2, 32)

    # ---- stages 2 & 3: fattened 3x3 convs (3 matmuls each, K = 3*Cin) ------
    p2 = _conv_block(pad2_ref, p1, cw2, cb2)              # (bt, H/4, W/4, 64)
    p3 = _conv_block(pad3_ref, p2, cw3, cb3)              # (bt, H/8, W/8, 128)

    # ---- FC head ------------------------------------------------------------
    # fw1 rows were permuted at init to (oi, oj, c) order, so the NHWC conv
    # output feeds FC1 with no (C,H,W) flatten relayout.
    B, H8, W8, C3 = p3.shape
    p3_bf = p3.astype(jnp.bfloat16)
    if H8 * W8 <= 16:
        # Lane-dense (bt, H8*W8*C3) slab (128-lane aligned concat) -> one fat
        # K = H8*W8*C3 matmul.
        feat = jnp.concatenate(
            [p3_bf[:, oi:oi + 1, oj:oj + 1, :].reshape(B, C3)
             for oi in range(H8) for oj in range(W8)], axis=-1)
        h = jnp.dot(feat, fw1[...], preferred_element_type=jnp.float32)
    else:
        # Fallback for large post-pool grids: per-position K=C3 accumulation.
        h = jnp.zeros((B, fw1.shape[1]), jnp.float32)
        for oi in range(H8):
            for oj in range(W8):
                k0 = (oi * W8 + oj) * C3
                h += jnp.dot(p3_bf[:, oi:oi + 1, oj:oj + 1, :].reshape(B, C3),
                             fw1[k0:k0 + C3, :],
                             preferred_element_type=jnp.float32)

    h = jnp.maximum(h + fb1[...], 0.0)
    h = jnp.maximum(jnp.dot(h.astype(jnp.bfloat16), fw2[...],
                            preferred_element_type=jnp.float32) + fb2[...], 0.0)
    h = jnp.maximum(jnp.dot(h.astype(jnp.bfloat16), fw3[...],
                            preferred_element_type=jnp.float32) + fb3[...], 0.0)
    logits = jnp.dot(h.astype(jnp.bfloat16), fw4[...],
                     preferred_element_type=jnp.float32) + fb4[...]
    o_ref[...] = logits.reshape(o_ref.shape).astype(o_ref.dtype)


# ----------------------------------------------------------------------------
# Batch-tile / VMEM sizing helpers (generation-aware)
# ----------------------------------------------------------------------------
def _vmem_capacity_bytes():
    try:
        return int(pltpu.get_tpu_info().vmem_capacity_bytes)
    except Exception:
        return 64 * 1024 * 1024          # conservative: v7x per-TensorCore VMEM


def _pick_batch_tile(n, h, w, budget):
    """Largest batch tile whose *lane-padded* per-step footprint fits `budget`,
    capped so the grid still has >= 2 steps (keeps both v7x TensorCores busy)."""
    lane = 128
    per_img = (
        2 * h * w * lane * 2                          # im2col input block (bf16, x2 buffers)
        + (h // 2 + 2) * (w // 2 + 2) * lane * 4      # pad2 scratch (f32, lane-padded)
        + (h // 4 + 2) * (w // 4 + 2) * lane * 4      # pad3 scratch (f32, lane-padded)
        + 4 * h * w * lane * 4                        # headroom for live f32 intermediates
    )
    bt = max(1, min(128, budget // per_img))
    if n >= 2:
        bt = min(bt, max(1, n // 2))                  # >= 2 grid steps for megacore
    return int(max(1, min(bt, n)))


# ----------------------------------------------------------------------------
# Wrapper: one pallas_call for the whole network.
# ----------------------------------------------------------------------------
def cnn_forward(x_nchw, params):
    conv_params, fc_params = params
    (cw1, cb1), (cw2, cb2), (cw3, cb3) = conv_params
    (fw1, fb1), (fw2, fb2), (fw3, fb3), (fw4, fb4) = fc_params

    n, cin, h, w = x_nchw.shape
    assert h % 8 == 0 and w % 8 == 0, "three 2x2 max-pools need H, W % 8 == 0"
    num_classes = fw4.shape[1]
    c1 = cw1.shape[1]          # conv1 out channels (32)  -> pad2 scratch depth
    c2 = cw2.shape[2]          # conv2 out channels (64)  -> pad3 scratch depth

    # ---- boundary glue (one-time XLA work per call) -------------------------
    # NCHW -> NHWC, bf16, and im2col of the *first* conv: with Cin=3 the input
    # is hopelessly lane-sparse on the 128-lane axis, so hand the kernel a
    # (n, h, w, 27) patch tensor and conv1 becomes one fat matmul.
    xt = jnp.transpose(x_nchw, (0, 2, 3, 1)).astype(jnp.bfloat16)
    xp = jnp.pad(xt, ((0, 0), (1, 1), (1, 1), (0, 0)))
    x_i2c = jnp.concatenate(
        [xp[:, dh:dh + h, dw:dw + w, :] for dh in range(3) for dw in range(3)],
        axis=-1)                                                  # (n, h, w, 9*cin)

    # ---- batch-tile selection (lane-padded VMEM budget, megacore aware) -----
    vmem_cap = _vmem_capacity_bytes()                 # 64 MiB v7x, 128 MiB v5e/v6e
    vmem_limit = max(32 * 1024 * 1024,
                     min(vmem_cap - 2 * 1024 * 1024, 120 * 1024 * 1024))
    bt = _pick_batch_tile(n, h, w, budget=vmem_limit // 2)

    n_pad = pl.cdiv(n, bt) * bt
    if n_pad != n:                                    # non-divisor batches: pad
        x_i2c = jnp.pad(x_i2c, ((0, n_pad - n), (0, 0), (0, 0), (0, 0)))
    n_tiles = n_pad // bt

    weights = (cw1, cb1, cw2, cb2, cw3, cb3,
               fw1, fb1, fw2, fb2, fw3, fb3, fw4, fb4)

    def _whole(arr):   # constant block index: weight stays VMEM-resident
        nd = arr.ndim
        return pl.BlockSpec(arr.shape, lambda i: (0,) * nd)

    grid_spec = pltpu.PrefetchScalarGridSpec(
        num_scalar_prefetch=0,
        grid=(n_tiles,),
        in_specs=[pl.BlockSpec((bt, h, w, 9 * cin), lambda i: (i, 0, 0, 0))]
                 + [_whole(a) for a in weights],
        # 3D output so the per-tile block equals full trailing dims for any bt.
        out_specs=pl.BlockSpec((1, bt, num_classes), lambda i: (i, 0, 0)),
        scratch_shapes=[
            pltpu.VMEM((bt, h // 2 + 2, w // 2 + 2, c1), jnp.float32),   # pad2
            pltpu.VMEM((bt, h // 4 + 2, w // 4 + 2, c2), jnp.float32),   # pad3
        ],
    )
    out = pl.pallas_call(
        _cnn_fused_kernel,
        out_shape=jax.ShapeDtypeStruct((n_tiles, bt, num_classes), jnp.float32),
        grid_spec=grid_spec,
        compiler_params=pltpu.CompilerParams(
            dimension_semantics=("parallel",),
            vmem_limit_bytes=int(vmem_limit)),
    )(x_i2c, *weights)
    return out.reshape(n_pad, num_classes)[:n]


# ----------------------------------------------------------------------------
# Parameter init (deterministic, synthetic) + one-time layout preparation.
# ----------------------------------------------------------------------------
def init_params(key, img_hw, num_classes):
    h, w = img_hw
    conv_params = []
    for cin, cout in CONV_CHANNELS:
        key, k1 = jax.random.split(key)
        scale = 1.0 / jnp.sqrt(3.0 * 3.0 * cin)
        # HWIO layout.  (Real PyTorch OIHW weights would need .transpose(2,3,1,0).)
        wgt = jax.random.normal(k1, (3, 3, cin, cout), jnp.float32) * scale
        conv_params.append((wgt, jnp.zeros((cout,), jnp.float32)))

    feat = CONV_CHANNELS[-1][1] * (h // 8) * (w // 8)
    fc_dims = [(feat, NEURONS), (NEURONS, NEURONS),
               (NEURONS, NEURONS), (NEURONS, num_classes)]
    fc_params = []
    for fin, fout in fc_dims:
        key, k1 = jax.random.split(key)
        scale = 1.0 / jnp.sqrt(float(fin))
        wgt = jax.random.normal(k1, (fin, fout), jnp.float32) * scale
        fc_params.append((wgt, jnp.zeros((fout,), jnp.float32)))
    return conv_params, fc_params


def prepare_params(params, img_hw):
    """One-time layout prep for the kernel:
      * conv1 weight  -> (27, 32)      rows ordered (dh, dw, cin)  [matches im2col]
      * conv2/3 weight-> (3, 3*Cin, C) rows per dh ordered (dw, cin)
      * fc1 weight    -> (H8*W8*C, N)  rows ordered (oi, oj, c)    [folds torch
                                        (C,H,W) flatten into the weight]
      * all matmul weights bf16, biases (1, C) f32."""
    h, w = img_hw
    h8, w8 = h // 8, w // 8
    c3 = CONV_CHANNELS[-1][1]
    conv_params, fc_params = params

    conv_prep = []
    for idx, (wgt, b) in enumerate(conv_params):
        cin, cout = wgt.shape[2], wgt.shape[3]
        if idx == 0:
            wk = wgt.reshape(9 * cin, cout)          # (27, 32)
        else:
            wk = wgt.reshape(3, 3 * cin, cout)       # (3, 3*Cin, Cout)
        conv_prep.append((wk.astype(jnp.bfloat16), b.reshape(1, -1)))

    (w1, b1) = fc_params[0]
    w1k = (w1.reshape(c3, h8, w8, w1.shape[1])       # torch rows are (c, oi, oj)
             .transpose(1, 2, 0, 3)
             .reshape(h8 * w8 * c3, w1.shape[1])
             .astype(jnp.bfloat16))
    fc_prep = [(w1k, b1.reshape(1, -1))]
    fc_prep += [(wgt.astype(jnp.bfloat16), b.reshape(1, -1))
                for wgt, b in fc_params[1:]]
    return conv_prep, fc_prep


if __name__ == "__main__":
    # Small shapes consistent with the module: 3 input channels, 16x16 images
    # (divisible by 8 so the three max-pools work), 10 classes.  batch=8 so the
    # batch-tile / megacore path (bt=4, grid=(2,)) is actually exercised.
    batch, img_h, img_w, num_classes = 8, 16, 16, 10

    key = jax.random.PRNGKey(0)
    kx, kp = jax.random.split(key)
    x = jax.random.normal(kx, (batch, 3, img_h, img_w), jnp.float32)   # NCHW
    params = prepare_params(init_params(kp, (img_h, img_w), num_classes),
                            (img_h, img_w))

    fwd = jax.jit(cnn_forward)
    out = fwd(x, params)
    jax.block_until_ready(out)
    assert out.shape == (batch, num_classes)
    # NOTE: bf16 MXU operands with f32 accumulation -> expect ~1e-2 relative
    # tolerance vs. a pure-f32 PyTorch reference (intentional).
    print("KERNEL_OK")
</pallas_src>

<mosaic_0001>
module attributes {stable_mosaic.version = 11 : i64} {
  func.func @_cnn_fused_kernel(%arg0: i32, %arg1: memref<4x16x16x27xbf16, #tpu.memory_space<vmem>>, %arg2: memref<27x32xbf16, #tpu.memory_space<vmem>>, %arg3: memref<1x32xf32, #tpu.memory_space<vmem>>, %arg4: memref<3x96x64xbf16, #tpu.memory_space<vmem>>, %arg5: memref<1x64xf32, #tpu.memory_space<vmem>>, %arg6: memref<3x192x128xbf16, #tpu.memory_space<vmem>>, %arg7: memref<1x128xf32, #tpu.memory_space<vmem>>, %arg8: memref<512x128xbf16, #tpu.memory_space<vmem>>, %arg9: memref<1x128xf32, #tpu.memory_space<vmem>>, %arg10: memref<128x128xbf16, #tpu.memory_space<vmem>>, %arg11: memref<1x128xf32, #tpu.memory_space<vmem>>, %arg12: memref<128x128xbf16, #tpu.memory_space<vmem>>, %arg13: memref<1x128xf32, #tpu.memory_space<vmem>>, %arg14: memref<128x10xbf16, #tpu.memory_space<vmem>>, %arg15: memref<1x10xf32, #tpu.memory_space<vmem>>, %arg16: memref<1x4x10xf32, #tpu.memory_space<vmem>>, %arg17: memref<4x10x10x32xf32, #tpu.memory_space<vmem>>, %arg18: memref<4x6x6x64xf32, #tpu.memory_space<vmem>>) attributes {dimension_semantics = [#tpu.dimension_semantics<parallel>], iteration_bounds = array<i64: 2>, scalar_prefetch = 0 : i64, scratch_operands = 2 : i64, tpu.core_type = #tpu.core_type<tc>, window_params = [{transform_indices = @transform_0, window_bounds = array<i64: 4, 16, 16, 27>}, {pipeline_mode = #tpu.pipeline_mode<synchronous>, transform_indices = @transform_1, window_bounds = array<i64: 27, 32>}, {pipeline_mode = #tpu.pipeline_mode<synchronous>, transform_indices = @transform_2, window_bounds = array<i64: 1, 32>}, {pipeline_mode = #tpu.pipeline_mode<synchronous>, transform_indices = @transform_3, window_bounds = array<i64: 3, 96, 64>}, {pipeline_mode = #tpu.pipeline_mode<synchronous>, transform_indices = @transform_4, window_bounds = array<i64: 1, 64>}, {pipeline_mode = #tpu.pipeline_mode<synchronous>, transform_indices = @transform_5, window_bounds = array<i64: 3, 192, 128>}, {pipeline_mode = #tpu.pipeline_mode<synchronous>, transform_indices = @transform_6, window_bounds = array<i64: 1, 128>}, {pipeline_mode = #tpu.pipeline_mode<synchronous>, transform_indices = @transform_7, window_bounds = array<i64: 512, 128>}, {pipeline_mode = #tpu.pipeline_mode<synchronous>, transform_indices = @transform_8, window_bounds = array<i64: 1, 128>}, {pipeline_mode = #tpu.pipeline_mode<synchronous>, transform_indices = @transform_9, window_bounds = array<i64: 128, 128>}, {pipeline_mode = #tpu.pipeline_mode<synchronous>, transform_indices = @transform_10, window_bounds = array<i64: 1, 128>}, {pipeline_mode = #tpu.pipeline_mode<synchronous>, transform_indices = @transform_11, window_bounds = array<i64: 128, 128>}, {pipeline_mode = #tpu.pipeline_mode<synchronous>, transform_indices = @transform_12, window_bounds = array<i64: 1, 128>}, {pipeline_mode = #tpu.pipeline_mode<synchronous>, transform_indices = @transform_13, window_bounds = array<i64: 128, 10>}, {pipeline_mode = #tpu.pipeline_mode<synchronous>, transform_indices = @transform_14, window_bounds = array<i64: 1, 10>}, {transform_indices = @transform_15, window_bounds = array<i64: 1, 4, 10>}]} {
    %c0 = arith.constant 0 : index
    %c0_0 = arith.constant 0 : index
    %c0_1 = arith.constant 0 : index
    %c0_2 = arith.constant 0 : index
    %0 = vector.load %arg1[%c0, %c0_0, %c0_1, %c0_2] : memref<4x16x16x27xbf16, #tpu.memory_space<vmem>>, vector<4x16x16x27xbf16>
    %1 = vector.shape_cast %0 : vector<4x16x16x27xbf16> to vector<1024x27xbf16>
    %c0_3 = arith.constant 0 : index
    %c0_4 = arith.constant 0 : index
    %2 = vector.load %arg2[%c0_3, %c0_4] : memref<27x32xbf16, #tpu.memory_space<vmem>>, vector<27x32xbf16>
    %cst = arith.constant dense<0.000000e+00> : vector<1024x32xf32>
    %3 = tpu.matmul %1, %2, %cst {dimension_numbers = #tpu.dot_dimension_numbers<[1], [0], [0], [1], [0, 0, 1, 1], [], []>} : vector<1024x27xbf16>, vector<27x32xbf16>, vector<1024x32xf32> -> vector<1024x32xf32>
    %c0_5 = arith.constant 0 : index
    %c0_6 = arith.constant 0 : index
    %4 = vector.load %arg3[%c0_5, %c0_6] : memref<1x32xf32, #tpu.memory_space<vmem>>, vector<1x32xf32>
    %5 = vector.broadcast %4 : vector<1x32xf32> to vector<1024x32xf32>
    %6 = arith.addf %3, %5 : vector<1024x32xf32>
    %cst_7 = arith.constant 0.000000e+00 : f32
    %7 = vector.broadcast %cst_7 : f32 to vector<1024x32xf32>
    %8 = arith.maximumf %6, %7 : vector<1024x32xf32>
    %9 = vector.shape_cast %8 : vector<1024x32xf32> to vector<64x16x32xf32>
    %10 = vector.shape_cast %9 : vector<64x16x32xf32> to vector<32x2x16x32xf32>
    %cst_8 = arith.constant dense<0xFF800000> : vector<32x16x32xf32>
    %11 = vector.multi_reduction <maximumf>, %10, %cst_8 [1] : vector<32x2x16x32xf32> to vector<32x16x32xf32>
    %12 = vector.shape_cast %11 : vector<32x16x32xf32> to vector<32x8x2x32xf32>
    %cst_9 = arith.constant dense<0xFF800000> : vector<32x8x32xf32>
    %13 = vector.multi_reduction <maximumf>, %12, %cst_9 [2] : vector<32x8x2x32xf32> to vector<32x8x32xf32>
    %14 = vector.shape_cast %13 : vector<32x8x32xf32> to vector<4x8x8x32xf32>
    %c0_10 = arith.constant 0 : index
    %c1 = arith.constant 1 : index
    %c1_11 = arith.constant 1 : index
    %c0_12 = arith.constant 0 : index
    %15 = vector.load %arg17[%c0_10, %c1, %c1_11, %c0_12] : memref<4x10x10x32xf32, #tpu.memory_space<vmem>>, vector<4x8x8x32xf32>
    tpu.vector_store %arg17[%c0_10, %c1, %c1_11, %c0_12], %14 {strides = array<i32>} : memref<4x10x10x32xf32, #tpu.memory_space<vmem>>, vector<4x8x8x32xf32>,
    %cst_13 = arith.constant 0.000000e+00 : f32
    %16 = vector.broadcast %cst_13 : f32 to vector<4x1x10x32xf32>
    %cst_14 = arith.constant 0.000000e+00 : f32
    %17 = vector.broadcast %cst_14 : f32 to vector<4x8x1x32xf32>
    %c0_15 = arith.constant 0 : index
    %c0_16 = arith.constant 0 : index
    %c0_17 = arith.constant 0 : index
    %c0_18 = arith.constant 0 : index
    %18 = vector.load %arg17[%c0_15, %c0_16, %c0_17, %c0_18] : memref<4x10x10x32xf32, #tpu.memory_space<vmem>>, vector<4x1x10x32xf32>
    tpu.vector_store %arg17[%c0_15, %c0_16, %c0_17, %c0_18], %16 {strides = array<i32>} : memref<4x10x10x32xf32, #tpu.memory_space<vmem>>, vector<4x1x10x32xf32>,
    %c0_19 = arith.constant 0 : index
    %c9 = arith.constant 9 : index
    %c0_20 = arith.constant 0 : index
    %c0_21 = arith.constant 0 : index
    %19 = vector.load %arg17[%c0_19, %c9, %c0_20, %c0_21] : memref<4x10x10x32xf32, #tpu.memory_space<vmem>>, vector<4x1x10x32xf32>
    tpu.vector_store %arg17[%c0_19, %c9, %c0_20, %c0_21], %16 {strides = array<i32>} : memref<4x10x10x32xf32, #tpu.memory_space<vmem>>, vector<4x1x10x32xf32>,
    %c0_22 = arith.constant 0 : index
    %c1_23 = arith.constant 1 : index
    %c0_24 = arith.constant 0 : index
    %c0_25 = arith.constant 0 : index
    %20 = vector.load %arg17[%c0_22, %c1_23, %c0_24, %c0_25] : memref<4x10x10x32xf32, #tpu.memory_space<vmem>>, vector<4x8x1x32xf32>
    tpu.vector_store %arg17[%c0_22, %c1_23, %c0_24, %c0_25], %17 {strides = array<i32>} : memref<4x10x10x32xf32, #tpu.memory_space<vmem>>, vector<4x8x1x32xf32>,
    %c0_26 = arith.constant 0 : index
    %c1_27 = arith.constant 1 : index
    %c9_28 = arith.constant 9 : index
    %c0_29 = arith.constant 0 : index
    %21 = vector.load %arg17[%c0_26, %c1_27, %c9_28, %c0_29] : memref<4x10x10x32xf32, #tpu.memory_space<vmem>>, vector<4x8x1x32xf32>
    tpu.vector_store %arg17[%c0_26, %c1_27, %c9_28, %c0_29], %17 {strides = array<i32>} : memref<4x10x10x32xf32, #tpu.memory_space<vmem>>, vector<4x8x1x32xf32>,
    %cst_30 = arith.constant 0.000000e+00 : f32
    %22 = vector.broadcast %cst_30 : f32 to vector<256x64xf32>
    %c0_31 = arith.constant 0 : index
    %c0_32 = arith.constant 0 : index
    %c0_33 = arith.constant 0 : index
    %c0_34 = arith.constant 0 : index
    %23 = vector.load %arg17[%c0_31, %c0_32, %c0_33, %c0_34] : memref<4x10x10x32xf32, #tpu.memory_space<vmem>>, vector<4x8x8x32xf32>
    %24 = vector.shape_cast %23 : vector<4x8x8x32xf32> to vector<256x32xf32>
    %c0_35 = arith.constant 0 : index
    %c0_36 = arith.constant 0 : index
    %c1_37 = arith.constant 1 : index
    %c0_38 = arith.constant 0 : index
    %25 = vector.load %arg17[%c0_35, %c0_36, %c1_37, %c0_38] : memref<4x10x10x32xf32, #tpu.memory_space<vmem>>, vector<4x8x8x32xf32>
    %26 = vector.shape_cast %25 : vector<4x8x8x32xf32> to vector<256x32xf32>
    %c0_39 = arith.constant 0 : index
    %c0_40 = arith.constant 0 : index
    %c2 = arith.constant 2 : index
    %c0_41 = arith.constant 0 : index
    %27 = vector.load %arg17[%c0_39, %c0_40, %c2, %c0_41] : memref<4x10x10x32xf32, #tpu.memory_space<vmem>>, vector<4x8x8x32xf32>
    %28 = vector.shape_cast %27 : vector<4x8x8x32xf32> to vector<256x32xf32>
    %29 = tpu.concatenate %24, %26, %28 in 1 : vector<256x32xf32>, vector<256x32xf32>, vector<256x32xf32> -> vector<256x96xf32>
    %30 = arith.truncf %29 : vector<256x96xf32> to vector<256x96xbf16>
    %c0_42 = arith.constant 0 : index
    %c0_43 = arith.constant 0 : index
    %c0_44 = arith.constant 0 : index
    %31 = vector.load %arg4[%c0_42, %c0_43, %c0_44] : memref<3x96x64xbf16, #tpu.memory_space<vmem>>, vector<1x96x64xbf16>
    %32 = vector.shape_cast %31 : vector<1x96x64xbf16> to vector<96x64xbf16>
    %cst_45 = arith.constant dense<0.000000e+00> : vector<256x64xf32>
    %33 = tpu.matmul %30, %32, %cst_45 {dimension_numbers = #tpu.dot_dimension_numbers<[1], [0], [0], [1], [0, 0, 1, 1], [], []>} : vector<256x96xbf16>, vector<96x64xbf16>, vector<256x64xf32> -> vector<256x64xf32>
    %34 = arith.addf %22, %33 : vector<256x64xf32>
    %c0_46 = arith.constant 0 : index
    %c1_47 = arith.constant 1 : index
    %c0_48 = arith.constant 0 : index
    %c0_49 = arith.constant 0 : index
    %35 = vector.load %arg17[%c0_46, %c1_47, %c0_48, %c0_49] : memref<4x10x10x32xf32, #tpu.memory_space<vmem>>, vector<4x8x8x32xf32>
    %36 = vector.shape_cast %35 : vector<4x8x8x32xf32> to vector<256x32xf32>
    %c0_50 = arith.constant 0 : index
    %c1_51 = arith.constant 1 : index
    %c1_52 = arith.constant 1 : index
    %c0_53 = arith.constant 0 : index
    %37 = vector.load %arg17[%c0_50, %c1_51, %c1_52, %c0_53] : memref<4x10x10x32xf32, #tpu.memory_space<vmem>>, vector<4x8x8x32xf32>
    %38 = vector.shape_cast %37 : vector<4x8x8x32xf32> to vector<256x32xf32>
    %c0_54 = arith.constant 0 : index
    %c1_55 = arith.constant 1 : index
    %c2_56 = arith.constant 2 : index
    %c0_57 = arith.constant 0 : index
    %39 = vector.load %arg17[%c0_54, %c1_55, %c2_56, %c0_57] : memref<4x10x10x32xf32, #tpu.memory_space<vmem>>, vector<4x8x8x32xf32>
    %40 = vector.shape_cast %39 : vector<4x8x8x32xf32> to vector<256x32xf32>
    %41 = tpu.concatenate %36, %38, %40 in 1 : vector<256x32xf32>, vector<256x32xf32>, vector<256x32xf32> -> vector<256x96xf32>
    %42 = arith.truncf %41 : vector<256x96xf32> to vector<256x96xbf16>
    %c1_58 = arith.constant 1 : index
    %c0_59 = arith.constant 0 : index
    %c0_60 = arith.constant 0 : index
    %43 = vector.load %arg4[%c1_58, %c0_59, %c0_60] : memref<3x96x64xbf16, #tpu.memory_space<vmem>>, vector<1x96x64xbf16>
    %44 = vector.shape_cast %43 : vector<1x96x64xbf16> to vector<96x64xbf16>
    %cst_61 = arith.constant dense<0.000000e+00> : vector<256x64xf32>
    %45 = tpu.matmul %42, %44, %cst_61 {dimension_numbers = #tpu.dot_dimension_numbers<[1], [0], [0], [1], [0, 0, 1, 1], [], []>} : vector<256x96xbf16>, vector<96x64xbf16>, vector<256x64xf32> -> vector<256x64xf32>
    %46 = arith.addf %34, %45 : vector<256x64xf32>
    %c0_62 = arith.constant 0 : index
    %c2_63 = arith.constant 2 : index
    %c0_64 = arith.constant 0 : index
    %c0_65 = arith.constant 0 : index
    %47 = vector.load %arg17[%c0_62, %c2_63, %c0_64, %c0_65] : memref<4x10x10x32xf32, #tpu.memory_space<vmem>>, vector<4x8x8x32xf32>
    %48 = vector.shape_cast %47 : vector<4x8x8x32xf32> to vector<256x32xf32>
    %c0_66 = arith.constant 0 : index
    %c2_67 = arith.constant 2 : index
    %c1_68 = arith.constant 1 : index
    %c0_69 = arith.constant 0 : index
    %49 = vector.load %arg17[%c0_66, %c2_67, %c1_68, %c0_69] : memref<4x10x10x32xf32, #tpu.memory_space<vmem>>, vector<4x8x8x32xf32>
    %50 = vector.shape_cast %49 : vector<4x8x8x32xf32> to vector<256x32xf32>
    %c0_70 = arith.constant 0 : index
    %c2_71 = arith.constant 2 : index
    %c2_72 = arith.constant 2 : index
    %c0_73 = arith.constant 0 : index
    %51 = vector.load %arg17[%c0_70, %c2_71, %c2_72, %c0_73] : memref<4x10x10x32xf32, #tpu.memory_space<vmem>>, vector<4x8x8x32xf32>
    %52 = vector.shape_cast %51 : vector<4x8x8x32xf32> to vector<256x32xf32>
    %53 = tpu.concatenate %48, %50, %52 in 1 : vector<256x32xf32>, vector<256x32xf32>, vector<256x32xf32> -> vector<256x96xf32>
    %54 = arith.truncf %53 : vector<256x96xf32> to vector<256x96xbf16>
    %c2_74 = arith.constant 2 : index
    %c0_75 = arith.constant 0 : index
    %c0_76 = arith.constant 0 : index
    %55 = vector.load %arg4[%c2_74, %c0_75, %c0_76] : memref<3x96x64xbf16, #tpu.memory_space<vmem>>, vector<1x96x64xbf16>
    %56 = vector.shape_cast %55 : vector<1x96x64xbf16> to vector<96x64xbf16>
    %cst_77 = arith.constant dense<0.000000e+00> : vector<256x64xf32>
    %57 = tpu.matmul %54, %56, %cst_77 {dimension_numbers = #tpu.dot_dimension_numbers<[1], [0], [0], [1], [0, 0, 1, 1], [], []>} : vector<256x96xbf16>, vector<96x64xbf16>, vector<256x64xf32> -> vector<256x64xf32>
    %58 = arith.addf %46, %57 : vector<256x64xf32>
    %c0_78 = arith.constant 0 : index
    %c0_79 = arith.constant 0 : index
    %59 = vector.load %arg5[%c0_78, %c0_79] : memref<1x64xf32, #tpu.memory_space<vmem>>, vector<1x64xf32>
    %60 = vector.broadcast %59 : vector<1x64xf32> to vector<256x64xf32>
    %61 = arith.addf %58, %60 : vector<256x64xf32>
    %cst_80 = arith.constant 0.000000e+00 : f32
    %62 = vector.broadcast %cst_80 : f32 to vector<256x64xf32>
    %63 = arith.maximumf %61, %62 : vector<256x64xf32>
    %64 = vector.shape_cast %63 : vector<256x64xf32> to vector<32x8x64xf32>
    %65 = vector.shape_cast %64 : vector<32x8x64xf32> to vector<16x2x8x64xf32>
    %cst_81 = arith.constant dense<0xFF800000> : vector<16x8x64xf32>
    %66 = vector.multi_reduction <maximumf>, %65, %cst_81 [1] : vector<16x2x8x64xf32> to vector<16x8x64xf32>
    %67 = vector.shape_cast %66 : vector<16x8x64xf32> to vector<16x4x2x64xf32>
    %cst_82 = arith.constant dense<0xFF800000> : vector<16x4x64xf32>
    %68 = vector.multi_reduction <maximumf>, %67, %cst_82 [2] : vector<16x4x2x64xf32> to vector<16x4x64xf32>
    %69 = vector.shape_cast %68 : vector<16x4x64xf32> to vector<4x4x4x64xf32>
    %c0_83 = arith.constant 0 : index
    %c1_84 = arith.constant 1 : index
    %c1_85 = arith.constant 1 : index
    %c0_86 = arith.constant 0 : index
    %70 = vector.load %arg18[%c0_83, %c1_84, %c1_85, %c0_86] : memref<4x6x6x64xf32, #tpu.memory_space<vmem>>, vector<4x4x4x64xf32>
    tpu.vector_store %arg18[%c0_83, %c1_84, %c1_85, %c0_86], %69 {strides = array<i32>} : memref<4x6x6x64xf32, #tpu.memory_space<vmem>>, vector<4x4x4x64xf32>,
    %cst_87 = arith.constant 0.000000e+00 : f32
    %71 = vector.broadcast %cst_87 : f32 to vector<4x1x6x64xf32>
    %cst_88 = arith.constant 0.000000e+00 : f32
    %72 = vector.broadcast %cst_88 : f32 to vector<4x4x1x64xf32>
    %c0_89 = arith.constant 0 : index
    %c0_90 = arith.constant 0 : index
    %c0_91 = arith.constant 0 : index
    %c0_92 = arith.constant 0 : index
    %73 = vector.load %arg18[%c0_89, %c0_90, %c0_91, %c0_92] : memref<4x6x6x64xf32, #tpu.memory_space<vmem>>, vector<4x1x6x64xf32>
    tpu.vector_store %arg18[%c0_89, %c0_90, %c0_91, %c0_92], %71 {strides = array<i32>} : memref<4x6x6x64xf32, #tpu.memory_space<vmem>>, vector<4x1x6x64xf32>,
    %c0_93 = arith.constant 0 : index
    %c5 = arith.constant 5 : index
    %c0_94 = arith.constant 0 : index
    %c0_95 = arith.constant 0 : index
    %74 = vector.load %arg18[%c0_93, %c5, %c0_94, %c0_95] : memref<4x6x6x64xf32, #tpu.memory_space<vmem>>, vector<4x1x6x64xf32>
    tpu.vector_store %arg18[%c0_93, %c5, %c0_94, %c0_95], %71 {strides = array<i32>} : memref<4x6x6x64xf32, #tpu.memory_space<vmem>>, vector<4x1x6x64xf32>,
    %c0_96 = arith.constant 0 : index
    %c1_97 = arith.constant 1 : index
    %c0_98 = arith.constant 0 : index
    %c0_99 = arith.constant 0 : index
    %75 = vector.load %arg18[%c0_96, %c1_97, %c0_98, %c0_99] : memref<4x6x6x64xf32, #tpu.memory_space<vmem>>, vector<4x4x1x64xf32>
    tpu.vector_store %arg18[%c0_96, %c1_97, %c0_98, %c0_99], %72 {strides = array<i32>} : memref<4x6x6x64xf32, #tpu.memory_space<vmem>>, vector<4x4x1x64xf32>,
    %c0_100 = arith.constant 0 : index
    %c1_101 = arith.constant 1 : index
    %c5_102 = arith.constant 5 : index
    %c0_103 = arith.constant 0 : index
    %76 = vector.load %arg18[%c0_100, %c1_101, %c5_102, %c0_103] : memref<4x6x6x64xf32, #tpu.memory_space<vmem>>, vector<4x4x1x64xf32>
    tpu.vector_store %arg18[%c0_100, %c1_101, %c5_102, %c0_103], %72 {strides = array<i32>} : memref<4x6x6x64xf32, #tpu.memory_space<vmem>>, vector<4x4x1x64xf32>,
    %cst_104 = arith.constant 0.000000e+00 : f32
    %77 = vector.broadcast %cst_104 : f32 to vector<64x128xf32>
    %c0_105 = arith.constant 0 : index
    %c0_106 = arith.constant 0 : index
    %c0_107 = arith.constant 0 : index
    %c0_108 = arith.constant 0 : index
    %78 = vector.load %arg18[%c0_105, %c0_106, %c0_107, %c0_108] : memref<4x6x6x64xf32, #tpu.memory_space<vmem>>, vector<4x4x4x64xf32>
    %79 = vector.shape_cast %78 : vector<4x4x4x64xf32> to vector<64x64xf32>
    %c0_109 = arith.constant 0 : index
    %c0_110 = arith.constant 0 : index
    %c1_111 = arith.constant 1 : index
    %c0_112 = arith.constant 0 : index
    %80 = vector.load %arg18[%c0_109, %c0_110, %c1_111, %c0_112] : memref<4x6x6x64xf32, #tpu.memory_space<vmem>>, vector<4x4x4x64xf32>
    %81 = vector.shape_cast %80 : vector<4x4x4x64xf32> to vector<64x64xf32>
    %c0_113 = arith.constant 0 : index
    %c0_114 = arith.constant 0 : index
    %c2_115 = arith.constant 2 : index
    %c0_116 = arith.constant 0 : index
    %82 = vector.load %arg18[%c0_113, %c0_114, %c2_115, %c0_116] : memref<4x6x6x64xf32, #tpu.memory_space<vmem>>, vector<4x4x4x64xf32>
    %83 = vector.shape_cast %82 : vector<4x4x4x64xf32> to vector<64x64xf32>
    %84 = tpu.concatenate %79, %81, %83 in 1 : vector<64x64xf32>, vector<64x64xf32>, vector<64x64xf32> -> vector<64x192xf32>
    %85 = arith.truncf %84 : vector<64x192xf32> to vector<64x192xbf16>
    %c0_117 = arith.constant 0 : index
    %c0_118 = arith.constant 0 : index
    %c0_119 = arith.constant 0 : index
    %86 = vector.load %arg6[%c0_117, %c0_118, %c0_119] : memref<3x192x128xbf16, #tpu.memory_space<vmem>>, vector<1x192x128xbf16>
    %87 = vector.shape_cast %86 : vector<1x192x128xbf16> to vector<192x128xbf16>
    %cst_120 = arith.constant dense<0.000000e+00> : vector<64x128xf32>
    %88 = tpu.matmul %85, %87, %cst_120 {dimension_numbers = #tpu.dot_dimension_numbers<[1], [0], [0], [1], [0, 0, 1, 1], [], []>} : vector<64x192xbf16>, vector<192x128xbf16>, vector<64x128xf32> -> vector<64x128xf32>
    %89 = arith.addf %77, %88 : vector<64x128xf32>
    %c0_121 = arith.constant 0 : index
    %c1_122 = arith.constant 1 : index
    %c0_123 = arith.constant 0 : index
    %c0_124 = arith.constant 0 : index
    %90 = vector.load %arg18[%c0_121, %c1_122, %c0_123, %c0_124] : memref<4x6x6x64xf32, #tpu.memory_space<vmem>>, vector<4x4x4x64xf32>
    %91 = vector.shape_cast %90 : vector<4x4x4x64xf32> to vector<64x64xf32>
    %c0_125 = arith.constant 0 : index
    %c1_126 = arith.constant 1 : index
    %c1_127 = arith.constant 1 : index
    %c0_128 = arith.constant 0 : index
    %92 = vector.load %arg18[%c0_125, %c1_126, %c1_127, %c0_128] : memref<4x6x6x64xf32, #tpu.memory_space<vmem>>, vector<4x4x4x64xf32>
    %93 = vector.shape_cast %92 : vector<4x4x4x64xf32> to vector<64x64xf32>
    %c0_129 = arith.constant 0 : index
    %c1_130 = arith.constant 1 : index
    %c2_131 = arith.constant 2 : index
    %c0_132 = arith.constant 0 : index
    %94 = vector.load %arg18[%c0_129, %c1_130, %c2_131, %c0_132] : memref<4x6x6x64xf32, #tpu.memory_space<vmem>>, vector<4x4x4x64xf32>
    %95 = vector.shape_cast %94 : vector<4x4x4x64xf32> to vector<64x64xf32>
    %96 = tpu.concatenate %91, %93, %95 in 1 : vector<64x64xf32>, vector<64x64xf32>, vector<64x64xf32> -> vector<64x192xf32>
    %97 = arith.truncf %96 : vector<64x192xf32> to vector<64x192xbf16>
    %c1_133 = arith.constant 1 : index
    %c0_134 = arith.constant 0 : index
    %c0_135 = arith.constant 0 : index
    %98 = vector.load %arg6[%c1_133, %c0_134, %c0_135] : memref<3x192x128xbf16, #tpu.memory_space<vmem>>, vector<1x192x128xbf16>
    %99 = vector.shape_cast %98 : vector<1x192x128xbf16> to vector<192x128xbf16>
    %cst_136 = arith.constant dense<0.000000e+00> : vector<64x128xf32>
    %100 = tpu.matmul %97, %99, %cst_136 {dimension_numbers = #tpu.dot_dimension_numbers<[1], [0], [0], [1], [0, 0, 1, 1], [], []>} : vector<64x192xbf16>, vector<192x128xbf16>, vector<64x128xf32> -> vector<64x128xf32>
    %101 = arith.addf %89, %100 : vector<64x128xf32>
    %c0_137 = arith.constant 0 : index
    %c2_138 = arith.constant 2 : index
    %c0_139 = arith.constant 0 : index
    %c0_140 = arith.constant 0 : index
    %102 = vector.load %arg18[%c0_137, %c2_138, %c0_139, %c0_140] : memref<4x6x6x64xf32, #tpu.memory_space<vmem>>, vector<4x4x4x64xf32>
    %103 = vector.shape_cast %102 : vector<4x4x4x64xf32> to vector<64x64xf32>
    %c0_141 = arith.constant 0 : index
    %c2_142 = arith.constant 2 : index
    %c1_143 = arith.constant 1 : index
    %c0_144 = arith.constant 0 : index
    %104 = vector.load %arg18[%c0_141, %c2_142, %c1_143, %c0_144] : memref<4x6x6x64xf32, #tpu.memory_space<vmem>>, vector<4x4x4x64xf32>
    %105 = vector.shape_cast %104 : vector<4x4x4x64xf32> to vector<64x64xf32>
    %c0_145 = arith.constant 0 : index
    %c2_146 = arith.constant 2 : index
    %c2_147 = arith.constant 2 : index
    %c0_148 = arith.constant 0 : index
    %106 = vector.load %arg18[%c0_145, %c2_146, %c2_147, %c0_148] : memref<4x6x6x64xf32, #tpu.memory_space<vmem>>, vector<4x4x4x64xf32>
    %107 = vector.shape_cast %106 : vector<4x4x4x64xf32> to vector<64x64xf32>
    %108 = tpu.concatenate %103, %105, %107 in 1 : vector<64x64xf32>, vector<64x64xf32>, vector<64x64xf32> -> vector<64x192xf32>
    %109 = arith.truncf %108 : vector<64x192xf32> to vector<64x192xbf16>
    %c2_149 = arith.constant 2 : index
    %c0_150 = arith.constant 0 : index
    %c0_151 = arith.constant 0 : index
    %110 = vector.load %arg6[%c2_149, %c0_150, %c0_151] : memref<3x192x128xbf16, #tpu.memory_space<vmem>>, vector<1x192x128xbf16>
    %111 = vector.shape_cast %110 : vector<1x192x128xbf16> to vector<192x128xbf16>
    %cst_152 = arith.constant dense<0.000000e+00> : vector<64x128xf32>
    %112 = tpu.matmul %109, %111, %cst_152 {dimension_numbers = #tpu.dot_dimension_numbers<[1], [0], [0], [1], [0, 0, 1, 1], [], []>} : vector<64x192xbf16>, vector<192x128xbf16>, vector<64x128xf32> -> vector<64x128xf32>
    %113 = arith.addf %101, %112 : vector<64x128xf32>
    %c0_153 = arith.constant 0 : index
    %c0_154 = arith.constant 0 : index
    %114 = vector.load %arg7[%c0_153, %c0_154] : memref<1x128xf32, #tpu.memory_space<vmem>>, vector<1x128xf32>
    %115 = vector.broadcast %114 : vector<1x128xf32> to vector<64x128xf32>
    %116 = arith.addf %113, %115 : vector<64x128xf32>
    %cst_155 = arith.constant 0.000000e+00 : f32
    %117 = vector.broadcast %cst_155 : f32 to vector<64x128xf32>
    %118 = arith.maximumf %116, %117 : vector<64x128xf32>
    %119 = vector.shape_cast %118 : vector<64x128xf32> to vector<16x4x128xf32>
    %120 = vector.shape_cast %119 : vector<16x4x128xf32> to vector<8x2x4x128xf32>
    %cst_156 = arith.constant dense<0xFF800000> : vector<8x4x128xf32>
    %121 = vector.multi_reduction <maximumf>, %120, %cst_156 [1] : vector<8x2x4x128xf32> to vector<8x4x128xf32>
    %122 = vector.shape_cast %121 : vector<8x4x128xf32> to vector<8x2x2x128xf32>
    %cst_157 = arith.constant dense<0xFF800000> : vector<8x2x128xf32>
    %123 = vector.multi_reduction <maximumf>, %122, %cst_157 [2] : vector<8x2x2x128xf32> to vector<8x2x128xf32>
    %124 = vector.shape_cast %123 : vector<8x2x128xf32> to vector<4x2x2x128xf32>
    %125 = arith.truncf %124 : vector<4x2x2x128xf32> to vector<4x2x2x128xbf16>
    %126 = vector.extract_strided_slice %125 {offsets = [0, 0, 0, 0], sizes = [4, 1, 1, 128], strides = [1, 1, 1, 1]} : vector<4x2x2x128xbf16> to vector<4x1x1x128xbf16>
    %127 = vector.shape_cast %126 : vector<4x1x1x128xbf16> to vector<4x128xbf16>
    %128 = vector.extract_strided_slice %125 {offsets = [0, 0, 1, 0], sizes = [4, 1, 1, 128], strides = [1, 1, 1, 1]} : vector<4x2x2x128xbf16> to vector<4x1x1x128xbf16>
    %129 = vector.shape_cast %128 : vector<4x1x1x128xbf16> to vector<4x128xbf16>
    %130 = vector.extract_strided_slice %125 {offsets = [0, 1, 0, 0], sizes = [4, 1, 1, 128], strides = [1, 1, 1, 1]} : vector<4x2x2x128xbf16> to vector<4x1x1x128xbf16>
    %131 = vector.shape_cast %130 : vector<4x1x1x128xbf16> to vector<4x128xbf16>
    %132 = vector.extract_strided_slice %125 {offsets = [0, 1, 1, 0], sizes = [4, 1, 1, 128], strides = [1, 1, 1, 1]} : vector<4x2x2x128xbf16> to vector<4x1x1x128xbf16>
    %133 = vector.shape_cast %132 : vector<4x1x1x128xbf16> to vector<4x128xbf16>
    %134 = tpu.concatenate %127, %129, %131, %133 in 1 : vector<4x128xbf16>, vector<4x128xbf16>, vector<4x128xbf16>, vector<4x128xbf16> -> vector<4x512xbf16>
    %c0_158 = arith.constant 0 : index
    %c0_159 = arith.constant 0 : index
    %135 = vector.load %arg8[%c0_158, %c0_159] : memref<512x128xbf16, #tpu.memory_space<vmem>>, vector<512x128xbf16>
    %cst_160 = arith.constant dense<0.000000e+00> : vector<4x128xf32>
    %136 = tpu.matmul %134, %135, %cst_160 {dimension_numbers = #tpu.dot_dimension_numbers<[1], [0], [0], [1], [0, 0, 1, 1], [], []>} : vector<4x512xbf16>, vector<512x128xbf16>, vector<4x128xf32> -> vector<4x128xf32>
    %c0_161 = arith.constant 0 : index
    %c0_162 = arith.constant 0 : index
    %137 = vector.load %arg9[%c0_161, %c0_162] : memref<1x128xf32, #tpu.memory_space<vmem>>, vector<1x128xf32>
    %138 = vector.broadcast %137 : vector<1x128xf32> to vector<4x128xf32>
    %139 = arith.addf %136, %138 : vector<4x128xf32>
    %cst_163 = arith.constant 0.000000e+00 : f32
    %140 = vector.broadcast %cst_163 : f32 to vector<4x128xf32>
    %141 = arith.maximumf %139, %140 : vector<4x128xf32>
    %142 = arith.truncf %141 : vector<4x128xf32> to vector<4x128xbf16>
    %c0_164 = arith.constant 0 : index
    %c0_165 = arith.constant 0 : index
    %143 = vector.load %arg10[%c0_164, %c0_165] : memref<128x128xbf16, #tpu.memory_space<vmem>>, vector<128x128xbf16>
    %cst_166 = arith.constant dense<0.000000e+00> : vector<4x128xf32>
    %144 = tpu.matmul %142, %143, %cst_166 {dimension_numbers = #tpu.dot_dimension_numbers<[1], [0], [0], [1], [0, 0, 1, 1], [], []>} : vector<4x128xbf16>, vector<128x128xbf16>, vector<4x128xf32> -> vector<4x128xf32>
    %c0_167 = arith.constant 0 : index
    %c0_168 = arith.constant 0 : index
    %145 = vector.load %arg11[%c0_167, %c0_168] : memref<1x128xf32, #tpu.memory_space<vmem>>, vector<1x128xf32>
    %146 = vector.broadcast %145 : vector<1x128xf32> to vector<4x128xf32>
    %147 = arith.addf %144, %146 : vector<4x128xf32>
    %cst_169 = arith.constant 0.000000e+00 : f32
    %148 = vector.broadcast %cst_169 : f32 to vector<4x128xf32>
    %149 = arith.maximumf %147, %148 : vector<4x128xf32>
    %150 = arith.truncf %149 : vector<4x128xf32> to vector<4x128xbf16>
    %c0_170 = arith.constant 0 : index
    %c0_171 = arith.constant 0 : index
    %151 = vector.load %arg12[%c0_170, %c0_171] : memref<128x128xbf16, #tpu.memory_space<vmem>>, vector<128x128xbf16>
    %cst_172 = arith.constant dense<0.000000e+00> : vector<4x128xf32>
    %152 = tpu.matmul %150, %151, %cst_172 {dimension_numbers = #tpu.dot_dimension_numbers<[1], [0], [0], [1], [0, 0, 1, 1], [], []>} : vector<4x128xbf16>, vector<128x128xbf16>, vector<4x128xf32> -> vector<4x128xf32>
    %c0_173 = arith.constant 0 : index
    %c0_174 = arith.constant 0 : index
    %153 = vector.load %arg13[%c0_173, %c0_174] : memref<1x128xf32, #tpu.memory_space<vmem>>, vector<1x128xf32>
    %154 = vector.broadcast %153 : vector<1x128xf32> to vector<4x128xf32>
    %155 = arith.addf %152, %154 : vector<4x128xf32>
    %cst_175 = arith.constant 0.000000e+00 : f32
    %156 = vector.broadcast %cst_175 : f32 to vector<4x128xf32>
    %157 = arith.maximumf %155, %156 : vector<4x128xf32>
    %158 = arith.truncf %157 : vector<4x128xf32> to vector<4x128xbf16>
    %c0_176 = arith.constant 0 : index
    %c0_177 = arith.constant 0 : index
    %159 = vector.load %arg14[%c0_176, %c0_177] : memref<128x10xbf16, #tpu.memory_space<vmem>>, vector<128x10xbf16>
    %cst_178 = arith.constant dense<0.000000e+00> : vector<4x10xf32>
    %160 = tpu.matmul %158, %159, %cst_178 {dimension_numbers = #tpu.dot_dimension_numbers<[1], [0], [0], [1], [0, 0, 1, 1], [], []>} : vector<4x128xbf16>, vector<128x10xbf16>, vector<4x10xf32> -> vector<4x10xf32>
    %c0_179 = arith.constant 0 : index
    %c0_180 = arith.constant 0 : index
    %161 = vector.load %arg15[%c0_179, %c0_180] : memref<1x10xf32, #tpu.memory_space<vmem>>, vector<1x10xf32>
    %162 = vector.broadcast %161 : vector<1x10xf32> to vector<4x10xf32>
    %163 = arith.addf %160, %162 : vector<4x10xf32>
    %164 = vector.shape_cast %163 : vector<4x10xf32> to vector<1x4x10xf32>
    %c0_181 = arith.constant 0 : index
    %c0_182 = arith.constant 0 : index
    %c0_183 = arith.constant 0 : index
    %165 = vector.load %arg16[%c0_181, %c0_182, %c0_183] : memref<1x4x10xf32, #tpu.memory_space<vmem>>, vector<1x4x10xf32>
    tpu.vector_store %arg16[%c0_181, %c0_182, %c0_183], %164 {strides = array<i32>} : memref<1x4x10xf32, #tpu.memory_space<vmem>>, vector<1x4x10xf32>,
    return
  }
  func.func @transform_0(%arg0: i32) -> (i32, i32, i32, i32) {
    %c0_i32 = arith.constant 0 : i32
    %c0_i32_0 = arith.constant 0 : i32
    %c0_i32_1 = arith.constant 0 : i32
    %c0_i32_2 = arith.constant 0 : i32
    return %arg0, %c0_i32, %c0_i32_0, %c0_i32_1 : i32, i32, i32, i32
  }
  func.func @transform_1(%arg0: i32) -> (i32, i32) {
    %c0_i32 = arith.constant 0 : i32
    %c0_i32_0 = arith.constant 0 : i32
    %c0_i32_1 = arith.constant 0 : i32
    return %c0_i32, %c0_i32_0 : i32, i32
  }
  func.func @transform_2(%arg0: i32) -> (i32, i32) {
    %c0_i32 = arith.constant 0 : i32
    %c0_i32_0 = arith.constant 0 : i32
    %c0_i32_1 = arith.constant 0 : i32
    return %c0_i32, %c0_i32_0 : i32, i32
  }
  func.func @transform_3(%arg0: i32) -> (i32, i32, i32) {
    %c0_i32 = arith.constant 0 : i32
    %c0_i32_0 = arith.constant 0 : i32
    %c0_i32_1 = arith.constant 0 : i32
    %c0_i32_2 = arith.constant 0 : i32
    return %c0_i32, %c0_i32_0, %c0_i32_1 : i32, i32, i32
  }
  func.func @transform_4(%arg0: i32) -> (i32, i32) {
    %c0_i32 = arith.constant 0 : i32
    %c0_i32_0 = arith.constant 0 : i32
    %c0_i32_1 = arith.constant 0 : i32
    return %c0_i32, %c0_i32_0 : i32, i32
  }
  func.func @transform_5(%arg0: i32) -> (i32, i32, i32) {
    %c0_i32 = arith.constant 0 : i32
    %c0_i32_0 = arith.constant 0 : i32
    %c0_i32_1 = arith.constant 0 : i32
    %c0_i32_2 = arith.constant 0 : i32
    return %c0_i32, %c0_i32_0, %c0_i32_1 : i32, i32, i32
  }
  func.func @transform_6(%arg0: i32) -> (i32, i32) {
    %c0_i32 = arith.constant 0 : i32
    %c0_i32_0 = arith.constant 0 : i32
    %c0_i32_1 = arith.constant 0 : i32
    return %c0_i32, %c0_i32_0 : i32, i32
  }
  func.func @transform_7(%arg0: i32) -> (i32, i32) {
    %c0_i32 = arith.constant 0 : i32
    %c0_i32_0 = arith.constant 0 : i32
    %c0_i32_1 = arith.constant 0 : i32
    return %c0_i32, %c0_i32_0 : i32, i32
  }
  func.func @transform_8(%arg0: i32) -> (i32, i32) {
    %c0_i32 = arith.constant 0 : i32
    %c0_i32_0 = arith.constant 0 : i32
    %c0_i32_1 = arith.constant 0 : i32
    return %c0_i32, %c0_i32_0 : i32, i32
  }
  func.func @transform_9(%arg0: i32) -> (i32, i32) {
    %c0_i32 = arith.constant 0 : i32
    %c0_i32_0 = arith.constant 0 : i32
    %c0_i32_1 = arith.constant 0 : i32
    return %c0_i32, %c0_i32_0 : i32, i32
  }
  func.func @transform_10(%arg0: i32) -> (i32, i32) {
    %c0_i32 = arith.constant 0 : i32
    %c0_i32_0 = arith.constant 0 : i32
    %c0_i32_1 = arith.constant 0 : i32
    return %c0_i32, %c0_i32_0 : i32, i32
  }
  func.func @transform_11(%arg0: i32) -> (i32, i32) {
    %c0_i32 = arith.constant 0 : i32
    %c0_i32_0 = arith.constant 0 : i32
    %c0_i32_1 = arith.constant 0 : i32
    return %c0_i32, %c0_i32_0 : i32, i32
  }
  func.func @transform_12(%arg0: i32) -> (i32, i32) {
    %c0_i32 = arith.constant 0 : i32
    %c0_i32_0 = arith.constant 0 : i32
    %c0_i32_1 = arith.constant 0 : i32
    return %c0_i32, %c0_i32_0 : i32, i32
  }
  func.func @transform_13(%arg0: i32) -> (i32, i32) {
    %c0_i32 = arith.constant 0 : i32
    %c0_i32_0 = arith.constant 0 : i32
    %c0_i32_1 = arith.constant 0 : i32
    return %c0_i32, %c0_i32_0 : i32, i32
  }
  func.func @transform_14(%arg0: i32) -> (i32, i32) {
    %c0_i32 = arith.constant 0 : i32
    %c0_i32_0 = arith.constant 0 : i32
    %c0_i32_1 = arith.constant 0 : i32
    return %c0_i32, %c0_i32_0 : i32, i32
  }
  func.func @transform_15(%arg0: i32) -> (i32, i32, i32) {
    %c0_i32 = arith.constant 0 : i32
    %c0_i32_0 = arith.constant 0 : i32
    %c0_i32_1 = arith.constant 0 : i32
    return %arg0, %c0_i32, %c0_i32_0 : i32, i32, i32
  }
}

</mosaic_0001>

<llo_original>
// kernel: cnn_forward.1
$region0: #{cnn_forward.1}
  #allocation0 [shape = 'u32[]', space=smem, size = 0x4, offset = 0x4, fixed_abs, tag = 'smem constant byte address 0x4 - core index']
  #allocation1 [shape = 'u32[144,128]{1,0:T(1,128)}', space=vmem, size = 0x12000, scoped, tag = 'internal scratch']
  #allocation2 [shape = 'f32[4,10,10,32]{3,2,1,0:T(8,128)}', space=vmem, size = 0x50000, scoped, tag = 'scratch operand']
  #allocation3 [shape = 'f32[4,6,6,64]{3,2,1,0:T(8,128)}', space=vmem, size = 0x18000, scoped, tag = 'scratch operand']
  %s0 = inlined_call_operand.vmem [shape: bf16[8,16,16,27], index: 0, kind: input, shape index: {}]
  %s1 = inlined_call_operand.vmem [shape: bf16[27,32], index: 1, kind: input, shape index: {}]
  %s2 = inlined_call_operand.vmem [shape: f32[1,32], index: 2, kind: input, shape index: {}]
  %s3 = inlined_call_operand.vmem [shape: bf16[3,96,64], index: 3, kind: input, shape index: {}]
  %s4 = inlined_call_operand.vmem [shape: f32[1,64], index: 4, kind: input, shape index: {}]
  %s5 = inlined_call_operand.vmem [shape: bf16[3,192,128], index: 5, kind: input, shape index: {}]
  %s6 = inlined_call_operand.vmem [shape: f32[1,128], index: 6, kind: input, shape index: {}]
  %s7 = inlined_call_operand.vmem [shape: bf16[512,128], index: 7, kind: input, shape index: {}]
  %s8 = inlined_call_operand.vmem [shape: f32[1,128], index: 8, kind: input, shape index: {}]
  %s9 = inlined_call_operand.vmem [shape: bf16[128,128], index: 9, kind: input, shape index: {}]
  %s10 = inlined_call_operand.vmem [shape: f32[1,128], index: 10, kind: input, shape index: {}]
  %s11 = inlined_call_operand.vmem [shape: bf16[128,128], index: 11, kind: input, shape index: {}]
  %s12 = inlined_call_operand.vmem [shape: f32[1,128], index: 12, kind: input, shape index: {}]
  %s13 = inlined_call_operand.vmem [shape: bf16[128,10], index: 13, kind: input, shape index: {}]
  %s14 = inlined_call_operand.vmem [shape: f32[1,10], index: 14, kind: input, shape index: {}]
  %s15 = inlined_call_operand.hbm [shape: f32[2,4,10], index: 15, kind: output, shape index: {}]
  %s16 = sld [smem:[#allocation0]]
  $region93: #{cnn_forward.1} parent=0
    _
  %s18 = ssub.s32 1, %s16
  %s19 = scalar_select 0, %s18, %s16
  $region1: #{cnn_forward.1} parent=0
    #allocation4 [shape = 'u8[4096]{0}', space=vmem, size = 0x1000, scoped, tag = 'output window, operand 0']
    #allocation5 [shape = 's32[2]{0}', space=sflag, size = 0x8, scoped, tag = 'scoped memory for cnn_forward.1']
    %20 = vsyncpa [#allocation5], 0
    %s21 = scalar_lea.sflag [#allocation5], 1
    %22 = vsyncpa %s21, 0
    loop: start=0, step=1, limit=4
    $region2: #{cnn_forward.1} parent=1 // loop_pre_header
      _
    $region3: #{cnn_forward.1} parent=1 // loop_header
      %s24 = sphi 0, %s28
      %p25 = scmp.ge.s32.totalorder %s24, 4
      %s34 = sphi 0, %s36
      %s37 = sphi 0, %s34
      %s38 = sphi 0, %s37
      %s54 = sphi 0, %s38
      %s58 = sphi 0, %s58
      %s60 = sphi 0, %s58
      %s61 = sphi 0, %s60
      %s75 = sphi 0, %s61
      %s79 = sphi 0, %s79
      %s81 = sphi 0, %s79
      %s82 = sphi 0, %s81
      %s96 = sphi 0, %s82
      %s100 = sphi 0, %s100
      %s102 = sphi 0, %s100
      %s103 = sphi 0, %s102
      %s117 = sphi 0, %s103
      %s121 = sphi 0, %s121
      %s123 = sphi 0, %s121
      %s124 = sphi 0, %s123
      %s138 = sphi 0, %s124
      %s142 = sphi 0, %s142
      %s144 = sphi 0, %s142
      %s145 = sphi 0, %s144
      %s159 = sphi 0, %s145
      %s163 = sphi 0, %s163
      %s165 = sphi 0, %s163
      %s166 = sphi 0, %s165
      %s180 = sphi 0, %s166
      %s184 = sphi 0, %s184
      %s186 = sphi 0, %s184
      %s187 = sphi 0, %s186
      %s201 = sphi 0, %s187
      %s205 = sphi 0, %s205
      %s207 = sphi 0, %s205
      %s208 = sphi 0, %s207
      %s222 = sphi 0, %s208
      %s226 = sphi 0, %s226
      %s228 = sphi 0, %s226
      %s229 = sphi 0, %s228
      %s243 = sphi 0, %s229
      %s247 = sphi 0, %s247
      %s249 = sphi 0, %s247
      %s250 = sphi 0, %s249
      %s264 = sphi 0, %s250
      %s268 = sphi 0, %s268
      %s270 = sphi 0, %s268
      %s271 = sphi 0, %s270
      %s285 = sphi 0, %s271
      %s289 = sphi 0, %s289
      %s291 = sphi 0, %s289
      %s292 = sphi 0, %s291
      %s306 = sphi 0, %s292
      %s310 = sphi 0, %s310
      %s312 = sphi 0, %s310
      %s313 = sphi 0, %s312
      %s327 = sphi 0, %s313
      %s331 = sphi 0, %s331
      %s333 = sphi 0, %s331
      %s334 = sphi 0, %s333
      %s348 = sphi 0, %s334
      %s354 = sphi 0, %s356
      %s357 = sphi 0, %s354
      %s358 = sphi 0, %s357
      %s374 = sphi 0, %s358
    $region4: #{cnn_forward.1} parent=1 // loop_header_branch
      %27 = sbr.rel (%p25) target = $region8
    $region5: #{cnn_forward.1} parent=1 // loop_body
      %s29 = ssub.s32 %s24, 1
      %s30 = ssub.s32 %s24, 2
      %s31 = sadd.s32 %s24, 1
      %s32 = ssub.s32 %s24, %s31
      %p33 = scmp.eq.s32.totalorder %s32, 0
      %s35 = sadd.s32 %s34, 1
      %s36 = scalar_select %p33, %s34, %s35
      %p39 = pneg %p33
      %p40 = scmp.eq.s32.totalorder %s24, 1
      %p41 = por %p39, %p40
      %p42 = scmp.ne.s32.totalorder %s34, %s37
      %p43 = scmp.eq.s32.totalorder %s24, 0
      %p44 = por %p42, %p43
      %p45 = scmp.ne.s32.totalorder %s34, %s37
      %p46 = scmp.eq.s32.totalorder %s29, 1
      %p47 = por %p45, %p46
      %p48 = scmp.ne.s32.totalorder %s37, %s38
      %p49 = scmp.eq.s32.totalorder %s29, 0
      %p50 = por %p48, %p49
      %p51 = scmp.ne.s32.totalorder %s37, %s38
      %p52 = scmp.eq.s32.totalorder %s30, 1
      %p53 = por %p51, %p52
      %p55 = scmp.ne.s32.totalorder %s38, %s54
      %p56 = scmp.eq.s32.totalorder %s30, 0
      %p57 = por %p55, %p56
      %s59 = sadd.s32 %s58, 1
      %p62 = scmp.eq.s32.totalorder %s24, 1
      %p63 = scmp.ne.s32.totalorder %s58, %s60
      %p64 = scmp.eq.s32.totalorder %s24, 0
      %p65 = por %p63, %p64
      %p66 = scmp.ne.s32.totalorder %s58, %s60
      %p67 = scmp.eq.s32.totalorder %s29, 1
      %p68 = por %p66, %p67
      %p69 = scmp.ne.s32.totalorder %s60, %s61
      %p70 = scmp.eq.s32.totalorder %s29, 0
      %p71 = por %p69, %p70
      %p72 = scmp.ne.s32.totalorder %s60, %s61
      %p73 = scmp.eq.s32.totalorder %s30, 1
      %p74 = por %p72, %p73
      %p76 = scmp.ne.s32.totalorder %s61, %s75
      %p77 = scmp.eq.s32.totalorder %s30, 0
      %p78 = por %p76, %p77
      %s80 = sadd.s32 %s79, 1
      %p83 = scmp.eq.s32.totalorder %s24, 1
      %p84 = scmp.ne.s32.totalorder %s79, %s81
      %p85 = scmp.eq.s32.totalorder %s24, 0
      %p86 = por %p84, %p85
      %p87 = scmp.ne.s32.totalorder %s79, %s81
      %p88 = scmp.eq.s32.totalorder %s29, 1
      %p89 = por %p87, %p88
      %p90 = scmp.ne.s32.totalorder %s81, %s82
      %p91 = scmp.eq.s32.totalorder %s29, 0
      %p92 = por %p90, %p91
      %p93 = scmp.ne.s32.totalorder %s81, %s82
      %p94 = scmp.eq.s32.totalorder %s30, 1
      %p95 = por %p93, %p94
      %p97 = scmp.ne.s32.totalorder %s82, %s96
      %p98 = scmp.eq.s32.totalorder %s30, 0
      %p99 = por %p97, %p98
      %s101 = sadd.s32 %s100, 1
      %p104 = scmp.eq.s32.totalorder %s24, 1
      %p105 = scmp.ne.s32.totalorder %s100, %s102
      %p106 = scmp.eq.s32.totalorder %s24, 0
      %p107 = por %p105, %p106
      %p108 = scmp.ne.s32.totalorder %s100, %s102
      %p109 = scmp.eq.s32.totalorder %s29, 1
      %p110 = por %p108, %p109
      %p111 = scmp.ne.s32.totalorder %s102, %s103
      %p112 = scmp.eq.s32.totalorder %s29, 0
      %p113 = por %p111, %p112
      %p114 = scmp.ne.s32.totalorder %s102, %s103
      %p115 = scmp.eq.s32.totalorder %s30, 1
      %p116 = por %p114, %p115
      %p118 = scmp.ne.s32.totalorder %s103, %s117
      %p119 = scmp.eq.s32.totalorder %s30, 0
      %p120 = por %p118, %p119
      %s122 = sadd.s32 %s121, 1
      %p125 = scmp.eq.s32.totalorder %s24, 1
      %p126 = scmp.ne.s32.totalorder %s121, %s123
      %p127 = scmp.eq.s32.totalorder %s24, 0
      %p128 = por %p126, %p127
      %p129 = scmp.ne.s32.totalorder %s121, %s123
      %p130 = scmp.eq.s32.totalorder %s29, 1
      %p131 = por %p129, %p130
      %p132 = scmp.ne.s32.totalorder %s123, %s124
      %p133 = scmp.eq.s32.totalorder %s29, 0
      %p134 = por %p132, %p133
      %p135 = scmp.ne.s32.totalorder %s123, %s124
      %p136 = scmp.eq.s32.totalorder %s30, 1
      %p137 = por %p135, %p136
      %p139 = scmp.ne.s32.totalorder %s124, %s138
      %p140 = scmp.eq.s32.totalorder %s30, 0
      %p141 = por %p139, %p140
      %s143 = sadd.s32 %s142, 1
      %p146 = scmp.eq.s32.totalorder %s24, 1
      %p147 = scmp.ne.s32.totalorder %s142, %s144
      %p148 = scmp.eq.s32.totalorder %s24, 0
      %p149 = por %p147, %p148
      %p150 = scmp.ne.s32.totalorder %s142, %s144
      %p151 = scmp.eq.s32.totalorder %s29, 1
      %p152 = por %p150, %p151
      %p153 = scmp.ne.s32.totalorder %s144, %s145
      %p154 = scmp.eq.s32.totalorder %s29, 0
      %p155 = por %p153, %p154
      %p156 = scmp.ne.s32.totalorder %s144, %s145
      %p157 = scmp.eq.s32.totalorder %s30, 1
      %p158 = por %p156, %p157
      %p160 = scmp.ne.s32.totalorder %s145, %s159
      %p161 = scmp.eq.s32.totalorder %s30, 0
      %p162 = por %p160, %p161
      %s164 = sadd.s32 %s163, 1
      %p167 = scmp.eq.s32.totalorder %s24, 1
      %p168 = scmp.ne.s32.totalorder %s163, %s165
      %p169 = scmp.eq.s32.totalorder %s24, 0
      %p170 = por %p168, %p169
      %p171 = scmp.ne.s32.totalorder %s163, %s165
      %p172 = scmp.eq.s32.totalorder %s29, 1
      %p173 = por %p171, %p172
      %p174 = scmp.ne.s32.totalorder %s165, %s166
      %p175 = scmp.eq.s32.totalorder %s29, 0
      %p176 = por %p174, %p175
      %p177 = scmp.ne.s32.totalorder %s165, %s166
      %p178 = scmp.eq.s32.totalorder %s30, 1
      %p179 = por %p177, %p178
      %p181 = scmp.ne.s32.totalorder %s166, %s180
      %p182 = scmp.eq.s32.totalorder %s30, 0
      %p183 = por %p181, %p182
      %s185 = sadd.s32 %s184, 1
      %p188 = scmp.eq.s32.totalorder %s24, 1
      %p189 = scmp.ne.s32.totalorder %s184, %s186
      %p190 = scmp.eq.s32.totalorder %s24, 0
      %p191 = por %p189, %p190
      %p192 = scmp.ne.s32.totalorder %s184, %s186
      %p193 = scmp.eq.s32.totalorder %s29, 1
      %p194 = por %p192, %p193
      %p195 = scmp.ne.s32.totalorder %s186, %s187
      %p196 = scmp.eq.s32.totalorder %s29, 0
      %p197 = por %p195, %p196
      %p198 = scmp.ne.s32.totalorder %s186, %s187
      %p199 = scmp.eq.s32.totalorder %s30, 1
      %p200 = por %p198, %p199
      %p202 = scmp.ne.s32.totalorder %s187, %s201
      %p203 = scmp.eq.s32.totalorder %s30, 0
      %p204 = por %p202, %p203
      %s206 = sadd.s32 %s205, 1
      %p209 = scmp.eq.s32.totalorder %s24, 1
      %p210 = scmp.ne.s32.totalorder %s205, %s207
      %p211 = scmp.eq.s32.totalorder %s24, 0
      %p212 = por %p210, %p211
      %p213 = scmp.ne.s32.totalorder %s205, %s207
      %p214 = scmp.eq.s32.totalorder %s29, 1
      %p215 = por %p213, %p214
      %p216 = scmp.ne.s32.totalorder %s207, %s208
      %p217 = scmp.eq.s32.totalorder %s29, 0
      %p218 = por %p216, %p217
      %p219 = scmp.ne.s32.totalorder %s207, %s208
      %p220 = scmp.eq.s32.totalorder %s30, 1
      %p221 = por %p219, %p220
      %p223 = scmp.ne.s32.totalorder %s208, %s222
      %p224 = scmp.eq.s32.totalorder %s30, 0
      %p225 = por %p223, %p224
      %s227 = sadd.s32 %s226, 1
      %p230 = scmp.eq.s32.totalorder %s24, 1
      %p231 = scmp.ne.s32.totalorder %s226, %s228
      %p232 = scmp.eq.s32.totalorder %s24, 0
      %p233 = por %p231, %p232
      %p234 = scmp.ne.s32.totalorder %s226, %s228
      %p235 = scmp.eq.s32.totalorder %s29, 1
      %p236 = por %p234, %p235
      %p237 = scmp.ne.s32.totalorder %s228, %s229
      %p238 = scmp.eq.s32.totalorder %s29, 0
      %p239 = por %p237, %p238
      %p240 = scmp.ne.s32.totalorder %s228, %s229
      %p241 = scmp.eq.s32.totalorder %s30, 1
      %p242 = por %p240, %p241
      %p244 = scmp.ne.s32.totalorder %s229, %s243
      %p245 = scmp.eq.s32.totalorder %s30, 0
      %p246 = por %p244, %p245
      %s248 = sadd.s32 %s247, 1
      %p251 = scmp.eq.s32.totalorder %s24, 1
      %p252 = scmp.ne.s32.totalorder %s247, %s249
      %p253 = scmp.eq.s32.totalorder %s24, 0
      %p254 = por %p252, %p253
      %p255 = scmp.ne.s32.totalorder %s247, %s249
      %p256 = scmp.eq.s32.totalorder %s29, 1
      %p257 = por %p255, %p256
      %p258 = scmp.ne.s32.totalorder %s249, %s250
      %p259 = scmp.eq.s32.totalorder %s29, 0
      %p260 = por %p258, %p259
      %p261 = scmp.ne.s32.totalorder %s249, %s250
      %p262 = scmp.eq.s32.totalorder %s30, 1
      %p263 = por %p261, %p262
      %p265 = scmp.ne.s32.totalorder %s250, %s264
      %p266 = scmp.eq.s32.totalorder %s30, 0
      %p267 = por %p265, %p266
      %s269 = sadd.s32 %s268, 1
      %p272 = scmp.eq.s32.totalorder %s24, 1
      %p273 = scmp.ne.s32.totalorder %s268, %s270
      %p274 = scmp.eq.s32.totalorder %s24, 0
      %p275 = por %p273, %p274
      %p276 = scmp.ne.s32.totalorder %s268, %s270
      %p277 = scmp.eq.s32.totalorder %s29, 1
      %p278 = por %p276, %p277
      %p279 = scmp.ne.s32.totalorder %s270, %s271
      %p280 = scmp.eq.s32.totalorder %s29, 0
      %p281 = por %p279, %p280
      %p282 = scmp.ne.s32.totalorder %s270, %s271
      %p283 = scmp.eq.s32.totalorder %s30, 1
      %p284 = por %p282, %p283
      %p286 = scmp.ne.s32.totalorder %s271, %s285
      %p287 = scmp.eq.s32.totalorder %s30, 0
      %p288 = por %p286, %p287
      %s290 = sadd.s32 %s289, 1
      %p293 = scmp.eq.s32.totalorder %s24, 1
      %p294 = scmp.ne.s32.totalorder %s289, %s291
      %p295 = scmp.eq.s32.totalorder %s24, 0
      %p296 = por %p294, %p295
      %p297 = scmp.ne.s32.totalorder %s289, %s291
      %p298 = scmp.eq.s32.totalorder %s29, 1
      %p299 = por %p297, %p298
      %p300 = scmp.ne.s32.totalorder %s291, %s292
      %p301 = scmp.eq.s32.totalorder %s29, 0
      %p302 = por %p300, %p301
      %p303 = scmp.ne.s32.totalorder %s291, %s292
      %p304 = scmp.eq.s32.totalorder %s30, 1
      %p305 = por %p303, %p304
      %p307 = scmp.ne.s32.totalorder %s292, %s306
      %p308 = scmp.eq.s32.totalorder %s30, 0
      %p309 = por %p307, %p308
      %s311 = sadd.s32 %s310, 1
      %p314 = scmp.eq.s32.totalorder %s24, 1
      %p315 = scmp.ne.s32.totalorder %s310, %s312
      %p316 = scmp.eq.s32.totalorder %s24, 0
      %p317 = por %p315, %p316
      %p318 = scmp.ne.s32.totalorder %s310, %s312
      %p319 = scmp.eq.s32.totalorder %s29, 1
      %p320 = por %p318, %p319
      %p321 = scmp.ne.s32.totalorder %s312, %s313
      %p322 = scmp.eq.s32.totalorder %s29, 0
      %p323 = por %p321, %p322
      %p324 = scmp.ne.s32.totalorder %s312, %s313
      %p325 = scmp.eq.s32.totalorder %s30, 1
      %p326 = por %p324, %p325
      %p328 = scmp.ne.s32.totalorder %s313, %s327
      %p329 = scmp.eq.s32.totalorder %s30, 0
      %p330 = por %p328, %p329
      %s332 = sadd.s32 %s331, 1
      %p335 = scmp.eq.s32.totalorder %s24, 1
      %p336 = scmp.ne.s32.totalorder %s331, %s333
      %p337 = scmp.eq.s32.totalorder %s24, 0
      %p338 = por %p336, %p337
      %p339 = scmp.ne.s32.totalorder %s331, %s333
      %p340 = scmp.eq.s32.totalorder %s29, 1
      %p341 = por %p339, %p340
      %p342 = scmp.ne.s32.totalorder %s333, %s334
      %p343 = scmp.eq.s32.totalorder %s29, 0
      %p344 = por %p342, %p343
      %p345 = scmp.ne.s32.totalorder %s333, %s334
      %p346 = scmp.eq.s32.totalorder %s30, 1
      %p347 = por %p345, %p346
      %p349 = scmp.ne.s32.totalorder %s334, %s348
      %p350 = scmp.eq.s32.totalorder %s30, 0
      %p351 = por %p349, %p350
      %s352 = ssub.s32 %s24, %s31
      %p353 = scmp.eq.s32.totalorder %s352, 0
      %s355 = sadd.s32 %s354, 1
      %s356 = scalar_select %p353, %s354, %s355
      %p359 = pneg %p353
      %p360 = scmp.eq.s32.totalorder %s24, 1
      %p361 = por %p359, %p360
      %p362 = scmp.ne.s32.totalorder %s354, %s357
      %p363 = scmp.eq.s32.totalorder %s24, 0
      %p364 = por %p362, %p363
      %p365 = scmp.ne.s32.totalorder %s354, %s357
      %p366 = scmp.eq.s32.totalorder %s29, 1
      %p367 = por %p365, %p366
      %p368 = scmp.ne.s32.totalorder %s357, %s358
      %p369 = scmp.eq.s32.totalorder %s29, 0
      %p370 = por %p368, %p369
      %p371 = scmp.ne.s32.totalorder %s357, %s358
      %p372 = scmp.eq.s32.totalorder %s30, 1
      %p373 = por %p371, %p372
      %p375 = scmp.ne.s32.totalorder %s358, %s374
      %p376 = scmp.eq.s32.totalorder %s30, 0
      %p377 = por %p375, %p376
      %p378 = scmp.le.s32.totalorder 1, %s24
      %p379 = scmp.lt.s32.totalorder %s24, 3
      %p380 = pnand %p378, %p379
      %p381 = pneg %p380
      // Predicated region
      $region9: #{cnn_forward.1} parent=5 // pred_check
        _
      $region10: #{cnn_forward.1} parent=5 // pred_check_branch
        %383 = sbr.rel (%p380) target = $region12
      $region11: #{cnn_forward.1} parent=5 // pred_region
        %s384 = ssub.s32 %s24, 1
        // Predicated region
        $region13: #{cnn_forward.1} parent=11 // pred_check
          %p385 = pneg %p71
        $region14: #{cnn_forward.1} parent=11 // pred_check_branch
          %387 = sbr.rel (%p385) target = $region16
        $region15: #{cnn_forward.1} parent=11 // pred_region
          _
        $region16: #{cnn_forward.1} parent=11 // pred_fallthru
          _
        // Predicated region
        $region17: #{cnn_forward.1} parent=11 // pred_check
          %p388 = pneg %p92
        $region18: #{cnn_forward.1} parent=11 // pred_check_branch
          %390 = sbr.rel (%p388) target = $region20
        $region19: #{cnn_forward.1} parent=11 // pred_region
          _
        $region20: #{cnn_forward.1} parent=11 // pred_fallthru
          _
        // Predicated region
        $region21: #{cnn_forward.1} parent=11 // pred_check
          %p391 = pneg %p113
        $region22: #{cnn_forward.1} parent=11 // pred_check_branch
          %393 = sbr.rel (%p391) target = $region24
        $region23: #{cnn_forward.1} parent=11 // pred_region
          _
        $region24: #{cnn_forward.1} parent=11 // pred_fallthru
          _
        // Predicated region
        $region25: #{cnn_forward.1} parent=11 // pred_check
          %p394 = pneg %p134
        $region26: #{cnn_forward.1} parent=11 // pred_check_branch
          %396 = sbr.rel (%p394) target = $region28
        $region27: #{cnn_forward.1} parent=11 // pred_region
          _
        $region28: #{cnn_forward.1} parent=11 // pred_fallthru
          _
        // Predicated region
        $region29: #{cnn_forward.1} parent=11 // pred_check
          %p397 = pneg %p155
        $region30: #{cnn_forward.1} parent=11 // pred_check_branch
          %399 = sbr.rel (%p397) target = $region32
        $region31: #{cnn_forward.1} parent=11 // pred_region
          _
        $region32: #{cnn_forward.1} parent=11 // pred_fallthru
          _
        // Predicated region
        $region33: #{cnn_forward.1} parent=11 // pred_check
          %p400 = pneg %p176
        $region34: #{cnn_forward.1} parent=11 // pred_check_branch
          %402 = sbr.rel (%p400) target = $region36
        $region35: #{cnn_forward.1} parent=11 // pred_region
          _
        $region36: #{cnn_forward.1} parent=11 // pred_fallthru
          _
        // Predicated region
        $region37: #{cnn_forward.1} parent=11 // pred_check
          %p403 = pneg %p197
        $region38: #{cnn_forward.1} parent=11 // pred_check_branch
          %405 = sbr.rel (%p403) target = $region40
        $region39: #{cnn_forward.1} parent=11 // pred_region
          _
        $region40: #{cnn_forward.1} parent=11 // pred_fallthru
          _
        // Predicated region
        $region41: #{cnn_forward.1} parent=11 // pred_check
          %p406 = pneg %p218
        $region42: #{cnn_forward.1} parent=11 // pred_check_branch
          %408 = sbr.rel (%p406) target = $region44
        $region43: #{cnn_forward.1} parent=11 // pred_region
          _
        $region44: #{cnn_forward.1} parent=11 // pred_fallthru
          _
        // Predicated region
        $region45: #{cnn_forward.1} parent=11 // pred_check
          %p409 = pneg %p239
        $region46: #{cnn_forward.1} parent=11 // pred_check_branch
          %411 = sbr.rel (%p409) target = $region48
        $region47: #{cnn_forward.1} parent=11 // pred_region
          _
        $region48: #{cnn_forward.1} parent=11 // pred_fallthru
          _
        // Predicated region
        $region49: #{cnn_forward.1} parent=11 // pred_check
          %p412 = pneg %p260
        $region50: #{cnn_forward.1} parent=11 // pred_check_branch
          %414 = sbr.rel (%p412) target = $region52
        $region51: #{cnn_forward.1} parent=11 // pred_region
          _
        $region52: #{cnn_forward.1} parent=11 // pred_fallthru
          _
        // Predicated region
        $region53: #{cnn_forward.1} parent=11 // pred_check
          %p415 = pneg %p281
        $region54: #{cnn_forward.1} parent=11 // pred_check_branch
          %417 = sbr.rel (%p415) target = $region56
        $region55: #{cnn_forward.1} parent=11 // pred_region
          _
        $region56: #{cnn_forward.1} parent=11 // pred_fallthru
          _
        // Predicated region
        $region57: #{cnn_forward.1} parent=11 // pred_check
          %p418 = pneg %p302
        $region58: #{cnn_forward.1} parent=11 // pred_check_branch
          %420 = sbr.rel (%p418) target = $region60
        $region59: #{cnn_forward.1} parent=11 // pred_region
          _
        $region60: #{cnn_forward.1} parent=11 // pred_fallthru
          _
        // Predicated region
        $region61: #{cnn_forward.1} parent=11 // pred_check
          %p421 = pneg %p323
        $region62: #{cnn_forward.1} parent=11 // pred_check_branch
          %423 = sbr.rel (%p421) target = $region64
        $region63: #{cnn_forward.1} parent=11 // pred_region
          _
        $region64: #{cnn_forward.1} parent=11 // pred_fallthru
          _
        // Predicated region
        $region65: #{cnn_forward.1} parent=11 // pred_check
          %p424 = pneg %p344
        $region66: #{cnn_forward.1} parent=11 // pred_check_branch
          %426 = sbr.rel (%p424) target = $region68
        $region67: #{cnn_forward.1} parent=11 // pred_region
          _
        $region68: #{cnn_forward.1} parent=11 // pred_fallthru
          _
      $region12: #{cnn_forward.1} parent=5 // pred_fallthru
        _
      %p427 = scmp.lt.s32.totalorder %s24, 2
      // Predicated region
      $region69: #{cnn_forward.1} parent=5 // pred_check
        %p428 = pneg %p427
      $region70: #{cnn_forward.1} parent=5 // pred_check_branch
        %430 = sbr.rel (%p428) target = $region72
      $region71: #{cnn_forward.1} parent=5 // pred_region
        // Predicated region
        $region73: #{cnn_forward.1} parent=71 // pred_check
          %p431 = pneg %p44
        $region74: #{cnn_forward.1} parent=71 // pred_check_branch
          %433 = sbr.rel (%p431) target = $region76
        $region75: #{cnn_forward.1} parent=71 // pred_region
          %s434 = smul.u32 4, %s24
          %p435 = scmp.lt.s32.totalorder %s434, 7
          %s436 = scalar_select %p435, %s434, 7
          %s437 = smul.addr %s436, 32
          %s438 = smul.addr %s437, 4
          %s439 = scalar_lea.vmem %s0, %s438
          %s440 = smul.u32 4, %s24
        $region76: #{cnn_forward.1} parent=71 // pred_fallthru
          _
      $region72: #{cnn_forward.1} parent=5 // pred_fallthru
        _
      %p441 = scmp.le.s32.totalorder 1, %s24
      %p442 = scmp.lt.s32.totalorder %s24, 3
      %p443 = pnand %p441, %p442
      %p444 = pneg %p443
      // Predicated region
      $region77: #{cnn_forward.1} parent=5 // pred_check
        _
      $region78: #{cnn_forward.1} parent=5 // pred_check_branch
        %446 = sbr.rel (%p443) target = $region80
      $region79: #{cnn_forward.1} parent=5 // pred_region
        %s447 = ssub.s32 %s24, 1
        %s448 = smul.u32 4, %s29
        %p449 = scmp.lt.s32.totalorder %s448, 7
        %s450 = scalar_select %p449, %s448, 7
        %s451 = smul.addr %s450, 32
        %s452 = smul.addr %s451, 4
        %s453 = scalar_lea.vmem %s0, %s452
        %p454 = pneg %p50
        %p455 = pneg %p47
        %p456 = pneg %p71
        %p457 = pneg %p68
        %p458 = pneg %p92
        %p459 = pneg %p89
        %p460 = pneg %p113
        %p461 = pneg %p110
        %p462 = pneg %p134
        %p463 = pneg %p131
        %p464 = pneg %p155
        %p465 = pneg %p152
        %p466 = pneg %p176
        %p467 = pneg %p173
        %p468 = pneg %p197
        %p469 = pneg %p194
        %p470 = pneg %p218
        %p471 = pneg %p215
        %p472 = pneg %p239
        %p473 = pneg %p236
        %p474 = pneg %p260
        %p475 = pneg %p257
        %p476 = pneg %p281
        %p477 = pneg %p278
        %p478 = pneg %p302
        %p479 = pneg %p299
        %p480 = pneg %p323
        %p481 = pneg %p320
        %p482 = pneg %p344
        %p483 = pneg %p341
        %p484 = pneg %p370
        %p485 = pneg %p367
        %s486 = sand.u32 %s357, 1
        %s487 = scalar_lea.sflag [#allocation5], %s486
        %s488 = sand.u32 %s357, 1
        %s489 = smul.addr %s488, 4
        %s490 = scalar_lea.vmem [#allocation4], %s489
        %s491 = smul.u32 4, %s29
        %p492 = scmp.lt.s32.totalorder %s491, 7
        %s493 = scalar_select %p492, %s491, 7
        %s494 = smul.addr %s493, 32
        %s495 = smul.addr %s494, 4
        %s496 = scalar_lea.vmem %s0, %s495
        %s497 = smul.u32 4, %s29
        %v499 = vld [vmem:[%s496] sm:$0xf]
        %v500 = vld [vmem:[%s496 + $0x4] sm:$0xf]
        %v501 = vld [vmem:[%s496 + $0x8] sm:$0xf]
        %v502 = vld [vmem:[%s496 + $0xc] sm:$0xf]
        %v503 = vld [vmem:[%s496 + $0x10] sm:$0xf]
        %v504 = vld [vmem:[%s496 + $0x14] sm:$0xf]
        %v505 = vld [vmem:[%s496 + $0x18] sm:$0xf]
        %v506 = vld [vmem:[%s496 + $0x1c] sm:$0xf]
        %v507 = vld [vmem:[%s496 + $0x20] sm:$0xf]
        %v508 = vld [vmem:[%s496 + $0x24] sm:$0xf]
        %v509 = vld [vmem:[%s496 + $0x28] sm:$0xf]
        %v510 = vld [vmem:[%s496 + $0x2c] sm:$0xf]
        %v511 = vld [vmem:[%s496 + $0x30] sm:$0xf]
        %v512 = vld [vmem:[%s496 + $0x34] sm:$0xf]
        %v513 = vld [vmem:[%s496 + $0x38] sm:$0xf]
        %v514 = vld [vmem:[%s496 + $0x3c] sm:$0xf]
        %v515 = vld [vmem:[%s496 + $0x40] sm:$0xf]
        %v516 = vld [vmem:[%s496 + $0x44] sm:$0xf]
        %v517 = vld [vmem:[%s496 + $0x48] sm:$0xf]
        %v518 = vld [vmem:[%s496 + $0x4c] sm:$0xf]
        %v519 = vld [vmem:[%s496 + $0x50] sm:$0xf]
        %v520 = vld [vmem:[%s496 + $0x54] sm:$0xf]
        %v521 = vld [vmem:[%s496 + $0x58] sm:$0xf]
        %v522 = vld [vmem:[%s496 + $0x5c] sm:$0xf]
        %v523 = vld [vmem:[%s496 + $0x60] sm:$0xf]
        %v524 = vld [vmem:[%s496 + $0x64] sm:$0xf]
        %v525 = vld [vmem:[%s496 + $0x68] sm:$0xf]
        %v526 = vld [vmem:[%s496 + $0x6c] sm:$0xf]
        %v527 = vld [vmem:[%s496 + $0x70] sm:$0xf]
        %v528 = vld [vmem:[%s496 + $0x74] sm:$0xf]
        %v529 = vld [vmem:[%s496 + $0x78] sm:$0xf]
        %v530 = vld [vmem:[%s496 + $0x7c] sm:$0xf]
        %v531 = vld [vmem:[%s496 + $0x80] sm:$0xf]
        %v532 = vld [vmem:[%s496 + $0x84] sm:$0xf]
        %v533 = vld [vmem:[%s496 + $0x88] sm:$0xf]
        %v534 = vld [vmem:[%s496 + $0x8c] sm:$0xf]
        %v535 = vld [vmem:[%s496 + $0x90] sm:$0xf]
        %v536 = vld [vmem:[%s496 + $0x94] sm:$0xf]
        %v537 = vld [vmem:[%s496 + $0x98] sm:$0xf]
        %v538 = vld [vmem:[%s496 + $0x9c] sm:$0xf]
        %v539 = vld [vmem:[%s496 + $0xa0] sm:$0xf]
        %v540 = vld [vmem:[%s496 + $0xa4] sm:$0xf]
        %v541 = vld [vmem:[%s496 + $0xa8] sm:$0xf]
        %v542 = vld [vmem:[%s496 + $0xac] sm:$0xf]
        %v543 = vld [vmem:[%s496 + $0xb0] sm:$0xf]
        %v544 = vld [vmem:[%s496 + $0xb4] sm:$0xf]
        %v545 = vld [vmem:[%s496 + $0xb8] sm:$0xf]
        %v546 = vld [vmem:[%s496 + $0xbc] sm:$0xf]
        %v547 = vld [vmem:[%s496 + $0xc0] sm:$0xf]
        %v548 = vld [vmem:[%s496 + $0xc4] sm:$0xf]
        %v549 = vld [vmem:[%s496 + $0xc8] sm:$0xf]
        %v550 = vld [vmem:[%s496 + $0xcc] sm:$0xf]
        %v551 = vld [vmem:[%s496 + $0xd0] sm:$0xf]
        %v552 = vld [vmem:[%s496 + $0xd4] sm:$0xf]
        %v553 = vld [vmem:[%s496 + $0xd8] sm:$0xf]
        %v554 = vld [vmem:[%s496 + $0xdc] sm:$0xf]
        %v555 = vld [vmem:[%s496 + $0xe0] sm:$0xf]
        %v556 = vld [vmem:[%s496 + $0xe4] sm:$0xf]
        %v557 = vld [vmem:[%s496 + $0xe8] sm:$0xf]
        %v558 = vld [vmem:[%s496 + $0xec] sm:$0xf]
        %v559 = vld [vmem:[%s496 + $0xf0] sm:$0xf]
        %v560 = vld [vmem:[%s496 + $0xf4] sm:$0xf]
        %v561 = vld [vmem:[%s496 + $0xf8] sm:$0xf]
        %v562 = vld [vmem:[%s496 + $0xfc] sm:$0xf]
        %v563 = vld [vmem:[%s496 + $0x100] sm:$0xf]
        %v564 = vld [vmem:[%s496 + $0x104] sm:$0xf]
        %v565 = vld [vmem:[%s496 + $0x108] sm:$0xf]
        %v566 = vld [vmem:[%s496 + $0x10c] sm:$0xf]
        %v567 = vld [vmem:[%s496 + $0x110] sm:$0xf]
        %v568 = vld [vmem:[%s496 + $0x114] sm:$0xf]
        %v569 = vld [vmem:[%s496 + $0x118] sm:$0xf]
        %v570 = vld [vmem:[%s496 + $0x11c] sm:$0xf]
        %v571 = vld [vmem:[%s496 + $0x120] sm:$0xf]
        %v572 = vld [vmem:[%s496 + $0x124] sm:$0xf]
        %v573 = vld [vmem:[%s496 + $0x128] sm:$0xf]
        %v574 = vld [vmem:[%s496 + $0x12c] sm:$0xf]
        %v575 = vld [vmem:[%s496 + $0x130] sm:$0xf]
        %v576 = vld [vmem:[%s496 + $0x134] sm:$0xf]
        %v577 = vld [vmem:[%s496 + $0x138] sm:$0xf]
        %v578 = vld [vmem:[%s496 + $0x13c] sm:$0xf]
        %v579 = vld [vmem:[%s496 + $0x140] sm:$0xf]
        %v580 = vld [vmem:[%s496 + $0x144] sm:$0xf]
        %v581 = vld [vmem:[%s496 + $0x148] sm:$0xf]
        %v582 = vld [vmem:[%s496 + $0x14c] sm:$0xf]
        %v583 = vld [vmem:[%s496 + $0x150] sm:$0xf]
        %v584 = vld [vmem:[%s496 + $0x154] sm:$0xf]
        %v585 = vld [vmem:[%s496 + $0x158] sm:$0xf]
        %v586 = vld [vmem:[%s496 + $0x15c] sm:$0xf]
        %v587 = vld [vmem:[%s496 + $0x160] sm:$0xf]
        %v588 = vld [vmem:[%s496 + $0x164] sm:$0xf]
        %v589 = vld [vmem:[%s496 + $0x168] sm:$0xf]
        %v590 = vld [vmem:[%s496 + $0x16c] sm:$0xf]
        %v591 = vld [vmem:[%s496 + $0x170] sm:$0xf]
        %v592 = vld [vmem:[%s496 + $0x174] sm:$0xf]
        %v593 = vld [vmem:[%s496 + $0x178] sm:$0xf]
        %v594 = vld [vmem:[%s496 + $0x17c] sm:$0xf]
        %v595 = vld [vmem:[%s496 + $0x180] sm:$0xf]
        %v596 = vld [vmem:[%s496 + $0x184] sm:$0xf]
        %v597 = vld [vmem:[%s496 + $0x188] sm:$0xf]
        %v598 = vld [vmem:[%s496 + $0x18c] sm:$0xf]
        %v599 = vld [vmem:[%s496 + $0x190] sm:$0xf]
        %v600 = vld [vmem:[%s496 + $0x194] sm:$0xf]
        %v601 = vld [vmem:[%s496 + $0x198] sm:$0xf]
        %v602 = vld [vmem:[%s496 + $0x19c] sm:$0xf]
        %v603 = vld [vmem:[%s496 + $0x1a0] sm:$0xf]
        %v604 = vld [vmem:[%s496 + $0x1a4] sm:$0xf]
        %v605 = vld [vmem:[%s496 + $0x1a8] sm:$0xf]
        %v606 = vld [vmem:[%s496 + $0x1ac] sm:$0xf]
        %v607 = vld [vmem:[%s496 + $0x1b0] sm:$0xf]
        %v608 = vld [vmem:[%s496 + $0x1b4] sm:$0xf]
        %v609 = vld [vmem:[%s496 + $0x1b8] sm:$0xf]
        %v610 = vld [vmem:[%s496 + $0x1bc] sm:$0xf]
        %v611 = vld [vmem:[%s496 + $0x1c0] sm:$0xf]
        %v612 = vld [vmem:[%s496 + $0x1c4] sm:$0xf]
        %v613 = vld [vmem:[%s496 + $0x1c8] sm:$0xf]
        %v614 = vld [vmem:[%s496 + $0x1cc] sm:$0xf]
        %v615 = vld [vmem:[%s496 + $0x1d0] sm:$0xf]
        %v616 = vld [vmem:[%s496 + $0x1d4] sm:$0xf]
        %v617 = vld [vmem:[%s496 + $0x1d8] sm:$0xf]
        %v618 = vld [vmem:[%s496 + $0x1dc] sm:$0xf]
        %v619 = vld [vmem:[%s496 + $0x1e0] sm:$0xf]
        %v620 = vld [vmem:[%s496 + $0x1e4] sm:$0xf]
        %v621 = vld [vmem:[%s496 + $0x1e8] sm:$0xf]
        %v622 = vld [vmem:[%s496 + $0x1ec] sm:$0xf]
        %v623 = vld [vmem:[%s496 + $0x1f0] sm:$0xf]
        %v624 = vld [vmem:[%s496 + $0x1f4] sm:$0xf]
        %v625 = vld [vmem:[%s496 + $0x1f8] sm:$0xf]
        %v626 = vld [vmem:[%s496 + $0x1fc] sm:$0xf]
        %v627 = vld [vmem:[%s1] sm:$0xf]
        %v628 = vld [vmem:[%s1 + $0x4] sm:$0xf]
        %v629 = vld [vmem:[%s1 + $0x8] sm:$0xf]
        %v630 = vld [vmem:[%s1 + $0xc] sm:$0x3]
        %v631 = vld [vmem:[%s2] sm:$0x1]
        %v633 = vlaneseq
        %v634 = vshrl.u32 %v633, 7
        %v635 = vsub.s32 0, %v634
        %v636 = vrot.slane %v631, %v635
        %v766 = vunpack.c.l.b16 %v499
        %v767 = vunpack.c.l.b16 %v500
        %v768 = vunpack.c.l.b16 %v501
        %v769 = vunpack.c.l.b16 %v502
        %v770 = vunpack.c.l.b16 %v503
        %v771 = vunpack.c.l.b16 %v504
        %v772 = vunpack.c.l.b16 %v505
        %v773 = vunpack.c.l.b16 %v506
        %v774 = vunpack.c.l.b16 %v507
        %v775 = vunpack.c.l.b16 %v508
        %v776 = vunpack.c.l.b16 %v509
        %v777 = vunpack.c.l.b16 %v510
        %v778 = vunpack.c.l.b16 %v511
        %v779 = vunpack.c.l.b16 %v512
        %v780 = vunpack.c.l.b16 %v513
        %v781 = vunpack.c.l.b16 %v514
        %v782 = vunpack.c.l.b16 %v515
        %v783 = vunpack.c.l.b16 %v516
        %v784 = vunpack.c.l.b16 %v517
        %v785 = vunpack.c.l.b16 %v518
        %v786 = vunpack.c.l.b16 %v519
        %v787 = vunpack.c.l.b16 %v520
        %v788 = vunpack.c.l.b16 %v521
        %v789 = vunpack.c.l.b16 %v522
        %v790 = vunpack.c.l.b16 %v523
        %v791 = vunpack.c.l.b16 %v524
        %v792 = vunpack.c.l.b16 %v525
        %v793 = vunpack.c.l.b16 %v526
        %v794 = vunpack.c.l.b16 %v527
        %v795 = vunpack.c.l.b16 %v528
        %v796 = vunpack.c.l.b16 %v529
        %v797 = vunpack.c.l.b16 %v530
        %v798 = vunpack.c.l.b16 %v531
        %v799 = vunpack.c.l.b16 %v532
        %v800 = vunpack.c.l.b16 %v533
        %v801 = vunpack.c.l.b16 %v534
        %v802 = vunpack.c.l.b16 %v535
        %v803 = vunpack.c.l.b16 %v536
        %v804 = vunpack.c.l.b16 %v537
        %v805 = vunpack.c.l.b16 %v538
        %v806 = vunpack.c.l.b16 %v539
        %v807 = vunpack.c.l.b16 %v540
        %v808 = vunpack.c.l.b16 %v541
        %v809 = vunpack.c.l.b16 %v542
        %v810 = vunpack.c.l.b16 %v543
        %v811 = vunpack.c.l.b16 %v544
        %v812 = vunpack.c.l.b16 %v545
        %v813 = vunpack.c.l.b16 %v546
        %v814 = vunpack.c.l.b16 %v547
        %v815 = vunpack.c.l.b16 %v548
        %v816 = vunpack.c.l.b16 %v549
        %v817 = vunpack.c.l.b16 %v550
        %v818 = vunpack.c.l.b16 %v551
        %v819 = vunpack.c.l.b16 %v552
        %v820 = vunpack.c.l.b16 %v553
        %v821 = vunpack.c.l.b16 %v554
        %v822 = vunpack.c.l.b16 %v555
        %v823 = vunpack.c.l.b16 %v556
        %v824 = vunpack.c.l.b16 %v557
        %v825 = vunpack.c.l.b16 %v558
        %v826 = vunpack.c.l.b16 %v559
        %v827 = vunpack.c.l.b16 %v560
        %v828 = vunpack.c.l.b16 %v561
        %v829 = vunpack.c.l.b16 %v562
        %v830 = vunpack.c.l.b16 %v563
        %v831 = vunpack.c.l.b16 %v564
        %v832 = vunpack.c.l.b16 %v565
        %v833 = vunpack.c.l.b16 %v566
        %v834 = vunpack.c.l.b16 %v567
        %v835 = vunpack.c.l.b16 %v568
        %v836 = vunpack.c.l.b16 %v569
        %v837 = vunpack.c.l.b16 %v570
        %v838 = vunpack.c.l.b16 %v571
        %v839 = vunpack.c.l.b16 %v572
        %v840 = vunpack.c.l.b16 %v573
        %v841 = vunpack.c.l.b16 %v574
        %v842 = vunpack.c.l.b16 %v575
        %v843 = vunpack.c.l.b16 %v576
        %v844 = vunpack.c.l.b16 %v577
        %v845 = vunpack.c.l.b16 %v578
        %v846 = vunpack.c.l.b16 %v579
        %v847 = vunpack.c.l.b16 %v580
        %v848 = vunpack.c.l.b16 %v581
        %v849 = vunpack.c.l.b16 %v582
        %v850 = vunpack.c.l.b16 %v583
        %v851 = vunpack.c.l.b16 %v584
        %v852 = vunpack.c.l.b16 %v585
        %v853 = vunpack.c.l.b16 %v586
        %v854 = vunpack.c.l.b16 %v587
        %v855 = vunpack.c.l.b16 %v588
        %v856 = vunpack.c.l.b16 %v589
        %v857 = vunpack.c.l.b16 %v590
        %v858 = vunpack.c.l.b16 %v591
        %v859 = vunpack.c.l.b16 %v592
        %v860 = vunpack.c.l.b16 %v593
        %v861 = vunpack.c.l.b16 %v594
        %v862 = vunpack.c.l.b16 %v595
        %v863 = vunpack.c.l.b16 %v596
        %v864 = vunpack.c.l.b16 %v597
        %v865 = vunpack.c.l.b16 %v598
        %v866 = vunpack.c.l.b16 %v599
        %v867 = vunpack.c.l.b16 %v600
        %v868 = vunpack.c.l.b16 %v601
        %v869 = vunpack.c.l.b16 %v602
        %v870 = vunpack.c.l.b16 %v603
        %v871 = vunpack.c.l.b16 %v604
        %v872 = vunpack.c.l.b16 %v605
        %v873 = vunpack.c.l.b16 %v606
        %v874 = vunpack.c.l.b16 %v607
        %v875 = vunpack.c.l.b16 %v608
        %v876 = vunpack.c.l.b16 %v609
        %v877 = vunpack.c.l.b16 %v610
        %v878 = vunpack.c.l.b16 %v611
        %v879 = vunpack.c.l.b16 %v612
        %v880 = vunpack.c.l.b16 %v613
        %v881 = vunpack.c.l.b16 %v614
        %v882 = vunpack.c.l.b16 %v615
        %v883 = vunpack.c.l.b16 %v616
        %v884 = vunpack.c.l.b16 %v617
        %v885 = vunpack.c.l.b16 %v618
        %v886 = vunpack.c.l.b16 %v619
        %v887 = vunpack.c.l.b16 %v620
        %v888 = vunpack.c.l.b16 %v621
        %v889 = vunpack.c.l.b16 %v622
        %v890 = vunpack.c.l.b16 %v623
        %v891 = vunpack.c.l.b16 %v624
        %v892 = vunpack.c.l.b16 %v625
        %v893 = vunpack.c.l.b16 %v626
        %v894 = vpack.c.b16 %v767, %v766
        %v895 = vpack.c.b16 %v769, %v768
        %v896 = vpack.c.b16 %v771, %v770
        %v897 = vpack.c.b16 %v773, %v772
        %v898 = vpack.c.b16 %v775, %v774
        %v899 = vpack.c.b16 %v777, %v776
        %v900 = vpack.c.b16 %v779, %v778
        %v901 = vpack.c.b16 %v781, %v780
        %v902 = vpack.c.b16 %v783, %v782
        %v903 = vpack.c.b16 %v785, %v784
        %v904 = vpack.c.b16 %v787, %v786
        %v905 = vpack.c.b16 %v789, %v788
        %v906 = vpack.c.b16 %v791, %v790
        %v907 = vpack.c.b16 %v793, %v792
        %v908 = vpack.c.b16 %v795, %v794
        %v909 = vpack.c.b16 %v797, %v796
        %v910 = vpack.c.b16 %v799, %v798
        %v911 = vpack.c.b16 %v801, %v800
        %v912 = vpack.c.b16 %v803, %v802
        %v913 = vpack.c.b16 %v805, %v804
        %v914 = vpack.c.b16 %v807, %v806
        %v915 = vpack.c.b16 %v809, %v808
        %v916 = vpack.c.b16 %v811, %v810
        %v917 = vpack.c.b16 %v813, %v812
        %v918 = vpack.c.b16 %v815, %v814
        %v919 = vpack.c.b16 %v817, %v816
        %v920 = vpack.c.b16 %v819, %v818
        %v921 = vpack.c.b16 %v821, %v820
        %v922 = vpack.c.b16 %v823, %v822
        %v923 = vpack.c.b16 %v825, %v824
        %v924 = vpack.c.b16 %v827, %v826
        %v925 = vpack.c.b16 %v829, %v828
        %v926 = vpack.c.b16 %v831, %v830
        %v927 = vpack.c.b16 %v833, %v832
        %v928 = vpack.c.b16 %v835, %v834
        %v929 = vpack.c.b16 %v837, %v836
        %v930 = vpack.c.b16 %v839, %v838
        %v931 = vpack.c.b16 %v841, %v840
        %v932 = vpack.c.b16 %v843, %v842
        %v933 = vpack.c.b16 %v845, %v844
        %v934 = vpack.c.b16 %v847, %v846
        %v935 = vpack.c.b16 %v849, %v848
        %v936 = vpack.c.b16 %v851, %v850
        %v937 = vpack.c.b16 %v853, %v852
        %v938 = vpack.c.b16 %v855, %v854
        %v939 = vpack.c.b16 %v857, %v856
        %v940 = vpack.c.b16 %v859, %v858
        %v941 = vpack.c.b16 %v861, %v860
        %v942 = vpack.c.b16 %v863, %v862
        %v943 = vpack.c.b16 %v865, %v864
        %v944 = vpack.c.b16 %v867, %v866
        %v945 = vpack.c.b16 %v869, %v868
        %v946 = vpack.c.b16 %v871, %v870
        %v947 = vpack.c.b16 %v873, %v872
        %v948 = vpack.c.b16 %v875, %v874
        %v949 = vpack.c.b16 %v877, %v876
        %v950 = vpack.c.b16 %v879, %v878
        %v951 = vpack.c.b16 %v881, %v880
        %v952 = vpack.c.b16 %v883, %v882
        %v953 = vpack.c.b16 %v885, %v884
        %v954 = vpack.c.b16 %v887, %v886
        %v955 = vpack.c.b16 %v889, %v888
        %v956 = vpack.c.b16 %v891, %v890
        %v957 = vpack.c.b16 %v893, %v892
        %v962 = vunpack.c.l.b16 %v627
        %v963 = vunpack.c.l.b16 %v628
        %v964 = vunpack.c.l.b16 %v629
        %v965 = vunpack.c.l.b16 %v630
        %v966 = vpack.c.b16 %v963, %v962
        %v967 = vpack.c.b16 %v965, %v964
        %vm969 = vcmask 220160
        %v971 = vsel %vm969, %v894, 0
        %v974 = vsel %vm969, %v895, 0
        %v977 = vsel %vm969, %v896, 0
        %v980 = vsel %vm969, %v897, 0
        %v983 = vsel %vm969, %v898, 0
        %v986 = vsel %vm969, %v899, 0
        %v989 = vsel %vm969, %v900, 0
        %v992 = vsel %vm969, %v901, 0
        %v995 = vsel %vm969, %v902, 0
        %v998 = vsel %vm969, %v903, 0
        %v1001 = vsel %vm969, %v904, 0
        %v1004 = vsel %vm969, %v905, 0
        %v1007 = vsel %vm969, %v906, 0
        %v1010 = vsel %vm969, %v907, 0
        %v1013 = vsel %vm969, %v908, 0
        %v1016 = vsel %vm969, %v909, 0
        %v1019 = vsel %vm969, %v910, 0
        %v1022 = vsel %vm969, %v911, 0
        %v1025 = vsel %vm969, %v912, 0
        %v1028 = vsel %vm969, %v913, 0
        %v1031 = vsel %vm969, %v914, 0
        %v1034 = vsel %vm969, %v915, 0
        %v1037 = vsel %vm969, %v916, 0
        %v1040 = vsel %vm969, %v917, 0
        %v1043 = vsel %vm969, %v918, 0
        %v1046 = vsel %vm969, %v919, 0
        %v1049 = vsel %vm969, %v920, 0
        %v1052 = vsel %vm969, %v921, 0
        %v1055 = vsel %vm969, %v922, 0
        %v1058 = vsel %vm969, %v923, 0
        %v1061 = vsel %vm969, %v924, 0
        %v1064 = vsel %vm969, %v925, 0
        %v1067 = vsel %vm969, %v926, 0
        %v1070 = vsel %vm969, %v927, 0
        %v1073 = vsel %vm969, %v928, 0
        %v1076 = vsel %vm969, %v929, 0
        %v1079 = vsel %vm969, %v930, 0
        %v1082 = vsel %vm969, %v931, 0
        %v1085 = vsel %vm969, %v932, 0
        %v1088 = vsel %vm969, %v933, 0
        %v1091 = vsel %vm969, %v934, 0
        %v1094 = vsel %vm969, %v935, 0
        %v1097 = vsel %vm969, %v936, 0
        %v1100 = vsel %vm969, %v937, 0
        %v1103 = vsel %vm969, %v938, 0
        %v1106 = vsel %vm969, %v939, 0
        %v1109 = vsel %vm969, %v940, 0
        %v1112 = vsel %vm969, %v941, 0
        %v1115 = vsel %vm969, %v942, 0
        %v1118 = vsel %vm969, %v943, 0
        %v1121 = vsel %vm969, %v944, 0
        %v1124 = vsel %vm969, %v945, 0
        %v1127 = vsel %vm969, %v946, 0
        %v1130 = vsel %vm969, %v947, 0
        %v1133 = vsel %vm969, %v948, 0
        %v1136 = vsel %vm969, %v949, 0
        %v1139 = vsel %vm969, %v950, 0
        %v1142 = vsel %vm969, %v951, 0
        %v1145 = vsel %vm969, %v952, 0
        %v1148 = vsel %vm969, %v953, 0
        %v1151 = vsel %vm969, %v954, 0
        %v1154 = vsel %vm969, %v955, 0
        %v1157 = vsel %vm969, %v956, 0
        %v1160 = vsel %vm969, %v957, 0
        %vm1162 = vcmask 1044480
        %vm1163 = vcmask 1045504
        %v1164 = vsel %vm1162, 4294967295, 65535
        %v1165 = vsel %vm1163, %v1164, 0
        %v1167 = vand.u32 %v967, %v1165
        %1169 = vmatprep.subr.bf16.mxu0 0
        %1170 = vmatpush1.bf16.msra.mxu0 %v966
        %1171 = vmatprep.subr.bf16.mxu0 0
        %1172 = vmatpush1.bf16.msra.mxu0 %v1167
        %1173 = vmatprep.subr.bf16.mxu0 0
        %1174 = vmatpush1.bf16.msra.mxu0 0
        %1175 = vmatprep.subr.bf16.mxu0 0
        %1176 = vmatpush1.bf16.msra.mxu0 0
        %1177 = vmatprep.subr.bf16.mxu0 0
        %1178 = vmatpush1.bf16.msra.mxu0 0
        %1179 = vmatprep.subr.bf16.mxu0 0
        %1180 = vmatpush1.bf16.msra.mxu0 0
        %1181 = vmatprep.subr.bf16.mxu0 0
        %1182 = vmatpush1.bf16.msra.mxu0 0
        %1183 = vmatprep.subr.bf16.mxu0 0
        %1184 = vmatpush1.bf16.msra.mxu0 0
        %1185 = vmatprep.subr.bf16.mxu0 0
        %1186 = vmatpush1.bf16.msra.mxu0 0
        %1187 = vmatprep.subr.bf16.mxu0 0
        %1188 = vmatpush1.bf16.msra.mxu0 0
        %1189 = vmatprep.subr.bf16.mxu0 0
        %1190 = vmatpush1.bf16.msra.mxu0 0
        %1191 = vmatprep.subr.bf16.mxu0 0
        %1192 = vmatpush1.bf16.msra.mxu0 0
        %1193 = vmatprep.subr.bf16.mxu0 0
        %1194 = vmatpush1.bf16.msra.mxu0 0
        %1195 = vmatprep.subr.bf16.mxu0 0
        %1196 = vmatpush1.bf16.msra.mxu0 0
        %1197 = vmatprep.subr.bf16.mxu0 0
        %1198 = vmatpush1.bf16.msra.mxu0 0
        %1199 = vmatprep.subr.bf16.mxu0 0
        %1200 = vmatpush1.bf16.msra.mxu0 0
        %1201 = vmatprep.mubr.bf16.mxu0 0
        %1202 = vmatmul.mubr.bf16.gmra.mrb[0].mxu0 %v971
        %v1203 = vpop.f32.mrb[0].mxu0
        %v1204 = vadd.f32 %v636, %v1203
        %v1205 = vpop.f32.mrb[0].mxu0
        %v1206 = vpop.f32.mrb[0].mxu0
        %v1207 = vadd.f32 %v636, %v1206
        %v1208 = vpop.f32.mrb[0].mxu0
        %1209 = vmatprep.mubr.bf16.mxu0 0
        %1210 = vmatmul.mubr.bf16.gmra.mrb[0].mxu0 %v974
        %v1211 = vpop.f32.mrb[0].mxu0
        %v1212 = vadd.f32 %v636, %v1211
        %v1213 = vpop.f32.mrb[0].mxu0
        %v1214 = vpop.f32.mrb[0].mxu0
        %v1215 = vadd.f32 %v636, %v1214
        %v1216 = vpop.f32.mrb[0].mxu0
        %1217 = vmatprep.mubr.bf16.mxu0 0
        %1218 = vmatmul.mubr.bf16.gmra.mrb[0].mxu0 %v977
        %v1219 = vpop.f32.mrb[0].mxu0
        %v1220 = vadd.f32 %v636, %v1219
        %v1221 = vpop.f32.mrb[0].mxu0
        %v1222 = vpop.f32.mrb[0].mxu0
        %v1223 = vadd.f32 %v636, %v1222
        %v1224 = vpop.f32.mrb[0].mxu0
        %1225 = vmatprep.mubr.bf16.mxu0 0
        %1226 = vmatmul.mubr.bf16.gmra.mrb[0].mxu0 %v980
        %v1227 = vpop.f32.mrb[0].mxu0
        %v1228 = vadd.f32 %v636, %v1227
        %v1229 = vpop.f32.mrb[0].mxu0
        %v1230 = vpop.f32.mrb[0].mxu0
        %v1231 = vadd.f32 %v636, %v1230
        %v1232 = vpop.f32.mrb[0].mxu0
        %1233 = vmatprep.mubr.bf16.mxu0 0
        %1234 = vmatmul.mubr.bf16.gmra.mrb[0].mxu0 %v983
        %v1235 = vpop.f32.mrb[0].mxu0
        %v1236 = vadd.f32 %v636, %v1235
        %v1237 = vpop.f32.mrb[0].mxu0
        %v1238 = vpop.f32.mrb[0].mxu0
        %v1239 = vadd.f32 %v636, %v1238
        %v1240 = vpop.f32.mrb[0].mxu0
        %1241 = vmatprep.mubr.bf16.mxu0 0
        %1242 = vmatmul.mubr.bf16.gmra.mrb[0].mxu0 %v986
        %v1243 = vpop.f32.mrb[0].mxu0
        %v1244 = vadd.f32 %v636, %v1243
        %v1245 = vpop.f32.mrb[0].mxu0
        %v1246 = vpop.f32.mrb[0].mxu0
        %v1247 = vadd.f32 %v636, %v1246
        %v1248 = vpop.f32.mrb[0].mxu0
        %1249 = vmatprep.mubr.bf16.mxu0 0
        %1250 = vmatmul.mubr.bf16.gmra.mrb[0].mxu0 %v989
        %v1251 = vpop.f32.mrb[0].mxu0
        %v1252 = vadd.f32 %v636, %v1251
        %v1253 = vpop.f32.mrb[0].mxu0
        %v1254 = vpop.f32.mrb[0].mxu0
        %v1255 = vadd.f32 %v636, %v1254
        %v1256 = vpop.f32.mrb[0].mxu0
        %1257 = vmatprep.mubr.bf16.mxu0 0
        %1258 = vmatmul.mubr.bf16.gmra.mrb[0].mxu0 %v992
        %v1259 = vpop.f32.mrb[0].mxu0
        %v1260 = vadd.f32 %v636, %v1259
        %v1261 = vpop.f32.mrb[0].mxu0
        %v1262 = vpop.f32.mrb[0].mxu0
        %v1263 = vadd.f32 %v636, %v1262
        %v1264 = vpop.f32.mrb[0].mxu0
        %1265 = vmatprep.mubr.bf16.mxu0 0
        %1266 = vmatmul.mubr.bf16.gmra.mrb[0].mxu0 %v995
        %v1267 = vpop.f32.mrb[0].mxu0
        %v1268 = vadd.f32 %v636, %v1267
        %v1269 = vpop.f32.mrb[0].mxu0
        %v1270 = vpop.f32.mrb[0].mxu0
        %v1271 = vadd.f32 %v636, %v1270
        %v1272 = vpop.f32.mrb[0].mxu0
        %1273 = vmatprep.mubr.bf16.mxu0 0
        %1274 = vmatmul.mubr.bf16.gmra.mrb[0].mxu0 %v998
        %v1275 = vpop.f32.mrb[0].mxu0
        %v1276 = vadd.f32 %v636, %v1275
        %v1277 = vpop.f32.mrb[0].mxu0
        %v1278 = vpop.f32.mrb[0].mxu0
        %v1279 = vadd.f32 %v636, %v1278
        %v1280 = vpop.f32.mrb[0].mxu0
        %1281 = vmatprep.mubr.bf16.mxu0 0
        %1282 = vmatmul.mubr.bf16.gmra.mrb[0].mxu0 %v1001
        %v1283 = vpop.f32.mrb[0].mxu0
        %v1284 = vadd.f32 %v636, %v1283
        %v1285 = vpop.f32.mrb[0].mxu0
        %v1286 = vpop.f32.mrb[0].mxu0
        %v1287 = vadd.f32 %v636, %v1286
        %v1288 = vpop.f32.mrb[0].mxu0
        %1289 = vmatprep.mubr.bf16.mxu0 0
        %1290 = vmatmul.mubr.bf16.gmra.mrb[0].mxu0 %v1004
        %v1291 = vpop.f32.mrb[0].mxu0
        %v1292 = vadd.f32 %v636, %v1291
        %v1293 = vpop.f32.mrb[0].mxu0
        %v1294 = vpop.f32.mrb[0].mxu0
        %v1295 = vadd.f32 %v636, %v1294
        %v1296 = vpop.f32.mrb[0].mxu0
        %1297 = vmatprep.mubr.bf16.mxu0 0
        %1298 = vmatmul.mubr.bf16.gmra.mrb[0].mxu0 %v1007
        %v1299 = vpop.f32.mrb[0].mxu0
        %v1300 = vadd.f32 %v636, %v1299
        %v1301 = vpop.f32.mrb[0].mxu0
        %v1302 = vpop.f32.mrb[0].mxu0
        %v1303 = vadd.f32 %v636, %v1302
        %v1304 = vpop.f32.mrb[0].mxu0
        %1305 = vmatprep.mubr.bf16.mxu0 0
        %1306 = vmatmul.mubr.bf16.gmra.mrb[0].mxu0 %v1010
        %v1307 = vpop.f32.mrb[0].mxu0
        %v1308 = vadd.f32 %v636, %v1307
        %v1309 = vpop.f32.mrb[0].mxu0
        %v1310 = vpop.f32.mrb[0].mxu0
        %v1311 = vadd.f32 %v636, %v1310
        %v1312 = vpop.f32.mrb[0].mxu0
        %1313 = vmatprep.mubr.bf16.mxu0 0
        %1314 = vmatmul.mubr.bf16.gmra.mrb[0].mxu0 %v1013
        %v1315 = vpop.f32.mrb[0].mxu0
        %v1316 = vadd.f32 %v636, %v1315
        %v1317 = vpop.f32.mrb[0].mxu0
        %v1318 = vpop.f32.mrb[0].mxu0
        %v1319 = vadd.f32 %v636, %v1318
        %v1320 = vpop.f32.mrb[0].mxu0
        %1321 = vmatprep.mubr.bf16.mxu0 0
        %1322 = vmatmul.mubr.bf16.gmra.mrb[0].mxu0 %v1016
        %v1323 = vpop.f32.mrb[0].mxu0
        %v1324 = vadd.f32 %v636, %v1323
        %v1325 = vpop.f32.mrb[0].mxu0
        %v1326 = vpop.f32.mrb[0].mxu0
        %v1327 = vadd.f32 %v636, %v1326
        %v1328 = vpop.f32.mrb[0].mxu0
        %1329 = vmatprep.mubr.bf16.mxu0 0
        %1330 = vmatmul.mubr.bf16.gmra.mrb[0].mxu0 %v1019
        %v1331 = vpop.f32.mrb[0].mxu0
        %v1332 = vadd.f32 %v636, %v1331
        %v1333 = vpop.f32.mrb[0].mxu0
        %v1334 = vpop.f32.mrb[0].mxu0
        %v1335 = vadd.f32 %v636, %v1334
        %v1336 = vpop.f32.mrb[0].mxu0
        %1337 = vmatprep.mubr.bf16.mxu0 0
        %1338 = vmatmul.mubr.bf16.gmra.mrb[0].mxu0 %v1022
        %v1339 = vpop.f32.mrb[0].mxu0
        %v1340 = vadd.f32 %v636, %v1339
        %v1341 = vpop.f32.mrb[0].mxu0
        %v1342 = vpop.f32.mrb[0].mxu0
        %v1343 = vadd.f32 %v636, %v1342
        %v1344 = vpop.f32.mrb[0].mxu0
        %1345 = vmatprep.mubr.bf16.mxu0 0
        %1346 = vmatmul.mubr.bf16.gmra.mrb[0].mxu0 %v1025
        %v1347 = vpop.f32.mrb[0].mxu0
        %v1348 = vadd.f32 %v636, %v1347
        %v1349 = vpop.f32.mrb[0].mxu0
        %v1350 = vpop.f32.mrb[0].mxu0
        %v1351 = vadd.f32 %v636, %v1350
        %v1352 = vpop.f32.mrb[0].mxu0
        %1353 = vmatprep.mubr.bf16.mxu0 0
        %1354 = vmatmul.mubr.bf16.gmra.mrb[0].mxu0 %v1028
        %v1355 = vpop.f32.mrb[0].mxu0
        %v1356 = vadd.f32 %v636, %v1355
        %v1357 = vpop.f32.mrb[0].mxu0
        %v1358 = vpop.f32.mrb[0].mxu0
        %v1359 = vadd.f32 %v636, %v1358
        %v1360 = vpop.f32.mrb[0].mxu0
        %1361 = vmatprep.mubr.bf16.mxu0 0
        %1362 = vmatmul.mubr.bf16.gmra.mrb[0].mxu0 %v1031
        %v1363 = vpop.f32.mrb[0].mxu0
        %v1364 = vadd.f32 %v636, %v1363
        %v1365 = vpop.f32.mrb[0].mxu0
        %v1366 = vpop.f32.mrb[0].mxu0
        %v1367 = vadd.f32 %v636, %v1366
        %v1368 = vpop.f32.mrb[0].mxu0
        %1369 = vmatprep.mubr.bf16.mxu0 0
        %1370 = vmatmul.mubr.bf16.gmra.mrb[0].mxu0 %v1034
        %v1371 = vpop.f32.mrb[0].mxu0
        %v1372 = vadd.f32 %v636, %v1371
        %v1373 = vpop.f32.mrb[0].mxu0
        %v1374 = vpop.f32.mrb[0].mxu0
        %v1375 = vadd.f32 %v636, %v1374
        %v1376 = vpop.f32.mrb[0].mxu0
        %1377 = vmatprep.mubr.bf16.mxu0 0
        %1378 = vmatmul.mubr.bf16.gmra.mrb[0].mxu0 %v1037
        %v1379 = vpop.f32.mrb[0].mxu0
        %v1380 = vadd.f32 %v636, %v1379
        %v1381 = vpop.f32.mrb[0].mxu0
        %v1382 = vpop.f32.mrb[0].mxu0
        %v1383 = vadd.f32 %v636, %v1382
        %v1384 = vpop.f32.mrb[0].mxu0
        %1385 = vmatprep.mubr.bf16.mxu0 0
        %1386 = vmatmul.mubr.bf16.gmra.mrb[0].mxu0 %v1040
        %v1387 = vpop.f32.mrb[0].mxu0
        %v1388 = vadd.f32 %v636, %v1387
        %v1389 = vpop.f32.mrb[0].mxu0
        %v1390 = vpop.f32.mrb[0].mxu0
        %v1391 = vadd.f32 %v636, %v1390
        %v1392 = vpop.f32.mrb[0].mxu0
        %1393 = vmatprep.mubr.bf16.mxu0 0
        %1394 = vmatmul.mubr.bf16.gmra.mrb[0].mxu0 %v1043
        %v1395 = vpop.f32.mrb[0].mxu0
        %v1396 = vadd.f32 %v636, %v1395
        %v1397 = vpop.f32.mrb[0].mxu0
        %v1398 = vpop.f32.mrb[0].mxu0
        %v1399 = vadd.f32 %v636, %v1398
        %v1400 = vpop.f32.mrb[0].mxu0
        %1401 = vmatprep.mubr.bf16.mxu0 0
        %1402 = vmatmul.mubr.bf16.gmra.mrb[0].mxu0 %v1046
        %v1403 = vpop.f32.mrb[0].mxu0
        %v1404 = vadd.f32 %v636, %v1403
        %v1405 = vpop.f32.mrb[0].mxu0
        %v1406 = vpop.f32.mrb[0].mxu0
        %v1407 = vadd.f32 %v636, %v1406
        %v1408 = vpop.f32.mrb[0].mxu0
        %1409 = vmatprep.mubr.bf16.mxu0 0
        %1410 = vmatmul.mubr.bf16.gmra.mrb[0].mxu0 %v1049
        %v1411 = vpop.f32.mrb[0].mxu0
        %v1412 = vadd.f32 %v636, %v1411
        %v1413 = vpop.f32.mrb[0].mxu0
        %v1414 = vpop.f32.mrb[0].mxu0
        %v1415 = vadd.f32 %v636, %v1414
        %v1416 = vpop.f32.mrb[0].mxu0
        %1417 = vmatprep.mubr.bf16.mxu0 0
        %1418 = vmatmul.mubr.bf16.gmra.mrb[0].mxu0 %v1052
        %v1419 = vpop.f32.mrb[0].mxu0
        %v1420 = vadd.f32 %v636, %v1419
        %v1421 = vpop.f32.mrb[0].mxu0
        %v1422 = vpop.f32.mrb[0].mxu0
        %v1423 = vadd.f32 %v636, %v1422
        %v1424 = vpop.f32.mrb[0].mxu0
        %1425 = vmatprep.mubr.bf16.mxu0 0
        %1426 = vmatmul.mubr.bf16.gmra.mrb[0].mxu0 %v1055
        %v1427 = vpop.f32.mrb[0].mxu0
        %v1428 = vadd.f32 %v636, %v1427
        %v1429 = vpop.f32.mrb[0].mxu0
        %v1430 = vpop.f32.mrb[0].mxu0
        %v1431 = vadd.f32 %v636, %v1430
        %v1432 = vpop.f32.mrb[0].mxu0
        %1433 = vmatprep.mubr.bf16.mxu0 0
        %1434 = vmatmul.mubr.bf16.gmra.mrb[0].mxu0 %v1058
        %v1435 = vpop.f32.mrb[0].mxu0
        %v1436 = vadd.f32 %v636, %v1435
        %v1437 = vpop.f32.mrb[0].mxu0
        %v1438 = vpop.f32.mrb[0].mxu0
        %v1439 = vadd.f32 %v636, %v1438
        %v1440 = vpop.f32.mrb[0].mxu0
        %1441 = vmatprep.mubr.bf16.mxu0 0
        %1442 = vmatmul.mubr.bf16.gmra.mrb[0].mxu0 %v1061
        %v1443 = vpop.f32.mrb[0].mxu0
        %v1444 = vadd.f32 %v636, %v1443
        %v1445 = vpop.f32.mrb[0].mxu0
        %v1446 = vpop.f32.mrb[0].mxu0
        %v1447 = vadd.f32 %v636, %v1446
        %v1448 = vpop.f32.mrb[0].mxu0
        %1449 = vmatprep.mubr.bf16.mxu0 0
        %1450 = vmatmul.mubr.bf16.gmra.mrb[0].mxu0 %v1064
        %v1451 = vpop.f32.mrb[0].mxu0
        %v1452 = vadd.f32 %v636, %v1451
        %v1453 = vpop.f32.mrb[0].mxu0
        %v1454 = vpop.f32.mrb[0].mxu0
        %v1455 = vadd.f32 %v636, %v1454
        %v1456 = vpop.f32.mrb[0].mxu0
        %1457 = vmatprep.mubr.bf16.mxu0 0
        %1458 = vmatmul.mubr.bf16.gmra.mrb[0].mxu0 %v1067
        %v1459 = vpop.f32.mrb[0].mxu0
        %v1460 = vadd.f32 %v636, %v1459
        %v1461 = vpop.f32.mrb[0].mxu0
        %v1462 = vpop.f32.mrb[0].mxu0
        %v1463 = vadd.f32 %v636, %v1462
        %v1464 = vpop.f32.mrb[0].mxu0
        %1465 = vmatprep.mubr.bf16.mxu0 0
        %1466 = vmatmul.mubr.bf16.gmra.mrb[0].mxu0 %v1070
        %v1467 = vpop.f32.mrb[0].mxu0
        %v1468 = vadd.f32 %v636, %v1467
        %v1469 = vpop.f32.mrb[0].mxu0
        %v1470 = vpop.f32.mrb[0].mxu0
        %v1471 = vadd.f32 %v636, %v1470
        %v1472 = vpop.f32.mrb[0].mxu0
        %1473 = vmatprep.mubr.bf16.mxu0 0
        %1474 = vmatmul.mubr.bf16.gmra.mrb[0].mxu0 %v1073
        %v1475 = vpop.f32.mrb[0].mxu0
        %v1476 = vadd.f32 %v636, %v1475
        %v1477 = vpop.f32.mrb[0].mxu0
        %v1478 = vpop.f32.mrb[0].mxu0
        %v1479 = vadd.f32 %v636, %v1478
        %v1480 = vpop.f32.mrb[0].mxu0
        %1481 = vmatprep.mubr.bf16.mxu0 0
        %1482 = vmatmul.mubr.bf16.gmra.mrb[0].mxu0 %v1076
        %v1483 = vpop.f32.mrb[0].mxu0
        %v1484 = vadd.f32 %v636, %v1483
        %v1485 = vpop.f32.mrb[0].mxu0
        %v1486 = vpop.f32.mrb[0].mxu0
        %v1487 = vadd.f32 %v636, %v1486
        %v1488 = vpop.f32.mrb[0].mxu0
        %1489 = vmatprep.mubr.bf16.mxu0 0
        %1490 = vmatmul.mubr.bf16.gmra.mrb[0].mxu0 %v1079
        %v1491 = vpop.f32.mrb[0].mxu0
        %v1492 = vadd.f32 %v636, %v1491
        %v1493 = vpop.f32.mrb[0].mxu0
        %v1494 = vpop.f32.mrb[0].mxu0
        %v1495 = vadd.f32 %v636, %v1494
        %v1496 = vpop.f32.mrb[0].mxu0
        %1497 = vmatprep.mubr.bf16.mxu0 0
        %1498 = vmatmul.mubr.bf16.gmra.mrb[0].mxu0 %v1082
        %v1499 = vpop.f32.mrb[0].mxu0
        %v1500 = vadd.f32 %v636, %v1499
        %v1501 = vpop.f32.mrb[0].mxu0
        %v1502 = vpop.f32.mrb[0].mxu0
        %v1503 = vadd.f32 %v636, %v1502
        %v1504 = vpop.f32.mrb[0].mxu0
        %1505 = vmatprep.mubr.bf16.mxu0 0
        %1506 = vmatmul.mubr.bf16.gmra.mrb[0].mxu0 %v1085
        %v1507 = vpop.f32.mrb[0].mxu0
        %v1508 = vadd.f32 %v636, %v1507
        %v1509 = vpop.f32.mrb[0].mxu0
        %v1510 = vpop.f32.mrb[0].mxu0
        %v1511 = vadd.f32 %v636, %v1510
        %v1512 = vpop.f32.mrb[0].mxu0
        %1513 = vmatprep.mubr.bf16.mxu0 0
        %1514 = vmatmul.mubr.bf16.gmra.mrb[0].mxu0 %v1088
        %v1515 = vpop.f32.mrb[0].mxu0
        %v1516 = vadd.f32 %v636, %v1515
        %v1517 = vpop.f32.mrb[0].mxu0
        %v1518 = vpop.f32.mrb[0].mxu0
        %v1519 = vadd.f32 %v636, %v1518
        %v1520 = vpop.f32.mrb[0].mxu0
        %1521 = vmatprep.mubr.bf16.mxu0 0
        %1522 = vmatmul.mubr.bf16.gmra.mrb[0].mxu0 %v1091
        %v1523 = vpop.f32.mrb[0].mxu0
        %v1524 = vadd.f32 %v636, %v1523
        %v1525 = vpop.f32.mrb[0].mxu0
        %v1526 = vpop.f32.mrb[0].mxu0
        %v1527 = vadd.f32 %v636, %v1526
        %v1528 = vpop.f32.mrb[0].mxu0
        %1529 = vmatprep.mubr.bf16.mxu0 0
        %1530 = vmatmul.mubr.bf16.gmra.mrb[0].mxu0 %v1094
        %v1531 = vpop.f32.mrb[0].mxu0
        %v1532 = vadd.f32 %v636, %v1531
        %v1533 = vpop.f32.mrb[0].mxu0
        %v1534 = vpop.f32.mrb[0].mxu0
        %v1535 = vadd.f32 %v636, %v1534
        %v1536 = vpop.f32.mrb[0].mxu0
        %1537 = vmatprep.mubr.bf16.mxu0 0
        %1538 = vmatmul.mubr.bf16.gmra.mrb[0].mxu0 %v1097
        %v1539 = vpop.f32.mrb[0].mxu0
        %v1540 = vadd.f32 %v636, %v1539
        %v1541 = vpop.f32.mrb[0].mxu0
        %v1542 = vpop.f32.mrb[0].mxu0
        %v1543 = vadd.f32 %v636, %v1542
        %v1544 = vpop.f32.mrb[0].mxu0
        %1545 = vmatprep.mubr.bf16.mxu0 0
        %1546 = vmatmul.mubr.bf16.gmra.mrb[0].mxu0 %v1100
        %v1547 = vpop.f32.mrb[0].mxu0
        %v1548 = vadd.f32 %v636, %v1547
        %v1549 = vpop.f32.mrb[0].mxu0
        %v1550 = vpop.f32.mrb[0].mxu0
        %v1551 = vadd.f32 %v636, %v1550
        %v1552 = vpop.f32.mrb[0].mxu0
        %1553 = vmatprep.mubr.bf16.mxu0 0
        %1554 = vmatmul.mubr.bf16.gmra.mrb[0].mxu0 %v1103
        %v1555 = vpop.f32.mrb[0].mxu0
        %v1556 = vadd.f32 %v636, %v1555
        %v1557 = vpop.f32.mrb[0].mxu0
        %v1558 = vpop.f32.mrb[0].mxu0
        %v1559 = vadd.f32 %v636, %v1558
        %v1560 = vpop.f32.mrb[0].mxu0
        %1561 = vmatprep.mubr.bf16.mxu0 0
        %1562 = vmatmul.mubr.bf16.gmra.mrb[0].mxu0 %v1106
        %v1563 = vpop.f32.mrb[0].mxu0
        %v1564 = vadd.f32 %v636, %v1563
        %v1565 = vpop.f32.mrb[0].mxu0
        %v1566 = vpop.f32.mrb[0].mxu0
        %v1567 = vadd.f32 %v636, %v1566
        %v1568 = vpop.f32.mrb[0].mxu0
        %1569 = vmatprep.mubr.bf16.mxu0 0
        %1570 = vmatmul.mubr.bf16.gmra.mrb[0].mxu0 %v1109
        %v1571 = vpop.f32.mrb[0].mxu0
        %v1572 = vadd.f32 %v636, %v1571
        %v1573 = vpop.f32.mrb[0].mxu0
        %v1574 = vpop.f32.mrb[0].mxu0
        %v1575 = vadd.f32 %v636, %v1574
        %v1576 = vpop.f32.mrb[0].mxu0
        %1577 = vmatprep.mubr.bf16.mxu0 0
        %1578 = vmatmul.mubr.bf16.gmra.mrb[0].mxu0 %v1112
        %v1579 = vpop.f32.mrb[0].mxu0
        %v1580 = vadd.f32 %v636, %v1579
        %v1581 = vpop.f32.mrb[0].mxu0
        %v1582 = vpop.f32.mrb[0].mxu0
        %v1583 = vadd.f32 %v636, %v1582
        %v1584 = vpop.f32.mrb[0].mxu0
        %1585 = vmatprep.mubr.bf16.mxu0 0
        %1586 = vmatmul.mubr.bf16.gmra.mrb[0].mxu0 %v1115
        %v1587 = vpop.f32.mrb[0].mxu0
        %v1588 = vadd.f32 %v636, %v1587
        %v1589 = vpop.f32.mrb[0].mxu0
        %v1590 = vpop.f32.mrb[0].mxu0
        %v1591 = vadd.f32 %v636, %v1590
        %v1592 = vpop.f32.mrb[0].mxu0
        %1593 = vmatprep.mubr.bf16.mxu0 0
        %1594 = vmatmul.mubr.bf16.gmra.mrb[0].mxu0 %v1118
        %v1595 = vpop.f32.mrb[0].mxu0
        %v1596 = vadd.f32 %v636, %v1595
        %v1597 = vpop.f32.mrb[0].mxu0
        %v1598 = vpop.f32.mrb[0].mxu0
        %v1599 = vadd.f32 %v636, %v1598
        %v1600 = vpop.f32.mrb[0].mxu0
        %1601 = vmatprep.mubr.bf16.mxu0 0
        %1602 = vmatmul.mubr.bf16.gmra.mrb[0].mxu0 %v1121
        %v1603 = vpop.f32.mrb[0].mxu0
        %v1604 = vadd.f32 %v636, %v1603
        %v1605 = vpop.f32.mrb[0].mxu0
        %v1606 = vpop.f32.mrb[0].mxu0
        %v1607 = vadd.f32 %v636, %v1606
        %v1608 = vpop.f32.mrb[0].mxu0
        %1609 = vmatprep.mubr.bf16.mxu0 0
        %1610 = vmatmul.mubr.bf16.gmra.mrb[0].mxu0 %v1124
        %v1611 = vpop.f32.mrb[0].mxu0
        %v1612 = vadd.f32 %v636, %v1611
        %v1613 = vpop.f32.mrb[0].mxu0
        %v1614 = vpop.f32.mrb[0].mxu0
        %v1615 = vadd.f32 %v636, %v1614
        %v1616 = vpop.f32.mrb[0].mxu0
        %1617 = vmatprep.mubr.bf16.mxu0 0
        %1618 = vmatmul.mubr.bf16.gmra.mrb[0].mxu0 %v1127
        %v1619 = vpop.f32.mrb[0].mxu0
        %v1620 = vadd.f32 %v636, %v1619
        %v1621 = vpop.f32.mrb[0].mxu0
        %v1622 = vpop.f32.mrb[0].mxu0
        %v1623 = vadd.f32 %v636, %v1622
        %v1624 = vpop.f32.mrb[0].mxu0
        %1625 = vmatprep.mubr.bf16.mxu0 0
        %1626 = vmatmul.mubr.bf16.gmra.mrb[0].mxu0 %v1130
        %v1627 = vpop.f32.mrb[0].mxu0
        %v1628 = vadd.f32 %v636, %v1627
        %v1629 = vpop.f32.mrb[0].mxu0
        %v1630 = vpop.f32.mrb[0].mxu0
        %v1631 = vadd.f32 %v636, %v1630
        %v1632 = vpop.f32.mrb[0].mxu0
        %1633 = vmatprep.mubr.bf16.mxu0 0
        %1634 = vmatmul.mubr.bf16.gmra.mrb[0].mxu0 %v1133
        %v1635 = vpop.f32.mrb[0].mxu0
        %v1636 = vadd.f32 %v636, %v1635
        %v1637 = vpop.f32.mrb[0].mxu0
        %v1638 = vpop.f32.mrb[0].mxu0
        %v1639 = vadd.f32 %v636, %v1638
        %v1640 = vpop.f32.mrb[0].mxu0
        %1641 = vmatprep.mubr.bf16.mxu0 0
        %1642 = vmatmul.mubr.bf16.gmra.mrb[0].mxu0 %v1136
        %v1643 = vpop.f32.mrb[0].mxu0
        %v1644 = vadd.f32 %v636, %v1643
        %v1645 = vpop.f32.mrb[0].mxu0
        %v1646 = vpop.f32.mrb[0].mxu0
        %v1647 = vadd.f32 %v636, %v1646
        %v1648 = vpop.f32.mrb[0].mxu0
        %1649 = vmatprep.mubr.bf16.mxu0 0
        %1650 = vmatmul.mubr.bf16.gmra.mrb[0].mxu0 %v1139
        %v1651 = vpop.f32.mrb[0].mxu0
        %v1652 = vadd.f32 %v636, %v1651
        %v1653 = vpop.f32.mrb[0].mxu0
        %v1654 = vpop.f32.mrb[0].mxu0
        %v1655 = vadd.f32 %v636, %v1654
        %v1656 = vpop.f32.mrb[0].mxu0
        %1657 = vmatprep.mubr.bf16.mxu0 0
        %1658 = vmatmul.mubr.bf16.gmra.mrb[0].mxu0 %v1142
        %v1659 = vpop.f32.mrb[0].mxu0
        %v1660 = vadd.f32 %v636, %v1659
        %v1661 = vpop.f32.mrb[0].mxu0
        %v1662 = vpop.f32.mrb[0].mxu0
        %v1663 = vadd.f32 %v636, %v1662
        %v1664 = vpop.f32.mrb[0].mxu0
        %1665 = vmatprep.mubr.bf16.mxu0 0
        %1666 = vmatmul.mubr.bf16.gmra.mrb[0].mxu0 %v1145
        %v1667 = vpop.f32.mrb[0].mxu0
        %v1668 = vadd.f32 %v636, %v1667
        %v1669 = vpop.f32.mrb[0].mxu0
        %v1670 = vpop.f32.mrb[0].mxu0
        %v1671 = vadd.f32 %v636, %v1670
        %v1672 = vpop.f32.mrb[0].mxu0
        %1673 = vmatprep.mubr.bf16.mxu0 0
        %1674 = vmatmul.mubr.bf16.gmra.mrb[0].mxu0 %v1148
        %v1675 = vpop.f32.mrb[0].mxu0
        %v1676 = vadd.f32 %v636, %v1675
        %v1677 = vpop.f32.mrb[0].mxu0
        %v1678 = vpop.f32.mrb[0].mxu0
        %v1679 = vadd.f32 %v636, %v1678
        %v1680 = vpop.f32.mrb[0].mxu0
        %1681 = vmatprep.mubr.bf16.mxu0 0
        %1682 = vmatmul.mubr.bf16.gmra.mrb[0].mxu0 %v1151
        %v1683 = vpop.f32.mrb[0].mxu0
        %v1684 = vadd.f32 %v636, %v1683
        %v1685 = vpop.f32.mrb[0].mxu0
        %v1686 = vpop.f32.mrb[0].mxu0
        %v1687 = vadd.f32 %v636, %v1686
        %v1688 = vpop.f32.mrb[0].mxu0
        %1689 = vmatprep.mubr.bf16.mxu0 0
        %1690 = vmatmul.mubr.bf16.gmra.mrb[0].mxu0 %v1154
        %v1691 = vpop.f32.mrb[0].mxu0
        %v1692 = vadd.f32 %v636, %v1691
        %v1693 = vpop.f32.mrb[0].mxu0
        %v1694 = vpop.f32.mrb[0].mxu0
        %v1695 = vadd.f32 %v636, %v1694
        %v1696 = vpop.f32.mrb[0].mxu0
        %1697 = vmatprep.mubr.bf16.mxu0 0
        %1698 = vmatmul.mubr.bf16.gmra.mrb[0].mxu0 %v1157
        %v1699 = vpop.f32.mrb[0].mxu0
        %v1700 = vadd.f32 %v636, %v1699
        %v1701 = vpop.f32.mrb[0].mxu0
        %v1702 = vpop.f32.mrb[0].mxu0
        %v1703 = vadd.f32 %v636, %v1702
        %v1704 = vpop.f32.mrb[0].mxu0
        %1705 = vmatprep.mubr.bf16.mxu0 0
        %1706 = vmatmul.mubr.bf16.gmra.mrb[0].mxu0 %v1160
        %v1707 = vpop.f32.mrb[0].mxu0
        %v1708 = vadd.f32 %v636, %v1707
        %v1709 = vpop.f32.mrb[0].mxu0
        %v1710 = vpop.f32.mrb[0].mxu0
        %v1711 = vadd.f32 %v636, %v1710
        %v1712 = vpop.f32.mrb[0].mxu0
        %1713 = vdwg.mxu0
        %v1714 = vmax.f32 %v1204, 0.0
        %v1715 = vmax.f32 %v1207, 0.0
        %v1716 = vmax.f32 %v1212, 0.0
        %v1717 = vmax.f32 %v1215, 0.0
        %v1718 = vmax.f32 %v1220, 0.0
        %v1719 = vmax.f32 %v1223, 0.0
        %v1720 = vmax.f32 %v1228, 0.0
        %v1721 = vmax.f32 %v1231, 0.0
        %v1722 = vmax.f32 %v1236, 0.0
        %v1723 = vmax.f32 %v1239, 0.0
        %v1724 = vmax.f32 %v1244, 0.0
        %v1725 = vmax.f32 %v1247, 0.0
        %v1726 = vmax.f32 %v1252, 0.0
        %v1727 = vmax.f32 %v1255, 0.0
        %v1728 = vmax.f32 %v1260, 0.0
        %v1729 = vmax.f32 %v1263, 0.0
        %v1730 = vmax.f32 %v1268, 0.0
        %v1731 = vmax.f32 %v1271, 0.0
        %v1732 = vmax.f32 %v1276, 0.0
        %v1733 = vmax.f32 %v1279, 0.0
        %v1734 = vmax.f32 %v1284, 0.0
        %v1735 = vmax.f32 %v1287, 0.0
        %v1736 = vmax.f32 %v1292, 0.0
        %v1737 = vmax.f32 %v1295, 0.0
        %v1738 = vmax.f32 %v1300, 0.0
        %v1739 = vmax.f32 %v1303, 0.0
        %v1740 = vmax.f32 %v1308, 0.0
        %v1741 = vmax.f32 %v1311, 0.0
        %v1742 = vmax.f32 %v1316, 0.0
        %v1743 = vmax.f32 %v1319, 0.0
        %v1744 = vmax.f32 %v1324, 0.0
        %v1745 = vmax.f32 %v1327, 0.0
        %v1746 = vmax.f32 %v1332, 0.0
        %v1747 = vmax.f32 %v1335, 0.0
        %v1748 = vmax.f32 %v1340, 0.0
        %v1749 = vmax.f32 %v1343, 0.0
        %v1750 = vmax.f32 %v1348, 0.0
        %v1751 = vmax.f32 %v1351, 0.0
        %v1752 = vmax.f32 %v1356, 0.0
        %v1753 = vmax.f32 %v1359, 0.0
        %v1754 = vmax.f32 %v1364, 0.0
        %v1755 = vmax.f32 %v1367, 0.0
        %v1756 = vmax.f32 %v1372, 0.0
        %v1757 = vmax.f32 %v1375, 0.0
        %v1758 = vmax.f32 %v1380, 0.0
        %v1759 = vmax.f32 %v1383, 0.0
        %v1760 = vmax.f32 %v1388, 0.0
        %v1761 = vmax.f32 %v1391, 0.0
        %v1762 = vmax.f32 %v1396, 0.0
        %v1763 = vmax.f32 %v1399, 0.0
        %v1764 = vmax.f32 %v1404, 0.0
        %v1765 = vmax.f32 %v1407, 0.0
        %v1766 = vmax.f32 %v1412, 0.0
        %v1767 = vmax.f32 %v1415, 0.0
        %v1768 = vmax.f32 %v1420, 0.0
        %v1769 = vmax.f32 %v1423, 0.0
        %v1770 = vmax.f32 %v1428, 0.0
        %v1771 = vmax.f32 %v1431, 0.0
        %v1772 = vmax.f32 %v1436, 0.0
        %v1773 = vmax.f32 %v1439, 0.0
        %v1774 = vmax.f32 %v1444, 0.0
        %v1775 = vmax.f32 %v1447, 0.0
        %v1776 = vmax.f32 %v1452, 0.0
        %v1777 = vmax.f32 %v1455, 0.0
        %v1778 = vmax.f32 %v1460, 0.0
        %v1779 = vmax.f32 %v1463, 0.0
        %v1780 = vmax.f32 %v1468, 0.0
        %v1781 = vmax.f32 %v1471, 0.0
        %v1782 = vmax.f32 %v1476, 0.0
        %v1783 = vmax.f32 %v1479, 0.0
        %v1784 = vmax.f32 %v1484, 0.0
        %v1785 = vmax.f32 %v1487, 0.0
        %v1786 = vmax.f32 %v1492, 0.0
        %v1787 = vmax.f32 %v1495, 0.0
        %v1788 = vmax.f32 %v1500, 0.0
        %v1789 = vmax.f32 %v1503, 0.0
        %v1790 = vmax.f32 %v1508, 0.0
        %v1791 = vmax.f32 %v1511, 0.0
        %v1792 = vmax.f32 %v1516, 0.0
        %v1793 = vmax.f32 %v1519, 0.0
        %v1794 = vmax.f32 %v1524, 0.0
        %v1795 = vmax.f32 %v1527, 0.0
        %v1796 = vmax.f32 %v1532, 0.0
        %v1797 = vmax.f32 %v1535, 0.0
        %v1798 = vmax.f32 %v1540, 0.0
        %v1799 = vmax.f32 %v1543, 0.0
        %v1800 = vmax.f32 %v1548, 0.0
        %v1801 = vmax.f32 %v1551, 0.0
        %v1802 = vmax.f32 %v1556, 0.0
        %v1803 = vmax.f32 %v1559, 0.0
        %v1804 = vmax.f32 %v1564, 0.0
        %v1805 = vmax.f32 %v1567, 0.0
        %v1806 = vmax.f32 %v1572, 0.0
        %v1807 = vmax.f32 %v1575, 0.0
        %v1808 = vmax.f32 %v1580, 0.0
        %v1809 = vmax.f32 %v1583, 0.0
        %v1810 = vmax.f32 %v1588, 0.0
        %v1811 = vmax.f32 %v1591, 0.0
        %v1812 = vmax.f32 %v1596, 0.0
        %v1813 = vmax.f32 %v1599, 0.0
        %v1814 = vmax.f32 %v1604, 0.0
        %v1815 = vmax.f32 %v1607, 0.0
        %v1816 = vmax.f32 %v1612, 0.0
        %v1817 = vmax.f32 %v1615, 0.0
        %v1818 = vmax.f32 %v1620, 0.0
        %v1819 = vmax.f32 %v1623, 0.0
        %v1820 = vmax.f32 %v1628, 0.0
        %v1821 = vmax.f32 %v1631, 0.0
        %v1822 = vmax.f32 %v1636, 0.0
        %v1823 = vmax.f32 %v1639, 0.0
        %v1824 = vmax.f32 %v1644, 0.0
        %v1825 = vmax.f32 %v1647, 0.0
        %v1826 = vmax.f32 %v1652, 0.0
        %v1827 = vmax.f32 %v1655, 0.0
        %v1828 = vmax.f32 %v1660, 0.0
        %v1829 = vmax.f32 %v1663, 0.0
        %v1830 = vmax.f32 %v1668, 0.0
        %v1831 = vmax.f32 %v1671, 0.0
        %v1832 = vmax.f32 %v1676, 0.0
        %v1833 = vmax.f32 %v1679, 0.0
        %v1834 = vmax.f32 %v1684, 0.0
        %v1835 = vmax.f32 %v1687, 0.0
        %v1836 = vmax.f32 %v1692, 0.0
        %v1837 = vmax.f32 %v1695, 0.0
        %v1838 = vmax.f32 %v1700, 0.0
        %v1839 = vmax.f32 %v1703, 0.0
        %v1840 = vmax.f32 %v1708, 0.0
        %v1841 = vmax.f32 %v1711, 0.0
        %vm1842 = vcmask 261120
        %v1843 = vsel %vm1842, %v1714, -inf
        %v1844 = vsel %vm1842, %v1716, -inf
        %v1845 = vmax.f32 %v1843, %v1844
        %v1846 = vsel %vm1842, %v1715, -inf
        %v1847 = vsel %vm1842, %v1717, -inf
        %v1848 = vmax.f32 %v1846, %v1847
        %v1849 = vsel %vm1842, %v1718, -inf
        %v1850 = vsel %vm1842, %v1720, -inf
        %v1851 = vmax.f32 %v1849, %v1850
        %v1852 = vsel %vm1842, %v1719, -inf
        %v1853 = vsel %vm1842, %v1721, -inf
        %v1854 = vmax.f32 %v1852, %v1853
        %v1855 = vsel %vm1842, %v1722, -inf
        %v1856 = vsel %vm1842, %v1724, -inf
        %v1857 = vmax.f32 %v1855, %v1856
        %v1858 = vsel %vm1842, %v1723, -inf
        %v1859 = vsel %vm1842, %v1725, -inf
        %v1860 = vmax.f32 %v1858, %v1859
        %v1861 = vsel %vm1842, %v1726, -inf
        %v1862 = vsel %vm1842, %v1728, -inf
        %v1863 = vmax.f32 %v1861, %v1862
        %v1864 = vsel %vm1842, %v1727, -inf
        %v1865 = vsel %vm1842, %v1729, -inf
        %v1866 = vmax.f32 %v1864, %v1865
        %v1867 = vsel %vm1842, %v1730, -inf
        %v1868 = vsel %vm1842, %v1732, -inf
        %v1869 = vmax.f32 %v1867, %v1868
        %v1870 = vsel %vm1842, %v1731, -inf
        %v1871 = vsel %vm1842, %v1733, -inf
        %v1872 = vmax.f32 %v1870, %v1871
        %v1873 = vsel %vm1842, %v1734, -inf
        %v1874 = vsel %vm1842, %v1736, -inf
        %v1875 = vmax.f32 %v1873, %v1874
        %v1876 = vsel %vm1842, %v1735, -inf
        %v1877 = vsel %vm1842, %v1737, -inf
        %v1878 = vmax.f32 %v1876, %v1877
        %v1879 = vsel %vm1842, %v1738, -inf
        %v1880 = vsel %vm1842, %v1740, -inf
        %v1881 = vmax.f32 %v1879, %v1880
        %v1882 = vsel %vm1842, %v1739, -inf
        %v1883 = vsel %vm1842, %v1741, -inf
        %v1884 = vmax.f32 %v1882, %v1883
        %v1885 = vsel %vm1842, %v1742, -inf
        %v1886 = vsel %vm1842, %v1744, -inf
        %v1887 = vmax.f32 %v1885, %v1886
        %v1888 = vsel %vm1842, %v1743, -inf
        %v1889 = vsel %vm1842, %v1745, -inf
        %v1890 = vmax.f32 %v1888, %v1889
        %v1891 = vsel %vm1842, %v1746, -inf
        %v1892 = vsel %vm1842, %v1748, -inf
        %v1893 = vmax.f32 %v1891, %v1892
        %v1894 = vsel %vm1842, %v1747, -inf
        %v1895 = vsel %vm1842, %v1749, -inf
        %v1896 = vmax.f32 %v1894, %v1895
        %v1897 = vsel %vm1842, %v1750, -inf
        %v1898 = vsel %vm1842, %v1752, -inf
        %v1899 = vmax.f32 %v1897, %v1898
        %v1900 = vsel %vm1842, %v1751, -inf
        %v1901 = vsel %vm1842, %v1753, -inf
        %v1902 = vmax.f32 %v1900, %v1901
        %v1903 = vsel %vm1842, %v1754, -inf
        %v1904 = vsel %vm1842, %v1756, -inf
        %v1905 = vmax.f32 %v1903, %v1904
        %v1906 = vsel %vm1842, %v1755, -inf
        %v1907 = vsel %vm1842, %v1757, -inf
        %v1908 = vmax.f32 %v1906, %v1907
        %v1909 = vsel %vm1842, %v1758, -inf
        %v1910 = vsel %vm1842, %v1760, -inf
        %v1911 = vmax.f32 %v1909, %v1910
        %v1912 = vsel %vm1842, %v1759, -inf
        %v1913 = vsel %vm1842, %v1761, -inf
        %v1914 = vmax.f32 %v1912, %v1913
        %v1915 = vsel %vm1842, %v1762, -inf
        %v1916 = vsel %vm1842, %v1764, -inf
        %v1917 = vmax.f32 %v1915, %v1916
        %v1918 = vsel %vm1842, %v1763, -inf
        %v1919 = vsel %vm1842, %v1765, -inf
        %v1920 = vmax.f32 %v1918, %v1919
        %v1921 = vsel %vm1842, %v1766, -inf
        %v1922 = vsel %vm1842, %v1768, -inf
        %v1923 = vmax.f32 %v1921, %v1922
        %v1924 = vsel %vm1842, %v1767, -inf
        %v1925 = vsel %vm1842, %v1769, -inf
        %v1926 = vmax.f32 %v1924, %v1925
        %v1927 = vsel %vm1842, %v1770, -inf
        %v1928 = vsel %vm1842, %v1772, -inf
        %v1929 = vmax.f32 %v1927, %v1928
        %v1930 = vsel %vm1842, %v1771, -inf
        %v1931 = vsel %vm1842, %v1773, -inf
        %v1932 = vmax.f32 %v1930, %v1931
        %v1933 = vsel %vm1842, %v1774, -inf
        %v1934 = vsel %vm1842, %v1776, -inf
        %v1935 = vmax.f32 %v1933, %v1934
        %v1936 = vsel %vm1842, %v1775, -inf
        %v1937 = vsel %vm1842, %v1777, -inf
        %v1938 = vmax.f32 %v1936, %v1937
        %v1939 = vsel %vm1842, %v1778, -inf
        %v1940 = vsel %vm1842, %v1780, -inf
        %v1941 = vmax.f32 %v1939, %v1940
        %v1942 = vsel %vm1842, %v1779, -inf
        %v1943 = vsel %vm1842, %v1781, -inf
        %v1944 = vmax.f32 %v1942, %v1943
        %v1945 = vsel %vm1842, %v1782, -inf
        %v1946 = vsel %vm1842, %v1784, -inf
        %v1947 = vmax.f32 %v1945, %v1946
        %v1948 = vsel %vm1842, %v1783, -inf
        %v1949 = vsel %vm1842, %v1785, -inf
        %v1950 = vmax.f32 %v1948, %v1949
        %v1951 = vsel %vm1842, %v1786, -inf
        %v1952 = vsel %vm1842, %v1788, -inf
        %v1953 = vmax.f32 %v1951, %v1952
        %v1954 = vsel %vm1842, %v1787, -inf
        %v1955 = vsel %vm1842, %v1789, -inf
        %v1956 = vmax.f32 %v1954, %v1955
        %v1957 = vsel %vm1842, %v1790, -inf
        %v1958 = vsel %vm1842, %v1792, -inf
        %v1959 = vmax.f32 %v1957, %v1958
        %v1960 = vsel %vm1842, %v1791, -inf
        %v1961 = vsel %vm1842, %v1793, -inf
        %v1962 = vmax.f32 %v1960, %v1961
        %v1963 = vsel %vm1842, %v1794, -inf
        %v1964 = vsel %vm1842, %v1796, -inf
        %v1965 = vmax.f32 %v1963, %v1964
        %v1966 = vsel %vm1842, %v1795, -inf
        %v1967 = vsel %vm1842, %v1797, -inf
        %v1968 = vmax.f32 %v1966, %v1967
        %v1969 = vsel %vm1842, %v1798, -inf
        %v1970 = vsel %vm1842, %v1800, -inf
        %v1971 = vmax.f32 %v1969, %v1970
        %v1972 = vsel %vm1842, %v1799, -inf
        %v1973 = vsel %vm1842, %v1801, -inf
        %v1974 = vmax.f32 %v1972, %v1973
        %v1975 = vsel %vm1842, %v1802, -inf
        %v1976 = vsel %vm1842, %v1804, -inf
        %v1977 = vmax.f32 %v1975, %v1976
        %v1978 = vsel %vm1842, %v1803, -inf
        %v1979 = vsel %vm1842, %v1805, -inf
        %v1980 = vmax.f32 %v1978, %v1979
        %v1981 = vsel %vm1842, %v1806, -inf
        %v1982 = vsel %vm1842, %v1808, -inf
        %v1983 = vmax.f32 %v1981, %v1982
        %v1984 = vsel %vm1842, %v1807, -inf
        %v1985 = vsel %vm1842, %v1809, -inf
        %v1986 = vmax.f32 %v1984, %v1985
        %v1987 = vsel %vm1842, %v1810, -inf
        %v1988 = vsel %vm1842, %v1812, -inf
        %v1989 = vmax.f32 %v1987, %v1988
        %v1990 = vsel %vm1842, %v1811, -inf
        %v1991 = vsel %vm1842, %v1813, -inf
        %v1992 = vmax.f32 %v1990, %v1991
        %v1993 = vsel %vm1842, %v1814, -inf
        %v1994 = vsel %vm1842, %v1816, -inf
        %v1995 = vmax.f32 %v1993, %v1994
        %v1996 = vsel %vm1842, %v1815, -inf
        %v1997 = vsel %vm1842, %v1817, -inf
        %v1998 = vmax.f32 %v1996, %v1997
        %v1999 = vsel %vm1842, %v1818, -inf
        %v2000 = vsel %vm1842, %v1820, -inf
        %v2001 = vmax.f32 %v1999, %v2000
        %v2002 = vsel %vm1842, %v1819, -inf
        %v2003 = vsel %vm1842, %v1821, -inf
        %v2004 = vmax.f32 %v2002, %v2003
        %v2005 = vsel %vm1842, %v1822, -inf
        %v2006 = vsel %vm1842, %v1824, -inf
        %v2007 = vmax.f32 %v2005, %v2006
        %v2008 = vsel %vm1842, %v1823, -inf
        %v2009 = vsel %vm1842, %v1825, -inf
        %v2010 = vmax.f32 %v2008, %v2009
        %v2011 = vsel %vm1842, %v1826, -inf
        %v2012 = vsel %vm1842, %v1828, -inf
        %v2013 = vmax.f32 %v2011, %v2012
        %v2014 = vsel %vm1842, %v1827, -inf
        %v2015 = vsel %vm1842, %v1829, -inf
        %v2016 = vmax.f32 %v2014, %v2015
        %v2017 = vsel %vm1842, %v1830, -inf
        %v2018 = vsel %vm1842, %v1832, -inf
        %v2019 = vmax.f32 %v2017, %v2018
        %v2020 = vsel %vm1842, %v1831, -inf
        %v2021 = vsel %vm1842, %v1833, -inf
        %v2022 = vmax.f32 %v2020, %v2021
        %v2023 = vsel %vm1842, %v1834, -inf
        %v2024 = vsel %vm1842, %v1836, -inf
        %v2025 = vmax.f32 %v2023, %v2024
        %v2026 = vsel %vm1842, %v1835, -inf
        %v2027 = vsel %vm1842, %v1837, -inf
        %v2028 = vmax.f32 %v2026, %v2027
        %v2029 = vsel %vm1842, %v1838, -inf
        %v2030 = vsel %vm1842, %v1840, -inf
        %v2031 = vmax.f32 %v2029, %v2030
        %v2032 = vsel %vm1842, %v1839, -inf
        %v2033 = vsel %vm1842, %v1841, -inf
        %v2034 = vmax.f32 %v2032, %v2033
        %v2099 = vcombine.high %v1845, %v1845
        %v2101 = vunpack.c.l.s4 1983009808
        %v2102 = vunpack.c.0.s8 %v2101
        %v2103 = vlaneseq
        %v2104 = vshrl.u32 %v2103, 7
        %v2105 = vsub.s32 %v2102, %v2104
        %v2106 = vrot.slane %v1845, %v2105
        %v2108 = vunpack.c.l.s4 1983009808
        %v2109 = vunpack.c.0.s8 %v2108
        %v2110 = vlaneseq
        %v2111 = vshrl.u32 %v2110, 7
        %v2112 = vsub.s32 %v2109, %v2111
        %v2113 = vrot.slane %v2099, %v2112
        %v2114 = vcombine.high %v2106, %v2106
        %v2115 = vcombine.high %v2113, %v2113
        %v2116 = vcombine.high %v1848, %v1848
        %v2118 = vunpack.c.l.s4 1983009808
        %v2119 = vunpack.c.0.s8 %v2118
        %v2120 = vlaneseq
        %v2121 = vshrl.u32 %v2120, 7
        %v2122 = vsub.s32 %v2119, %v2121
        %v2123 = vrot.slane %v1848, %v2122
        %v2125 = vunpack.c.l.s4 1983009808
        %v2126 = vunpack.c.0.s8 %v2125
        %v2127 = vlaneseq
        %v2128 = vshrl.u32 %v2127, 7
        %v2129 = vsub.s32 %v2126, %v2128
        %v2130 = vrot.slane %v2116, %v2129
        %v2131 = vcombine.high %v2123, %v2123
        %v2132 = vcombine.high %v2130, %v2130
        %v2133 = vcombine.high %v1851, %v1851
        %v2135 = vunpack.c.l.s4 1983009808
        %v2136 = vunpack.c.0.s8 %v2135
        %v2137 = vlaneseq
        %v2138 = vshrl.u32 %v2137, 7
        %v2139 = vsub.s32 %v2136, %v2138
        %v2140 = vrot.slane %v1851, %v2139
        %v2142 = vunpack.c.l.s4 1983009808
        %v2143 = vunpack.c.0.s8 %v2142
        %v2144 = vlaneseq
        %v2145 = vshrl.u32 %v2144, 7
        %v2146 = vsub.s32 %v2143, %v2145
        %v2147 = vrot.slane %v2133, %v2146
        %v2148 = vcombine.high %v2140, %v2140
        %v2149 = vcombine.high %v2147, %v2147
        %v2150 = vcombine.high %v1854, %v1854
        %v2152 = vunpack.c.l.s4 1983009808
        %v2153 = vunpack.c.0.s8 %v2152
        %v2154 = vlaneseq
        %v2155 = vshrl.u32 %v2154, 7
        %v2156 = vsub.s32 %v2153, %v2155
        %v2157 = vrot.slane %v1854, %v2156
        %v2159 = vunpack.c.l.s4 1983009808
        %v2160 = vunpack.c.0.s8 %v2159
        %v2161 = vlaneseq
        %v2162 = vshrl.u32 %v2161, 7
        %v2163 = vsub.s32 %v2160, %v2162
        %v2164 = vrot.slane %v2150, %v2163
        %v2165 = vcombine.high %v2157, %v2157
        %v2166 = vcombine.high %v2164, %v2164
        %v2167 = vcombine.high %v1857, %v1857
        %v2169 = vunpack.c.l.s4 1983009808
        %v2170 = vunpack.c.0.s8 %v2169
        %v2171 = vlaneseq
        %v2172 = vshrl.u32 %v2171, 7
        %v2173 = vsub.s32 %v2170, %v2172
        %v2174 = vrot.slane %v1857, %v2173
        %v2176 = vunpack.c.l.s4 1983009808
        %v2177 = vunpack.c.0.s8 %v2176
        %v2178 = vlaneseq
        %v2179 = vshrl.u32 %v2178, 7
        %v2180 = vsub.s32 %v2177, %v2179
        %v2181 = vrot.slane %v2167, %v2180
        %v2182 = vcombine.high %v2174, %v2174
        %v2183 = vcombine.high %v2181, %v2181
        %v2184 = vcombine.high %v1860, %v1860
        %v2186 = vunpack.c.l.s4 1983009808
        %v2187 = vunpack.c.0.s8 %v2186
        %v2188 = vlaneseq
        %v2189 = vshrl.u32 %v2188, 7
        %v2190 = vsub.s32 %v2187, %v2189
        %v2191 = vrot.slane %v1860, %v2190
        %v2193 = vunpack.c.l.s4 1983009808
        %v2194 = vunpack.c.0.s8 %v2193
        %v2195 = vlaneseq
        %v2196 = vshrl.u32 %v2195, 7
        %v2197 = vsub.s32 %v2194, %v2196
        %v2198 = vrot.slane %v2184, %v2197
        %v2199 = vcombine.high %v2191, %v2191
        %v2200 = vcombine.high %v2198, %v2198
        %v2201 = vcombine.high %v1863, %v1863
        %v2203 = vunpack.c.l.s4 1983009808
        %v2204 = vunpack.c.0.s8 %v2203
        %v2205 = vlaneseq
        %v2206 = vshrl.u32 %v2205, 7
        %v2207 = vsub.s32 %v2204, %v2206
        %v2208 = vrot.slane %v1863, %v2207
        %v2210 = vunpack.c.l.s4 1983009808
        %v2211 = vunpack.c.0.s8 %v2210
        %v2212 = vlaneseq
        %v2213 = vshrl.u32 %v2212, 7
        %v2214 = vsub.s32 %v2211, %v2213
        %v2215 = vrot.slane %v2201, %v2214
        %v2216 = vcombine.high %v2208, %v2208
        %v2217 = vcombine.high %v2215, %v2215
        %v2218 = vcombine.high %v1866, %v1866
        %v2220 = vunpack.c.l.s4 1983009808
        %v2221 = vunpack.c.0.s8 %v2220
        %v2222 = vlaneseq
        %v2223 = vshrl.u32 %v2222, 7
        %v2224 = vsub.s32 %v2221, %v2223
        %v2225 = vrot.slane %v1866, %v2224
        %v2227 = vunpack.c.l.s4 1983009808
        %v2228 = vunpack.c.0.s8 %v2227
        %v2229 = vlaneseq
        %v2230 = vshrl.u32 %v2229, 7
        %v2231 = vsub.s32 %v2228, %v2230
        %v2232 = vrot.slane %v2218, %v2231
        %v2233 = vcombine.high %v2225, %v2225
        %v2234 = vcombine.high %v2232, %v2232
        %v2235 = vcombine.high %v1869, %v1869
        %v2237 = vunpack.c.l.s4 1983009808
        %v2238 = vunpack.c.0.s8 %v2237
        %v2239 = vlaneseq
        %v2240 = vshrl.u32 %v2239, 7
        %v2241 = vsub.s32 %v2238, %v2240
        %v2242 = vrot.slane %v1869, %v2241
        %v2244 = vunpack.c.l.s4 1983009808
        %v2245 = vunpack.c.0.s8 %v2244
        %v2246 = vlaneseq
        %v2247 = vshrl.u32 %v2246, 7
        %v2248 = vsub.s32 %v2245, %v2247
        %v2249 = vrot.slane %v2235, %v2248
        %v2250 = vcombine.high %v2242, %v2242
        %v2251 = vcombine.high %v2249, %v2249
        %v2252 = vcombine.high %v1872, %v1872
        %v2254 = vunpack.c.l.s4 1983009808
        %v2255 = vunpack.c.0.s8 %v2254
        %v2256 = vlaneseq
        %v2257 = vshrl.u32 %v2256, 7
        %v2258 = vsub.s32 %v2255, %v2257
        %v2259 = vrot.slane %v1872, %v2258
        %v2261 = vunpack.c.l.s4 1983009808
        %v2262 = vunpack.c.0.s8 %v2261
        %v2263 = vlaneseq
        %v2264 = vshrl.u32 %v2263, 7
        %v2265 = vsub.s32 %v2262, %v2264
        %v2266 = vrot.slane %v2252, %v2265
        %v2267 = vcombine.high %v2259, %v2259
        %v2268 = vcombine.high %v2266, %v2266
        %v2269 = vcombine.high %v1875, %v1875
        %v2271 = vunpack.c.l.s4 1983009808
        %v2272 = vunpack.c.0.s8 %v2271
        %v2273 = vlaneseq
        %v2274 = vshrl.u32 %v2273, 7
        %v2275 = vsub.s32 %v2272, %v2274
        %v2276 = vrot.slane %v1875, %v2275
        %v2278 = vunpack.c.l.s4 1983009808
        %v2279 = vunpack.c.0.s8 %v2278
        %v2280 = vlaneseq
        %v2281 = vshrl.u32 %v2280, 7
        %v2282 = vsub.s32 %v2279, %v2281
        %v2283 = vrot.slane %v2269, %v2282
        %v2284 = vcombine.high %v2276, %v2276
        %v2285 = vcombine.high %v2283, %v2283
        %v2286 = vcombine.high %v1878, %v1878
        %v2288 = vunpack.c.l.s4 1983009808
        %v2289 = vunpack.c.0.s8 %v2288
        %v2290 = vlaneseq
        %v2291 = vshrl.u32 %v2290, 7
        %v2292 = vsub.s32 %v2289, %v2291
        %v2293 = vrot.slane %v1878, %v2292
        %v2295 = vunpack.c.l.s4 1983009808
        %v2296 = vunpack.c.0.s8 %v2295
        %v2297 = vlaneseq
        %v2298 = vshrl.u32 %v2297, 7
        %v2299 = vsub.s32 %v2296, %v2298
        %v2300 = vrot.slane %v2286, %v2299
        %v2301 = vcombine.high %v2293, %v2293
        %v2302 = vcombine.high %v2300, %v2300
        %v2303 = vcombine.high %v1881, %v1881
        %v2305 = vunpack.c.l.s4 1983009808
        %v2306 = vunpack.c.0.s8 %v2305
        %v2307 = vlaneseq
        %v2308 = vshrl.u32 %v2307, 7
        %v2309 = vsub.s32 %v2306, %v2308
        %v2310 = vrot.slane %v1881, %v2309
        %v2312 = vunpack.c.l.s4 1983009808
        %v2313 = vunpack.c.0.s8 %v2312
        %v2314 = vlaneseq
        %v2315 = vshrl.u32 %v2314, 7
        %v2316 = vsub.s32 %v2313, %v2315
        %v2317 = vrot.slane %v2303, %v2316
        %v2318 = vcombine.high %v2310, %v2310
        %v2319 = vcombine.high %v2317, %v2317
        %v2320 = vcombine.high %v1884, %v1884
        %v2322 = vunpack.c.l.s4 1983009808
        %v2323 = vunpack.c.0.s8 %v2322
        %v2324 = vlaneseq
        %v2325 = vshrl.u32 %v2324, 7
        %v2326 = vsub.s32 %v2323, %v2325
        %v2327 = vrot.slane %v1884, %v2326
        %v2329 = vunpack.c.l.s4 1983009808
        %v2330 = vunpack.c.0.s8 %v2329
        %v2331 = vlaneseq
        %v2332 = vshrl.u32 %v2331, 7
        %v2333 = vsub.s32 %v2330, %v2332
        %v2334 = vrot.slane %v2320, %v2333
        %v2335 = vcombine.high %v2327, %v2327
        %v2336 = vcombine.high %v2334, %v2334
        %v2337 = vcombine.high %v1887, %v1887
        %v2339 = vunpack.c.l.s4 1983009808
        %v2340 = vunpack.c.0.s8 %v2339
        %v2341 = vlaneseq
        %v2342 = vshrl.u32 %v2341, 7
        %v2343 = vsub.s32 %v2340, %v2342
        %v2344 = vrot.slane %v1887, %v2343
        %v2346 = vunpack.c.l.s4 1983009808
        %v2347 = vunpack.c.0.s8 %v2346
        %v2348 = vlaneseq
        %v2349 = vshrl.u32 %v2348, 7
        %v2350 = vsub.s32 %v2347, %v2349
        %v2351 = vrot.slane %v2337, %v2350
        %v2352 = vcombine.high %v2344, %v2344
        %v2353 = vcombine.high %v2351, %v2351
        %v2354 = vcombine.high %v1890, %v1890
        %v2356 = vunpack.c.l.s4 1983009808
        %v2357 = vunpack.c.0.s8 %v2356
        %v2358 = vlaneseq
        %v2359 = vshrl.u32 %v2358, 7
        %v2360 = vsub.s32 %v2357, %v2359
        %v2361 = vrot.slane %v1890, %v2360
        %v2363 = vunpack.c.l.s4 1983009808
        %v2364 = vunpack.c.0.s8 %v2363
        %v2365 = vlaneseq
        %v2366 = vshrl.u32 %v2365, 7
        %v2367 = vsub.s32 %v2364, %v2366
        %v2368 = vrot.slane %v2354, %v2367
        %v2369 = vcombine.high %v2361, %v2361
        %v2370 = vcombine.high %v2368, %v2368
        %v2371 = vcombine.high %v1893, %v1893
        %v2373 = vunpack.c.l.s4 1983009808
        %v2374 = vunpack.c.0.s8 %v2373
        %v2375 = vlaneseq
        %v2376 = vshrl.u32 %v2375, 7
        %v2377 = vsub.s32 %v2374, %v2376
        %v2378 = vrot.slane %v1893, %v2377
        %v2380 = vunpack.c.l.s4 1983009808
        %v2381 = vunpack.c.0.s8 %v2380
        %v2382 = vlaneseq
        %v2383 = vshrl.u32 %v2382, 7
        %v2384 = vsub.s32 %v2381, %v2383
        %v2385 = vrot.slane %v2371, %v2384
        %v2386 = vcombine.high %v2378, %v2378
        %v2387 = vcombine.high %v2385, %v2385
        %v2388 = vcombine.high %v1896, %v1896
        %v2390 = vunpack.c.l.s4 1983009808
        %v2391 = vunpack.c.0.s8 %v2390
        %v2392 = vlaneseq
        %v2393 = vshrl.u32 %v2392, 7
        %v2394 = vsub.s32 %v2391, %v2393
        %v2395 = vrot.slane %v1896, %v2394
        %v2397 = vunpack.c.l.s4 1983009808
        %v2398 = vunpack.c.0.s8 %v2397
        %v2399 = vlaneseq
        %v2400 = vshrl.u32 %v2399, 7
        %v2401 = vsub.s32 %v2398, %v2400
        %v2402 = vrot.slane %v2388, %v2401
        %v2403 = vcombine.high %v2395, %v2395
        %v2404 = vcombine.high %v2402, %v2402
        %v2405 = vcombine.high %v1899, %v1899
        %v2407 = vunpack.c.l.s4 1983009808
        %v2408 = vunpack.c.0.s8 %v2407
        %v2409 = vlaneseq
        %v2410 = vshrl.u32 %v2409, 7
        %v2411 = vsub.s32 %v2408, %v2410
        %v2412 = vrot.slane %v1899, %v2411
        %v2414 = vunpack.c.l.s4 1983009808
        %v2415 = vunpack.c.0.s8 %v2414
        %v2416 = vlaneseq
        %v2417 = vshrl.u32 %v2416, 7
        %v2418 = vsub.s32 %v2415, %v2417
        %v2419 = vrot.slane %v2405, %v2418
        %v2420 = vcombine.high %v2412, %v2412
        %v2421 = vcombine.high %v2419, %v2419
        %v2422 = vcombine.high %v1902, %v1902
        %v2424 = vunpack.c.l.s4 1983009808
        %v2425 = vunpack.c.0.s8 %v2424
        %v2426 = vlaneseq
        %v2427 = vshrl.u32 %v2426, 7
        %v2428 = vsub.s32 %v2425, %v2427
        %v2429 = vrot.slane %v1902, %v2428
        %v2431 = vunpack.c.l.s4 1983009808
        %v2432 = vunpack.c.0.s8 %v2431
        %v2433 = vlaneseq
        %v2434 = vshrl.u32 %v2433, 7
        %v2435 = vsub.s32 %v2432, %v2434
        %v2436 = vrot.slane %v2422, %v2435
        %v2437 = vcombine.high %v2429, %v2429
        %v2438 = vcombine.high %v2436, %v2436
        %v2439 = vcombine.high %v1905, %v1905
        %v2441 = vunpack.c.l.s4 1983009808
        %v2442 = vunpack.c.0.s8 %v2441
        %v2443 = vlaneseq
        %v2444 = vshrl.u32 %v2443, 7
        %v2445 = vsub.s32 %v2442, %v2444
        %v2446 = vrot.slane %v1905, %v2445
        %v2448 = vunpack.c.l.s4 1983009808
        %v2449 = vunpack.c.0.s8 %v2448
        %v2450 = vlaneseq
        %v2451 = vshrl.u32 %v2450, 7
        %v2452 = vsub.s32 %v2449, %v2451
        %v2453 = vrot.slane %v2439, %v2452
        %v2454 = vcombine.high %v2446, %v2446
        %v2455 = vcombine.high %v2453, %v2453
        %v2456 = vcombine.high %v1908, %v1908
        %v2458 = vunpack.c.l.s4 1983009808
        %v2459 = vunpack.c.0.s8 %v2458
        %v2460 = vlaneseq
        %v2461 = vshrl.u32 %v2460, 7
        %v2462 = vsub.s32 %v2459, %v2461
        %v2463 = vrot.slane %v1908, %v2462
        %v2465 = vunpack.c.l.s4 1983009808
        %v2466 = vunpack.c.0.s8 %v2465
        %v2467 = vlaneseq
        %v2468 = vshrl.u32 %v2467, 7
        %v2469 = vsub.s32 %v2466, %v2468
        %v2470 = vrot.slane %v2456, %v2469
        %v2471 = vcombine.high %v2463, %v2463
        %v2472 = vcombine.high %v2470, %v2470
        %v2473 = vcombine.high %v1911, %v1911
        %v2475 = vunpack.c.l.s4 1983009808
        %v2476 = vunpack.c.0.s8 %v2475
        %v2477 = vlaneseq
        %v2478 = vshrl.u32 %v2477, 7
        %v2479 = vsub.s32 %v2476, %v2478
        %v2480 = vrot.slane %v1911, %v2479
        %v2482 = vunpack.c.l.s4 1983009808
        %v2483 = vunpack.c.0.s8 %v2482
        %v2484 = vlaneseq
        %v2485 = vshrl.u32 %v2484, 7
        %v2486 = vsub.s32 %v2483, %v2485
        %v2487 = vrot.slane %v2473, %v2486
        %v2488 = vcombine.high %v2480, %v2480
        %v2489 = vcombine.high %v2487, %v2487
        %v2490 = vcombine.high %v1914, %v1914
        %v2492 = vunpack.c.l.s4 1983009808
        %v2493 = vunpack.c.0.s8 %v2492
        %v2494 = vlaneseq
        %v2495 = vshrl.u32 %v2494, 7
        %v2496 = vsub.s32 %v2493, %v2495
        %v2497 = vrot.slane %v1914, %v2496
        %v2499 = vunpack.c.l.s4 1983009808
        %v2500 = vunpack.c.0.s8 %v2499
        %v2501 = vlaneseq
        %v2502 = vshrl.u32 %v2501, 7
        %v2503 = vsub.s32 %v2500, %v2502
        %v2504 = vrot.slane %v2490, %v2503
        %v2505 = vcombine.high %v2497, %v2497
        %v2506 = vcombine.high %v2504, %v2504
        %v2507 = vcombine.high %v1917, %v1917
        %v2509 = vunpack.c.l.s4 1983009808
        %v2510 = vunpack.c.0.s8 %v2509
        %v2511 = vlaneseq
        %v2512 = vshrl.u32 %v2511, 7
        %v2513 = vsub.s32 %v2510, %v2512
        %v2514 = vrot.slane %v1917, %v2513
        %v2516 = vunpack.c.l.s4 1983009808
        %v2517 = vunpack.c.0.s8 %v2516
        %v2518 = vlaneseq
        %v2519 = vshrl.u32 %v2518, 7
        %v2520 = vsub.s32 %v2517, %v2519
        %v2521 = vrot.slane %v2507, %v2520
        %v2522 = vcombine.high %v2514, %v2514
        %v2523 = vcombine.high %v2521, %v2521
        %v2524 = vcombine.high %v1920, %v1920
        %v2526 = vunpack.c.l.s4 1983009808
        %v2527 = vunpack.c.0.s8 %v2526
        %v2528 = vlaneseq
        %v2529 = vshrl.u32 %v2528, 7
        %v2530 = vsub.s32 %v2527, %v2529
        %v2531 = vrot.slane %v1920, %v2530
        %v2533 = vunpack.c.l.s4 1983009808
        %v2534 = vunpack.c.0.s8 %v2533
        %v2535 = vlaneseq
        %v2536 = vshrl.u32 %v2535, 7
        %v2537 = vsub.s32 %v2534, %v2536
        %v2538 = vrot.slane %v2524, %v2537
        %v2539 = vcombine.high %v2531, %v2531
        %v2540 = vcombine.high %v2538, %v2538
        %v2541 = vcombine.high %v1923, %v1923
        %v2543 = vunpack.c.l.s4 1983009808
        %v2544 = vunpack.c.0.s8 %v2543
        %v2545 = vlaneseq
        %v2546 = vshrl.u32 %v2545, 7
        %v2547 = vsub.s32 %v2544, %v2546
        %v2548 = vrot.slane %v1923, %v2547
        %v2550 = vunpack.c.l.s4 1983009808
        %v2551 = vunpack.c.0.s8 %v2550
        %v2552 = vlaneseq
        %v2553 = vshrl.u32 %v2552, 7
        %v2554 = vsub.s32 %v2551, %v2553
        %v2555 = vrot.slane %v2541, %v2554
        %v2556 = vcombine.high %v2548, %v2548
        %v2557 = vcombine.high %v2555, %v2555
        %v2558 = vcombine.high %v1926, %v1926
        %v2560 = vunpack.c.l.s4 1983009808
        %v2561 = vunpack.c.0.s8 %v2560
        %v2562 = vlaneseq
        %v2563 = vshrl.u32 %v2562, 7
        %v2564 = vsub.s32 %v2561, %v2563
        %v2565 = vrot.slane %v1926, %v2564
        %v2567 = vunpack.c.l.s4 1983009808
        %v2568 = vunpack.c.0.s8 %v2567
        %v2569 = vlaneseq
        %v2570 = vshrl.u32 %v2569, 7
        %v2571 = vsub.s32 %v2568, %v2570
        %v2572 = vrot.slane %v2558, %v2571
        %v2573 = vcombine.high %v2565, %v2565
        %v2574 = vcombine.high %v2572, %v2572
        %v2575 = vcombine.high %v1929, %v1929
        %v2577 = vunpack.c.l.s4 1983009808
        %v2578 = vunpack.c.0.s8 %v2577
        %v2579 = vlaneseq
        %v2580 = vshrl.u32 %v2579, 7
        %v2581 = vsub.s32 %v2578, %v2580
        %v2582 = vrot.slane %v1929, %v2581
        %v2584 = vunpack.c.l.s4 1983009808
        %v2585 = vunpack.c.0.s8 %v2584
        %v2586 = vlaneseq
        %v2587 = vshrl.u32 %v2586, 7
        %v2588 = vsub.s32 %v2585, %v2587
        %v2589 = vrot.slane %v2575, %v2588
        %v2590 = vcombine.high %v2582, %v2582
        %v2591 = vcombine.high %v2589, %v2589
        %v2592 = vcombine.high %v1932, %v1932
        %v2594 = vunpack.c.l.s4 1983009808
        %v2595 = vunpack.c.0.s8 %v2594
        %v2596 = vlaneseq
        %v2597 = vshrl.u32 %v2596, 7
        %v2598 = vsub.s32 %v2595, %v2597
        %v2599 = vrot.slane %v1932, %v2598
        %v2601 = vunpack.c.l.s4 1983009808
        %v2602 = vunpack.c.0.s8 %v2601
        %v2603 = vlaneseq
        %v2604 = vshrl.u32 %v2603, 7
        %v2605 = vsub.s32 %v2602, %v2604
        %v2606 = vrot.slane %v2592, %v2605
        %v2607 = vcombine.high %v2599, %v2599
        %v2608 = vcombine.high %v2606, %v2606
        %v2609 = vcombine.high %v1935, %v1935
        %v2611 = vunpack.c.l.s4 1983009808
        %v2612 = vunpack.c.0.s8 %v2611
        %v2613 = vlaneseq
        %v2614 = vshrl.u32 %v2613, 7
        %v2615 = vsub.s32 %v2612, %v2614
        %v2616 = vrot.slane %v1935, %v2615
        %v2618 = vunpack.c.l.s4 1983009808
        %v2619 = vunpack.c.0.s8 %v2618
        %v2620 = vlaneseq
        %v2621 = vshrl.u32 %v2620, 7
        %v2622 = vsub.s32 %v2619, %v2621
        %v2623 = vrot.slane %v2609, %v2622
        %v2624 = vcombine.high %v2616, %v2616
        %v2625 = vcombine.high %v2623, %v2623
        %v2626 = vcombine.high %v1938, %v1938
        %v2628 = vunpack.c.l.s4 1983009808
        %v2629 = vunpack.c.0.s8 %v2628
        %v2630 = vlaneseq
        %v2631 = vshrl.u32 %v2630, 7
        %v2632 = vsub.s32 %v2629, %v2631
        %v2633 = vrot.slane %v1938, %v2632
        %v2635 = vunpack.c.l.s4 1983009808
        %v2636 = vunpack.c.0.s8 %v2635
        %v2637 = vlaneseq
        %v2638 = vshrl.u32 %v2637, 7
        %v2639 = vsub.s32 %v2636, %v2638
        %v2640 = vrot.slane %v2626, %v2639
        %v2641 = vcombine.high %v2633, %v2633
        %v2642 = vcombine.high %v2640, %v2640
        %v2643 = vcombine.high %v1941, %v1941
        %v2645 = vunpack.c.l.s4 1983009808
        %v2646 = vunpack.c.0.s8 %v2645
        %v2647 = vlaneseq
        %v2648 = vshrl.u32 %v2647, 7
        %v2649 = vsub.s32 %v2646, %v2648
        %v2650 = vrot.slane %v1941, %v2649
        %v2652 = vunpack.c.l.s4 1983009808
        %v2653 = vunpack.c.0.s8 %v2652
        %v2654 = vlaneseq
        %v2655 = vshrl.u32 %v2654, 7
        %v2656 = vsub.s32 %v2653, %v2655
        %v2657 = vrot.slane %v2643, %v2656
        %v2658 = vcombine.high %v2650, %v2650
        %v2659 = vcombine.high %v2657, %v2657
        %v2660 = vcombine.high %v1944, %v1944
        %v2662 = vunpack.c.l.s4 1983009808
        %v2663 = vunpack.c.0.s8 %v2662
        %v2664 = vlaneseq
        %v2665 = vshrl.u32 %v2664, 7
        %v2666 = vsub.s32 %v2663, %v2665
        %v2667 = vrot.slane %v1944, %v2666
        %v2669 = vunpack.c.l.s4 1983009808
        %v2670 = vunpack.c.0.s8 %v2669
        %v2671 = vlaneseq
        %v2672 = vshrl.u32 %v2671, 7
        %v2673 = vsub.s32 %v2670, %v2672
        %v2674 = vrot.slane %v2660, %v2673
        %v2675 = vcombine.high %v2667, %v2667
        %v2676 = vcombine.high %v2674, %v2674
        %v2677 = vcombine.high %v1947, %v1947
        %v2679 = vunpack.c.l.s4 1983009808
        %v2680 = vunpack.c.0.s8 %v2679
        %v2681 = vlaneseq
        %v2682 = vshrl.u32 %v2681, 7
        %v2683 = vsub.s32 %v2680, %v2682
        %v2684 = vrot.slane %v1947, %v2683
        %v2686 = vunpack.c.l.s4 1983009808
        %v2687 = vunpack.c.0.s8 %v2686
        %v2688 = vlaneseq
        %v2689 = vshrl.u32 %v2688, 7
        %v2690 = vsub.s32 %v2687, %v2689
        %v2691 = vrot.slane %v2677, %v2690
        %v2692 = vcombine.high %v2684, %v2684
        %v2693 = vcombine.high %v2691, %v2691
        %v2694 = vcombine.high %v1950, %v1950
        %v2696 = vunpack.c.l.s4 1983009808
        %v2697 = vunpack.c.0.s8 %v2696
        %v2698 = vlaneseq
        %v2699 = vshrl.u32 %v2698, 7
        %v2700 = vsub.s32 %v2697, %v2699
        %v2701 = vrot.slane %v1950, %v2700
        %v2703 = vunpack.c.l.s4 1983009808
        %v2704 = vunpack.c.0.s8 %v2703
        %v2705 = vlaneseq
        %v2706 = vshrl.u32 %v2705, 7
        %v2707 = vsub.s32 %v2704, %v2706
        %v2708 = vrot.slane %v2694, %v2707
        %v2709 = vcombine.high %v2701, %v2701
        %v2710 = vcombine.high %v2708, %v2708
        %v2711 = vcombine.high %v1953, %v1953
        %v2713 = vunpack.c.l.s4 1983009808
        %v2714 = vunpack.c.0.s8 %v2713
        %v2715 = vlaneseq
        %v2716 = vshrl.u32 %v2715, 7
        %v2717 = vsub.s32 %v2714, %v2716
        %v2718 = vrot.slane %v1953, %v2717
        %v2720 = vunpack.c.l.s4 1983009808
        %v2721 = vunpack.c.0.s8 %v2720
        %v2722 = vlaneseq
        %v2723 = vshrl.u32 %v2722, 7
        %v2724 = vsub.s32 %v2721, %v2723
        %v2725 = vrot.slane %v2711, %v2724
        %v2726 = vcombine.high %v2718, %v2718
        %v2727 = vcombine.high %v2725, %v2725
        %v2728 = vcombine.high %v1956, %v1956
        %v2730 = vunpack.c.l.s4 1983009808
        %v2731 = vunpack.c.0.s8 %v2730
        %v2732 = vlaneseq
        %v2733 = vshrl.u32 %v2732, 7
        %v2734 = vsub.s32 %v2731, %v2733
        %v2735 = vrot.slane %v1956, %v2734
        %v2737 = vunpack.c.l.s4 1983009808
        %v2738 = vunpack.c.0.s8 %v2737
        %v2739 = vlaneseq
        %v2740 = vshrl.u32 %v2739, 7
        %v2741 = vsub.s32 %v2738, %v2740
        %v2742 = vrot.slane %v2728, %v2741
        %v2743 = vcombine.high %v2735, %v2735
        %v2744 = vcombine.high %v2742, %v2742
        %v2745 = vcombine.high %v1959, %v1959
        %v2747 = vunpack.c.l.s4 1983009808
        %v2748 = vunpack.c.0.s8 %v2747
        %v2749 = vlaneseq
        %v2750 = vshrl.u32 %v2749, 7
        %v2751 = vsub.s32 %v2748, %v2750
        %v2752 = vrot.slane %v1959, %v2751
        %v2754 = vunpack.c.l.s4 1983009808
        %v2755 = vunpack.c.0.s8 %v2754
        %v2756 = vlaneseq
        %v2757 = vshrl.u32 %v2756, 7
        %v2758 = vsub.s32 %v2755, %v2757
        %v2759 = vrot.slane %v2745, %v2758
        %v2760 = vcombine.high %v2752, %v2752
        %v2761 = vcombine.high %v2759, %v2759
        %v2762 = vcombine.high %v1962, %v1962
        %v2764 = vunpack.c.l.s4 1983009808
        %v2765 = vunpack.c.0.s8 %v2764
        %v2766 = vlaneseq
        %v2767 = vshrl.u32 %v2766, 7
        %v2768 = vsub.s32 %v2765, %v2767
        %v2769 = vrot.slane %v1962, %v2768
        %v2771 = vunpack.c.l.s4 1983009808
        %v2772 = vunpack.c.0.s8 %v2771
        %v2773 = vlaneseq
        %v2774 = vshrl.u32 %v2773, 7
        %v2775 = vsub.s32 %v2772, %v2774
        %v2776 = vrot.slane %v2762, %v2775
        %v2777 = vcombine.high %v2769, %v2769
        %v2778 = vcombine.high %v2776, %v2776
        %v2779 = vcombine.high %v1965, %v1965
        %v2781 = vunpack.c.l.s4 1983009808
        %v2782 = vunpack.c.0.s8 %v2781
        %v2783 = vlaneseq
        %v2784 = vshrl.u32 %v2783, 7
        %v2785 = vsub.s32 %v2782, %v2784
        %v2786 = vrot.slane %v1965, %v2785
        %v2788 = vunpack.c.l.s4 1983009808
        %v2789 = vunpack.c.0.s8 %v2788
        %v2790 = vlaneseq
        %v2791 = vshrl.u32 %v2790, 7
        %v2792 = vsub.s32 %v2789, %v2791
        %v2793 = vrot.slane %v2779, %v2792
        %v2794 = vcombine.high %v2786, %v2786
        %v2795 = vcombine.high %v2793, %v2793
        %v2796 = vcombine.high %v1968, %v1968
        %v2798 = vunpack.c.l.s4 1983009808
        %v2799 = vunpack.c.0.s8 %v2798
        %v2800 = vlaneseq
        %v2801 = vshrl.u32 %v2800, 7
        %v2802 = vsub.s32 %v2799, %v2801
        %v2803 = vrot.slane %v1968, %v2802
        %v2805 = vunpack.c.l.s4 1983009808
        %v2806 = vunpack.c.0.s8 %v2805
        %v2807 = vlaneseq
        %v2808 = vshrl.u32 %v2807, 7
        %v2809 = vsub.s32 %v2806, %v2808
        %v2810 = vrot.slane %v2796, %v2809
        %v2811 = vcombine.high %v2803, %v2803
        %v2812 = vcombine.high %v2810, %v2810
        %v2813 = vcombine.high %v1971, %v1971
        %v2815 = vunpack.c.l.s4 1983009808
        %v2816 = vunpack.c.0.s8 %v2815
        %v2817 = vlaneseq
        %v2818 = vshrl.u32 %v2817, 7
        %v2819 = vsub.s32 %v2816, %v2818
        %v2820 = vrot.slane %v1971, %v2819
        %v2822 = vunpack.c.l.s4 1983009808
        %v2823 = vunpack.c.0.s8 %v2822
        %v2824 = vlaneseq
        %v2825 = vshrl.u32 %v2824, 7
        %v2826 = vsub.s32 %v2823, %v2825
        %v2827 = vrot.slane %v2813, %v2826
        %v2828 = vcombine.high %v2820, %v2820
        %v2829 = vcombine.high %v2827, %v2827
        %v2830 = vcombine.high %v1974, %v1974
        %v2832 = vunpack.c.l.s4 1983009808
        %v2833 = vunpack.c.0.s8 %v2832
        %v2834 = vlaneseq
        %v2835 = vshrl.u32 %v2834, 7
        %v2836 = vsub.s32 %v2833, %v2835
        %v2837 = vrot.slane %v1974, %v2836
        %v2839 = vunpack.c.l.s4 1983009808
        %v2840 = vunpack.c.0.s8 %v2839
        %v2841 = vlaneseq
        %v2842 = vshrl.u32 %v2841, 7
        %v2843 = vsub.s32 %v2840, %v2842
        %v2844 = vrot.slane %v2830, %v2843
        %v2845 = vcombine.high %v2837, %v2837
        %v2846 = vcombine.high %v2844, %v2844
        %v2847 = vcombine.high %v1977, %v1977
        %v2849 = vunpack.c.l.s4 1983009808
        %v2850 = vunpack.c.0.s8 %v2849
        %v2851 = vlaneseq
        %v2852 = vshrl.u32 %v2851, 7
        %v2853 = vsub.s32 %v2850, %v2852
        %v2854 = vrot.slane %v1977, %v2853
        %v2856 = vunpack.c.l.s4 1983009808
        %v2857 = vunpack.c.0.s8 %v2856
        %v2858 = vlaneseq
        %v2859 = vshrl.u32 %v2858, 7
        %v2860 = vsub.s32 %v2857, %v2859
        %v2861 = vrot.slane %v2847, %v2860
        %v2862 = vcombine.high %v2854, %v2854
        %v2863 = vcombine.high %v2861, %v2861
        %v2864 = vcombine.high %v1980, %v1980
        %v2866 = vunpack.c.l.s4 1983009808
        %v2867 = vunpack.c.0.s8 %v2866
        %v2868 = vlaneseq
        %v2869 = vshrl.u32 %v2868, 7
        %v2870 = vsub.s32 %v2867, %v2869
        %v2871 = vrot.slane %v1980, %v2870
        %v2873 = vunpack.c.l.s4 1983009808
        %v2874 = vunpack.c.0.s8 %v2873
        %v2875 = vlaneseq
        %v2876 = vshrl.u32 %v2875, 7
        %v2877 = vsub.s32 %v2874, %v2876
        %v2878 = vrot.slane %v2864, %v2877
        %v2879 = vcombine.high %v2871, %v2871
        %v2880 = vcombine.high %v2878, %v2878
        %v2881 = vcombine.high %v1983, %v1983
        %v2883 = vunpack.c.l.s4 1983009808
        %v2884 = vunpack.c.0.s8 %v2883
        %v2885 = vlaneseq
        %v2886 = vshrl.u32 %v2885, 7
        %v2887 = vsub.s32 %v2884, %v2886
        %v2888 = vrot.slane %v1983, %v2887
        %v2890 = vunpack.c.l.s4 1983009808
        %v2891 = vunpack.c.0.s8 %v2890
        %v2892 = vlaneseq
        %v2893 = vshrl.u32 %v2892, 7
        %v2894 = vsub.s32 %v2891, %v2893
        %v2895 = vrot.slane %v2881, %v2894
        %v2896 = vcombine.high %v2888, %v2888
        %v2897 = vcombine.high %v2895, %v2895
        %v2898 = vcombine.high %v1986, %v1986
        %v2900 = vunpack.c.l.s4 1983009808
        %v2901 = vunpack.c.0.s8 %v2900
        %v2902 = vlaneseq
        %v2903 = vshrl.u32 %v2902, 7
        %v2904 = vsub.s32 %v2901, %v2903
        %v2905 = vrot.slane %v1986, %v2904
        %v2907 = vunpack.c.l.s4 1983009808
        %v2908 = vunpack.c.0.s8 %v2907
        %v2909 = vlaneseq
        %v2910 = vshrl.u32 %v2909, 7
        %v2911 = vsub.s32 %v2908, %v2910
        %v2912 = vrot.slane %v2898, %v2911
        %v2913 = vcombine.high %v2905, %v2905
        %v2914 = vcombine.high %v2912, %v2912
        %v2915 = vcombine.high %v1989, %v1989
        %v2917 = vunpack.c.l.s4 1983009808
        %v2918 = vunpack.c.0.s8 %v2917
        %v2919 = vlaneseq
        %v2920 = vshrl.u32 %v2919, 7
        %v2921 = vsub.s32 %v2918, %v2920
        %v2922 = vrot.slane %v1989, %v2921
        %v2924 = vunpack.c.l.s4 1983009808
        %v2925 = vunpack.c.0.s8 %v2924
        %v2926 = vlaneseq
        %v2927 = vshrl.u32 %v2926, 7
        %v2928 = vsub.s32 %v2925, %v2927
        %v2929 = vrot.slane %v2915, %v2928
        %v2930 = vcombine.high %v2922, %v2922
        %v2931 = vcombine.high %v2929, %v2929
        %v2932 = vcombine.high %v1992, %v1992
        %v2934 = vunpack.c.l.s4 1983009808
        %v2935 = vunpack.c.0.s8 %v2934
        %v2936 = vlaneseq
        %v2937 = vshrl.u32 %v2936, 7
        %v2938 = vsub.s32 %v2935, %v2937
        %v2939 = vrot.slane %v1992, %v2938
        %v2941 = vunpack.c.l.s4 1983009808
        %v2942 = vunpack.c.0.s8 %v2941
        %v2943 = vlaneseq
        %v2944 = vshrl.u32 %v2943, 7
        %v2945 = vsub.s32 %v2942, %v2944
        %v2946 = vrot.slane %v2932, %v2945
        %v2947 = vcombine.high %v2939, %v2939
        %v2948 = vcombine.high %v2946, %v2946
        %v2949 = vcombine.high %v1995, %v1995
        %v2951 = vunpack.c.l.s4 1983009808
        %v2952 = vunpack.c.0.s8 %v2951
        %v2953 = vlaneseq
        %v2954 = vshrl.u32 %v2953, 7
        %v2955 = vsub.s32 %v2952, %v2954
        %v2956 = vrot.slane %v1995, %v2955
        %v2958 = vunpack.c.l.s4 1983009808
        %v2959 = vunpack.c.0.s8 %v2958
        %v2960 = vlaneseq
        %v2961 = vshrl.u32 %v2960, 7
        %v2962 = vsub.s32 %v2959, %v2961
        %v2963 = vrot.slane %v2949, %v2962
        %v2964 = vcombine.high %v2956, %v2956
        %v2965 = vcombine.high %v2963, %v2963
        %v2966 = vcombine.high %v1998, %v1998
        %v2968 = vunpack.c.l.s4 1983009808
        %v2969 = vunpack.c.0.s8 %v2968
        %v2970 = vlaneseq
        %v2971 = vshrl.u32 %v2970, 7
        %v2972 = vsub.s32 %v2969, %v2971
        %v2973 = vrot.slane %v1998, %v2972
        %v2975 = vunpack.c.l.s4 1983009808
        %v2976 = vunpack.c.0.s8 %v2975
        %v2977 = vlaneseq
        %v2978 = vshrl.u32 %v2977, 7
        %v2979 = vsub.s32 %v2976, %v2978
        %v2980 = vrot.slane %v2966, %v2979
        %v2981 = vcombine.high %v2973, %v2973
        %v2982 = vcombine.high %v2980, %v2980
        %v2983 = vcombine.high %v2001, %v2001
        %v2985 = vunpack.c.l.s4 1983009808
        %v2986 = vunpack.c.0.s8 %v2985
        %v2987 = vlaneseq
        %v2988 = vshrl.u32 %v2987, 7
        %v2989 = vsub.s32 %v2986, %v2988
        %v2990 = vrot.slane %v2001, %v2989
        %v2992 = vunpack.c.l.s4 1983009808
        %v2993 = vunpack.c.0.s8 %v2992
        %v2994 = vlaneseq
        %v2995 = vshrl.u32 %v2994, 7
        %v2996 = vsub.s32 %v2993, %v2995
        %v2997 = vrot.slane %v2983, %v2996
        %v2998 = vcombine.high %v2990, %v2990
        %v2999 = vcombine.high %v2997, %v2997
        %v3000 = vcombine.high %v2004, %v2004
        %v3002 = vunpack.c.l.s4 1983009808
        %v3003 = vunpack.c.0.s8 %v3002
        %v3004 = vlaneseq
        %v3005 = vshrl.u32 %v3004, 7
        %v3006 = vsub.s32 %v3003, %v3005
        %v3007 = vrot.slane %v2004, %v3006
        %v3009 = vunpack.c.l.s4 1983009808
        %v3010 = vunpack.c.0.s8 %v3009
        %v3011 = vlaneseq
        %v3012 = vshrl.u32 %v3011, 7
        %v3013 = vsub.s32 %v3010, %v3012
        %v3014 = vrot.slane %v3000, %v3013
        %v3015 = vcombine.high %v3007, %v3007
        %v3016 = vcombine.high %v3014, %v3014
        %v3017 = vcombine.high %v2007, %v2007
        %v3019 = vunpack.c.l.s4 1983009808
        %v3020 = vunpack.c.0.s8 %v3019
        %v3021 = vlaneseq
        %v3022 = vshrl.u32 %v3021, 7
        %v3023 = vsub.s32 %v3020, %v3022
        %v3024 = vrot.slane %v2007, %v3023
        %v3026 = vunpack.c.l.s4 1983009808
        %v3027 = vunpack.c.0.s8 %v3026
        %v3028 = vlaneseq
        %v3029 = vshrl.u32 %v3028, 7
        %v3030 = vsub.s32 %v3027, %v3029
        %v3031 = vrot.slane %v3017, %v3030
        %v3032 = vcombine.high %v3024, %v3024
        %v3033 = vcombine.high %v3031, %v3031
        %v3034 = vcombine.high %v2010, %v2010
        %v3036 = vunpack.c.l.s4 1983009808
        %v3037 = vunpack.c.0.s8 %v3036
        %v3038 = vlaneseq
        %v3039 = vshrl.u32 %v3038, 7
        %v3040 = vsub.s32 %v3037, %v3039
        %v3041 = vrot.slane %v2010, %v3040
        %v3043 = vunpack.c.l.s4 1983009808
        %v3044 = vunpack.c.0.s8 %v3043
        %v3045 = vlaneseq
        %v3046 = vshrl.u32 %v3045, 7
        %v3047 = vsub.s32 %v3044, %v3046
        %v3048 = vrot.slane %v3034, %v3047
        %v3049 = vcombine.high %v3041, %v3041
        %v3050 = vcombine.high %v3048, %v3048
        %v3051 = vcombine.high %v2013, %v2013
        %v3053 = vunpack.c.l.s4 1983009808
        %v3054 = vunpack.c.0.s8 %v3053
        %v3055 = vlaneseq
        %v3056 = vshrl.u32 %v3055, 7
        %v3057 = vsub.s32 %v3054, %v3056
        %v3058 = vrot.slane %v2013, %v3057
        %v3060 = vunpack.c.l.s4 1983009808
        %v3061 = vunpack.c.0.s8 %v3060
        %v3062 = vlaneseq
        %v3063 = vshrl.u32 %v3062, 7
        %v3064 = vsub.s32 %v3061, %v3063
        %v3065 = vrot.slane %v3051, %v3064
        %v3066 = vcombine.high %v3058, %v3058
        %v3067 = vcombine.high %v3065, %v3065
        %v3068 = vcombine.high %v2016, %v2016
        %v3070 = vunpack.c.l.s4 1983009808
        %v3071 = vunpack.c.0.s8 %v3070
        %v3072 = vlaneseq
        %v3073 = vshrl.u32 %v3072, 7
        %v3074 = vsub.s32 %v3071, %v3073
        %v3075 = vrot.slane %v2016, %v3074
        %v3077 = vunpack.c.l.s4 1983009808
        %v3078 = vunpack.c.0.s8 %v3077
        %v3079 = vlaneseq
        %v3080 = vshrl.u32 %v3079, 7
        %v3081 = vsub.s32 %v3078, %v3080
        %v3082 = vrot.slane %v3068, %v3081
        %v3083 = vcombine.high %v3075, %v3075
        %v3084 = vcombine.high %v3082, %v3082
        %v3085 = vcombine.high %v2019, %v2019
        %v3087 = vunpack.c.l.s4 1983009808
        %v3088 = vunpack.c.0.s8 %v3087
        %v3089 = vlaneseq
        %v3090 = vshrl.u32 %v3089, 7
        %v3091 = vsub.s32 %v3088, %v3090
        %v3092 = vrot.slane %v2019, %v3091
        %v3094 = vunpack.c.l.s4 1983009808
        %v3095 = vunpack.c.0.s8 %v3094
        %v3096 = vlaneseq
        %v3097 = vshrl.u32 %v3096, 7
        %v3098 = vsub.s32 %v3095, %v3097
        %v3099 = vrot.slane %v3085, %v3098
        %v3100 = vcombine.high %v3092, %v3092
        %v3101 = vcombine.high %v3099, %v3099
        %v3102 = vcombine.high %v2022, %v2022
        %v3104 = vunpack.c.l.s4 1983009808
        %v3105 = vunpack.c.0.s8 %v3104
        %v3106 = vlaneseq
        %v3107 = vshrl.u32 %v3106, 7
        %v3108 = vsub.s32 %v3105, %v3107
        %v3109 = vrot.slane %v2022, %v3108
        %v3111 = vunpack.c.l.s4 1983009808
        %v3112 = vunpack.c.0.s8 %v3111
        %v3113 = vlaneseq
        %v3114 = vshrl.u32 %v3113, 7
        %v3115 = vsub.s32 %v3112, %v3114
        %v3116 = vrot.slane %v3102, %v3115
        %v3117 = vcombine.high %v3109, %v3109
        %v3118 = vcombine.high %v3116, %v3116
        %v3119 = vcombine.high %v2025, %v2025
        %v3121 = vunpack.c.l.s4 1983009808
        %v3122 = vunpack.c.0.s8 %v3121
        %v3123 = vlaneseq
        %v3124 = vshrl.u32 %v3123, 7
        %v3125 = vsub.s32 %v3122, %v3124
        %v3126 = vrot.slane %v2025, %v3125
        %v3128 = vunpack.c.l.s4 1983009808
        %v3129 = vunpack.c.0.s8 %v3128
        %v3130 = vlaneseq
        %v3131 = vshrl.u32 %v3130, 7
        %v3132 = vsub.s32 %v3129, %v3131
        %v3133 = vrot.slane %v3119, %v3132
        %v3134 = vcombine.high %v3126, %v3126
        %v3135 = vcombine.high %v3133, %v3133
        %v3136 = vcombine.high %v2028, %v2028
        %v3138 = vunpack.c.l.s4 1983009808
        %v3139 = vunpack.c.0.s8 %v3138
        %v3140 = vlaneseq
        %v3141 = vshrl.u32 %v3140, 7
        %v3142 = vsub.s32 %v3139, %v3141
        %v3143 = vrot.slane %v2028, %v3142
        %v3145 = vunpack.c.l.s4 1983009808
        %v3146 = vunpack.c.0.s8 %v3145
        %v3147 = vlaneseq
        %v3148 = vshrl.u32 %v3147, 7
        %v3149 = vsub.s32 %v3146, %v3148
        %v3150 = vrot.slane %v3136, %v3149
        %v3151 = vcombine.high %v3143, %v3143
        %v3152 = vcombine.high %v3150, %v3150
        %v3153 = vcombine.high %v2031, %v2031
        %v3155 = vunpack.c.l.s4 1983009808
        %v3156 = vunpack.c.0.s8 %v3155
        %v3157 = vlaneseq
        %v3158 = vshrl.u32 %v3157, 7
        %v3159 = vsub.s32 %v3156, %v3158
        %v3160 = vrot.slane %v2031, %v3159
        %v3162 = vunpack.c.l.s4 1983009808
        %v3163 = vunpack.c.0.s8 %v3162
        %v3164 = vlaneseq
        %v3165 = vshrl.u32 %v3164, 7
        %v3166 = vsub.s32 %v3163, %v3165
        %v3167 = vrot.slane %v3153, %v3166
        %v3168 = vcombine.high %v3160, %v3160
        %v3169 = vcombine.high %v3167, %v3167
        %v3170 = vcombine.high %v2034, %v2034
        %v3172 = vunpack.c.l.s4 1983009808
        %v3173 = vunpack.c.0.s8 %v3172
        %v3174 = vlaneseq
        %v3175 = vshrl.u32 %v3174, 7
        %v3176 = vsub.s32 %v3173, %v3175
        %v3177 = vrot.slane %v2034, %v3176
        %v3179 = vunpack.c.l.s4 1983009808
        %v3180 = vunpack.c.0.s8 %v3179
        %v3181 = vlaneseq
        %v3182 = vshrl.u32 %v3181, 7
        %v3183 = vsub.s32 %v3180, %v3182
        %v3184 = vrot.slane %v3170, %v3183
        %v3185 = vcombine.high %v3177, %v3177
        %v3186 = vcombine.high %v3184, %v3184
        %vm3443 = vcmask 254976
        %v3444 = vsel %vm3443, %v2106, -inf
        %v3445 = vrot.slane %v3444, 4
        %v3446 = vmax.f32 %v3444, %v3445
        %v3447 = vrot.slane %v3446, 2
        %v3448 = vmax.f32 %v3446, %v3447
        %v3449 = vrot.slane %v3448, 1
        %v3450 = vmax.f32 %v3448, %v3449
        %v3451 = vsel %vm3443, %v2114, -inf
        %v3452 = vrot.slane %v3451, 4
        %v3453 = vmax.f32 %v3451, %v3452
        %v3454 = vrot.slane %v3453, 2
        %v3455 = vmax.f32 %v3453, %v3454
        %v3456 = vrot.slane %v3455, 1
        %v3457 = vmax.f32 %v3455, %v3456
        %v3458 = vsel %vm3443, %v2113, -inf
        %v3459 = vrot.slane %v3458, 4
        %v3460 = vmax.f32 %v3458, %v3459
        %v3461 = vrot.slane %v3460, 2
        %v3462 = vmax.f32 %v3460, %v3461
        %v3463 = vrot.slane %v3462, 1
        %v3464 = vmax.f32 %v3462, %v3463
        %v3465 = vsel %vm3443, %v2115, -inf
        %v3466 = vrot.slane %v3465, 4
        %v3467 = vmax.f32 %v3465, %v3466
        %v3468 = vrot.slane %v3467, 2
        %v3469 = vmax.f32 %v3467, %v3468
        %v3470 = vrot.slane %v3469, 1
        %v3471 = vmax.f32 %v3469, %v3470
        %v3472 = vsel %vm3443, %v2123, -inf
        %v3473 = vrot.slane %v3472, 4
        %v3474 = vmax.f32 %v3472, %v3473
        %v3475 = vrot.slane %v3474, 2
        %v3476 = vmax.f32 %v3474, %v3475
        %v3477 = vrot.slane %v3476, 1
        %v3478 = vmax.f32 %v3476, %v3477
        %v3479 = vsel %vm3443, %v2131, -inf
        %v3480 = vrot.slane %v3479, 4
        %v3481 = vmax.f32 %v3479, %v3480
        %v3482 = vrot.slane %v3481, 2
        %v3483 = vmax.f32 %v3481, %v3482
        %v3484 = vrot.slane %v3483, 1
        %v3485 = vmax.f32 %v3483, %v3484
        %v3486 = vsel %vm3443, %v2130, -inf
        %v3487 = vrot.slane %v3486, 4
        %v3488 = vmax.f32 %v3486, %v3487
        %v3489 = vrot.slane %v3488, 2
        %v3490 = vmax.f32 %v3488, %v3489
        %v3491 = vrot.slane %v3490, 1
        %v3492 = vmax.f32 %v3490, %v3491
        %v3493 = vsel %vm3443, %v2132, -inf
        %v3494 = vrot.slane %v3493, 4
        %v3495 = vmax.f32 %v3493, %v3494
        %v3496 = vrot.slane %v3495, 2
        %v3497 = vmax.f32 %v3495, %v3496
        %v3498 = vrot.slane %v3497, 1
        %v3499 = vmax.f32 %v3497, %v3498
        %v3500 = vsel %vm3443, %v2140, -inf
        %v3501 = vrot.slane %v3500, 4
        %v3502 = vmax.f32 %v3500, %v3501
        %v3503 = vrot.slane %v3502, 2
        %v3504 = vmax.f32 %v3502, %v3503
        %v3505 = vrot.slane %v3504, 1
        %v3506 = vmax.f32 %v3504, %v3505
        %v3507 = vsel %vm3443, %v2148, -inf
        %v3508 = vrot.slane %v3507, 4
        %v3509 = vmax.f32 %v3507, %v3508
        %v3510 = vrot.slane %v3509, 2
        %v3511 = vmax.f32 %v3509, %v3510
        %v3512 = vrot.slane %v3511, 1
        %v3513 = vmax.f32 %v3511, %v3512
        %v3514 = vsel %vm3443, %v2147, -inf
        %v3515 = vrot.slane %v3514, 4
        %v3516 = vmax.f32 %v3514, %v3515
        %v3517 = vrot.slane %v3516, 2
        %v3518 = vmax.f32 %v3516, %v3517
        %v3519 = vrot.slane %v3518, 1
        %v3520 = vmax.f32 %v3518, %v3519
        %v3521 = vsel %vm3443, %v2149, -inf
        %v3522 = vrot.slane %v3521, 4
        %v3523 = vmax.f32 %v3521, %v3522
        %v3524 = vrot.slane %v3523, 2
        %v3525 = vmax.f32 %v3523, %v3524
        %v3526 = vrot.slane %v3525, 1
        %v3527 = vmax.f32 %v3525, %v3526
        %v3528 = vsel %vm3443, %v2157, -inf
        %v3529 = vrot.slane %v3528, 4
        %v3530 = vmax.f32 %v3528, %v3529
        %v3531 = vrot.slane %v3530, 2
        %v3532 = vmax.f32 %v3530, %v3531
        %v3533 = vrot.slane %v3532, 1
        %v3534 = vmax.f32 %v3532, %v3533
        %v3535 = vsel %vm3443, %v2165, -inf
        %v3536 = vrot.slane %v3535, 4
        %v3537 = vmax.f32 %v3535, %v3536
        %v3538 = vrot.slane %v3537, 2
        %v3539 = vmax.f32 %v3537, %v3538
        %v3540 = vrot.slane %v3539, 1
        %v3541 = vmax.f32 %v3539, %v3540
        %v3542 = vsel %vm3443, %v2164, -inf
        %v3543 = vrot.slane %v3542, 4
        %v3544 = vmax.f32 %v3542, %v3543
        %v3545 = vrot.slane %v3544, 2
        %v3546 = vmax.f32 %v3544, %v3545
        %v3547 = vrot.slane %v3546, 1
        %v3548 = vmax.f32 %v3546, %v3547
        %v3549 = vsel %vm3443, %v2166, -inf
        %v3550 = vrot.slane %v3549, 4
        %v3551 = vmax.f32 %v3549, %v3550
        %v3552 = vrot.slane %v3551, 2
        %v3553 = vmax.f32 %v3551, %v3552
        %v3554 = vrot.slane %v3553, 1
        %v3555 = vmax.f32 %v3553, %v3554
        %v3556 = vsel %vm3443, %v2174, -inf
        %v3557 = vrot.slane %v3556, 4
        %v3558 = vmax.f32 %v3556, %v3557
        %v3559 = vrot.slane %v3558, 2
        %v3560 = vmax.f32 %v3558, %v3559
        %v3561 = vrot.slane %v3560, 1
        %v3562 = vmax.f32 %v3560, %v3561
        %v3563 = vsel %vm3443, %v2182, -inf
        %v3564 = vrot.slane %v3563, 4
        %v3565 = vmax.f32 %v3563, %v3564
        %v3566 = vrot.slane %v3565, 2
        %v3567 = vmax.f32 %v3565, %v3566
        %v3568 = vrot.slane %v3567, 1
        %v3569 = vmax.f32 %v3567, %v3568
        %v3570 = vsel %vm3443, %v2181, -inf
        %v3571 = vrot.slane %v3570, 4
        %v3572 = vmax.f32 %v3570, %v3571
        %v3573 = vrot.slane %v3572, 2
        %v3574 = vmax.f32 %v3572, %v3573
        %v3575 = vrot.slane %v3574, 1
        %v3576 = vmax.f32 %v3574, %v3575
        %v3577 = vsel %vm3443, %v2183, -inf
        %v3578 = vrot.slane %v3577, 4
        %v3579 = vmax.f32 %v3577, %v3578
        %v3580 = vrot.slane %v3579, 2
        %v3581 = vmax.f32 %v3579, %v3580
        %v3582 = vrot.slane %v3581, 1
        %v3583 = vmax.f32 %v3581, %v3582
        %v3584 = vsel %vm3443, %v2191, -inf
        %v3585 = vrot.slane %v3584, 4
        %v3586 = vmax.f32 %v3584, %v3585
        %v3587 = vrot.slane %v3586, 2
        %v3588 = vmax.f32 %v3586, %v3587
        %v3589 = vrot.slane %v3588, 1
        %v3590 = vmax.f32 %v3588, %v3589
        %v3591 = vsel %vm3443, %v2199, -inf
        %v3592 = vrot.slane %v3591, 4
        %v3593 = vmax.f32 %v3591, %v3592
        %v3594 = vrot.slane %v3593, 2
        %v3595 = vmax.f32 %v3593, %v3594
        %v3596 = vrot.slane %v3595, 1
        %v3597 = vmax.f32 %v3595, %v3596
        %v3598 = vsel %vm3443, %v2198, -inf
        %v3599 = vrot.slane %v3598, 4
        %v3600 = vmax.f32 %v3598, %v3599
        %v3601 = vrot.slane %v3600, 2
        %v3602 = vmax.f32 %v3600, %v3601
        %v3603 = vrot.slane %v3602, 1
        %v3604 = vmax.f32 %v3602, %v3603
        %v3605 = vsel %vm3443, %v2200, -inf
        %v3606 = vrot.slane %v3605, 4
        %v3607 = vmax.f32 %v3605, %v3606
        %v3608 = vrot.slane %v3607, 2
        %v3609 = vmax.f32 %v3607, %v3608
        %v3610 = vrot.slane %v3609, 1
        %v3611 = vmax.f32 %v3609, %v3610
        %v3612 = vsel %vm3443, %v2208, -inf
        %v3613 = vrot.slane %v3612, 4
        %v3614 = vmax.f32 %v3612, %v3613
        %v3615 = vrot.slane %v3614, 2
        %v3616 = vmax.f32 %v3614, %v3615
        %v3617 = vrot.slane %v3616, 1
        %v3618 = vmax.f32 %v3616, %v3617
        %v3619 = vsel %vm3443, %v2216, -inf
        %v3620 = vrot.slane %v3619, 4
        %v3621 = vmax.f32 %v3619, %v3620
        %v3622 = vrot.slane %v3621, 2
        %v3623 = vmax.f32 %v3621, %v3622
        %v3624 = vrot.slane %v3623, 1
        %v3625 = vmax.f32 %v3623, %v3624
        %v3626 = vsel %vm3443, %v2215, -inf
        %v3627 = vrot.slane %v3626, 4
        %v3628 = vmax.f32 %v3626, %v3627
        %v3629 = vrot.slane %v3628, 2
        %v3630 = vmax.f32 %v3628, %v3629
        %v3631 = vrot.slane %v3630, 1
        %v3632 = vmax.f32 %v3630, %v3631
        %v3633 = vsel %vm3443, %v2217, -inf
        %v3634 = vrot.slane %v3633, 4
        %v3635 = vmax.f32 %v3633, %v3634
        %v3636 = vrot.slane %v3635, 2
        %v3637 = vmax.f32 %v3635, %v3636
        %v3638 = vrot.slane %v3637, 1
        %v3639 = vmax.f32 %v3637, %v3638
        %v3640 = vsel %vm3443, %v2225, -inf
        %v3641 = vrot.slane %v3640, 4
        %v3642 = vmax.f32 %v3640, %v3641
        %v3643 = vrot.slane %v3642, 2
        %v3644 = vmax.f32 %v3642, %v3643
        %v3645 = vrot.slane %v3644, 1
        %v3646 = vmax.f32 %v3644, %v3645
        %v3647 = vsel %vm3443, %v2233, -inf
        %v3648 = vrot.slane %v3647, 4
        %v3649 = vmax.f32 %v3647, %v3648
        %v3650 = vrot.slane %v3649, 2
        %v3651 = vmax.f32 %v3649, %v3650
        %v3652 = vrot.slane %v3651, 1
        %v3653 = vmax.f32 %v3651, %v3652
        %v3654 = vsel %vm3443, %v2232, -inf
        %v3655 = vrot.slane %v3654, 4
        %v3656 = vmax.f32 %v3654, %v3655
        %v3657 = vrot.slane %v3656, 2
        %v3658 = vmax.f32 %v3656, %v3657
        %v3659 = vrot.slane %v3658, 1
        %v3660 = vmax.f32 %v3658, %v3659
        %v3661 = vsel %vm3443, %v2234, -inf
        %v3662 = vrot.slane %v3661, 4
        %v3663 = vmax.f32 %v3661, %v3662
        %v3664 = vrot.slane %v3663, 2
        %v3665 = vmax.f32 %v3663, %v3664
        %v3666 = vrot.slane %v3665, 1
        %v3667 = vmax.f32 %v3665, %v3666
        %v3668 = vsel %vm3443, %v2242, -inf
        %v3669 = vrot.slane %v3668, 4
        %v3670 = vmax.f32 %v3668, %v3669
        %v3671 = vrot.slane %v3670, 2
        %v3672 = vmax.f32 %v3670, %v3671
        %v3673 = vrot.slane %v3672, 1
        %v3674 = vmax.f32 %v3672, %v3673
        %v3675 = vsel %vm3443, %v2250, -inf
        %v3676 = vrot.slane %v3675, 4
        %v3677 = vmax.f32 %v3675, %v3676
        %v3678 = vrot.slane %v3677, 2
        %v3679 = vmax.f32 %v3677, %v3678
        %v3680 = vrot.slane %v3679, 1
        %v3681 = vmax.f32 %v3679, %v3680
        %v3682 = vsel %vm3443, %v2249, -inf
        %v3683 = vrot.slane %v3682, 4
        %v3684 = vmax.f32 %v3682, %v3683
        %v3685 = vrot.slane %v3684, 2
        %v3686 = vmax.f32 %v3684, %v3685
        %v3687 = vrot.slane %v3686, 1
        %v3688 = vmax.f32 %v3686, %v3687
        %v3689 = vsel %vm3443, %v2251, -inf
        %v3690 = vrot.slane %v3689, 4
        %v3691 = vmax.f32 %v3689, %v3690
        %v3692 = vrot.slane %v3691, 2
        %v3693 = vmax.f32 %v3691, %v3692
        %v3694 = vrot.slane %v3693, 1
        %v3695 = vmax.f32 %v3693, %v3694
        %v3696 = vsel %vm3443, %v2259, -inf
        %v3697 = vrot.slane %v3696, 4
        %v3698 = vmax.f32 %v3696, %v3697
        %v3699 = vrot.slane %v3698, 2
        %v3700 = vmax.f32 %v3698, %v3699
        %v3701 = vrot.slane %v3700, 1
        %v3702 = vmax.f32 %v3700, %v3701
        %v3703 = vsel %vm3443, %v2267, -inf
        %v3704 = vrot.slane %v3703, 4
        %v3705 = vmax.f32 %v3703, %v3704
        %v3706 = vrot.slane %v3705, 2
        %v3707 = vmax.f32 %v3705, %v3706
        %v3708 = vrot.slane %v3707, 1
        %v3709 = vmax.f32 %v3707, %v3708
        %v3710 = vsel %vm3443, %v2266, -inf
        %v3711 = vrot.slane %v3710, 4
        %v3712 = vmax.f32 %v3710, %v3711
        %v3713 = vrot.slane %v3712, 2
        %v3714 = vmax.f32 %v3712, %v3713
        %v3715 = vrot.slane %v3714, 1
        %v3716 = vmax.f32 %v3714, %v3715
        %v3717 = vsel %vm3443, %v2268, -inf
        %v3718 = vrot.slane %v3717, 4
        %v3719 = vmax.f32 %v3717, %v3718
        %v3720 = vrot.slane %v3719, 2
        %v3721 = vmax.f32 %v3719, %v3720
        %v3722 = vrot.slane %v3721, 1
        %v3723 = vmax.f32 %v3721, %v3722
        %v3724 = vsel %vm3443, %v2276, -inf
        %v3725 = vrot.slane %v3724, 4
        %v3726 = vmax.f32 %v3724, %v3725
        %v3727 = vrot.slane %v3726, 2
        %v3728 = vmax.f32 %v3726, %v3727
        %v3729 = vrot.slane %v3728, 1
        %v3730 = vmax.f32 %v3728, %v3729
        %v3731 = vsel %vm3443, %v2284, -inf
        %v3732 = vrot.slane %v3731, 4
        %v3733 = vmax.f32 %v3731, %v3732
        %v3734 = vrot.slane %v3733, 2
        %v3735 = vmax.f32 %v3733, %v3734
        %v3736 = vrot.slane %v3735, 1
        %v3737 = vmax.f32 %v3735, %v3736
        %v3738 = vsel %vm3443, %v2283, -inf
        %v3739 = vrot.slane %v3738, 4
        %v3740 = vmax.f32 %v3738, %v3739
        %v3741 = vrot.slane %v3740, 2
        %v3742 = vmax.f32 %v3740, %v3741
        %v3743 = vrot.slane %v3742, 1
        %v3744 = vmax.f32 %v3742, %v3743
        %v3745 = vsel %vm3443, %v2285, -inf
        %v3746 = vrot.slane %v3745, 4
        %v3747 = vmax.f32 %v3745, %v3746
        %v3748 = vrot.slane %v3747, 2
        %v3749 = vmax.f32 %v3747, %v3748
        %v3750 = vrot.slane %v3749, 1
        %v3751 = vmax.f32 %v3749, %v3750
        %v3752 = vsel %vm3443, %v2293, -inf
        %v3753 = vrot.slane %v3752, 4
        %v3754 = vmax.f32 %v3752, %v3753
        %v3755 = vrot.slane %v3754, 2
        %v3756 = vmax.f32 %v3754, %v3755
        %v3757 = vrot.slane %v3756, 1
        %v3758 = vmax.f32 %v3756, %v3757
        %v3759 = vsel %vm3443, %v2301, -inf
        %v3760 = vrot.slane %v3759, 4
        %v3761 = vmax.f32 %v3759, %v3760
        %v3762 = vrot.slane %v3761, 2
        %v3763 = vmax.f32 %v3761, %v3762
        %v3764 = vrot.slane %v3763, 1
        %v3765 = vmax.f32 %v3763, %v3764
        %v3766 = vsel %vm3443, %v2300, -inf
        %v3767 = vrot.slane %v3766, 4
        %v3768 = vmax.f32 %v3766, %v3767
        %v3769 = vrot.slane %v3768, 2
        %v3770 = vmax.f32 %v3768, %v3769
        %v3771 = vrot.slane %v3770, 1
        %v3772 = vmax.f32 %v3770, %v3771
        %v3773 = vsel %vm3443, %v2302, -inf
        %v3774 = vrot.slane %v3773, 4
        %v3775 = vmax.f32 %v3773, %v3774
        %v3776 = vrot.slane %v3775, 2
        %v3777 = vmax.f32 %v3775, %v3776
        %v3778 = vrot.slane %v3777, 1
        %v3779 = vmax.f32 %v3777, %v3778
        %v3780 = vsel %vm3443, %v2310, -inf
        %v3781 = vrot.slane %v3780, 4
        %v3782 = vmax.f32 %v3780, %v3781
        %v3783 = vrot.slane %v3782, 2
        %v3784 = vmax.f32 %v3782, %v3783
        %v3785 = vrot.slane %v3784, 1
        %v3786 = vmax.f32 %v3784, %v3785
        %v3787 = vsel %vm3443, %v2318, -inf
        %v3788 = vrot.slane %v3787, 4
        %v3789 = vmax.f32 %v3787, %v3788
        %v3790 = vrot.slane %v3789, 2
        %v3791 = vmax.f32 %v3789, %v3790
        %v3792 = vrot.slane %v3791, 1
        %v3793 = vmax.f32 %v3791, %v3792
        %v3794 = vsel %vm3443, %v2317, -inf
        %v3795 = vrot.slane %v3794, 4
        %v3796 = vmax.f32 %v3794, %v3795
        %v3797 = vrot.slane %v3796, 2
        %v3798 = vmax.f32 %v3796, %v3797
        %v3799 = vrot.slane %v3798, 1
        %v3800 = vmax.f32 %v3798, %v3799
        %v3801 = vsel %vm3443, %v2319, -inf
        %v3802 = vrot.slane %v3801, 4
        %v3803 = vmax.f32 %v3801, %v3802
        %v3804 = vrot.slane %v3803, 2
        %v3805 = vmax.f32 %v3803, %v3804
        %v3806 = vrot.slane %v3805, 1
        %v3807 = vmax.f32 %v3805, %v3806
        %v3808 = vsel %vm3443, %v2327, -inf
        %v3809 = vrot.slane %v3808, 4
        %v3810 = vmax.f32 %v3808, %v3809
        %v3811 = vrot.slane %v3810, 2
        %v3812 = vmax.f32 %v3810, %v3811
        %v3813 = vrot.slane %v3812, 1
        %v3814 = vmax.f32 %v3812, %v3813
        %v3815 = vsel %vm3443, %v2335, -inf
        %v3816 = vrot.slane %v3815, 4
        %v3817 = vmax.f32 %v3815, %v3816
        %v3818 = vrot.slane %v3817, 2
        %v3819 = vmax.f32 %v3817, %v3818
        %v3820 = vrot.slane %v3819, 1
        %v3821 = vmax.f32 %v3819, %v3820
        %v3822 = vsel %vm3443, %v2334, -inf
        %v3823 = vrot.slane %v3822, 4
        %v3824 = vmax.f32 %v3822, %v3823
        %v3825 = vrot.slane %v3824, 2
        %v3826 = vmax.f32 %v3824, %v3825
        %v3827 = vrot.slane %v3826, 1
        %v3828 = vmax.f32 %v3826, %v3827
        %v3829 = vsel %vm3443, %v2336, -inf
        %v3830 = vrot.slane %v3829, 4
        %v3831 = vmax.f32 %v3829, %v3830
        %v3832 = vrot.slane %v3831, 2
        %v3833 = vmax.f32 %v3831, %v3832
        %v3834 = vrot.slane %v3833, 1
        %v3835 = vmax.f32 %v3833, %v3834
        %v3836 = vsel %vm3443, %v2344, -inf
        %v3837 = vrot.slane %v3836, 4
        %v3838 = vmax.f32 %v3836, %v3837
        %v3839 = vrot.slane %v3838, 2
        %v3840 = vmax.f32 %v3838, %v3839
        %v3841 = vrot.slane %v3840, 1
        %v3842 = vmax.f32 %v3840, %v3841
        %v3843 = vsel %vm3443, %v2352, -inf
        %v3844 = vrot.slane %v3843, 4
        %v3845 = vmax.f32 %v3843, %v3844
        %v3846 = vrot.slane %v3845, 2
        %v3847 = vmax.f32 %v3845, %v3846
        %v3848 = vrot.slane %v3847, 1
        %v3849 = vmax.f32 %v3847, %v3848
        %v3850 = vsel %vm3443, %v2351, -inf
        %v3851 = vrot.slane %v3850, 4
        %v3852 = vmax.f32 %v3850, %v3851
        %v3853 = vrot.slane %v3852, 2
        %v3854 = vmax.f32 %v3852, %v3853
        %v3855 = vrot.slane %v3854, 1
        %v3856 = vmax.f32 %v3854, %v3855
        %v3857 = vsel %vm3443, %v2353, -inf
        %v3858 = vrot.slane %v3857, 4
        %v3859 = vmax.f32 %v3857, %v3858
        %v3860 = vrot.slane %v3859, 2
        %v3861 = vmax.f32 %v3859, %v3860
        %v3862 = vrot.slane %v3861, 1
        %v3863 = vmax.f32 %v3861, %v3862
        %v3864 = vsel %vm3443, %v2361, -inf
        %v3865 = vrot.slane %v3864, 4
        %v3866 = vmax.f32 %v3864, %v3865
        %v3867 = vrot.slane %v3866, 2
        %v3868 = vmax.f32 %v3866, %v3867
        %v3869 = vrot.slane %v3868, 1
        %v3870 = vmax.f32 %v3868, %v3869
        %v3871 = vsel %vm3443, %v2369, -inf
        %v3872 = vrot.slane %v3871, 4
        %v3873 = vmax.f32 %v3871, %v3872
        %v3874 = vrot.slane %v3873, 2
        %v3875 = vmax.f32 %v3873, %v3874
        %v3876 = vrot.slane %v3875, 1
        %v3877 = vmax.f32 %v3875, %v3876
        %v3878 = vsel %vm3443, %v2368, -inf
        %v3879 = vrot.slane %v3878, 4
        %v3880 = vmax.f32 %v3878, %v3879
        %v3881 = vrot.slane %v3880, 2
        %v3882 = vmax.f32 %v3880, %v3881
        %v3883 = vrot.slane %v3882, 1
        %v3884 = vmax.f32 %v3882, %v3883
        %v3885 = vsel %vm3443, %v2370, -inf
        %v3886 = vrot.slane %v3885, 4
        %v3887 = vmax.f32 %v3885, %v3886
        %v3888 = vrot.slane %v3887, 2
        %v3889 = vmax.f32 %v3887, %v3888
        %v3890 = vrot.slane %v3889, 1
        %v3891 = vmax.f32 %v3889, %v3890
        %v3892 = vsel %vm3443, %v2378, -inf
        %v3893 = vrot.slane %v3892, 4
        %v3894 = vmax.f32 %v3892, %v3893
        %v3895 = vrot.slane %v3894, 2
        %v3896 = vmax.f32 %v3894, %v3895
        %v3897 = vrot.slane %v3896, 1
        %v3898 = vmax.f32 %v3896, %v3897
        %v3899 = vsel %vm3443, %v2386, -inf
        %v3900 = vrot.slane %v3899, 4
        %v3901 = vmax.f32 %v3899, %v3900
        %v3902 = vrot.slane %v3901, 2
        %v3903 = vmax.f32 %v3901, %v3902
        %v3904 = vrot.slane %v3903, 1
        %v3905 = vmax.f32 %v3903, %v3904
        %v3906 = vsel %vm3443, %v2385, -inf
        %v3907 = vrot.slane %v3906, 4
        %v3908 = vmax.f32 %v3906, %v3907
        %v3909 = vrot.slane %v3908, 2
        %v3910 = vmax.f32 %v3908, %v3909
        %v3911 = vrot.slane %v3910, 1
        %v3912 = vmax.f32 %v3910, %v3911
        %v3913 = vsel %vm3443, %v2387, -inf
        %v3914 = vrot.slane %v3913, 4
        %v3915 = vmax.f32 %v3913, %v3914
        %v3916 = vrot.slane %v3915, 2
        %v3917 = vmax.f32 %v3915, %v3916
        %v3918 = vrot.slane %v3917, 1
        %v3919 = vmax.f32 %v3917, %v3918
        %v3920 = vsel %vm3443, %v2395, -inf
        %v3921 = vrot.slane %v3920, 4
        %v3922 = vmax.f32 %v3920, %v3921
        %v3923 = vrot.slane %v3922, 2
        %v3924 = vmax.f32 %v3922, %v3923
        %v3925 = vrot.slane %v3924, 1
        %v3926 = vmax.f32 %v3924, %v3925
        %v3927 = vsel %vm3443, %v2403, -inf
        %v3928 = vrot.slane %v3927, 4
        %v3929 = vmax.f32 %v3927, %v3928
        %v3930 = vrot.slane %v3929, 2
        %v3931 = vmax.f32 %v3929, %v3930
        %v3932 = vrot.slane %v3931, 1
        %v3933 = vmax.f32 %v3931, %v3932
        %v3934 = vsel %vm3443, %v2402, -inf
        %v3935 = vrot.slane %v3934, 4
        %v3936 = vmax.f32 %v3934, %v3935
        %v3937 = vrot.slane %v3936, 2
        %v3938 = vmax.f32 %v3936, %v3937
        %v3939 = vrot.slane %v3938, 1
        %v3940 = vmax.f32 %v3938, %v3939
        %v3941 = vsel %vm3443, %v2404, -inf
        %v3942 = vrot.slane %v3941, 4
        %v3943 = vmax.f32 %v3941, %v3942
        %v3944 = vrot.slane %v3943, 2
        %v3945 = vmax.f32 %v3943, %v3944
        %v3946 = vrot.slane %v3945, 1
        %v3947 = vmax.f32 %v3945, %v3946
        %v3948 = vsel %vm3443, %v2412, -inf
        %v3949 = vrot.slane %v3948, 4
        %v3950 = vmax.f32 %v3948, %v3949
        %v3951 = vrot.slane %v3950, 2
        %v3952 = vmax.f32 %v3950, %v3951
        %v3953 = vrot.slane %v3952, 1
        %v3954 = vmax.f32 %v3952, %v3953
        %v3955 = vsel %vm3443, %v2420, -inf
        %v3956 = vrot.slane %v3955, 4
        %v3957 = vmax.f32 %v3955, %v3956
        %v3958 = vrot.slane %v3957, 2
        %v3959 = vmax.f32 %v3957, %v3958
        %v3960 = vrot.slane %v3959, 1
        %v3961 = vmax.f32 %v3959, %v3960
        %v3962 = vsel %vm3443, %v2419, -inf
        %v3963 = vrot.slane %v3962, 4
        %v3964 = vmax.f32 %v3962, %v3963
        %v3965 = vrot.slane %v3964, 2
        %v3966 = vmax.f32 %v3964, %v3965
        %v3967 = vrot.slane %v3966, 1
        %v3968 = vmax.f32 %v3966, %v3967
        %v3969 = vsel %vm3443, %v2421, -inf
        %v3970 = vrot.slane %v3969, 4
        %v3971 = vmax.f32 %v3969, %v3970
        %v3972 = vrot.slane %v3971, 2
        %v3973 = vmax.f32 %v3971, %v3972
        %v3974 = vrot.slane %v3973, 1
        %v3975 = vmax.f32 %v3973, %v3974
        %v3976 = vsel %vm3443, %v2429, -inf
        %v3977 = vrot.slane %v3976, 4
        %v3978 = vmax.f32 %v3976, %v3977
        %v3979 = vrot.slane %v3978, 2
        %v3980 = vmax.f32 %v3978, %v3979
        %v3981 = vrot.slane %v3980, 1
        %v3982 = vmax.f32 %v3980, %v3981
        %v3983 = vsel %vm3443, %v2437, -inf
        %v3984 = vrot.slane %v3983, 4
        %v3985 = vmax.f32 %v3983, %v3984
        %v3986 = vrot.slane %v3985, 2
        %v3987 = vmax.f32 %v3985, %v3986
        %v3988 = vrot.slane %v3987, 1
        %v3989 = vmax.f32 %v3987, %v3988
        %v3990 = vsel %vm3443, %v2436, -inf
        %v3991 = vrot.slane %v3990, 4
        %v3992 = vmax.f32 %v3990, %v3991
        %v3993 = vrot.slane %v3992, 2
        %v3994 = vmax.f32 %v3992, %v3993
        %v3995 = vrot.slane %v3994, 1
        %v3996 = vmax.f32 %v3994, %v3995
        %v3997 = vsel %vm3443, %v2438, -inf
        %v3998 = vrot.slane %v3997, 4
        %v3999 = vmax.f32 %v3997, %v3998
        %v4000 = vrot.slane %v3999, 2
        %v4001 = vmax.f32 %v3999, %v4000
        %v4002 = vrot.slane %v4001, 1
        %v4003 = vmax.f32 %v4001, %v4002
        %v4004 = vsel %vm3443, %v2446, -inf
        %v4005 = vrot.slane %v4004, 4
        %v4006 = vmax.f32 %v4004, %v4005
        %v4007 = vrot.slane %v4006, 2
        %v4008 = vmax.f32 %v4006, %v4007
        %v4009 = vrot.slane %v4008, 1
        %v4010 = vmax.f32 %v4008, %v4009
        %v4011 = vsel %vm3443, %v2454, -inf
        %v4012 = vrot.slane %v4011, 4
        %v4013 = vmax.f32 %v4011, %v4012
        %v4014 = vrot.slane %v4013, 2
        %v4015 = vmax.f32 %v4013, %v4014
        %v4016 = vrot.slane %v4015, 1
        %v4017 = vmax.f32 %v4015, %v4016
        %v4018 = vsel %vm3443, %v2453, -inf
        %v4019 = vrot.slane %v4018, 4
        %v4020 = vmax.f32 %v4018, %v4019
        %v4021 = vrot.slane %v4020, 2
        %v4022 = vmax.f32 %v4020, %v4021
        %v4023 = vrot.slane %v4022, 1
        %v4024 = vmax.f32 %v4022, %v4023
        %v4025 = vsel %vm3443, %v2455, -inf
        %v4026 = vrot.slane %v4025, 4
        %v4027 = vmax.f32 %v4025, %v4026
        %v4028 = vrot.slane %v4027, 2
        %v4029 = vmax.f32 %v4027, %v4028
        %v4030 = vrot.slane %v4029, 1
        %v4031 = vmax.f32 %v4029, %v4030
        %v4032 = vsel %vm3443, %v2463, -inf
        %v4033 = vrot.slane %v4032, 4
        %v4034 = vmax.f32 %v4032, %v4033
        %v4035 = vrot.slane %v4034, 2
        %v4036 = vmax.f32 %v4034, %v4035
        %v4037 = vrot.slane %v4036, 1
        %v4038 = vmax.f32 %v4036, %v4037
        %v4039 = vsel %vm3443, %v2471, -inf
        %v4040 = vrot.slane %v4039, 4
        %v4041 = vmax.f32 %v4039, %v4040
        %v4042 = vrot.slane %v4041, 2
        %v4043 = vmax.f32 %v4041, %v4042
        %v4044 = vrot.slane %v4043, 1
        %v4045 = vmax.f32 %v4043, %v4044
        %v4046 = vsel %vm3443, %v2470, -inf
        %v4047 = vrot.slane %v4046, 4
        %v4048 = vmax.f32 %v4046, %v4047
        %v4049 = vrot.slane %v4048, 2
        %v4050 = vmax.f32 %v4048, %v4049
        %v4051 = vrot.slane %v4050, 1
        %v4052 = vmax.f32 %v4050, %v4051
        %v4053 = vsel %vm3443, %v2472, -inf
        %v4054 = vrot.slane %v4053, 4
        %v4055 = vmax.f32 %v4053, %v4054
        %v4056 = vrot.slane %v4055, 2
        %v4057 = vmax.f32 %v4055, %v4056
        %v4058 = vrot.slane %v4057, 1
        %v4059 = vmax.f32 %v4057, %v4058
        %v4060 = vsel %vm3443, %v2480, -inf
        %v4061 = vrot.slane %v4060, 4
        %v4062 = vmax.f32 %v4060, %v4061
        %v4063 = vrot.slane %v4062, 2
        %v4064 = vmax.f32 %v4062, %v4063
        %v4065 = vrot.slane %v4064, 1
        %v4066 = vmax.f32 %v4064, %v4065
        %v4067 = vsel %vm3443, %v2488, -inf
        %v4068 = vrot.slane %v4067, 4
        %v4069 = vmax.f32 %v4067, %v4068
        %v4070 = vrot.slane %v4069, 2
        %v4071 = vmax.f32 %v4069, %v4070
        %v4072 = vrot.slane %v4071, 1
        %v4073 = vmax.f32 %v4071, %v4072
        %v4074 = vsel %vm3443, %v2487, -inf
        %v4075 = vrot.slane %v4074, 4
        %v4076 = vmax.f32 %v4074, %v4075
        %v4077 = vrot.slane %v4076, 2
        %v4078 = vmax.f32 %v4076, %v4077
        %v4079 = vrot.slane %v4078, 1
        %v4080 = vmax.f32 %v4078, %v4079
        %v4081 = vsel %vm3443, %v2489, -inf
        %v4082 = vrot.slane %v4081, 4
        %v4083 = vmax.f32 %v4081, %v4082
        %v4084 = vrot.slane %v4083, 2
        %v4085 = vmax.f32 %v4083, %v4084
        %v4086 = vrot.slane %v4085, 1
        %v4087 = vmax.f32 %v4085, %v4086
        %v4088 = vsel %vm3443, %v2497, -inf
        %v4089 = vrot.slane %v4088, 4
        %v4090 = vmax.f32 %v4088, %v4089
        %v4091 = vrot.slane %v4090, 2
        %v4092 = vmax.f32 %v4090, %v4091
        %v4093 = vrot.slane %v4092, 1
        %v4094 = vmax.f32 %v4092, %v4093
        %v4095 = vsel %vm3443, %v2505, -inf
        %v4096 = vrot.slane %v4095, 4
        %v4097 = vmax.f32 %v4095, %v4096
        %v4098 = vrot.slane %v4097, 2
        %v4099 = vmax.f32 %v4097, %v4098
        %v4100 = vrot.slane %v4099, 1
        %v4101 = vmax.f32 %v4099, %v4100
        %v4102 = vsel %vm3443, %v2504, -inf
        %v4103 = vrot.slane %v4102, 4
        %v4104 = vmax.f32 %v4102, %v4103
        %v4105 = vrot.slane %v4104, 2
        %v4106 = vmax.f32 %v4104, %v4105
        %v4107 = vrot.slane %v4106, 1
        %v4108 = vmax.f32 %v4106, %v4107
        %v4109 = vsel %vm3443, %v2506, -inf
        %v4110 = vrot.slane %v4109, 4
        %v4111 = vmax.f32 %v4109, %v4110
        %v4112 = vrot.slane %v4111, 2
        %v4113 = vmax.f32 %v4111, %v4112
        %v4114 = vrot.slane %v4113, 1
        %v4115 = vmax.f32 %v4113, %v4114
        %v4116 = vsel %vm3443, %v2514, -inf
        %v4117 = vrot.slane %v4116, 4
        %v4118 = vmax.f32 %v4116, %v4117
        %v4119 = vrot.slane %v4118, 2
        %v4120 = vmax.f32 %v4118, %v4119
        %v4121 = vrot.slane %v4120, 1
        %v4122 = vmax.f32 %v4120, %v4121
        %v4123 = vsel %vm3443, %v2522, -inf
        %v4124 = vrot.slane %v4123, 4
        %v4125 = vmax.f32 %v4123, %v4124
        %v4126 = vrot.slane %v4125, 2
        %v4127 = vmax.f32 %v4125, %v4126
        %v4128 = vrot.slane %v4127, 1
        %v4129 = vmax.f32 %v4127, %v4128
        %v4130 = vsel %vm3443, %v2521, -inf
        %v4131 = vrot.slane %v4130, 4
        %v4132 = vmax.f32 %v4130, %v4131
        %v4133 = vrot.slane %v4132, 2
        %v4134 = vmax.f32 %v4132, %v4133
        %v4135 = vrot.slane %v4134, 1
        %v4136 = vmax.f32 %v4134, %v4135
        %v4137 = vsel %vm3443, %v2523, -inf
        %v4138 = vrot.slane %v4137, 4
        %v4139 = vmax.f32 %v4137, %v4138
        %v4140 = vrot.slane %v4139, 2
        %v4141 = vmax.f32 %v4139, %v4140
        %v4142 = vrot.slane %v4141, 1
        %v4143 = vmax.f32 %v4141, %v4142
        %v4144 = vsel %vm3443, %v2531, -inf
        %v4145 = vrot.slane %v4144, 4
        %v4146 = vmax.f32 %v4144, %v4145
        %v4147 = vrot.slane %v4146, 2
        %v4148 = vmax.f32 %v4146, %v4147
        %v4149 = vrot.slane %v4148, 1
        %v4150 = vmax.f32 %v4148, %v4149
        %v4151 = vsel %vm3443, %v2539, -inf
        %v4152 = vrot.slane %v4151, 4
        %v4153 = vmax.f32 %v4151, %v4152
        %v4154 = vrot.slane %v4153, 2
        %v4155 = vmax.f32 %v4153, %v4154
        %v4156 = vrot.slane %v4155, 1
        %v4157 = vmax.f32 %v4155, %v4156
        %v4158 = vsel %vm3443, %v2538, -inf
        %v4159 = vrot.slane %v4158, 4
        %v4160 = vmax.f32 %v4158, %v4159
        %v4161 = vrot.slane %v4160, 2
        %v4162 = vmax.f32 %v4160, %v4161
        %v4163 = vrot.slane %v4162, 1
        %v4164 = vmax.f32 %v4162, %v4163
        %v4165 = vsel %vm3443, %v2540, -inf
        %v4166 = vrot.slane %v4165, 4
        %v4167 = vmax.f32 %v4165, %v4166
        %v4168 = vrot.slane %v4167, 2
        %v4169 = vmax.f32 %v4167, %v4168
        %v4170 = vrot.slane %v4169, 1
        %v4171 = vmax.f32 %v4169, %v4170
        %v4172 = vsel %vm3443, %v2548, -inf
        %v4173 = vrot.slane %v4172, 4
        %v4174 = vmax.f32 %v4172, %v4173
        %v4175 = vrot.slane %v4174, 2
        %v4176 = vmax.f32 %v4174, %v4175
        %v4177 = vrot.slane %v4176, 1
        %v4178 = vmax.f32 %v4176, %v4177
        %v4179 = vsel %vm3443, %v2556, -inf
        %v4180 = vrot.slane %v4179, 4
        %v4181 = vmax.f32 %v4179, %v4180
        %v4182 = vrot.slane %v4181, 2
        %v4183 = vmax.f32 %v4181, %v4182
        %v4184 = vrot.slane %v4183, 1
        %v4185 = vmax.f32 %v4183, %v4184
        %v4186 = vsel %vm3443, %v2555, -inf
        %v4187 = vrot.slane %v4186, 4
        %v4188 = vmax.f32 %v4186, %v4187
        %v4189 = vrot.slane %v4188, 2
        %v4190 = vmax.f32 %v4188, %v4189
        %v4191 = vrot.slane %v4190, 1
        %v4192 = vmax.f32 %v4190, %v4191
        %v4193 = vsel %vm3443, %v2557, -inf
        %v4194 = vrot.slane %v4193, 4
        %v4195 = vmax.f32 %v4193, %v4194
        %v4196 = vrot.slane %v4195, 2
        %v4197 = vmax.f32 %v4195, %v4196
        %v4198 = vrot.slane %v4197, 1
        %v4199 = vmax.f32 %v4197, %v4198
        %v4200 = vsel %vm3443, %v2565, -inf
        %v4201 = vrot.slane %v4200, 4
        %v4202 = vmax.f32 %v4200, %v4201
        %v4203 = vrot.slane %v4202, 2
        %v4204 = vmax.f32 %v4202, %v4203
        %v4205 = vrot.slane %v4204, 1
        %v4206 = vmax.f32 %v4204, %v4205
        %v4207 = vsel %vm3443, %v2573, -inf
        %v4208 = vrot.slane %v4207, 4
        %v4209 = vmax.f32 %v4207, %v4208
        %v4210 = vrot.slane %v4209, 2
        %v4211 = vmax.f32 %v4209, %v4210
        %v4212 = vrot.slane %v4211, 1
        %v4213 = vmax.f32 %v4211, %v4212
        %v4214 = vsel %vm3443, %v2572, -inf
        %v4215 = vrot.slane %v4214, 4
        %v4216 = vmax.f32 %v4214, %v4215
        %v4217 = vrot.slane %v4216, 2
        %v4218 = vmax.f32 %v4216, %v4217
        %v4219 = vrot.slane %v4218, 1
        %v4220 = vmax.f32 %v4218, %v4219
        %v4221 = vsel %vm3443, %v2574, -inf
        %v4222 = vrot.slane %v4221, 4
        %v4223 = vmax.f32 %v4221, %v4222
        %v4224 = vrot.slane %v4223, 2
        %v4225 = vmax.f32 %v4223, %v4224
        %v4226 = vrot.slane %v4225, 1
        %v4227 = vmax.f32 %v4225, %v4226
        %v4228 = vsel %vm3443, %v2582, -inf
        %v4229 = vrot.slane %v4228, 4
        %v4230 = vmax.f32 %v4228, %v4229
        %v4231 = vrot.slane %v4230, 2
        %v4232 = vmax.f32 %v4230, %v4231
        %v4233 = vrot.slane %v4232, 1
        %v4234 = vmax.f32 %v4232, %v4233
        %v4235 = vsel %vm3443, %v2590, -inf
        %v4236 = vrot.slane %v4235, 4
        %v4237 = vmax.f32 %v4235, %v4236
        %v4238 = vrot.slane %v4237, 2
        %v4239 = vmax.f32 %v4237, %v4238
        %v4240 = vrot.slane %v4239, 1
        %v4241 = vmax.f32 %v4239, %v4240
        %v4242 = vsel %vm3443, %v2589, -inf
        %v4243 = vrot.slane %v4242, 4
        %v4244 = vmax.f32 %v4242, %v4243
        %v4245 = vrot.slane %v4244, 2
        %v4246 = vmax.f32 %v4244, %v4245
        %v4247 = vrot.slane %v4246, 1
        %v4248 = vmax.f32 %v4246, %v4247
        %v4249 = vsel %vm3443, %v2591, -inf
        %v4250 = vrot.slane %v4249, 4
        %v4251 = vmax.f32 %v4249, %v4250
        %v4252 = vrot.slane %v4251, 2
        %v4253 = vmax.f32 %v4251, %v4252
        %v4254 = vrot.slane %v4253, 1
        %v4255 = vmax.f32 %v4253, %v4254
        %v4256 = vsel %vm3443, %v2599, -inf
        %v4257 = vrot.slane %v4256, 4
        %v4258 = vmax.f32 %v4256, %v4257
        %v4259 = vrot.slane %v4258, 2
        %v4260 = vmax.f32 %v4258, %v4259
        %v4261 = vrot.slane %v4260, 1
        %v4262 = vmax.f32 %v4260, %v4261
        %v4263 = vsel %vm3443, %v2607, -inf
        %v4264 = vrot.slane %v4263, 4
        %v4265 = vmax.f32 %v4263, %v4264
        %v4266 = vrot.slane %v4265, 2
        %v4267 = vmax.f32 %v4265, %v4266
        %v4268 = vrot.slane %v4267, 1
        %v4269 = vmax.f32 %v4267, %v4268
        %v4270 = vsel %vm3443, %v2606, -inf
        %v4271 = vrot.slane %v4270, 4
        %v4272 = vmax.f32 %v4270, %v4271
        %v4273 = vrot.slane %v4272, 2
        %v4274 = vmax.f32 %v4272, %v4273
        %v4275 = vrot.slane %v4274, 1
        %v4276 = vmax.f32 %v4274, %v4275
        %v4277 = vsel %vm3443, %v2608, -inf
        %v4278 = vrot.slane %v4277, 4
        %v4279 = vmax.f32 %v4277, %v4278
        %v4280 = vrot.slane %v4279, 2
        %v4281 = vmax.f32 %v4279, %v4280
        %v4282 = vrot.slane %v4281, 1
        %v4283 = vmax.f32 %v4281, %v4282
        %v4284 = vsel %vm3443, %v2616, -inf
        %v4285 = vrot.slane %v4284, 4
        %v4286 = vmax.f32 %v4284, %v4285
        %v4287 = vrot.slane %v4286, 2
        %v4288 = vmax.f32 %v4286, %v4287
        %v4289 = vrot.slane %v4288, 1
        %v4290 = vmax.f32 %v4288, %v4289
        %v4291 = vsel %vm3443, %v2624, -inf
        %v4292 = vrot.slane %v4291, 4
        %v4293 = vmax.f32 %v4291, %v4292
        %v4294 = vrot.slane %v4293, 2
        %v4295 = vmax.f32 %v4293, %v4294
        %v4296 = vrot.slane %v4295, 1
        %v4297 = vmax.f32 %v4295, %v4296
        %v4298 = vsel %vm3443, %v2623, -inf
        %v4299 = vrot.slane %v4298, 4
        %v4300 = vmax.f32 %v4298, %v4299
        %v4301 = vrot.slane %v4300, 2
        %v4302 = vmax.f32 %v4300, %v4301
        %v4303 = vrot.slane %v4302, 1
        %v4304 = vmax.f32 %v4302, %v4303
        %v4305 = vsel %vm3443, %v2625, -inf
        %v4306 = vrot.slane %v4305, 4
        %v4307 = vmax.f32 %v4305, %v4306
        %v4308 = vrot.slane %v4307, 2
        %v4309 = vmax.f32 %v4307, %v4308
        %v4310 = vrot.slane %v4309, 1
        %v4311 = vmax.f32 %v4309, %v4310
        %v4312 = vsel %vm3443, %v2633, -inf
        %v4313 = vrot.slane %v4312, 4
        %v4314 = vmax.f32 %v4312, %v4313
        %v4315 = vrot.slane %v4314, 2
        %v4316 = vmax.f32 %v4314, %v4315
        %v4317 = vrot.slane %v4316, 1
        %v4318 = vmax.f32 %v4316, %v4317
        %v4319 = vsel %vm3443, %v2641, -inf
        %v4320 = vrot.slane %v4319, 4
        %v4321 = vmax.f32 %v4319, %v4320
        %v4322 = vrot.slane %v4321, 2
        %v4323 = vmax.f32 %v4321, %v4322
        %v4324 = vrot.slane %v4323, 1
        %v4325 = vmax.f32 %v4323, %v4324
        %v4326 = vsel %vm3443, %v2640, -inf
        %v4327 = vrot.slane %v4326, 4
        %v4328 = vmax.f32 %v4326, %v4327
        %v4329 = vrot.slane %v4328, 2
        %v4330 = vmax.f32 %v4328, %v4329
        %v4331 = vrot.slane %v4330, 1
        %v4332 = vmax.f32 %v4330, %v4331
        %v4333 = vsel %vm3443, %v2642, -inf
        %v4334 = vrot.slane %v4333, 4
        %v4335 = vmax.f32 %v4333, %v4334
        %v4336 = vrot.slane %v4335, 2
        %v4337 = vmax.f32 %v4335, %v4336
        %v4338 = vrot.slane %v4337, 1
        %v4339 = vmax.f32 %v4337, %v4338
        %v4340 = vsel %vm3443, %v2650, -inf
        %v4341 = vrot.slane %v4340, 4
        %v4342 = vmax.f32 %v4340, %v4341
        %v4343 = vrot.slane %v4342, 2
        %v4344 = vmax.f32 %v4342, %v4343
        %v4345 = vrot.slane %v4344, 1
        %v4346 = vmax.f32 %v4344, %v4345
        %v4347 = vsel %vm3443, %v2658, -inf
        %v4348 = vrot.slane %v4347, 4
        %v4349 = vmax.f32 %v4347, %v4348
        %v4350 = vrot.slane %v4349, 2
        %v4351 = vmax.f32 %v4349, %v4350
        %v4352 = vrot.slane %v4351, 1
        %v4353 = vmax.f32 %v4351, %v4352
        %v4354 = vsel %vm3443, %v2657, -inf
        %v4355 = vrot.slane %v4354, 4
        %v4356 = vmax.f32 %v4354, %v4355
        %v4357 = vrot.slane %v4356, 2
        %v4358 = vmax.f32 %v4356, %v4357
        %v4359 = vrot.slane %v4358, 1
        %v4360 = vmax.f32 %v4358, %v4359
        %v4361 = vsel %vm3443, %v2659, -inf
        %v4362 = vrot.slane %v4361, 4
        %v4363 = vmax.f32 %v4361, %v4362
        %v4364 = vrot.slane %v4363, 2
        %v4365 = vmax.f32 %v4363, %v4364
        %v4366 = vrot.slane %v4365, 1
        %v4367 = vmax.f32 %v4365, %v4366
        %v4368 = vsel %vm3443, %v2667, -inf
        %v4369 = vrot.slane %v4368, 4
        %v4370 = vmax.f32 %v4368, %v4369
        %v4371 = vrot.slane %v4370, 2
        %v4372 = vmax.f32 %v4370, %v4371
        %v4373 = vrot.slane %v4372, 1
        %v4374 = vmax.f32 %v4372, %v4373
        %v4375 = vsel %vm3443, %v2675, -inf
        %v4376 = vrot.slane %v4375, 4
        %v4377 = vmax.f32 %v4375, %v4376
        %v4378 = vrot.slane %v4377, 2
        %v4379 = vmax.f32 %v4377, %v4378
        %v4380 = vrot.slane %v4379, 1
        %v4381 = vmax.f32 %v4379, %v4380
        %v4382 = vsel %vm3443, %v2674, -inf
        %v4383 = vrot.slane %v4382, 4
        %v4384 = vmax.f32 %v4382, %v4383
        %v4385 = vrot.slane %v4384, 2
        %v4386 = vmax.f32 %v4384, %v4385
        %v4387 = vrot.slane %v4386, 1
        %v4388 = vmax.f32 %v4386, %v4387
        %v4389 = vsel %vm3443, %v2676, -inf
        %v4390 = vrot.slane %v4389, 4
        %v4391 = vmax.f32 %v4389, %v4390
        %v4392 = vrot.slane %v4391, 2
        %v4393 = vmax.f32 %v4391, %v4392
        %v4394 = vrot.slane %v4393, 1
        %v4395 = vmax.f32 %v4393, %v4394
        %v4396 = vsel %vm3443, %v2684, -inf
        %v4397 = vrot.slane %v4396, 4
        %v4398 = vmax.f32 %v4396, %v4397
        %v4399 = vrot.slane %v4398, 2
        %v4400 = vmax.f32 %v4398, %v4399
        %v4401 = vrot.slane %v4400, 1
        %v4402 = vmax.f32 %v4400, %v4401
        %v4403 = vsel %vm3443, %v2692, -inf
        %v4404 = vrot.slane %v4403, 4
        %v4405 = vmax.f32 %v4403, %v4404
        %v4406 = vrot.slane %v4405, 2
        %v4407 = vmax.f32 %v4405, %v4406
        %v4408 = vrot.slane %v4407, 1
        %v4409 = vmax.f32 %v4407, %v4408
        %v4410 = vsel %vm3443, %v2691, -inf
        %v4411 = vrot.slane %v4410, 4
        %v4412 = vmax.f32 %v4410, %v4411
        %v4413 = vrot.slane %v4412, 2
        %v4414 = vmax.f32 %v4412, %v4413
        %v4415 = vrot.slane %v4414, 1
        %v4416 = vmax.f32 %v4414, %v4415
        %v4417 = vsel %vm3443, %v2693, -inf
        %v4418 = vrot.slane %v4417, 4
        %v4419 = vmax.f32 %v4417, %v4418
        %v4420 = vrot.slane %v4419, 2
        %v4421 = vmax.f32 %v4419, %v4420
        %v4422 = vrot.slane %v4421, 1
        %v4423 = vmax.f32 %v4421, %v4422
        %v4424 = vsel %vm3443, %v2701, -inf
        %v4425 = vrot.slane %v4424, 4
        %v4426 = vmax.f32 %v4424, %v4425
        %v4427 = vrot.slane %v4426, 2
        %v4428 = vmax.f32 %v4426, %v4427
        %v4429 = vrot.slane %v4428, 1
        %v4430 = vmax.f32 %v4428, %v4429
        %v4431 = vsel %vm3443, %v2709, -inf
        %v4432 = vrot.slane %v4431, 4
        %v4433 = vmax.f32 %v4431, %v4432
        %v4434 = vrot.slane %v4433, 2
        %v4435 = vmax.f32 %v4433, %v4434
        %v4436 = vrot.slane %v4435, 1
        %v4437 = vmax.f32 %v4435, %v4436
        %v4438 = vsel %vm3443, %v2708, -inf
        %v4439 = vrot.slane %v4438, 4
        %v4440 = vmax.f32 %v4438, %v4439
        %v4441 = vrot.slane %v4440, 2
        %v4442 = vmax.f32 %v4440, %v4441
        %v4443 = vrot.slane %v4442, 1
        %v4444 = vmax.f32 %v4442, %v4443
        %v4445 = vsel %vm3443, %v2710, -inf
        %v4446 = vrot.slane %v4445, 4
        %v4447 = vmax.f32 %v4445, %v4446
        %v4448 = vrot.slane %v4447, 2
        %v4449 = vmax.f32 %v4447, %v4448
        %v4450 = vrot.slane %v4449, 1
        %v4451 = vmax.f32 %v4449, %v4450
        %v4452 = vsel %vm3443, %v2718, -inf
        %v4453 = vrot.slane %v4452, 4
        %v4454 = vmax.f32 %v4452, %v4453
        %v4455 = vrot.slane %v4454, 2
        %v4456 = vmax.f32 %v4454, %v4455
        %v4457 = vrot.slane %v4456, 1
        %v4458 = vmax.f32 %v4456, %v4457
        %v4459 = vsel %vm3443, %v2726, -inf
        %v4460 = vrot.slane %v4459, 4
        %v4461 = vmax.f32 %v4459, %v4460
        %v4462 = vrot.slane %v4461, 2
        %v4463 = vmax.f32 %v4461, %v4462
        %v4464 = vrot.slane %v4463, 1
        %v4465 = vmax.f32 %v4463, %v4464
        %v4466 = vsel %vm3443, %v2725, -inf
        %v4467 = vrot.slane %v4466, 4
        %v4468 = vmax.f32 %v4466, %v4467
        %v4469 = vrot.slane %v4468, 2
        %v4470 = vmax.f32 %v4468, %v4469
        %v4471 = vrot.slane %v4470, 1
        %v4472 = vmax.f32 %v4470, %v4471
        %v4473 = vsel %vm3443, %v2727, -inf
        %v4474 = vrot.slane %v4473, 4
        %v4475 = vmax.f32 %v4473, %v4474
        %v4476 = vrot.slane %v4475, 2
        %v4477 = vmax.f32 %v4475, %v4476
        %v4478 = vrot.slane %v4477, 1
        %v4479 = vmax.f32 %v4477, %v4478
        %v4480 = vsel %vm3443, %v2735, -inf
        %v4481 = vrot.slane %v4480, 4
        %v4482 = vmax.f32 %v4480, %v4481
        %v4483 = vrot.slane %v4482, 2
        %v4484 = vmax.f32 %v4482, %v4483
        %v4485 = vrot.slane %v4484, 1
        %v4486 = vmax.f32 %v4484, %v4485
        %v4487 = vsel %vm3443, %v2743, -inf
        %v4488 = vrot.slane %v4487, 4
        %v4489 = vmax.f32 %v4487, %v4488
        %v4490 = vrot.slane %v4489, 2
        %v4491 = vmax.f32 %v4489, %v4490
        %v4492 = vrot.slane %v4491, 1
        %v4493 = vmax.f32 %v4491, %v4492
        %v4494 = vsel %vm3443, %v2742, -inf
        %v4495 = vrot.slane %v4494, 4
        %v4496 = vmax.f32 %v4494, %v4495
        %v4497 = vrot.slane %v4496, 2
        %v4498 = vmax.f32 %v4496, %v4497
        %v4499 = vrot.slane %v4498, 1
        %v4500 = vmax.f32 %v4498, %v4499
        %v4501 = vsel %vm3443, %v2744, -inf
        %v4502 = vrot.slane %v4501, 4
        %v4503 = vmax.f32 %v4501, %v4502
        %v4504 = vrot.slane %v4503, 2
        %v4505 = vmax.f32 %v4503, %v4504
        %v4506 = vrot.slane %v4505, 1
        %v4507 = vmax.f32 %v4505, %v4506
        %v4508 = vsel %vm3443, %v2752, -inf
        %v4509 = vrot.slane %v4508, 4
        %v4510 = vmax.f32 %v4508, %v4509
        %v4511 = vrot.slane %v4510, 2
        %v4512 = vmax.f32 %v4510, %v4511
        %v4513 = vrot.slane %v4512, 1
        %v4514 = vmax.f32 %v4512, %v4513
        %v4515 = vsel %vm3443, %v2760, -inf
        %v4516 = vrot.slane %v4515, 4
        %v4517 = vmax.f32 %v4515, %v4516
        %v4518 = vrot.slane %v4517, 2
        %v4519 = vmax.f32 %v4517, %v4518
        %v4520 = vrot.slane %v4519, 1
        %v4521 = vmax.f32 %v4519, %v4520
        %v4522 = vsel %vm3443, %v2759, -inf
        %v4523 = vrot.slane %v4522, 4
        %v4524 = vmax.f32 %v4522, %v4523
        %v4525 = vrot.slane %v4524, 2
        %v4526 = vmax.f32 %v4524, %v4525
        %v4527 = vrot.slane %v4526, 1
        %v4528 = vmax.f32 %v4526, %v4527
        %v4529 = vsel %vm3443, %v2761, -inf
        %v4530 = vrot.slane %v4529, 4
        %v4531 = vmax.f32 %v4529, %v4530
        %v4532 = vrot.slane %v4531, 2
        %v4533 = vmax.f32 %v4531, %v4532
        %v4534 = vrot.slane %v4533, 1
        %v4535 = vmax.f32 %v4533, %v4534
        %v4536 = vsel %vm3443, %v2769, -inf
        %v4537 = vrot.slane %v4536, 4
        %v4538 = vmax.f32 %v4536, %v4537
        %v4539 = vrot.slane %v4538, 2
        %v4540 = vmax.f32 %v4538, %v4539
        %v4541 = vrot.slane %v4540, 1
        %v4542 = vmax.f32 %v4540, %v4541
        %v4543 = vsel %vm3443, %v2777, -inf
        %v4544 = vrot.slane %v4543, 4
        %v4545 = vmax.f32 %v4543, %v4544
        %v4546 = vrot.slane %v4545, 2
        %v4547 = vmax.f32 %v4545, %v4546
        %v4548 = vrot.slane %v4547, 1
        %v4549 = vmax.f32 %v4547, %v4548
        %v4550 = vsel %vm3443, %v2776, -inf
        %v4551 = vrot.slane %v4550, 4
        %v4552 = vmax.f32 %v4550, %v4551
        %v4553 = vrot.slane %v4552, 2
        %v4554 = vmax.f32 %v4552, %v4553
        %v4555 = vrot.slane %v4554, 1
        %v4556 = vmax.f32 %v4554, %v4555
        %v4557 = vsel %vm3443, %v2778, -inf
        %v4558 = vrot.slane %v4557, 4
        %v4559 = vmax.f32 %v4557, %v4558
        %v4560 = vrot.slane %v4559, 2
        %v4561 = vmax.f32 %v4559, %v4560
        %v4562 = vrot.slane %v4561, 1
        %v4563 = vmax.f32 %v4561, %v4562
        %v4564 = vsel %vm3443, %v2786, -inf
        %v4565 = vrot.slane %v4564, 4
        %v4566 = vmax.f32 %v4564, %v4565
        %v4567 = vrot.slane %v4566, 2
        %v4568 = vmax.f32 %v4566, %v4567
        %v4569 = vrot.slane %v4568, 1
        %v4570 = vmax.f32 %v4568, %v4569
        %v4571 = vsel %vm3443, %v2794, -inf
        %v4572 = vrot.slane %v4571, 4
        %v4573 = vmax.f32 %v4571, %v4572
        %v4574 = vrot.slane %v4573, 2
        %v4575 = vmax.f32 %v4573, %v4574
        %v4576 = vrot.slane %v4575, 1
        %v4577 = vmax.f32 %v4575, %v4576
        %v4578 = vsel %vm3443, %v2793, -inf
        %v4579 = vrot.slane %v4578, 4
        %v4580 = vmax.f32 %v4578, %v4579
        %v4581 = vrot.slane %v4580, 2
        %v4582 = vmax.f32 %v4580, %v4581
        %v4583 = vrot.slane %v4582, 1
        %v4584 = vmax.f32 %v4582, %v4583
        %v4585 = vsel %vm3443, %v2795, -inf
        %v4586 = vrot.slane %v4585, 4
        %v4587 = vmax.f32 %v4585, %v4586
        %v4588 = vrot.slane %v4587, 2
        %v4589 = vmax.f32 %v4587, %v4588
        %v4590 = vrot.slane %v4589, 1
        %v4591 = vmax.f32 %v4589, %v4590
        %v4592 = vsel %vm3443, %v2803, -inf
        %v4593 = vrot.slane %v4592, 4
        %v4594 = vmax.f32 %v4592, %v4593
        %v4595 = vrot.slane %v4594, 2
        %v4596 = vmax.f32 %v4594, %v4595
        %v4597 = vrot.slane %v4596, 1
        %v4598 = vmax.f32 %v4596, %v4597
        %v4599 = vsel %vm3443, %v2811, -inf
        %v4600 = vrot.slane %v4599, 4
        %v4601 = vmax.f32 %v4599, %v4600
        %v4602 = vrot.slane %v4601, 2
        %v4603 = vmax.f32 %v4601, %v4602
        %v4604 = vrot.slane %v4603, 1
        %v4605 = vmax.f32 %v4603, %v4604
        %v4606 = vsel %vm3443, %v2810, -inf
        %v4607 = vrot.slane %v4606, 4
        %v4608 = vmax.f32 %v4606, %v4607
        %v4609 = vrot.slane %v4608, 2
        %v4610 = vmax.f32 %v4608, %v4609
        %v4611 = vrot.slane %v4610, 1
        %v4612 = vmax.f32 %v4610, %v4611
        %v4613 = vsel %vm3443, %v2812, -inf
        %v4614 = vrot.slane %v4613, 4
        %v4615 = vmax.f32 %v4613, %v4614
        %v4616 = vrot.slane %v4615, 2
        %v4617 = vmax.f32 %v4615, %v4616
        %v4618 = vrot.slane %v4617, 1
        %v4619 = vmax.f32 %v4617, %v4618
        %v4620 = vsel %vm3443, %v2820, -inf
        %v4621 = vrot.slane %v4620, 4
        %v4622 = vmax.f32 %v4620, %v4621
        %v4623 = vrot.slane %v4622, 2
        %v4624 = vmax.f32 %v4622, %v4623
        %v4625 = vrot.slane %v4624, 1
        %v4626 = vmax.f32 %v4624, %v4625
        %v4627 = vsel %vm3443, %v2828, -inf
        %v4628 = vrot.slane %v4627, 4
        %v4629 = vmax.f32 %v4627, %v4628
        %v4630 = vrot.slane %v4629, 2
        %v4631 = vmax.f32 %v4629, %v4630
        %v4632 = vrot.slane %v4631, 1
        %v4633 = vmax.f32 %v4631, %v4632
        %v4634 = vsel %vm3443, %v2827, -inf
        %v4635 = vrot.slane %v4634, 4
        %v4636 = vmax.f32 %v4634, %v4635
        %v4637 = vrot.slane %v4636, 2
        %v4638 = vmax.f32 %v4636, %v4637
        %v4639 = vrot.slane %v4638, 1
        %v4640 = vmax.f32 %v4638, %v4639
        %v4641 = vsel %vm3443, %v2829, -inf
        %v4642 = vrot.slane %v4641, 4
        %v4643 = vmax.f32 %v4641, %v4642
        %v4644 = vrot.slane %v4643, 2
        %v4645 = vmax.f32 %v4643, %v4644
        %v4646 = vrot.slane %v4645, 1
        %v4647 = vmax.f32 %v4645, %v4646
        %v4648 = vsel %vm3443, %v2837, -inf
        %v4649 = vrot.slane %v4648, 4
        %v4650 = vmax.f32 %v4648, %v4649
        %v4651 = vrot.slane %v4650, 2
        %v4652 = vmax.f32 %v4650, %v4651
        %v4653 = vrot.slane %v4652, 1
        %v4654 = vmax.f32 %v4652, %v4653
        %v4655 = vsel %vm3443, %v2845, -inf
        %v4656 = vrot.slane %v4655, 4
        %v4657 = vmax.f32 %v4655, %v4656
        %v4658 = vrot.slane %v4657, 2
        %v4659 = vmax.f32 %v4657, %v4658
        %v4660 = vrot.slane %v4659, 1
        %v4661 = vmax.f32 %v4659, %v4660
        %v4662 = vsel %vm3443, %v2844, -inf
        %v4663 = vrot.slane %v4662, 4
        %v4664 = vmax.f32 %v4662, %v4663
        %v4665 = vrot.slane %v4664, 2
        %v4666 = vmax.f32 %v4664, %v4665
        %v4667 = vrot.slane %v4666, 1
        %v4668 = vmax.f32 %v4666, %v4667
        %v4669 = vsel %vm3443, %v2846, -inf
        %v4670 = vrot.slane %v4669, 4
        %v4671 = vmax.f32 %v4669, %v4670
        %v4672 = vrot.slane %v4671, 2
        %v4673 = vmax.f32 %v4671, %v4672
        %v4674 = vrot.slane %v4673, 1
        %v4675 = vmax.f32 %v4673, %v4674
        %v4676 = vsel %vm3443, %v2854, -inf
        %v4677 = vrot.slane %v4676, 4
        %v4678 = vmax.f32 %v4676, %v4677
        %v4679 = vrot.slane %v4678, 2
        %v4680 = vmax.f32 %v4678, %v4679
        %v4681 = vrot.slane %v4680, 1
        %v4682 = vmax.f32 %v4680, %v4681
        %v4683 = vsel %vm3443, %v2862, -inf
        %v4684 = vrot.slane %v4683, 4
        %v4685 = vmax.f32 %v4683, %v4684
        %v4686 = vrot.slane %v4685, 2
        %v4687 = vmax.f32 %v4685, %v4686
        %v4688 = vrot.slane %v4687, 1
        %v4689 = vmax.f32 %v4687, %v4688
        %v4690 = vsel %vm3443, %v2861, -inf
        %v4691 = vrot.slane %v4690, 4
        %v4692 = vmax.f32 %v4690, %v4691
        %v4693 = vrot.slane %v4692, 2
        %v4694 = vmax.f32 %v4692, %v4693
        %v4695 = vrot.slane %v4694, 1
        %v4696 = vmax.f32 %v4694, %v4695
        %v4697 = vsel %vm3443, %v2863, -inf
        %v4698 = vrot.slane %v4697, 4
        %v4699 = vmax.f32 %v4697, %v4698
        %v4700 = vrot.slane %v4699, 2
        %v4701 = vmax.f32 %v4699, %v4700
        %v4702 = vrot.slane %v4701, 1
        %v4703 = vmax.f32 %v4701, %v4702
        %v4704 = vsel %vm3443, %v2871, -inf
        %v4705 = vrot.slane %v4704, 4
        %v4706 = vmax.f32 %v4704, %v4705
        %v4707 = vrot.slane %v4706, 2
        %v4708 = vmax.f32 %v4706, %v4707
        %v4709 = vrot.slane %v4708, 1
        %v4710 = vmax.f32 %v4708, %v4709
        %v4711 = vsel %vm3443, %v2879, -inf
        %v4712 = vrot.slane %v4711, 4
        %v4713 = vmax.f32 %v4711, %v4712
        %v4714 = vrot.slane %v4713, 2
        %v4715 = vmax.f32 %v4713, %v4714
        %v4716 = vrot.slane %v4715, 1
        %v4717 = vmax.f32 %v4715, %v4716
        %v4718 = vsel %vm3443, %v2878, -inf
        %v4719 = vrot.slane %v4718, 4
        %v4720 = vmax.f32 %v4718, %v4719
        %v4721 = vrot.slane %v4720, 2
        %v4722 = vmax.f32 %v4720, %v4721
        %v4723 = vrot.slane %v4722, 1
        %v4724 = vmax.f32 %v4722, %v4723
        %v4725 = vsel %vm3443, %v2880, -inf
        %v4726 = vrot.slane %v4725, 4
        %v4727 = vmax.f32 %v4725, %v4726
        %v4728 = vrot.slane %v4727, 2
        %v4729 = vmax.f32 %v4727, %v4728
        %v4730 = vrot.slane %v4729, 1
        %v4731 = vmax.f32 %v4729, %v4730
        %v4732 = vsel %vm3443, %v2888, -inf
        %v4733 = vrot.slane %v4732, 4
        %v4734 = vmax.f32 %v4732, %v4733
        %v4735 = vrot.slane %v4734, 2
        %v4736 = vmax.f32 %v4734, %v4735
        %v4737 = vrot.slane %v4736, 1
        %v4738 = vmax.f32 %v4736, %v4737
        %v4739 = vsel %vm3443, %v2896, -inf
        %v4740 = vrot.slane %v4739, 4
        %v4741 = vmax.f32 %v4739, %v4740
        %v4742 = vrot.slane %v4741, 2
        %v4743 = vmax.f32 %v4741, %v4742
        %v4744 = vrot.slane %v4743, 1
        %v4745 = vmax.f32 %v4743, %v4744
        %v4746 = vsel %vm3443, %v2895, -inf
        %v4747 = vrot.slane %v4746, 4
        %v4748 = vmax.f32 %v4746, %v4747
        %v4749 = vrot.slane %v4748, 2
        %v4750 = vmax.f32 %v4748, %v4749
        %v4751 = vrot.slane %v4750, 1
        %v4752 = vmax.f32 %v4750, %v4751
        %v4753 = vsel %vm3443, %v2897, -inf
        %v4754 = vrot.slane %v4753, 4
        %v4755 = vmax.f32 %v4753, %v4754
        %v4756 = vrot.slane %v4755, 2
        %v4757 = vmax.f32 %v4755, %v4756
        %v4758 = vrot.slane %v4757, 1
        %v4759 = vmax.f32 %v4757, %v4758
        %v4760 = vsel %vm3443, %v2905, -inf
        %v4761 = vrot.slane %v4760, 4
        %v4762 = vmax.f32 %v4760, %v4761
        %v4763 = vrot.slane %v4762, 2
        %v4764 = vmax.f32 %v4762, %v4763
        %v4765 = vrot.slane %v4764, 1
        %v4766 = vmax.f32 %v4764, %v4765
        %v4767 = vsel %vm3443, %v2913, -inf
        %v4768 = vrot.slane %v4767, 4
        %v4769 = vmax.f32 %v4767, %v4768
        %v4770 = vrot.slane %v4769, 2
        %v4771 = vmax.f32 %v4769, %v4770
        %v4772 = vrot.slane %v4771, 1
        %v4773 = vmax.f32 %v4771, %v4772
        %v4774 = vsel %vm3443, %v2912, -inf
        %v4775 = vrot.slane %v4774, 4
        %v4776 = vmax.f32 %v4774, %v4775
        %v4777 = vrot.slane %v4776, 2
        %v4778 = vmax.f32 %v4776, %v4777
        %v4779 = vrot.slane %v4778, 1
        %v4780 = vmax.f32 %v4778, %v4779
        %v4781 = vsel %vm3443, %v2914, -inf
        %v4782 = vrot.slane %v4781, 4
        %v4783 = vmax.f32 %v4781, %v4782
        %v4784 = vrot.slane %v4783, 2
        %v4785 = vmax.f32 %v4783, %v4784
        %v4786 = vrot.slane %v4785, 1
        %v4787 = vmax.f32 %v4785, %v4786
        %v4788 = vsel %vm3443, %v2922, -inf
        %v4789 = vrot.slane %v4788, 4
        %v4790 = vmax.f32 %v4788, %v4789
        %v4791 = vrot.slane %v4790, 2
        %v4792 = vmax.f32 %v4790, %v4791
        %v4793 = vrot.slane %v4792, 1
        %v4794 = vmax.f32 %v4792, %v4793
        %v4795 = vsel %vm3443, %v2930, -inf
        %v4796 = vrot.slane %v4795, 4
        %v4797 = vmax.f32 %v4795, %v4796
        %v4798 = vrot.slane %v4797, 2
        %v4799 = vmax.f32 %v4797, %v4798
        %v4800 = vrot.slane %v4799, 1
        %v4801 = vmax.f32 %v4799, %v4800
        %v4802 = vsel %vm3443, %v2929, -inf
        %v4803 = vrot.slane %v4802, 4
        %v4804 = vmax.f32 %v4802, %v4803
        %v4805 = vrot.slane %v4804, 2
        %v4806 = vmax.f32 %v4804, %v4805
        %v4807 = vrot.slane %v4806, 1
        %v4808 = vmax.f32 %v4806, %v4807
        %v4809 = vsel %vm3443, %v2931, -inf
        %v4810 = vrot.slane %v4809, 4
        %v4811 = vmax.f32 %v4809, %v4810
        %v4812 = vrot.slane %v4811, 2
        %v4813 = vmax.f32 %v4811, %v4812
        %v4814 = vrot.slane %v4813, 1
        %v4815 = vmax.f32 %v4813, %v4814
        %v4816 = vsel %vm3443, %v2939, -inf
        %v4817 = vrot.slane %v4816, 4
        %v4818 = vmax.f32 %v4816, %v4817
        %v4819 = vrot.slane %v4818, 2
        %v4820 = vmax.f32 %v4818, %v4819
        %v4821 = vrot.slane %v4820, 1
        %v4822 = vmax.f32 %v4820, %v4821
        %v4823 = vsel %vm3443, %v2947, -inf
        %v4824 = vrot.slane %v4823, 4
        %v4825 = vmax.f32 %v4823, %v4824
        %v4826 = vrot.slane %v4825, 2
        %v4827 = vmax.f32 %v4825, %v4826
        %v4828 = vrot.slane %v4827, 1
        %v4829 = vmax.f32 %v4827, %v4828
        %v4830 = vsel %vm3443, %v2946, -inf
        %v4831 = vrot.slane %v4830, 4
        %v4832 = vmax.f32 %v4830, %v4831
        %v4833 = vrot.slane %v4832, 2
        %v4834 = vmax.f32 %v4832, %v4833
        %v4835 = vrot.slane %v4834, 1
        %v4836 = vmax.f32 %v4834, %v4835
        %v4837 = vsel %vm3443, %v2948, -inf
        %v4838 = vrot.slane %v4837, 4
        %v4839 = vmax.f32 %v4837, %v4838
        %v4840 = vrot.slane %v4839, 2
        %v4841 = vmax.f32 %v4839, %v4840
        %v4842 = vrot.slane %v4841, 1
        %v4843 = vmax.f32 %v4841, %v4842
        %v4844 = vsel %vm3443, %v2956, -inf
        %v4845 = vrot.slane %v4844, 4
        %v4846 = vmax.f32 %v4844, %v4845
        %v4847 = vrot.slane %v4846, 2
        %v4848 = vmax.f32 %v4846, %v4847
        %v4849 = vrot.slane %v4848, 1
        %v4850 = vmax.f32 %v4848, %v4849
        %v4851 = vsel %vm3443, %v2964, -inf
        %v4852 = vrot.slane %v4851, 4
        %v4853 = vmax.f32 %v4851, %v4852
        %v4854 = vrot.slane %v4853, 2
        %v4855 = vmax.f32 %v4853, %v4854
        %v4856 = vrot.slane %v4855, 1
        %v4857 = vmax.f32 %v4855, %v4856
        %v4858 = vsel %vm3443, %v2963, -inf
        %v4859 = vrot.slane %v4858, 4
        %v4860 = vmax.f32 %v4858, %v4859
        %v4861 = vrot.slane %v4860, 2
        %v4862 = vmax.f32 %v4860, %v4861
        %v4863 = vrot.slane %v4862, 1
        %v4864 = vmax.f32 %v4862, %v4863
        %v4865 = vsel %vm3443, %v2965, -inf
        %v4866 = vrot.slane %v4865, 4
        %v4867 = vmax.f32 %v4865, %v4866
        %v4868 = vrot.slane %v4867, 2
        %v4869 = vmax.f32 %v4867, %v4868
        %v4870 = vrot.slane %v4869, 1
        %v4871 = vmax.f32 %v4869, %v4870
        %v4872 = vsel %vm3443, %v2973, -inf
        %v4873 = vrot.slane %v4872, 4
        %v4874 = vmax.f32 %v4872, %v4873
        %v4875 = vrot.slane %v4874, 2
        %v4876 = vmax.f32 %v4874, %v4875
        %v4877 = vrot.slane %v4876, 1
        %v4878 = vmax.f32 %v4876, %v4877
        %v4879 = vsel %vm3443, %v2981, -inf
        %v4880 = vrot.slane %v4879, 4
        %v4881 = vmax.f32 %v4879, %v4880
        %v4882 = vrot.slane %v4881, 2
        %v4883 = vmax.f32 %v4881, %v4882
        %v4884 = vrot.slane %v4883, 1
        %v4885 = vmax.f32 %v4883, %v4884
        %v4886 = vsel %vm3443, %v2980, -inf
        %v4887 = vrot.slane %v4886, 4
        %v4888 = vmax.f32 %v4886, %v4887
        %v4889 = vrot.slane %v4888, 2
        %v4890 = vmax.f32 %v4888, %v4889
        %v4891 = vrot.slane %v4890, 1
        %v4892 = vmax.f32 %v4890, %v4891
        %v4893 = vsel %vm3443, %v2982, -inf
        %v4894 = vrot.slane %v4893, 4
        %v4895 = vmax.f32 %v4893, %v4894
        %v4896 = vrot.slane %v4895, 2
        %v4897 = vmax.f32 %v4895, %v4896
        %v4898 = vrot.slane %v4897, 1
        %v4899 = vmax.f32 %v4897, %v4898
        %v4900 = vsel %vm3443, %v2990, -inf
        %v4901 = vrot.slane %v4900, 4
        %v4902 = vmax.f32 %v4900, %v4901
        %v4903 = vrot.slane %v4902, 2
        %v4904 = vmax.f32 %v4902, %v4903
        %v4905 = vrot.slane %v4904, 1
        %v4906 = vmax.f32 %v4904, %v4905
        %v4907 = vsel %vm3443, %v2998, -inf
        %v4908 = vrot.slane %v4907, 4
        %v4909 = vmax.f32 %v4907, %v4908
        %v4910 = vrot.slane %v4909, 2
        %v4911 = vmax.f32 %v4909, %v4910
        %v4912 = vrot.slane %v4911, 1
        %v4913 = vmax.f32 %v4911, %v4912
        %v4914 = vsel %vm3443, %v2997, -inf
        %v4915 = vrot.slane %v4914, 4
        %v4916 = vmax.f32 %v4914, %v4915
        %v4917 = vrot.slane %v4916, 2
        %v4918 = vmax.f32 %v4916, %v4917
        %v4919 = vrot.slane %v4918, 1
        %v4920 = vmax.f32 %v4918, %v4919
        %v4921 = vsel %vm3443, %v2999, -inf
        %v4922 = vrot.slane %v4921, 4
        %v4923 = vmax.f32 %v4921, %v4922
        %v4924 = vrot.slane %v4923, 2
        %v4925 = vmax.f32 %v4923, %v4924
        %v4926 = vrot.slane %v4925, 1
        %v4927 = vmax.f32 %v4925, %v4926
        %v4928 = vsel %vm3443, %v3007, -inf
        %v4929 = vrot.slane %v4928, 4
        %v4930 = vmax.f32 %v4928, %v4929
        %v4931 = vrot.slane %v4930, 2
        %v4932 = vmax.f32 %v4930, %v4931
        %v4933 = vrot.slane %v4932, 1
        %v4934 = vmax.f32 %v4932, %v4933
        %v4935 = vsel %vm3443, %v3015, -inf
        %v4936 = vrot.slane %v4935, 4
        %v4937 = vmax.f32 %v4935, %v4936
        %v4938 = vrot.slane %v4937, 2
        %v4939 = vmax.f32 %v4937, %v4938
        %v4940 = vrot.slane %v4939, 1
        %v4941 = vmax.f32 %v4939, %v4940
        %v4942 = vsel %vm3443, %v3014, -inf
        %v4943 = vrot.slane %v4942, 4
        %v4944 = vmax.f32 %v4942, %v4943
        %v4945 = vrot.slane %v4944, 2
        %v4946 = vmax.f32 %v4944, %v4945
        %v4947 = vrot.slane %v4946, 1
        %v4948 = vmax.f32 %v4946, %v4947
        %v4949 = vsel %vm3443, %v3016, -inf
        %v4950 = vrot.slane %v4949, 4
        %v4951 = vmax.f32 %v4949, %v4950
        %v4952 = vrot.slane %v4951, 2
        %v4953 = vmax.f32 %v4951, %v4952
        %v4954 = vrot.slane %v4953, 1
        %v4955 = vmax.f32 %v4953, %v4954
        %v4956 = vsel %vm3443, %v3024, -inf
        %v4957 = vrot.slane %v4956, 4
        %v4958 = vmax.f32 %v4956, %v4957
        %v4959 = vrot.slane %v4958, 2
        %v4960 = vmax.f32 %v4958, %v4959
        %v4961 = vrot.slane %v4960, 1
        %v4962 = vmax.f32 %v4960, %v4961
        %v4963 = vsel %vm3443, %v3032, -inf
        %v4964 = vrot.slane %v4963, 4
        %v4965 = vmax.f32 %v4963, %v4964
        %v4966 = vrot.slane %v4965, 2
        %v4967 = vmax.f32 %v4965, %v4966
        %v4968 = vrot.slane %v4967, 1
        %v4969 = vmax.f32 %v4967, %v4968
        %v4970 = vsel %vm3443, %v3031, -inf
        %v4971 = vrot.slane %v4970, 4
        %v4972 = vmax.f32 %v4970, %v4971
        %v4973 = vrot.slane %v4972, 2
        %v4974 = vmax.f32 %v4972, %v4973
        %v4975 = vrot.slane %v4974, 1
        %v4976 = vmax.f32 %v4974, %v4975
        %v4977 = vsel %vm3443, %v3033, -inf
        %v4978 = vrot.slane %v4977, 4
        %v4979 = vmax.f32 %v4977, %v4978
        %v4980 = vrot.slane %v4979, 2
        %v4981 = vmax.f32 %v4979, %v4980
        %v4982 = vrot.slane %v4981, 1
        %v4983 = vmax.f32 %v4981, %v4982
        %v4984 = vsel %vm3443, %v3041, -inf
        %v4985 = vrot.slane %v4984, 4
        %v4986 = vmax.f32 %v4984, %v4985
        %v4987 = vrot.slane %v4986, 2
        %v4988 = vmax.f32 %v4986, %v4987
        %v4989 = vrot.slane %v4988, 1
        %v4990 = vmax.f32 %v4988, %v4989
        %v4991 = vsel %vm3443, %v3049, -inf
        %v4992 = vrot.slane %v4991, 4
        %v4993 = vmax.f32 %v4991, %v4992
        %v4994 = vrot.slane %v4993, 2
        %v4995 = vmax.f32 %v4993, %v4994
        %v4996 = vrot.slane %v4995, 1
        %v4997 = vmax.f32 %v4995, %v4996
        %v4998 = vsel %vm3443, %v3048, -inf
        %v4999 = vrot.slane %v4998, 4
        %v5000 = vmax.f32 %v4998, %v4999
        %v5001 = vrot.slane %v5000, 2
        %v5002 = vmax.f32 %v5000, %v5001
        %v5003 = vrot.slane %v5002, 1
        %v5004 = vmax.f32 %v5002, %v5003
        %v5005 = vsel %vm3443, %v3050, -inf
        %v5006 = vrot.slane %v5005, 4
        %v5007 = vmax.f32 %v5005, %v5006
        %v5008 = vrot.slane %v5007, 2
        %v5009 = vmax.f32 %v5007, %v5008
        %v5010 = vrot.slane %v5009, 1
        %v5011 = vmax.f32 %v5009, %v5010
        %v5012 = vsel %vm3443, %v3058, -inf
        %v5013 = vrot.slane %v5012, 4
        %v5014 = vmax.f32 %v5012, %v5013
        %v5015 = vrot.slane %v5014, 2
        %v5016 = vmax.f32 %v5014, %v5015
        %v5017 = vrot.slane %v5016, 1
        %v5018 = vmax.f32 %v5016, %v5017
        %v5019 = vsel %vm3443, %v3066, -inf
        %v5020 = vrot.slane %v5019, 4
        %v5021 = vmax.f32 %v5019, %v5020
        %v5022 = vrot.slane %v5021, 2
        %v5023 = vmax.f32 %v5021, %v5022
        %v5024 = vrot.slane %v5023, 1
        %v5025 = vmax.f32 %v5023, %v5024
        %v5026 = vsel %vm3443, %v3065, -inf
        %v5027 = vrot.slane %v5026, 4
        %v5028 = vmax.f32 %v5026, %v5027
        %v5029 = vrot.slane %v5028, 2
        %v5030 = vmax.f32 %v5028, %v5029
        %v5031 = vrot.slane %v5030, 1
        %v5032 = vmax.f32 %v5030, %v5031
        %v5033 = vsel %vm3443, %v3067, -inf
        %v5034 = vrot.slane %v5033, 4
        %v5035 = vmax.f32 %v5033, %v5034
        %v5036 = vrot.slane %v5035, 2
        %v5037 = vmax.f32 %v5035, %v5036
        %v5038 = vrot.slane %v5037, 1
        %v5039 = vmax.f32 %v5037, %v5038
        %v5040 = vsel %vm3443, %v3075, -inf
        %v5041 = vrot.slane %v5040, 4
        %v5042 = vmax.f32 %v5040, %v5041
        %v5043 = vrot.slane %v5042, 2
        %v5044 = vmax.f32 %v5042, %v5043
        %v5045 = vrot.slane %v5044, 1
        %v5046 = vmax.f32 %v5044, %v5045
        %v5047 = vsel %vm3443, %v3083, -inf
        %v5048 = vrot.slane %v5047, 4
        %v5049 = vmax.f32 %v5047, %v5048
        %v5050 = vrot.slane %v5049, 2
        %v5051 = vmax.f32 %v5049, %v5050
        %v5052 = vrot.slane %v5051, 1
        %v5053 = vmax.f32 %v5051, %v5052
        %v5054 = vsel %vm3443, %v3082, -inf
        %v5055 = vrot.slane %v5054, 4
        %v5056 = vmax.f32 %v5054, %v5055
        %v5057 = vrot.slane %v5056, 2
        %v5058 = vmax.f32 %v5056, %v5057
        %v5059 = vrot.slane %v5058, 1
        %v5060 = vmax.f32 %v5058, %v5059
        %v5061 = vsel %vm3443, %v3084, -inf
        %v5062 = vrot.slane %v5061, 4
        %v5063 = vmax.f32 %v5061, %v5062
        %v5064 = vrot.slane %v5063, 2
        %v5065 = vmax.f32 %v5063, %v5064
        %v5066 = vrot.slane %v5065, 1
        %v5067 = vmax.f32 %v5065, %v5066
        %v5068 = vsel %vm3443, %v3092, -inf
        %v5069 = vrot.slane %v5068, 4
        %v5070 = vmax.f32 %v5068, %v5069
        %v5071 = vrot.slane %v5070, 2
        %v5072 = vmax.f32 %v5070, %v5071
        %v5073 = vrot.slane %v5072, 1
        %v5074 = vmax.f32 %v5072, %v5073
        %v5075 = vsel %vm3443, %v3100, -inf
        %v5076 = vrot.slane %v5075, 4
        %v5077 = vmax.f32 %v5075, %v5076
        %v5078 = vrot.slane %v5077, 2
        %v5079 = vmax.f32 %v5077, %v5078
        %v5080 = vrot.slane %v5079, 1
        %v5081 = vmax.f32 %v5079, %v5080
        %v5082 = vsel %vm3443, %v3099, -inf
        %v5083 = vrot.slane %v5082, 4
        %v5084 = vmax.f32 %v5082, %v5083
        %v5085 = vrot.slane %v5084, 2
        %v5086 = vmax.f32 %v5084, %v5085
        %v5087 = vrot.slane %v5086, 1
        %v5088 = vmax.f32 %v5086, %v5087
        %v5089 = vsel %vm3443, %v3101, -inf
        %v5090 = vrot.slane %v5089, 4
        %v5091 = vmax.f32 %v5089, %v5090
        %v5092 = vrot.slane %v5091, 2
        %v5093 = vmax.f32 %v5091, %v5092
        %v5094 = vrot.slane %v5093, 1
        %v5095 = vmax.f32 %v5093, %v5094
        %v5096 = vsel %vm3443, %v3109, -inf
        %v5097 = vrot.slane %v5096, 4
        %v5098 = vmax.f32 %v5096, %v5097
        %v5099 = vrot.slane %v5098, 2
        %v5100 = vmax.f32 %v5098, %v5099
        %v5101 = vrot.slane %v5100, 1
        %v5102 = vmax.f32 %v5100, %v5101
        %v5103 = vsel %vm3443, %v3117, -inf
        %v5104 = vrot.slane %v5103, 4
        %v5105 = vmax.f32 %v5103, %v5104
        %v5106 = vrot.slane %v5105, 2
        %v5107 = vmax.f32 %v5105, %v5106
        %v5108 = vrot.slane %v5107, 1
        %v5109 = vmax.f32 %v5107, %v5108
        %v5110 = vsel %vm3443, %v3116, -inf
        %v5111 = vrot.slane %v5110, 4
        %v5112 = vmax.f32 %v5110, %v5111
        %v5113 = vrot.slane %v5112, 2
        %v5114 = vmax.f32 %v5112, %v5113
        %v5115 = vrot.slane %v5114, 1
        %v5116 = vmax.f32 %v5114, %v5115
        %v5117 = vsel %vm3443, %v3118, -inf
        %v5118 = vrot.slane %v5117, 4
        %v5119 = vmax.f32 %v5117, %v5118
        %v5120 = vrot.slane %v5119, 2
        %v5121 = vmax.f32 %v5119, %v5120
        %v5122 = vrot.slane %v5121, 1
        %v5123 = vmax.f32 %v5121, %v5122
        %v5124 = vsel %vm3443, %v3126, -inf
        %v5125 = vrot.slane %v5124, 4
        %v5126 = vmax.f32 %v5124, %v5125
        %v5127 = vrot.slane %v5126, 2
        %v5128 = vmax.f32 %v5126, %v5127
        %v5129 = vrot.slane %v5128, 1
        %v5130 = vmax.f32 %v5128, %v5129
        %v5131 = vsel %vm3443, %v3134, -inf
        %v5132 = vrot.slane %v5131, 4
        %v5133 = vmax.f32 %v5131, %v5132
        %v5134 = vrot.slane %v5133, 2
        %v5135 = vmax.f32 %v5133, %v5134
        %v5136 = vrot.slane %v5135, 1
        %v5137 = vmax.f32 %v5135, %v5136
        %v5138 = vsel %vm3443, %v3133, -inf
        %v5139 = vrot.slane %v5138, 4
        %v5140 = vmax.f32 %v5138, %v5139
        %v5141 = vrot.slane %v5140, 2
        %v5142 = vmax.f32 %v5140, %v5141
        %v5143 = vrot.slane %v5142, 1
        %v5144 = vmax.f32 %v5142, %v5143
        %v5145 = vsel %vm3443, %v3135, -inf
        %v5146 = vrot.slane %v5145, 4
        %v5147 = vmax.f32 %v5145, %v5146
        %v5148 = vrot.slane %v5147, 2
        %v5149 = vmax.f32 %v5147, %v5148
        %v5150 = vrot.slane %v5149, 1
        %v5151 = vmax.f32 %v5149, %v5150
        %v5152 = vsel %vm3443, %v3143, -inf
        %v5153 = vrot.slane %v5152, 4
        %v5154 = vmax.f32 %v5152, %v5153
        %v5155 = vrot.slane %v5154, 2
        %v5156 = vmax.f32 %v5154, %v5155
        %v5157 = vrot.slane %v5156, 1
        %v5158 = vmax.f32 %v5156, %v5157
        %v5159 = vsel %vm3443, %v3151, -inf
        %v5160 = vrot.slane %v5159, 4
        %v5161 = vmax.f32 %v5159, %v5160
        %v5162 = vrot.slane %v5161, 2
        %v5163 = vmax.f32 %v5161, %v5162
        %v5164 = vrot.slane %v5163, 1
        %v5165 = vmax.f32 %v5163, %v5164
        %v5166 = vsel %vm3443, %v3150, -inf
        %v5167 = vrot.slane %v5166, 4
        %v5168 = vmax.f32 %v5166, %v5167
        %v5169 = vrot.slane %v5168, 2
        %v5170 = vmax.f32 %v5168, %v5169
        %v5171 = vrot.slane %v5170, 1
        %v5172 = vmax.f32 %v5170, %v5171
        %v5173 = vsel %vm3443, %v3152, -inf
        %v5174 = vrot.slane %v5173, 4
        %v5175 = vmax.f32 %v5173, %v5174
        %v5176 = vrot.slane %v5175, 2
        %v5177 = vmax.f32 %v5175, %v5176
        %v5178 = vrot.slane %v5177, 1
        %v5179 = vmax.f32 %v5177, %v5178
        %v5180 = vsel %vm3443, %v3160, -inf
        %v5181 = vrot.slane %v5180, 4
        %v5182 = vmax.f32 %v5180, %v5181
        %v5183 = vrot.slane %v5182, 2
        %v5184 = vmax.f32 %v5182, %v5183
        %v5185 = vrot.slane %v5184, 1
        %v5186 = vmax.f32 %v5184, %v5185
        %v5187 = vsel %vm3443, %v3168, -inf
        %v5188 = vrot.slane %v5187, 4
        %v5189 = vmax.f32 %v5187, %v5188
        %v5190 = vrot.slane %v5189, 2
        %v5191 = vmax.f32 %v5189, %v5190
        %v5192 = vrot.slane %v5191, 1
        %v5193 = vmax.f32 %v5191, %v5192
        %v5194 = vsel %vm3443, %v3167, -inf
        %v5195 = vrot.slane %v5194, 4
        %v5196 = vmax.f32 %v5194, %v5195
        %v5197 = vrot.slane %v5196, 2
        %v5198 = vmax.f32 %v5196, %v5197
        %v5199 = vrot.slane %v5198, 1
        %v5200 = vmax.f32 %v5198, %v5199
        %v5201 = vsel %vm3443, %v3169, -inf
        %v5202 = vrot.slane %v5201, 4
        %v5203 = vmax.f32 %v5201, %v5202
        %v5204 = vrot.slane %v5203, 2
        %v5205 = vmax.f32 %v5203, %v5204
        %v5206 = vrot.slane %v5205, 1
        %v5207 = vmax.f32 %v5205, %v5206
        %v5208 = vsel %vm3443, %v3177, -inf
        %v5209 = vrot.slane %v5208, 4
        %v5210 = vmax.f32 %v5208, %v5209
        %v5211 = vrot.slane %v5210, 2
        %v5212 = vmax.f32 %v5210, %v5211
        %v5213 = vrot.slane %v5212, 1
        %v5214 = vmax.f32 %v5212, %v5213
        %v5215 = vsel %vm3443, %v3185, -inf
        %v5216 = vrot.slane %v5215, 4
        %v5217 = vmax.f32 %v5215, %v5216
        %v5218 = vrot.slane %v5217, 2
        %v5219 = vmax.f32 %v5217, %v5218
        %v5220 = vrot.slane %v5219, 1
        %v5221 = vmax.f32 %v5219, %v5220
        %v5222 = vsel %vm3443, %v3184, -inf
        %v5223 = vrot.slane %v5222, 4
        %v5224 = vmax.f32 %v5222, %v5223
        %v5225 = vrot.slane %v5224, 2
        %v5226 = vmax.f32 %v5224, %v5225
        %v5227 = vrot.slane %v5226, 1
        %v5228 = vmax.f32 %v5226, %v5227
        %v5229 = vsel %vm3443, %v3186, -inf
        %v5230 = vrot.slane %v5229, 4
        %v5231 = vmax.f32 %v5229, %v5230
        %v5232 = vrot.slane %v5231, 2
        %v5233 = vmax.f32 %v5231, %v5232
        %v5234 = vrot.slane %v5233, 1
        %v5235 = vmax.f32 %v5233, %v5234
        %vm5492 = vcmask 1041409
        %v5493 = vsel %vm5492, %v3457, %v3450
        %vm5494 = vcmask 1042434
        %v5495 = vsel %vm5494, %v3464, %v5493
        %vm5496 = vcmask 1043459
        %v5497 = vsel %vm5496, %v3471, %v5495
        %vm5498 = vcmask 1044484
        %v5499 = vsel %vm5498, %v3478, %v5497
        %vm5500 = vcmask 1045509
        %v5501 = vsel %vm5500, %v3485, %v5499
        %vm5502 = vcmask 1046534
        %v5503 = vsel %vm5502, %v3492, %v5501
        %vm5504 = vcmask 1047559
        %v5505 = vsel %vm5504, %v3499, %v5503
        %v5506 = vsel %vm5492, %v3513, %v3506
        %v5507 = vsel %vm5494, %v3520, %v5506
        %v5508 = vsel %vm5496, %v3527, %v5507
        %v5509 = vsel %vm5498, %v3534, %v5508
        %v5510 = vsel %vm5500, %v3541, %v5509
        %v5511 = vsel %vm5502, %v3548, %v5510
        %v5512 = vsel %vm5504, %v3555, %v5511
        %v5513 = vsel %vm5492, %v3569, %v3562
        %v5514 = vsel %vm5494, %v3576, %v5513
        %v5515 = vsel %vm5496, %v3583, %v5514
        %v5516 = vsel %vm5498, %v3590, %v5515
        %v5517 = vsel %vm5500, %v3597, %v5516
        %v5518 = vsel %vm5502, %v3604, %v5517
        %v5519 = vsel %vm5504, %v3611, %v5518
        %v5520 = vsel %vm5492, %v3625, %v3618
        %v5521 = vsel %vm5494, %v3632, %v5520
        %v5522 = vsel %vm5496, %v3639, %v5521
        %v5523 = vsel %vm5498, %v3646, %v5522
        %v5524 = vsel %vm5500, %v3653, %v5523
        %v5525 = vsel %vm5502, %v3660, %v5524
        %v5526 = vsel %vm5504, %v3667, %v5525
        %v5527 = vsel %vm5492, %v3681, %v3674
        %v5528 = vsel %vm5494, %v3688, %v5527
        %v5529 = vsel %vm5496, %v3695, %v5528
        %v5530 = vsel %vm5498, %v3702, %v5529
        %v5531 = vsel %vm5500, %v3709, %v5530
        %v5532 = vsel %vm5502, %v3716, %v5531
        %v5533 = vsel %vm5504, %v3723, %v5532
        %v5534 = vsel %vm5492, %v3737, %v3730
        %v5535 = vsel %vm5494, %v3744, %v5534
        %v5536 = vsel %vm5496, %v3751, %v5535
        %v5537 = vsel %vm5498, %v3758, %v5536
        %v5538 = vsel %vm5500, %v3765, %v5537
        %v5539 = vsel %vm5502, %v3772, %v5538
        %v5540 = vsel %vm5504, %v3779, %v5539
        %v5541 = vsel %vm5492, %v3793, %v3786
        %v5542 = vsel %vm5494, %v3800, %v5541
        %v5543 = vsel %vm5496, %v3807, %v5542
        %v5544 = vsel %vm5498, %v3814, %v5543
        %v5545 = vsel %vm5500, %v3821, %v5544
        %v5546 = vsel %vm5502, %v3828, %v5545
        %v5547 = vsel %vm5504, %v3835, %v5546
        %v5548 = vsel %vm5492, %v3849, %v3842
        %v5549 = vsel %vm5494, %v3856, %v5548
        %v5550 = vsel %vm5496, %v3863, %v5549
        %v5551 = vsel %vm5498, %v3870, %v5550
        %v5552 = vsel %vm5500, %v3877, %v5551
        %v5553 = vsel %vm5502, %v3884, %v5552
        %v5554 = vsel %vm5504, %v3891, %v5553
        %v5555 = vsel %vm5492, %v3905, %v3898
        %v5556 = vsel %vm5494, %v3912, %v5555
        %v5557 = vsel %vm5496, %v3919, %v5556
        %v5558 = vsel %vm5498, %v3926, %v5557
        %v5559 = vsel %vm5500, %v3933, %v5558
        %v5560 = vsel %vm5502, %v3940, %v5559
        %v5561 = vsel %vm5504, %v3947, %v5560
        %v5562 = vsel %vm5492, %v3961, %v3954
        %v5563 = vsel %vm5494, %v3968, %v5562
        %v5564 = vsel %vm5496, %v3975, %v5563
        %v5565 = vsel %vm5498, %v3982, %v5564
        %v5566 = vsel %vm5500, %v3989, %v5565
        %v5567 = vsel %vm5502, %v3996, %v5566
        %v5568 = vsel %vm5504, %v4003, %v5567
        %v5569 = vsel %vm5492, %v4017, %v4010
        %v5570 = vsel %vm5494, %v4024, %v5569
        %v5571 = vsel %vm5496, %v4031, %v5570
        %v5572 = vsel %vm5498, %v4038, %v5571
        %v5573 = vsel %vm5500, %v4045, %v5572
        %v5574 = vsel %vm5502, %v4052, %v5573
        %v5575 = vsel %vm5504, %v4059, %v5574
        %v5576 = vsel %vm5492, %v4073, %v4066
        %v5577 = vsel %vm5494, %v4080, %v5576
        %v5578 = vsel %vm5496, %v4087, %v5577
        %v5579 = vsel %vm5498, %v4094, %v5578
        %v5580 = vsel %vm5500, %v4101, %v5579
        %v5581 = vsel %vm5502, %v4108, %v5580
        %v5582 = vsel %vm5504, %v4115, %v5581
        %v5583 = vsel %vm5492, %v4129, %v4122
        %v5584 = vsel %vm5494, %v4136, %v5583
        %v5585 = vsel %vm5496, %v4143, %v5584
        %v5586 = vsel %vm5498, %v4150, %v5585
        %v5587 = vsel %vm5500, %v4157, %v5586
        %v5588 = vsel %vm5502, %v4164, %v5587
        %v5589 = vsel %vm5504, %v4171, %v5588
        %v5590 = vsel %vm5492, %v4185, %v4178
        %v5591 = vsel %vm5494, %v4192, %v5590
        %v5592 = vsel %vm5496, %v4199, %v5591
        %v5593 = vsel %vm5498, %v4206, %v5592
        %v5594 = vsel %vm5500, %v4213, %v5593
        %v5595 = vsel %vm5502, %v4220, %v5594
        %v5596 = vsel %vm5504, %v4227, %v5595
        %v5597 = vsel %vm5492, %v4241, %v4234
        %v5598 = vsel %vm5494, %v4248, %v5597
        %v5599 = vsel %vm5496, %v4255, %v5598
        %v5600 = vsel %vm5498, %v4262, %v5599
        %v5601 = vsel %vm5500, %v4269, %v5600
        %v5602 = vsel %vm5502, %v4276, %v5601
        %v5603 = vsel %vm5504, %v4283, %v5602
        %v5604 = vsel %vm5492, %v4297, %v4290
        %v5605 = vsel %vm5494, %v4304, %v5604
        %v5606 = vsel %vm5496, %v4311, %v5605
        %v5607 = vsel %vm5498, %v4318, %v5606
        %v5608 = vsel %vm5500, %v4325, %v5607
        %v5609 = vsel %vm5502, %v4332, %v5608
        %v5610 = vsel %vm5504, %v4339, %v5609
        %v5611 = vsel %vm5492, %v4353, %v4346
        %v5612 = vsel %vm5494, %v4360, %v5611
        %v5613 = vsel %vm5496, %v4367, %v5612
        %v5614 = vsel %vm5498, %v4374, %v5613
        %v5615 = vsel %vm5500, %v4381, %v5614
        %v5616 = vsel %vm5502, %v4388, %v5615
        %v5617 = vsel %vm5504, %v4395, %v5616
        %v5618 = vsel %vm5492, %v4409, %v4402
        %v5619 = vsel %vm5494, %v4416, %v5618
        %v5620 = vsel %vm5496, %v4423, %v5619
        %v5621 = vsel %vm5498, %v4430, %v5620
        %v5622 = vsel %vm5500, %v4437, %v5621
        %v5623 = vsel %vm5502, %v4444, %v5622
        %v5624 = vsel %vm5504, %v4451, %v5623
        %v5625 = vsel %vm5492, %v4465, %v4458
        %v5626 = vsel %vm5494, %v4472, %v5625
        %v5627 = vsel %vm5496, %v4479, %v5626
        %v5628 = vsel %vm5498, %v4486, %v5627
        %v5629 = vsel %vm5500, %v4493, %v5628
        %v5630 = vsel %vm5502, %v4500, %v5629
        %v5631 = vsel %vm5504, %v4507, %v5630
        %v5632 = vsel %vm5492, %v4521, %v4514
        %v5633 = vsel %vm5494, %v4528, %v5632
        %v5634 = vsel %vm5496, %v4535, %v5633
        %v5635 = vsel %vm5498, %v4542, %v5634
        %v5636 = vsel %vm5500, %v4549, %v5635
        %v5637 = vsel %vm5502, %v4556, %v5636
        %v5638 = vsel %vm5504, %v4563, %v5637
        %v5639 = vsel %vm5492, %v4577, %v4570
        %v5640 = vsel %vm5494, %v4584, %v5639
        %v5641 = vsel %vm5496, %v4591, %v5640
        %v5642 = vsel %vm5498, %v4598, %v5641
        %v5643 = vsel %vm5500, %v4605, %v5642
        %v5644 = vsel %vm5502, %v4612, %v5643
        %v5645 = vsel %vm5504, %v4619, %v5644
        %v5646 = vsel %vm5492, %v4633, %v4626
        %v5647 = vsel %vm5494, %v4640, %v5646
        %v5648 = vsel %vm5496, %v4647, %v5647
        %v5649 = vsel %vm5498, %v4654, %v5648
        %v5650 = vsel %vm5500, %v4661, %v5649
        %v5651 = vsel %vm5502, %v4668, %v5650
        %v5652 = vsel %vm5504, %v4675, %v5651
        %v5653 = vsel %vm5492, %v4689, %v4682
        %v5654 = vsel %vm5494, %v4696, %v5653
        %v5655 = vsel %vm5496, %v4703, %v5654
        %v5656 = vsel %vm5498, %v4710, %v5655
        %v5657 = vsel %vm5500, %v4717, %v5656
        %v5658 = vsel %vm5502, %v4724, %v5657
        %v5659 = vsel %vm5504, %v4731, %v5658
        %v5660 = vsel %vm5492, %v4745, %v4738
        %v5661 = vsel %vm5494, %v4752, %v5660
        %v5662 = vsel %vm5496, %v4759, %v5661
        %v5663 = vsel %vm5498, %v4766, %v5662
        %v5664 = vsel %vm5500, %v4773, %v5663
        %v5665 = vsel %vm5502, %v4780, %v5664
        %v5666 = vsel %vm5504, %v4787, %v5665
        %v5667 = vsel %vm5492, %v4801, %v4794
        %v5668 = vsel %vm5494, %v4808, %v5667
        %v5669 = vsel %vm5496, %v4815, %v5668
        %v5670 = vsel %vm5498, %v4822, %v5669
        %v5671 = vsel %vm5500, %v4829, %v5670
        %v5672 = vsel %vm5502, %v4836, %v5671
        %v5673 = vsel %vm5504, %v4843, %v5672
        %v5674 = vsel %vm5492, %v4857, %v4850
        %v5675 = vsel %vm5494, %v4864, %v5674
        %v5676 = vsel %vm5496, %v4871, %v5675
        %v5677 = vsel %vm5498, %v4878, %v5676
        %v5678 = vsel %vm5500, %v4885, %v5677
        %v5679 = vsel %vm5502, %v4892, %v5678
        %v5680 = vsel %vm5504, %v4899, %v5679
        %v5681 = vsel %vm5492, %v4913, %v4906
        %v5682 = vsel %vm5494, %v4920, %v5681
        %v5683 = vsel %vm5496, %v4927, %v5682
        %v5684 = vsel %vm5498, %v4934, %v5683
        %v5685 = vsel %vm5500, %v4941, %v5684
        %v5686 = vsel %vm5502, %v4948, %v5685
        %v5687 = vsel %vm5504, %v4955, %v5686
        %v5688 = vsel %vm5492, %v4969, %v4962
        %v5689 = vsel %vm5494, %v4976, %v5688
        %v5690 = vsel %vm5496, %v4983, %v5689
        %v5691 = vsel %vm5498, %v4990, %v5690
        %v5692 = vsel %vm5500, %v4997, %v5691
        %v5693 = vsel %vm5502, %v5004, %v5692
        %v5694 = vsel %vm5504, %v5011, %v5693
        %v5695 = vsel %vm5492, %v5025, %v5018
        %v5696 = vsel %vm5494, %v5032, %v5695
        %v5697 = vsel %vm5496, %v5039, %v5696
        %v5698 = vsel %vm5498, %v5046, %v5697
        %v5699 = vsel %vm5500, %v5053, %v5698
        %v5700 = vsel %vm5502, %v5060, %v5699
        %v5701 = vsel %vm5504, %v5067, %v5700
        %v5702 = vsel %vm5492, %v5081, %v5074
        %v5703 = vsel %vm5494, %v5088, %v5702
        %v5704 = vsel %vm5496, %v5095, %v5703
        %v5705 = vsel %vm5498, %v5102, %v5704
        %v5706 = vsel %vm5500, %v5109, %v5705
        %v5707 = vsel %vm5502, %v5116, %v5706
        %v5708 = vsel %vm5504, %v5123, %v5707
        %v5709 = vsel %vm5492, %v5137, %v5130
        %v5710 = vsel %vm5494, %v5144, %v5709
        %v5711 = vsel %vm5496, %v5151, %v5710
        %v5712 = vsel %vm5498, %v5158, %v5711
        %v5713 = vsel %vm5500, %v5165, %v5712
        %v5714 = vsel %vm5502, %v5172, %v5713
        %v5715 = vsel %vm5504, %v5179, %v5714
        %v5716 = vsel %vm5492, %v5193, %v5186
        %v5717 = vsel %vm5494, %v5200, %v5716
        %v5718 = vsel %vm5496, %v5207, %v5717
        %v5719 = vsel %vm5498, %v5214, %v5718
        %v5720 = vsel %vm5500, %v5221, %v5719
        %v5721 = vsel %vm5502, %v5228, %v5720
        %v5722 = vsel %vm5504, %v5235, %v5721
        %s5755 = scalar_lea.vmem [#allocation2], 16
        %5756 = vst.msk [vmem:[%s5755 + $0x1] sm:$0xff] %vm1842, %v5505
        %5757 = vst.msk [vmem:[%s5755 + $0x11] sm:$0xff] %vm1842, %v5512
        %5758 = vst.msk [vmem:[%s5755 + $0x21] sm:$0xff] %vm1842, %v5519
        %5759 = vst.msk [vmem:[%s5755 + $0x31] sm:$0xff] %vm1842, %v5526
        %5760 = vst.msk [vmem:[%s5755 + $0x41] sm:$0xff] %vm1842, %v5533
        %5761 = vst.msk [vmem:[%s5755 + $0x51] sm:$0xff] %vm1842, %v5540
        %5762 = vst.msk [vmem:[%s5755 + $0x61] sm:$0xff] %vm1842, %v5547
        %5763 = vst.msk [vmem:[%s5755 + $0x71] sm:$0xff] %vm1842, %v5554
        %5764 = vst.msk [vmem:[%s5755 + $0xa1] sm:$0xff] %vm1842, %v5561
        %5765 = vst.msk [vmem:[%s5755 + $0xb1] sm:$0xff] %vm1842, %v5568
        %5766 = vst.msk [vmem:[%s5755 + $0xc1] sm:$0xff] %vm1842, %v5575
        %5767 = vst.msk [vmem:[%s5755 + $0xd1] sm:$0xff] %vm1842, %v5582
        %5768 = vst.msk [vmem:[%s5755 + $0xe1] sm:$0xff] %vm1842, %v5589
        %5769 = vst.msk [vmem:[%s5755 + $0xf1] sm:$0xff] %vm1842, %v5596
        %5770 = vst.msk [vmem:[%s5755 + $0x101] sm:$0xff] %vm1842, %v5603
        %5771 = vst.msk [vmem:[%s5755 + $0x111] sm:$0xff] %vm1842, %v5610
        %5772 = vst.msk [vmem:[%s5755 + $0x141] sm:$0xff] %vm1842, %v5617
        %5773 = vst.msk [vmem:[%s5755 + $0x151] sm:$0xff] %vm1842, %v5624
        %5774 = vst.msk [vmem:[%s5755 + $0x161] sm:$0xff] %vm1842, %v5631
        %5775 = vst.msk [vmem:[%s5755 + $0x171] sm:$0xff] %vm1842, %v5638
        %5776 = vst.msk [vmem:[%s5755 + $0x181] sm:$0xff] %vm1842, %v5645
        %5777 = vst.msk [vmem:[%s5755 + $0x191] sm:$0xff] %vm1842, %v5652
        %5778 = vst.msk [vmem:[%s5755 + $0x1a1] sm:$0xff] %vm1842, %v5659
        %5779 = vst.msk [vmem:[%s5755 + $0x1b1] sm:$0xff] %vm1842, %v5666
        %5780 = vst.msk [vmem:[%s5755 + $0x1e1] sm:$0xff] %vm1842, %v5673
        %5781 = vst.msk [vmem:[%s5755 + $0x1f1] sm:$0xff] %vm1842, %v5680
        %5782 = vst.msk [vmem:[%s5755 + $0x201] sm:$0xff] %vm1842, %v5687
        %5783 = vst.msk [vmem:[%s5755 + $0x211] sm:$0xff] %vm1842, %v5694
        %5784 = vst.msk [vmem:[%s5755 + $0x221] sm:$0xff] %vm1842, %v5701
        %5785 = vst.msk [vmem:[%s5755 + $0x231] sm:$0xff] %vm1842, %v5708
        %5786 = vst.msk [vmem:[%s5755 + $0x241] sm:$0xff] %vm1842, %v5715
        %5787 = vst.msk [vmem:[%s5755 + $0x251] sm:$0xff] %vm1842, %v5722
        %5788 = vst.msk [vmem:[#allocation2] sm:$0xff] %vm1842, 0.0
        %5789 = vst.msk [vmem:[#allocation2 + $0x8] sm:$0x3] %vm3443, 0.0
        %5790 = vst.msk [vmem:[#allocation2 + $0xa0] sm:$0xff] %vm1842, 0.0
        %5791 = vst.msk [vmem:[#allocation2 + $0xa8] sm:$0x3] %vm3443, 0.0
        %5792 = vst.msk [vmem:[#allocation2 + $0x140] sm:$0xff] %vm1842, 0.0
        %5793 = vst.msk [vmem:[#allocation2 + $0x148] sm:$0x3] %vm3443, 0.0
        %5794 = vst.msk [vmem:[#allocation2 + $0x1e0] sm:$0xff] %vm1842, 0.0
        %5795 = vst.msk [vmem:[#allocation2 + $0x1e8] sm:$0x3] %vm3443, 0.0
        %s5796 = scalar_lea.vmem [#allocation2], 144
        %5797 = vst.msk [vmem:[%s5796] sm:$0xff] %vm1842, 0.0
        %5798 = vst.msk [vmem:[%s5796 + $0x8] sm:$0x3] %vm3443, 0.0
        %5799 = vst.msk [vmem:[%s5796 + $0xa0] sm:$0xff] %vm1842, 0.0
        %5800 = vst.msk [vmem:[%s5796 + $0xa8] sm:$0x3] %vm3443, 0.0
        %5801 = vst.msk [vmem:[%s5796 + $0x140] sm:$0xff] %vm1842, 0.0
        %5802 = vst.msk [vmem:[%s5796 + $0x148] sm:$0x3] %vm3443, 0.0
        %5803 = vst.msk [vmem:[%s5796 + $0x1e0] sm:$0xff] %vm1842, 0.0
        %5804 = vst.msk [vmem:[%s5796 + $0x1e8] sm:$0x3] %vm3443, 0.0
        %vm5805 = vcmask 253952
        %5806 = vst.msk [vmem:[%s5755] sm:$0x1] %vm5805, 0.0
        %5807 = vst.msk [vmem:[%s5755 + $0x10] sm:$0x1] %vm5805, 0.0
        %5808 = vst.msk [vmem:[%s5755 + $0x20] sm:$0x1] %vm5805, 0.0
        %5809 = vst.msk [vmem:[%s5755 + $0x30] sm:$0x1] %vm5805, 0.0
        %5810 = vst.msk [vmem:[%s5755 + $0x40] sm:$0x1] %vm5805, 0.0
        %5811 = vst.msk [vmem:[%s5755 + $0x50] sm:$0x1] %vm5805, 0.0
        %5812 = vst.msk [vmem:[%s5755 + $0x60] sm:$0x1] %vm5805, 0.0
        %5813 = vst.msk [vmem:[%s5755 + $0x70] sm:$0x1] %vm5805, 0.0
        %5814 = vst.msk [vmem:[%s5755 + $0xa0] sm:$0x1] %vm5805, 0.0
        %5815 = vst.msk [vmem:[%s5755 + $0xb0] sm:$0x1] %vm5805, 0.0
        %5816 = vst.msk [vmem:[%s5755 + $0xc0] sm:$0x1] %vm5805, 0.0
        %5817 = vst.msk [vmem:[%s5755 + $0xd0] sm:$0x1] %vm5805, 0.0
        %5818 = vst.msk [vmem:[%s5755 + $0xe0] sm:$0x1] %vm5805, 0.0
        %5819 = vst.msk [vmem:[%s5755 + $0xf0] sm:$0x1] %vm5805, 0.0
        %5820 = vst.msk [vmem:[%s5755 + $0x100] sm:$0x1] %vm5805, 0.0
        %5821 = vst.msk [vmem:[%s5755 + $0x110] sm:$0x1] %vm5805, 0.0
        %5822 = vst.msk [vmem:[%s5755 + $0x140] sm:$0x1] %vm5805, 0.0
        %5823 = vst.msk [vmem:[%s5755 + $0x150] sm:$0x1] %vm5805, 0.0
        %5824 = vst.msk [vmem:[%s5755 + $0x160] sm:$0x1] %vm5805, 0.0
        %5825 = vst.msk [vmem:[%s5755 + $0x170] sm:$0x1] %vm5805, 0.0
        %5826 = vst.msk [vmem:[%s5755 + $0x180] sm:$0x1] %vm5805, 0.0
        %5827 = vst.msk [vmem:[%s5755 + $0x190] sm:$0x1] %vm5805, 0.0
        %5828 = vst.msk [vmem:[%s5755 + $0x1a0] sm:$0x1] %vm5805, 0.0
        %5829 = vst.msk [vmem:[%s5755 + $0x1b0] sm:$0x1] %vm5805, 0.0
        %5830 = vst.msk [vmem:[%s5755 + $0x1e0] sm:$0x1] %vm5805, 0.0
        %5831 = vst.msk [vmem:[%s5755 + $0x1f0] sm:$0x1] %vm5805, 0.0
        %5832 = vst.msk [vmem:[%s5755 + $0x200] sm:$0x1] %vm5805, 0.0
        %5833 = vst.msk [vmem:[%s5755 + $0x210] sm:$0x1] %vm5805, 0.0
        %5834 = vst.msk [vmem:[%s5755 + $0x220] sm:$0x1] %vm5805, 0.0
        %5835 = vst.msk [vmem:[%s5755 + $0x230] sm:$0x1] %vm5805, 0.0
        %5836 = vst.msk [vmem:[%s5755 + $0x240] sm:$0x1] %vm5805, 0.0
        %5837 = vst.msk [vmem:[%s5755 + $0x250] sm:$0x1] %vm5805, 0.0
        %5838 = vst.msk [vmem:[%s5755 + $0x9] sm:$0x1] %vm5805, 0.0
        %5839 = vst.msk [vmem:[%s5755 + $0x19] sm:$0x1] %vm5805, 0.0
        %5840 = vst.msk [vmem:[%s5755 + $0x29] sm:$0x1] %vm5805, 0.0
        %5841 = vst.msk [vmem:[%s5755 + $0x39] sm:$0x1] %vm5805, 0.0
        %5842 = vst.msk [vmem:[%s5755 + $0x49] sm:$0x1] %vm5805, 0.0
        %5843 = vst.msk [vmem:[%s5755 + $0x59] sm:$0x1] %vm5805, 0.0
        %5844 = vst.msk [vmem:[%s5755 + $0x69] sm:$0x1] %vm5805, 0.0
        %5845 = vst.msk [vmem:[%s5755 + $0x79] sm:$0x1] %vm5805, 0.0
        %5846 = vst.msk [vmem:[%s5755 + $0xa9] sm:$0x1] %vm5805, 0.0
        %5847 = vst.msk [vmem:[%s5755 + $0xb9] sm:$0x1] %vm5805, 0.0
        %5848 = vst.msk [vmem:[%s5755 + $0xc9] sm:$0x1] %vm5805, 0.0
        %5849 = vst.msk [vmem:[%s5755 + $0xd9] sm:$0x1] %vm5805, 0.0
        %5850 = vst.msk [vmem:[%s5755 + $0xe9] sm:$0x1] %vm5805, 0.0
        %5851 = vst.msk [vmem:[%s5755 + $0xf9] sm:$0x1] %vm5805, 0.0
        %5852 = vst.msk [vmem:[%s5755 + $0x109] sm:$0x1] %vm5805, 0.0
        %5853 = vst.msk [vmem:[%s5755 + $0x119] sm:$0x1] %vm5805, 0.0
        %5854 = vst.msk [vmem:[%s5755 + $0x149] sm:$0x1] %vm5805, 0.0
        %5855 = vst.msk [vmem:[%s5755 + $0x159] sm:$0x1] %vm5805, 0.0
        %5856 = vst.msk [vmem:[%s5755 + $0x169] sm:$0x1] %vm5805, 0.0
        %5857 = vst.msk [vmem:[%s5755 + $0x179] sm:$0x1] %vm5805, 0.0
        %5858 = vst.msk [vmem:[%s5755 + $0x189] sm:$0x1] %vm5805, 0.0
        %5859 = vst.msk [vmem:[%s5755 + $0x199] sm:$0x1] %vm5805, 0.0
        %5860 = vst.msk [vmem:[%s5755 + $0x1a9] sm:$0x1] %vm5805, 0.0
        %5861 = vst.msk [vmem:[%s5755 + $0x1b9] sm:$0x1] %vm5805, 0.0
        %5862 = vst.msk [vmem:[%s5755 + $0x1e9] sm:$0x1] %vm5805, 0.0
        %5863 = vst.msk [vmem:[%s5755 + $0x1f9] sm:$0x1] %vm5805, 0.0
        %5864 = vst.msk [vmem:[%s5755 + $0x209] sm:$0x1] %vm5805, 0.0
        %5865 = vst.msk [vmem:[%s5755 + $0x219] sm:$0x1] %vm5805, 0.0
        %5866 = vst.msk [vmem:[%s5755 + $0x229] sm:$0x1] %vm5805, 0.0
        %5867 = vst.msk [vmem:[%s5755 + $0x239] sm:$0x1] %vm5805, 0.0
        %5868 = vst.msk [vmem:[%s5755 + $0x249] sm:$0x1] %vm5805, 0.0
        %5869 = vst.msk [vmem:[%s5755 + $0x259] sm:$0x1] %vm5805, 0.0
        %v5870 = vld [vmem:[#allocation2] sm:$0xff]
        %v5871 = vld [vmem:[#allocation2 + $0x10] sm:$0xff]
        %v5872 = vld [vmem:[#allocation2 + $0x20] sm:$0xff]
        %v5873 = vld [vmem:[#allocation2 + $0x30] sm:$0xff]
        %v5874 = vld [vmem:[#allocation2 + $0x40] sm:$0xff]
        %v5875 = vld [vmem:[#allocation2 + $0x50] sm:$0xff]
        %v5876 = vld [vmem:[#allocation2 + $0x60] sm:$0xff]
        %v5877 = vld [vmem:[#allocation2 + $0x70] sm:$0xff]
        %v5878 = vld [vmem:[#allocation2 + $0xa0] sm:$0xff]
        %v5879 = vld [vmem:[#allocation2 + $0xb0] sm:$0xff]
        %v5880 = vld [vmem:[#allocation2 + $0xc0] sm:$0xff]
        %v5881 = vld [vmem:[#allocation2 + $0xd0] sm:$0xff]
        %v5882 = vld [vmem:[#allocation2 + $0xe0] sm:$0xff]
        %v5883 = vld [vmem:[#allocation2 + $0xf0] sm:$0xff]
        %v5884 = vld [vmem:[#allocation2 + $0x100] sm:$0xff]
        %v5885 = vld [vmem:[#allocation2 + $0x110] sm:$0xff]
        %v5886 = vld [vmem:[#allocation2 + $0x140] sm:$0xff]
        %v5887 = vld [vmem:[#allocation2 + $0x150] sm:$0xff]
        %v5888 = vld [vmem:[#allocation2 + $0x160] sm:$0xff]
        %v5889 = vld [vmem:[#allocation2 + $0x170] sm:$0xff]
        %v5890 = vld [vmem:[#allocation2 + $0x180] sm:$0xff]
        %v5891 = vld [vmem:[#allocation2 + $0x190] sm:$0xff]
        %v5892 = vld [vmem:[#allocation2 + $0x1a0] sm:$0xff]
        %v5893 = vld [vmem:[#allocation2 + $0x1b0] sm:$0xff]
        %v5894 = vld [vmem:[#allocation2 + $0x1e0] sm:$0xff]
        %v5895 = vld [vmem:[#allocation2 + $0x1f0] sm:$0xff]
        %v5896 = vld [vmem:[#allocation2 + $0x200] sm:$0xff]
        %v5897 = vld [vmem:[#allocation2 + $0x210] sm:$0xff]
        %v5898 = vld [vmem:[#allocation2 + $0x220] sm:$0xff]
        %v5899 = vld [vmem:[#allocation2 + $0x230] sm:$0xff]
        %v5900 = vld [vmem:[#allocation2 + $0x240] sm:$0xff]
        %v5901 = vld [vmem:[#allocation2 + $0x250] sm:$0xff]
        %v5902 = vld [vmem:[#allocation2 + $0x1] sm:$0xff]
        %v5903 = vld [vmem:[#allocation2 + $0x11] sm:$0xff]
        %v5904 = vld [vmem:[#allocation2 + $0x21] sm:$0xff]
        %v5905 = vld [vmem:[#allocation2 + $0x31] sm:$0xff]
        %v5906 = vld [vmem:[#allocation2 + $0x41] sm:$0xff]
        %v5907 = vld [vmem:[#allocation2 + $0x51] sm:$0xff]
        %v5908 = vld [vmem:[#allocation2 + $0x61] sm:$0xff]
        %v5909 = vld [vmem:[#allocation2 + $0x71] sm:$0xff]
        %v5910 = vld [vmem:[#allocation2 + $0xa1] sm:$0xff]
        %v5911 = vld [vmem:[#allocation2 + $0xb1] sm:$0xff]
        %v5912 = vld [vmem:[#allocation2 + $0xc1] sm:$0xff]
        %v5913 = vld [vmem:[#allocation2 + $0xd1] sm:$0xff]
        %v5914 = vld [vmem:[#allocation2 + $0xe1] sm:$0xff]
        %v5915 = vld [vmem:[#allocation2 + $0xf1] sm:$0xff]
        %v5916 = vld [vmem:[#allocation2 + $0x101] sm:$0xff]
        %v5917 = vld [vmem:[#allocation2 + $0x111] sm:$0xff]
        %v5918 = vld [vmem:[#allocation2 + $0x141] sm:$0xff]
        %v5919 = vld [vmem:[#allocation2 + $0x151] sm:$0xff]
        %v5920 = vld [vmem:[#allocation2 + $0x161] sm:$0xff]
        %v5921 = vld [vmem:[#allocation2 + $0x171] sm:$0xff]
        %v5922 = vld [vmem:[#allocation2 + $0x181] sm:$0xff]
        %v5923 = vld [vmem:[#allocation2 + $0x191] sm:$0xff]
        %v5924 = vld [vmem:[#allocation2 + $0x1a1] sm:$0xff]
        %v5925 = vld [vmem:[#allocation2 + $0x1b1] sm:$0xff]
        %v5926 = vld [vmem:[#allocation2 + $0x1e1] sm:$0xff]
        %v5927 = vld [vmem:[#allocation2 + $0x1f1] sm:$0xff]
        %v5928 = vld [vmem:[#allocation2 + $0x201] sm:$0xff]
        %v5929 = vld [vmem:[#allocation2 + $0x211] sm:$0xff]
        %v5930 = vld [vmem:[#allocation2 + $0x221] sm:$0xff]
        %v5931 = vld [vmem:[#allocation2 + $0x231] sm:$0xff]
        %v5932 = vld [vmem:[#allocation2 + $0x241] sm:$0xff]
        %v5933 = vld [vmem:[#allocation2 + $0x251] sm:$0xff]
        %v5934 = vld [vmem:[#allocation2 + $0x2] sm:$0xff]
        %v5935 = vld [vmem:[#allocation2 + $0x12] sm:$0xff]
        %v5936 = vld [vmem:[#allocation2 + $0x22] sm:$0xff]
        %v5937 = vld [vmem:[#allocation2 + $0x32] sm:$0xff]
        %v5938 = vld [vmem:[#allocation2 + $0x42] sm:$0xff]
        %v5939 = vld [vmem:[#allocation2 + $0x52] sm:$0xff]
        %v5940 = vld [vmem:[#allocation2 + $0x62] sm:$0xff]
        %v5941 = vld [vmem:[#allocation2 + $0x72] sm:$0xff]
        %v5942 = vld [vmem:[#allocation2 + $0xa2] sm:$0xff]
        %v5943 = vld [vmem:[#allocation2 + $0xb2] sm:$0xff]
        %v5944 = vld [vmem:[#allocation2 + $0xc2] sm:$0xff]
        %v5945 = vld [vmem:[#allocation2 + $0xd2] sm:$0xff]
        %v5946 = vld [vmem:[#allocation2 + $0xe2] sm:$0xff]
        %v5947 = vld [vmem:[#allocation2 + $0xf2] sm:$0xff]
        %v5948 = vld [vmem:[#allocation2 + $0x102] sm:$0xff]
        %v5949 = vld [vmem:[#allocation2 + $0x112] sm:$0xff]
        %v5950 = vld [vmem:[#allocation2 + $0x142] sm:$0xff]
        %v5951 = vld [vmem:[#allocation2 + $0x152] sm:$0xff]
        %v5952 = vld [vmem:[#allocation2 + $0x162] sm:$0xff]
        %v5953 = vld [vmem:[#allocation2 + $0x172] sm:$0xff]
        %v5954 = vld [vmem:[#allocation2 + $0x182] sm:$0xff]
        %v5955 = vld [vmem:[#allocation2 + $0x192] sm:$0xff]
        %v5956 = vld [vmem:[#allocation2 + $0x1a2] sm:$0xff]
        %v5957 = vld [vmem:[#allocation2 + $0x1b2] sm:$0xff]
        %v5958 = vld [vmem:[#allocation2 + $0x1e2] sm:$0xff]
        %v5959 = vld [vmem:[#allocation2 + $0x1f2] sm:$0xff]
        %v5960 = vld [vmem:[#allocation2 + $0x202] sm:$0xff]
        %v5961 = vld [vmem:[#allocation2 + $0x212] sm:$0xff]
        %v5962 = vld [vmem:[#allocation2 + $0x222] sm:$0xff]
        %v5963 = vld [vmem:[#allocation2 + $0x232] sm:$0xff]
        %v5964 = vld [vmem:[#allocation2 + $0x242] sm:$0xff]
        %v5965 = vld [vmem:[#allocation2 + $0x252] sm:$0xff]
        %5998 = vrot.lane.b32.xlu0 %v5902, 32
        %v5999 = vpop.permute.xlu0 %5998
        %6000 = vrot.lane.b32.xlu0 %v5903, 32
        %v6001 = vpop.permute.xlu0 %6000
        %6002 = vrot.lane.b32.xlu0 %v5904, 32
        %v6003 = vpop.permute.xlu0 %6002
        %6004 = vrot.lane.b32.xlu0 %v5905, 32
        %v6005 = vpop.permute.xlu0 %6004
        %6006 = vrot.lane.b32.xlu0 %v5906, 32
        %v6007 = vpop.permute.xlu0 %6006
        %6008 = vrot.lane.b32.xlu0 %v5907, 32
        %v6009 = vpop.permute.xlu0 %6008
        %6010 = vrot.lane.b32.xlu0 %v5908, 32
        %v6011 = vpop.permute.xlu0 %6010
        %6012 = vrot.lane.b32.xlu0 %v5909, 32
        %v6013 = vpop.permute.xlu0 %6012
        %6014 = vrot.lane.b32.xlu0 %v5910, 32
        %v6015 = vpop.permute.xlu0 %6014
        %6016 = vrot.lane.b32.xlu0 %v5911, 32
        %v6017 = vpop.permute.xlu0 %6016
        %6018 = vrot.lane.b32.xlu0 %v5912, 32
        %v6019 = vpop.permute.xlu0 %6018
        %6020 = vrot.lane.b32.xlu0 %v5913, 32
        %v6021 = vpop.permute.xlu0 %6020
        %6022 = vrot.lane.b32.xlu0 %v5914, 32
        %v6023 = vpop.permute.xlu0 %6022
        %6024 = vrot.lane.b32.xlu0 %v5915, 32
        %v6025 = vpop.permute.xlu0 %6024
        %6026 = vrot.lane.b32.xlu0 %v5916, 32
        %v6027 = vpop.permute.xlu0 %6026
        %6028 = vrot.lane.b32.xlu0 %v5917, 32
        %v6029 = vpop.permute.xlu0 %6028
        %6030 = vrot.lane.b32.xlu0 %v5918, 32
        %v6031 = vpop.permute.xlu0 %6030
        %6032 = vrot.lane.b32.xlu0 %v5919, 32
        %v6033 = vpop.permute.xlu0 %6032
        %6034 = vrot.lane.b32.xlu0 %v5920, 32
        %v6035 = vpop.permute.xlu0 %6034
        %6036 = vrot.lane.b32.xlu0 %v5921, 32
        %v6037 = vpop.permute.xlu0 %6036
        %6038 = vrot.lane.b32.xlu0 %v5922, 32
        %v6039 = vpop.permute.xlu0 %6038
        %6040 = vrot.lane.b32.xlu0 %v5923, 32
        %v6041 = vpop.permute.xlu0 %6040
        %6042 = vrot.lane.b32.xlu0 %v5924, 32
        %v6043 = vpop.permute.xlu0 %6042
        %6044 = vrot.lane.b32.xlu0 %v5925, 32
        %v6045 = vpop.permute.xlu0 %6044
        %6046 = vrot.lane.b32.xlu0 %v5926, 32
        %v6047 = vpop.permute.xlu0 %6046
        %6048 = vrot.lane.b32.xlu0 %v5927, 32
        %v6049 = vpop.permute.xlu0 %6048
        %6050 = vrot.lane.b32.xlu0 %v5928, 32
        %v6051 = vpop.permute.xlu0 %6050
        %6052 = vrot.lane.b32.xlu0 %v5929, 32
        %v6053 = vpop.permute.xlu0 %6052
        %6054 = vrot.lane.b32.xlu0 %v5930, 32
        %v6055 = vpop.permute.xlu0 %6054
        %6056 = vrot.lane.b32.xlu0 %v5931, 32
        %v6057 = vpop.permute.xlu0 %6056
        %6058 = vrot.lane.b32.xlu0 %v5932, 32
        %v6059 = vpop.permute.xlu0 %6058
        %6060 = vrot.lane.b32.xlu0 %v5933, 32
        %v6061 = vpop.permute.xlu0 %6060
        %6126 = vrot.lane.b32.xlu0 %v5934, 64
        %v6127 = vpop.permute.xlu0 %6126
        %6128 = vrot.lane.b32.xlu0 %v5935, 64
        %v6129 = vpop.permute.xlu0 %6128
        %6130 = vrot.lane.b32.xlu0 %v5936, 64
        %v6131 = vpop.permute.xlu0 %6130
        %6132 = vrot.lane.b32.xlu0 %v5937, 64
        %v6133 = vpop.permute.xlu0 %6132
        %6134 = vrot.lane.b32.xlu0 %v5938, 64
        %v6135 = vpop.permute.xlu0 %6134
        %6136 = vrot.lane.b32.xlu0 %v5939, 64
        %v6137 = vpop.permute.xlu0 %6136
        %6138 = vrot.lane.b32.xlu0 %v5940, 64
        %v6139 = vpop.permute.xlu0 %6138
        %6140 = vrot.lane.b32.xlu0 %v5941, 64
        %v6141 = vpop.permute.xlu0 %6140
        %6142 = vrot.lane.b32.xlu0 %v5942, 64
        %v6143 = vpop.permute.xlu0 %6142
        %6144 = vrot.lane.b32.xlu0 %v5943, 64
        %v6145 = vpop.permute.xlu0 %6144
        %6146 = vrot.lane.b32.xlu0 %v5944, 64
        %v6147 = vpop.permute.xlu0 %6146
        %6148 = vrot.lane.b32.xlu0 %v5945, 64
        %v6149 = vpop.permute.xlu0 %6148
        %6150 = vrot.lane.b32.xlu0 %v5946, 64
        %v6151 = vpop.permute.xlu0 %6150
        %6152 = vrot.lane.b32.xlu0 %v5947, 64
        %v6153 = vpop.permute.xlu0 %6152
        %6154 = vrot.lane.b32.xlu0 %v5948, 64
        %v6155 = vpop.permute.xlu0 %6154
        %6156 = vrot.lane.b32.xlu0 %v5949, 64
        %v6157 = vpop.permute.xlu0 %6156
        %6158 = vrot.lane.b32.xlu0 %v5950, 64
        %v6159 = vpop.permute.xlu0 %6158
        %6160 = vrot.lane.b32.xlu0 %v5951, 64
        %v6161 = vpop.permute.xlu0 %6160
        %6162 = vrot.lane.b32.xlu0 %v5952, 64
        %v6163 = vpop.permute.xlu0 %6162
        %6164 = vrot.lane.b32.xlu0 %v5953, 64
        %v6165 = vpop.permute.xlu0 %6164
        %6166 = vrot.lane.b32.xlu0 %v5954, 64
        %v6167 = vpop.permute.xlu0 %6166
        %6168 = vrot.lane.b32.xlu0 %v5955, 64
        %v6169 = vpop.permute.xlu0 %6168
        %6170 = vrot.lane.b32.xlu0 %v5956, 64
        %v6171 = vpop.permute.xlu0 %6170
        %6172 = vrot.lane.b32.xlu0 %v5957, 64
        %v6173 = vpop.permute.xlu0 %6172
        %6174 = vrot.lane.b32.xlu0 %v5958, 64
        %v6175 = vpop.permute.xlu0 %6174
        %6176 = vrot.lane.b32.xlu0 %v5959, 64
        %v6177 = vpop.permute.xlu0 %6176
        %6178 = vrot.lane.b32.xlu0 %v5960, 64
        %v6179 = vpop.permute.xlu0 %6178
        %6180 = vrot.lane.b32.xlu0 %v5961, 64
        %v6181 = vpop.permute.xlu0 %6180
        %6182 = vrot.lane.b32.xlu0 %v5962, 64
        %v6183 = vpop.permute.xlu0 %6182
        %6184 = vrot.lane.b32.xlu0 %v5963, 64
        %v6185 = vpop.permute.xlu0 %6184
        %6186 = vrot.lane.b32.xlu0 %v5964, 64
        %v6187 = vpop.permute.xlu0 %6186
        %6188 = vrot.lane.b32.xlu0 %v5965, 64
        %v6189 = vpop.permute.xlu0 %6188
        %v6222 = vsel %vm1842, %v5870, %v5999
        %v6223 = vsel %vm1842, %v5871, %v6001
        %v6224 = vsel %vm1842, %v5872, %v6003
        %v6225 = vsel %vm1842, %v5873, %v6005
        %v6226 = vsel %vm1842, %v5874, %v6007
        %v6227 = vsel %vm1842, %v5875, %v6009
        %v6228 = vsel %vm1842, %v5876, %v6011
        %v6229 = vsel %vm1842, %v5877, %v6013
        %v6230 = vsel %vm1842, %v5878, %v6015
        %v6231 = vsel %vm1842, %v5879, %v6017
        %v6232 = vsel %vm1842, %v5880, %v6019
        %v6233 = vsel %vm1842, %v5881, %v6021
        %v6234 = vsel %vm1842, %v5882, %v6023
        %v6235 = vsel %vm1842, %v5883, %v6025
        %v6236 = vsel %vm1842, %v5884, %v6027
        %v6237 = vsel %vm1842, %v5885, %v6029
        %v6238 = vsel %vm1842, %v5886, %v6031
        %v6239 = vsel %vm1842, %v5887, %v6033
        %v6240 = vsel %vm1842, %v5888, %v6035
        %v6241 = vsel %vm1842, %v5889, %v6037
        %v6242 = vsel %vm1842, %v5890, %v6039
        %v6243 = vsel %vm1842, %v5891, %v6041
        %v6244 = vsel %vm1842, %v5892, %v6043
        %v6245 = vsel %vm1842, %v5893, %v6045
        %v6246 = vsel %vm1842, %v5894, %v6047
        %v6247 = vsel %vm1842, %v5895, %v6049
        %v6248 = vsel %vm1842, %v5896, %v6051
        %v6249 = vsel %vm1842, %v5897, %v6053
        %v6250 = vsel %vm1842, %v5898, %v6055
        %v6251 = vsel %vm1842, %v5899, %v6057
        %v6252 = vsel %vm1842, %v5900, %v6059
        %v6253 = vsel %vm1842, %v5901, %v6061
        %vm6254 = vcmask 523264
        %v6255 = vsel %vm6254, %v6222, %v6127
        %v6256 = vsel %vm6254, %v6223, %v6129
        %v6257 = vsel %vm6254, %v6224, %v6131
        %v6258 = vsel %vm6254, %v6225, %v6133
        %v6259 = vsel %vm6254, %v6226, %v6135
        %v6260 = vsel %vm6254, %v6227, %v6137
        %v6261 = vsel %vm6254, %v6228, %v6139
        %v6262 = vsel %vm6254, %v6229, %v6141
        %v6263 = vsel %vm6254, %v6230, %v6143
        %v6264 = vsel %vm6254, %v6231, %v6145
        %v6265 = vsel %vm6254, %v6232, %v6147
        %v6266 = vsel %vm6254, %v6233, %v6149
        %v6267 = vsel %vm6254, %v6234, %v6151
        %v6268 = vsel %vm6254, %v6235, %v6153
        %v6269 = vsel %vm6254, %v6236, %v6155
        %v6270 = vsel %vm6254, %v6237, %v6157
        %v6271 = vsel %vm6254, %v6238, %v6159
        %v6272 = vsel %vm6254, %v6239, %v6161
        %v6273 = vsel %vm6254, %v6240, %v6163
        %v6274 = vsel %vm6254, %v6241, %v6165
        %v6275 = vsel %vm6254, %v6242, %v6167
        %v6276 = vsel %vm6254, %v6243, %v6169
        %v6277 = vsel %vm6254, %v6244, %v6171
        %v6278 = vsel %vm6254, %v6245, %v6173
        %v6279 = vsel %vm6254, %v6246, %v6175
        %v6280 = vsel %vm6254, %v6247, %v6177
        %v6281 = vsel %vm6254, %v6248, %v6179
        %v6282 = vsel %vm6254, %v6249, %v6181
        %v6283 = vsel %vm6254, %v6250, %v6183
        %v6284 = vsel %vm6254, %v6251, %v6185
        %v6285 = vsel %vm6254, %v6252, %v6187
        %v6286 = vsel %vm6254, %v6253, %v6189
        %v6287 = vpack.c.bf16 %v6256, %v6255
        %v6288 = vpack.c.bf16 %v6258, %v6257
        %v6289 = vpack.c.bf16 %v6260, %v6259
        %v6290 = vpack.c.bf16 %v6262, %v6261
        %v6291 = vpack.c.bf16 %v6264, %v6263
        %v6292 = vpack.c.bf16 %v6266, %v6265
        %v6293 = vpack.c.bf16 %v6268, %v6267
        %v6294 = vpack.c.bf16 %v6270, %v6269
        %v6295 = vpack.c.bf16 %v6272, %v6271
        %v6296 = vpack.c.bf16 %v6274, %v6273
        %v6297 = vpack.c.bf16 %v6276, %v6275
        %v6298 = vpack.c.bf16 %v6278, %v6277
        %v6299 = vpack.c.bf16 %v6280, %v6279
        %v6300 = vpack.c.bf16 %v6282, %v6281
        %v6301 = vpack.c.bf16 %v6284, %v6283
        %v6302 = vpack.c.bf16 %v6286, %v6285
        %v6303 = vld [vmem:[%s3] sm:$0xf]
        %v6304 = vld [vmem:[%s3 + $0x4] sm:$0xf]
        %v6305 = vld [vmem:[%s3 + $0x8] sm:$0xf]
        %v6306 = vld [vmem:[%s3 + $0xc] sm:$0xf]
        %v6307 = vld [vmem:[%s3 + $0x10] sm:$0xf]
        %v6308 = vld [vmem:[%s3 + $0x14] sm:$0xf]
        %v6309 = vld [vmem:[%s3 + $0x18] sm:$0xf]
        %v6310 = vld [vmem:[%s3 + $0x1c] sm:$0xf]
        %v6311 = vld [vmem:[%s3 + $0x20] sm:$0xf]
        %v6312 = vld [vmem:[%s3 + $0x24] sm:$0xf]
        %v6313 = vld [vmem:[%s3 + $0x28] sm:$0xf]
        %v6314 = vld [vmem:[%s3 + $0x2c] sm:$0xf]
        %v6315 = vld [vmem:[%s5755] sm:$0xff]
        %v6316 = vld [vmem:[%s5755 + $0x10] sm:$0xff]
        %v6317 = vld [vmem:[%s5755 + $0x20] sm:$0xff]
        %v6318 = vld [vmem:[%s5755 + $0x30] sm:$0xff]
        %v6319 = vld [vmem:[%s5755 + $0x40] sm:$0xff]
        %v6320 = vld [vmem:[%s5755 + $0x50] sm:$0xff]
        %v6321 = vld [vmem:[%s5755 + $0x60] sm:$0xff]
        %v6322 = vld [vmem:[%s5755 + $0x70] sm:$0xff]
        %v6323 = vld [vmem:[%s5755 + $0xa0] sm:$0xff]
        %v6324 = vld [vmem:[%s5755 + $0xb0] sm:$0xff]
        %v6325 = vld [vmem:[%s5755 + $0xc0] sm:$0xff]
        %v6326 = vld [vmem:[%s5755 + $0xd0] sm:$0xff]
        %v6327 = vld [vmem:[%s5755 + $0xe0] sm:$0xff]
        %v6328 = vld [vmem:[%s5755 + $0xf0] sm:$0xff]
        %v6329 = vld [vmem:[%s5755 + $0x100] sm:$0xff]
        %v6330 = vld [vmem:[%s5755 + $0x110] sm:$0xff]
        %v6331 = vld [vmem:[%s5755 + $0x140] sm:$0xff]
        %v6332 = vld [vmem:[%s5755 + $0x150] sm:$0xff]
        %v6333 = vld [vmem:[%s5755 + $0x160] sm:$0xff]
        %v6334 = vld [vmem:[%s5755 + $0x170] sm:$0xff]
        %v6335 = vld [vmem:[%s5755 + $0x180] sm:$0xff]
        %v6336 = vld [vmem:[%s5755 + $0x190] sm:$0xff]
        %v6337 = vld [vmem:[%s5755 + $0x1a0] sm:$0xff]
        %v6338 = vld [vmem:[%s5755 + $0x1b0] sm:$0xff]
        %v6339 = vld [vmem:[%s5755 + $0x1e0] sm:$0xff]
        %v6340 = vld [vmem:[%s5755 + $0x1f0] sm:$0xff]
        %v6341 = vld [vmem:[%s5755 + $0x200] sm:$0xff]
        %v6342 = vld [vmem:[%s5755 + $0x210] sm:$0xff]
        %v6343 = vld [vmem:[%s5755 + $0x220] sm:$0xff]
        %v6344 = vld [vmem:[%s5755 + $0x230] sm:$0xff]
        %v6345 = vld [vmem:[%s5755 + $0x240] sm:$0xff]
        %v6346 = vld [vmem:[%s5755 + $0x250] sm:$0xff]
        %v6347 = vld [vmem:[%s5755 + $0x1] sm:$0xff]
        %v6348 = vld [vmem:[%s5755 + $0x11] sm:$0xff]
        %v6349 = vld [vmem:[%s5755 + $0x21] sm:$0xff]
        %v6350 = vld [vmem:[%s5755 + $0x31] sm:$0xff]
        %v6351 = vld [vmem:[%s5755 + $0x41] sm:$0xff]
        %v6352 = vld [vmem:[%s5755 + $0x51] sm:$0xff]
        %v6353 = vld [vmem:[%s5755 + $0x61] sm:$0xff]
        %v6354 = vld [vmem:[%s5755 + $0x71] sm:$0xff]
        %v6355 = vld [vmem:[%s5755 + $0xa1] sm:$0xff]
        %v6356 = vld [vmem:[%s5755 + $0xb1] sm:$0xff]
        %v6357 = vld [vmem:[%s5755 + $0xc1] sm:$0xff]
        %v6358 = vld [vmem:[%s5755 + $0xd1] sm:$0xff]
        %v6359 = vld [vmem:[%s5755 + $0xe1] sm:$0xff]
        %v6360 = vld [vmem:[%s5755 + $0xf1] sm:$0xff]
        %v6361 = vld [vmem:[%s5755 + $0x101] sm:$0xff]
        %v6362 = vld [vmem:[%s5755 + $0x111] sm:$0xff]
        %v6363 = vld [vmem:[%s5755 + $0x141] sm:$0xff]
        %v6364 = vld [vmem:[%s5755 + $0x151] sm:$0xff]
        %v6365 = vld [vmem:[%s5755 + $0x161] sm:$0xff]
        %v6366 = vld [vmem:[%s5755 + $0x171] sm:$0xff]
        %v6367 = vld [vmem:[%s5755 + $0x181] sm:$0xff]
        %v6368 = vld [vmem:[%s5755 + $0x191] sm:$0xff]
        %v6369 = vld [vmem:[%s5755 + $0x1a1] sm:$0xff]
        %v6370 = vld [vmem:[%s5755 + $0x1b1] sm:$0xff]
        %v6371 = vld [vmem:[%s5755 + $0x1e1] sm:$0xff]
        %v6372 = vld [vmem:[%s5755 + $0x1f1] sm:$0xff]
        %v6373 = vld [vmem:[%s5755 + $0x201] sm:$0xff]
        %v6374 = vld [vmem:[%s5755 + $0x211] sm:$0xff]
        %v6375 = vld [vmem:[%s5755 + $0x221] sm:$0xff]
        %v6376 = vld [vmem:[%s5755 + $0x231] sm:$0xff]
        %v6377 = vld [vmem:[%s5755 + $0x241] sm:$0xff]
        %v6378 = vld [vmem:[%s5755 + $0x251] sm:$0xff]
        %v6379 = vld [vmem:[%s5755 + $0x2] sm:$0xff]
        %v6380 = vld [vmem:[%s5755 + $0x12] sm:$0xff]
        %v6381 = vld [vmem:[%s5755 + $0x22] sm:$0xff]
        %v6382 = vld [vmem:[%s5755 + $0x32] sm:$0xff]
        %v6383 = vld [vmem:[%s5755 + $0x42] sm:$0xff]
        %v6384 = vld [vmem:[%s5755 + $0x52] sm:$0xff]
        %v6385 = vld [vmem:[%s5755 + $0x62] sm:$0xff]
        %v6386 = vld [vmem:[%s5755 + $0x72] sm:$0xff]
        %v6387 = vld [vmem:[%s5755 + $0xa2] sm:$0xff]
        %v6388 = vld [vmem:[%s5755 + $0xb2] sm:$0xff]
        %v6389 = vld [vmem:[%s5755 + $0xc2] sm:$0xff]
        %v6390 = vld [vmem:[%s5755 + $0xd2] sm:$0xff]
        %v6391 = vld [vmem:[%s5755 + $0xe2] sm:$0xff]
        %v6392 = vld [vmem:[%s5755 + $0xf2] sm:$0xff]
        %v6393 = vld [vmem:[%s5755 + $0x102] sm:$0xff]
        %v6394 = vld [vmem:[%s5755 + $0x112] sm:$0xff]
        %v6395 = vld [vmem:[%s5755 + $0x142] sm:$0xff]
        %v6396 = vld [vmem:[%s5755 + $0x152] sm:$0xff]
        %v6397 = vld [vmem:[%s5755 + $0x162] sm:$0xff]
        %v6398 = vld [vmem:[%s5755 + $0x172] sm:$0xff]
        %v6399 = vld [vmem:[%s5755 + $0x182] sm:$0xff]
        %v6400 = vld [vmem:[%s5755 + $0x192] sm:$0xff]
        %v6401 = vld [vmem:[%s5755 + $0x1a2] sm:$0xff]
        %v6402 = vld [vmem:[%s5755 + $0x1b2] sm:$0xff]
        %v6403 = vld [vmem:[%s5755 + $0x1e2] sm:$0xff]
        %v6404 = vld [vmem:[%s5755 + $0x1f2] sm:$0xff]
        %v6405 = vld [vmem:[%s5755 + $0x202] sm:$0xff]
        %v6406 = vld [vmem:[%s5755 + $0x212] sm:$0xff]
        %v6407 = vld [vmem:[%s5755 + $0x222] sm:$0xff]
        %v6408 = vld [vmem:[%s5755 + $0x232] sm:$0xff]
        %v6409 = vld [vmem:[%s5755 + $0x242] sm:$0xff]
        %v6410 = vld [vmem:[%s5755 + $0x252] sm:$0xff]
        %6443 = vrot.lane.b32.xlu0 %v6347, 32
        %v6444 = vpop.permute.xlu0 %6443
        %6445 = vrot.lane.b32.xlu0 %v6348, 32
        %v6446 = vpop.permute.xlu0 %6445
        %6447 = vrot.lane.b32.xlu0 %v6349, 32
        %v6448 = vpop.permute.xlu0 %6447
        %6449 = vrot.lane.b32.xlu0 %v6350, 32
        %v6450 = vpop.permute.xlu0 %6449
        %6451 = vrot.lane.b32.xlu0 %v6351, 32
        %v6452 = vpop.permute.xlu0 %6451
        %6453 = vrot.lane.b32.xlu0 %v6352, 32
        %v6454 = vpop.permute.xlu0 %6453
        %6455 = vrot.lane.b32.xlu0 %v6353, 32
        %v6456 = vpop.permute.xlu0 %6455
        %6457 = vrot.lane.b32.xlu0 %v6354, 32
        %v6458 = vpop.permute.xlu0 %6457
        %6459 = vrot.lane.b32.xlu0 %v6355, 32
        %v6460 = vpop.permute.xlu0 %6459
        %6461 = vrot.lane.b32.xlu0 %v6356, 32
        %v6462 = vpop.permute.xlu0 %6461
        %6463 = vrot.lane.b32.xlu0 %v6357, 32
        %v6464 = vpop.permute.xlu0 %6463
        %6465 = vrot.lane.b32.xlu0 %v6358, 32
        %v6466 = vpop.permute.xlu0 %6465
        %6467 = vrot.lane.b32.xlu0 %v6359, 32
        %v6468 = vpop.permute.xlu0 %6467
        %6469 = vrot.lane.b32.xlu0 %v6360, 32
        %v6470 = vpop.permute.xlu0 %6469
        %6471 = vrot.lane.b32.xlu0 %v6361, 32
        %v6472 = vpop.permute.xlu0 %6471
        %6473 = vrot.lane.b32.xlu0 %v6362, 32
        %v6474 = vpop.permute.xlu0 %6473
        %6475 = vrot.lane.b32.xlu0 %v6363, 32
        %v6476 = vpop.permute.xlu0 %6475
        %6477 = vrot.lane.b32.xlu0 %v6364, 32
        %v6478 = vpop.permute.xlu0 %6477
        %6479 = vrot.lane.b32.xlu0 %v6365, 32
        %v6480 = vpop.permute.xlu0 %6479
        %6481 = vrot.lane.b32.xlu0 %v6366, 32
        %v6482 = vpop.permute.xlu0 %6481
        %6483 = vrot.lane.b32.xlu0 %v6367, 32
        %v6484 = vpop.permute.xlu0 %6483
        %6485 = vrot.lane.b32.xlu0 %v6368, 32
        %v6486 = vpop.permute.xlu0 %6485
        %6487 = vrot.lane.b32.xlu0 %v6369, 32
        %v6488 = vpop.permute.xlu0 %6487
        %6489 = vrot.lane.b32.xlu0 %v6370, 32
        %v6490 = vpop.permute.xlu0 %6489
        %6491 = vrot.lane.b32.xlu0 %v6371, 32
        %v6492 = vpop.permute.xlu0 %6491
        %6493 = vrot.lane.b32.xlu0 %v6372, 32
        %v6494 = vpop.permute.xlu0 %6493
        %6495 = vrot.lane.b32.xlu0 %v6373, 32
        %v6496 = vpop.permute.xlu0 %6495
        %6497 = vrot.lane.b32.xlu0 %v6374, 32
        %v6498 = vpop.permute.xlu0 %6497
        %6499 = vrot.lane.b32.xlu0 %v6375, 32
        %v6500 = vpop.permute.xlu0 %6499
        %6501 = vrot.lane.b32.xlu0 %v6376, 32
        %v6502 = vpop.permute.xlu0 %6501
        %6503 = vrot.lane.b32.xlu0 %v6377, 32
        %v6504 = vpop.permute.xlu0 %6503
        %6505 = vrot.lane.b32.xlu0 %v6378, 32
        %v6506 = vpop.permute.xlu0 %6505
        %6571 = vrot.lane.b32.xlu0 %v6379, 64
        %v6572 = vpop.permute.xlu0 %6571
        %6573 = vrot.lane.b32.xlu0 %v6380, 64
        %v6574 = vpop.permute.xlu0 %6573
        %6575 = vrot.lane.b32.xlu0 %v6381, 64
        %v6576 = vpop.permute.xlu0 %6575
        %6577 = vrot.lane.b32.xlu0 %v6382, 64
        %v6578 = vpop.permute.xlu0 %6577
        %6579 = vrot.lane.b32.xlu0 %v6383, 64
        %v6580 = vpop.permute.xlu0 %6579
        %6581 = vrot.lane.b32.xlu0 %v6384, 64
        %v6582 = vpop.permute.xlu0 %6581
        %6583 = vrot.lane.b32.xlu0 %v6385, 64
        %v6584 = vpop.permute.xlu0 %6583
        %6585 = vrot.lane.b32.xlu0 %v6386, 64
        %v6586 = vpop.permute.xlu0 %6585
        %6587 = vrot.lane.b32.xlu0 %v6387, 64
        %v6588 = vpop.permute.xlu0 %6587
        %6589 = vrot.lane.b32.xlu0 %v6388, 64
        %v6590 = vpop.permute.xlu0 %6589
        %6591 = vrot.lane.b32.xlu0 %v6389, 64
        %v6592 = vpop.permute.xlu0 %6591
        %6593 = vrot.lane.b32.xlu0 %v6390, 64
        %v6594 = vpop.permute.xlu0 %6593
        %6595 = vrot.lane.b32.xlu0 %v6391, 64
        %v6596 = vpop.permute.xlu0 %6595
        %6597 = vrot.lane.b32.xlu0 %v6392, 64
        %v6598 = vpop.permute.xlu0 %6597
        %6599 = vrot.lane.b32.xlu0 %v6393, 64
        %v6600 = vpop.permute.xlu0 %6599
        %6601 = vrot.lane.b32.xlu0 %v6394, 64
        %v6602 = vpop.permute.xlu0 %6601
        %6603 = vrot.lane.b32.xlu0 %v6395, 64
        %v6604 = vpop.permute.xlu0 %6603
        %6605 = vrot.lane.b32.xlu0 %v6396, 64
        %v6606 = vpop.permute.xlu0 %6605
        %6607 = vrot.lane.b32.xlu0 %v6397, 64
        %v6608 = vpop.permute.xlu0 %6607
        %6609 = vrot.lane.b32.xlu0 %v6398, 64
        %v6610 = vpop.permute.xlu0 %6609
        %6611 = vrot.lane.b32.xlu0 %v6399, 64
        %v6612 = vpop.permute.xlu0 %6611
        %6613 = vrot.lane.b32.xlu0 %v6400, 64
        %v6614 = vpop.permute.xlu0 %6613
        %6615 = vrot.lane.b32.xlu0 %v6401, 64
        %v6616 = vpop.permute.xlu0 %6615
        %6617 = vrot.lane.b32.xlu0 %v6402, 64
        %v6618 = vpop.permute.xlu0 %6617
        %6619 = vrot.lane.b32.xlu0 %v6403, 64
        %v6620 = vpop.permute.xlu0 %6619
        %6621 = vrot.lane.b32.xlu0 %v6404, 64
        %v6622 = vpop.permute.xlu0 %6621
        %6623 = vrot.lane.b32.xlu0 %v6405, 64
        %v6624 = vpop.permute.xlu0 %6623
        %6625 = vrot.lane.b32.xlu0 %v6406, 64
        %v6626 = vpop.permute.xlu0 %6625
        %6627 = vrot.lane.b32.xlu0 %v6407, 64
        %v6628 = vpop.permute.xlu0 %6627
        %6629 = vrot.lane.b32.xlu0 %v6408, 64
        %v6630 = vpop.permute.xlu0 %6629
        %6631 = vrot.lane.b32.xlu0 %v6409, 64
        %v6632 = vpop.permute.xlu0 %6631
        %6633 = vrot.lane.b32.xlu0 %v6410, 64
        %v6634 = vpop.permute.xlu0 %6633
        %v6667 = vsel %vm1842, %v6315, %v6444
        %v6668 = vsel %vm1842, %v6316, %v6446
        %v6669 = vsel %vm1842, %v6317, %v6448
        %v6670 = vsel %vm1842, %v6318, %v6450
        %v6671 = vsel %vm1842, %v6319, %v6452
        %v6672 = vsel %vm1842, %v6320, %v6454
        %v6673 = vsel %vm1842, %v6321, %v6456
        %v6674 = vsel %vm1842, %v6322, %v6458
        %v6675 = vsel %vm1842, %v6323, %v6460
        %v6676 = vsel %vm1842, %v6324, %v6462
        %v6677 = vsel %vm1842, %v6325, %v6464
        %v6678 = vsel %vm1842, %v6326, %v6466
        %v6679 = vsel %vm1842, %v6327, %v6468
        %v6680 = vsel %vm1842, %v6328, %v6470
        %v6681 = vsel %vm1842, %v6329, %v6472
        %v6682 = vsel %vm1842, %v6330, %v6474
        %v6683 = vsel %vm1842, %v6331, %v6476
        %v6684 = vsel %vm1842, %v6332, %v6478
        %v6685 = vsel %vm1842, %v6333, %v6480
        %v6686 = vsel %vm1842, %v6334, %v6482
        %v6687 = vsel %vm1842, %v6335, %v6484
        %v6688 = vsel %vm1842, %v6336, %v6486
        %v6689 = vsel %vm1842, %v6337, %v6488
        %v6690 = vsel %vm1842, %v6338, %v6490
        %v6691 = vsel %vm1842, %v6339, %v6492
        %v6692 = vsel %vm1842, %v6340, %v6494
        %v6693 = vsel %vm1842, %v6341, %v6496
        %v6694 = vsel %vm1842, %v6342, %v6498
        %v6695 = vsel %vm1842, %v6343, %v6500
        %v6696 = vsel %vm1842, %v6344, %v6502
        %v6697 = vsel %vm1842, %v6345, %v6504
        %v6698 = vsel %vm1842, %v6346, %v6506
        %v6699 = vsel %vm6254, %v6667, %v6572
        %v6700 = vsel %vm6254, %v6668, %v6574
        %v6701 = vsel %vm6254, %v6669, %v6576
        %v6702 = vsel %vm6254, %v6670, %v6578
        %v6703 = vsel %vm6254, %v6671, %v6580
        %v6704 = vsel %vm6254, %v6672, %v6582
        %v6705 = vsel %vm6254, %v6673, %v6584
        %v6706 = vsel %vm6254, %v6674, %v6586
        %v6707 = vsel %vm6254, %v6675, %v6588
        %v6708 = vsel %vm6254, %v6676, %v6590
        %v6709 = vsel %vm6254, %v6677, %v6592
        %v6710 = vsel %vm6254, %v6678, %v6594
        %v6711 = vsel %vm6254, %v6679, %v6596
        %v6712 = vsel %vm6254, %v6680, %v6598
        %v6713 = vsel %vm6254, %v6681, %v6600
        %v6714 = vsel %vm6254, %v6682, %v6602
        %v6715 = vsel %vm6254, %v6683, %v6604
        %v6716 = vsel %vm6254, %v6684, %v6606
        %v6717 = vsel %vm6254, %v6685, %v6608
        %v6718 = vsel %vm6254, %v6686, %v6610
        %v6719 = vsel %vm6254, %v6687, %v6612
        %v6720 = vsel %vm6254, %v6688, %v6614
        %v6721 = vsel %vm6254, %v6689, %v6616
        %v6722 = vsel %vm6254, %v6690, %v6618
        %v6723 = vsel %vm6254, %v6691, %v6620
        %v6724 = vsel %vm6254, %v6692, %v6622
        %v6725 = vsel %vm6254, %v6693, %v6624
        %v6726 = vsel %vm6254, %v6694, %v6626
        %v6727 = vsel %vm6254, %v6695, %v6628
        %v6728 = vsel %vm6254, %v6696, %v6630
        %v6729 = vsel %vm6254, %v6697, %v6632
        %v6730 = vsel %vm6254, %v6698, %v6634
        %v6731 = vpack.c.bf16 %v6700, %v6699
        %v6732 = vpack.c.bf16 %v6702, %v6701
        %v6733 = vpack.c.bf16 %v6704, %v6703
        %v6734 = vpack.c.bf16 %v6706, %v6705
        %v6735 = vpack.c.bf16 %v6708, %v6707
        %v6736 = vpack.c.bf16 %v6710, %v6709
        %v6737 = vpack.c.bf16 %v6712, %v6711
        %v6738 = vpack.c.bf16 %v6714, %v6713
        %v6739 = vpack.c.bf16 %v6716, %v6715
        %v6740 = vpack.c.bf16 %v6718, %v6717
        %v6741 = vpack.c.bf16 %v6720, %v6719
        %v6742 = vpack.c.bf16 %v6722, %v6721
        %v6743 = vpack.c.bf16 %v6724, %v6723
        %v6744 = vpack.c.bf16 %v6726, %v6725
        %v6745 = vpack.c.bf16 %v6728, %v6727
        %v6746 = vpack.c.bf16 %v6730, %v6729
        %s6747 = scalar_lea.vmem %s3, 48
        %v6748 = vld [vmem:[%s6747] sm:$0xf]
        %v6749 = vld [vmem:[%s6747 + $0x4] sm:$0xf]
        %v6750 = vld [vmem:[%s6747 + $0x8] sm:$0xf]
        %v6751 = vld [vmem:[%s6747 + $0xc] sm:$0xf]
        %v6752 = vld [vmem:[%s6747 + $0x10] sm:$0xf]
        %v6753 = vld [vmem:[%s6747 + $0x14] sm:$0xf]
        %v6754 = vld [vmem:[%s6747 + $0x18] sm:$0xf]
        %v6755 = vld [vmem:[%s6747 + $0x1c] sm:$0xf]
        %v6756 = vld [vmem:[%s6747 + $0x20] sm:$0xf]
        %v6757 = vld [vmem:[%s6747 + $0x24] sm:$0xf]
        %v6758 = vld [vmem:[%s6747 + $0x28] sm:$0xf]
        %v6759 = vld [vmem:[%s6747 + $0x2c] sm:$0xf]
        %v6772 = vunpack.c.l.b16 %v6748
        %v6773 = vunpack.c.l.b16 %v6749
        %v6774 = vunpack.c.l.b16 %v6750
        %v6775 = vunpack.c.l.b16 %v6751
        %v6776 = vunpack.c.l.b16 %v6752
        %v6777 = vunpack.c.l.b16 %v6753
        %v6778 = vunpack.c.l.b16 %v6754
        %v6779 = vunpack.c.l.b16 %v6755
        %v6780 = vunpack.c.l.b16 %v6756
        %v6781 = vunpack.c.l.b16 %v6757
        %v6782 = vunpack.c.l.b16 %v6758
        %v6783 = vunpack.c.l.b16 %v6759
        %v6784 = vpack.c.b16 %v6773, %v6772
        %v6785 = vpack.c.b16 %v6775, %v6774
        %v6786 = vpack.c.b16 %v6777, %v6776
        %v6787 = vpack.c.b16 %v6779, %v6778
        %v6788 = vpack.c.b16 %v6781, %v6780
        %v6789 = vpack.c.b16 %v6783, %v6782
        %vm6796 = vcmask 785408
        %v6798 = vsel %vm6796, %v6731, 0
        %v6801 = vsel %vm6796, %v6732, 0
        %v6804 = vsel %vm6796, %v6733, 0
        %v6807 = vsel %vm6796, %v6734, 0
        %v6810 = vsel %vm6796, %v6735, 0
        %v6813 = vsel %vm6796, %v6736, 0
        %v6816 = vsel %vm6796, %v6737, 0
        %v6819 = vsel %vm6796, %v6738, 0
        %v6822 = vsel %vm6796, %v6739, 0
        %v6825 = vsel %vm6796, %v6740, 0
        %v6828 = vsel %vm6796, %v6741, 0
        %v6831 = vsel %vm6796, %v6742, 0
        %v6834 = vsel %vm6796, %v6743, 0
        %v6837 = vsel %vm6796, %v6744, 0
        %v6840 = vsel %vm6796, %v6745, 0
        %v6843 = vsel %vm6796, %v6746, 0
        %6845 = vmatprep.subr.bf16.mxu0 0
        %6846 = vmatpush1.bf16.msra.mxu0 %v6784
        %6847 = vmatprep.subr.bf16.mxu0 0
        %6848 = vmatpush1.bf16.msra.mxu0 %v6785
        %6849 = vmatprep.subr.bf16.mxu0 0
        %6850 = vmatpush1.bf16.msra.mxu0 %v6786
        %6851 = vmatprep.subr.bf16.mxu0 0
        %6852 = vmatpush1.bf16.msra.mxu0 %v6787
        %6853 = vmatprep.subr.bf16.mxu0 0
        %6854 = vmatpush1.bf16.msra.mxu0 %v6788
        %6855 = vmatprep.subr.bf16.mxu0 0
        %6856 = vmatpush1.bf16.msra.mxu0 %v6789
        %6857 = vmatprep.subr.bf16.mxu0 0
        %6858 = vmatpush1.bf16.msra.mxu0 0
        %6859 = vmatprep.subr.bf16.mxu0 0
        %6860 = vmatpush1.bf16.msra.mxu0 0
        %6861 = vmatprep.subr.bf16.mxu0 0
        %6862 = vmatpush1.bf16.msra.mxu0 0
        %6863 = vmatprep.subr.bf16.mxu0 0
        %6864 = vmatpush1.bf16.msra.mxu0 0
        %6865 = vmatprep.subr.bf16.mxu0 0
        %6866 = vmatpush1.bf16.msra.mxu0 0
        %6867 = vmatprep.subr.bf16.mxu0 0
        %6868 = vmatpush1.bf16.msra.mxu0 0
        %6869 = vmatprep.subr.bf16.mxu0 0
        %6870 = vmatpush1.bf16.msra.mxu0 0
        %6871 = vmatprep.subr.bf16.mxu0 0
        %6872 = vmatpush1.bf16.msra.mxu0 0
        %6873 = vmatprep.subr.bf16.mxu0 0
        %6874 = vmatpush1.bf16.msra.mxu0 0
        %6875 = vmatprep.subr.bf16.mxu0 0
        %6876 = vmatpush1.bf16.msra.mxu0 0
        %6877 = vmatprep.mubr.bf16.mxu0 0
        %6878 = vmatmul.mubr.bf16.gmra.mrb[0].mxu0 %v6798
        %v6879 = vpop.f32.mrb[0].mxu0
        %v6880 = vadd.f32 0.0, %v6879
        %v6881 = vpop.f32.mrb[0].mxu0
        %v6882 = vpop.f32.mrb[0].mxu0
        %v6883 = vadd.f32 0.0, %v6882
        %v6884 = vpop.f32.mrb[0].mxu0
        %6885 = vmatprep.mubr.bf16.mxu0 0
        %6886 = vmatmul.mubr.bf16.gmra.mrb[0].mxu0 %v6801
        %v6887 = vpop.f32.mrb[0].mxu0
        %v6888 = vadd.f32 0.0, %v6887
        %v6889 = vpop.f32.mrb[0].mxu0
        %v6890 = vpop.f32.mrb[0].mxu0
        %v6891 = vadd.f32 0.0, %v6890
        %v6892 = vpop.f32.mrb[0].mxu0
        %6893 = vmatprep.mubr.bf16.mxu0 0
        %6894 = vmatmul.mubr.bf16.gmra.mrb[0].mxu0 %v6804
        %v6895 = vpop.f32.mrb[0].mxu0
        %v6896 = vadd.f32 0.0, %v6895
        %v6897 = vpop.f32.mrb[0].mxu0
        %v6898 = vpop.f32.mrb[0].mxu0
        %v6899 = vadd.f32 0.0, %v6898
        %v6900 = vpop.f32.mrb[0].mxu0
        %6901 = vmatprep.mubr.bf16.mxu0 0
        %6902 = vmatmul.mubr.bf16.gmra.mrb[0].mxu0 %v6807
        %v6903 = vpop.f32.mrb[0].mxu0
        %v6904 = vadd.f32 0.0, %v6903
        %v6905 = vpop.f32.mrb[0].mxu0
        %v6906 = vpop.f32.mrb[0].mxu0
        %v6907 = vadd.f32 0.0, %v6906
        %v6908 = vpop.f32.mrb[0].mxu0
        %6909 = vmatprep.mubr.bf16.mxu0 0
        %6910 = vmatmul.mubr.bf16.gmra.mrb[0].mxu0 %v6810
        %v6911 = vpop.f32.mrb[0].mxu0
        %v6912 = vadd.f32 0.0, %v6911
        %v6913 = vpop.f32.mrb[0].mxu0
        %v6914 = vpop.f32.mrb[0].mxu0
        %v6915 = vadd.f32 0.0, %v6914
        %v6916 = vpop.f32.mrb[0].mxu0
        %6917 = vmatprep.mubr.bf16.mxu0 0
        %6918 = vmatmul.mubr.bf16.gmra.mrb[0].mxu0 %v6813
        %v6919 = vpop.f32.mrb[0].mxu0
        %v6920 = vadd.f32 0.0, %v6919
        %v6921 = vpop.f32.mrb[0].mxu0
        %v6922 = vpop.f32.mrb[0].mxu0
        %v6923 = vadd.f32 0.0, %v6922
        %v6924 = vpop.f32.mrb[0].mxu0
        %6925 = vmatprep.mubr.bf16.mxu0 0
        %6926 = vmatmul.mubr.bf16.gmra.mrb[0].mxu0 %v6816
        %v6927 = vpop.f32.mrb[0].mxu0
        %v6928 = vadd.f32 0.0, %v6927
        %v6929 = vpop.f32.mrb[0].mxu0
        %v6930 = vpop.f32.mrb[0].mxu0
        %v6931 = vadd.f32 0.0, %v6930
        %v6932 = vpop.f32.mrb[0].mxu0
        %6933 = vmatprep.mubr.bf16.mxu0 0
        %6934 = vmatmul.mubr.bf16.gmra.mrb[0].mxu0 %v6819
        %v6935 = vpop.f32.mrb[0].mxu0
        %v6936 = vadd.f32 0.0, %v6935
        %v6937 = vpop.f32.mrb[0].mxu0
        %v6938 = vpop.f32.mrb[0].mxu0
        %v6939 = vadd.f32 0.0, %v6938
        %v6940 = vpop.f32.mrb[0].mxu0
        %6941 = vmatprep.mubr.bf16.mxu0 0
        %6942 = vmatmul.mubr.bf16.gmra.mrb[0].mxu0 %v6822
        %v6943 = vpop.f32.mrb[0].mxu0
        %v6944 = vadd.f32 0.0, %v6943
        %v6945 = vpop.f32.mrb[0].mxu0
        %v6946 = vpop.f32.mrb[0].mxu0
        %v6947 = vadd.f32 0.0, %v6946
        %v6948 = vpop.f32.mrb[0].mxu0
        %6949 = vmatprep.mubr.bf16.mxu0 0
        %6950 = vmatmul.mubr.bf16.gmra.mrb[0].mxu0 %v6825
        %v6951 = vpop.f32.mrb[0].mxu0
        %v6952 = vadd.f32 0.0, %v6951
        %v6953 = vpop.f32.mrb[0].mxu0
        %v6954 = vpop.f32.mrb[0].mxu0
        %v6955 = vadd.f32 0.0, %v6954
        %v6956 = vpop.f32.mrb[0].mxu0
        %6957 = vmatprep.mubr.bf16.mxu0 0
        %6958 = vmatmul.mubr.bf16.gmra.mrb[0].mxu0 %v6828
        %v6959 = vpop.f32.mrb[0].mxu0
        %v6960 = vadd.f32 0.0, %v6959
        %v6961 = vpop.f32.mrb[0].mxu0
        %v6962 = vpop.f32.mrb[0].mxu0
        %v6963 = vadd.f32 0.0, %v6962
        %v6964 = vpop.f32.mrb[0].mxu0
        %6965 = vmatprep.mubr.bf16.mxu0 0
        %6966 = vmatmul.mubr.bf16.gmra.mrb[0].mxu0 %v6831
        %v6967 = vpop.f32.mrb[0].mxu0
        %v6968 = vadd.f32 0.0, %v6967
        %v6969 = vpop.f32.mrb[0].mxu0
        %v6970 = vpop.f32.mrb[0].mxu0
        %v6971 = vadd.f32 0.0, %v6970
        %v6972 = vpop.f32.mrb[0].mxu0
        %6973 = vmatprep.mubr.bf16.mxu0 0
        %6974 = vmatmul.mubr.bf16.gmra.mrb[0].mxu0 %v6834
        %v6975 = vpop.f32.mrb[0].mxu0
        %v6976 = vadd.f32 0.0, %v6975
        %v6977 = vpop.f32.mrb[0].mxu0
        %v6978 = vpop.f32.mrb[0].mxu0
        %v6979 = vadd.f32 0.0, %v6978
        %v6980 = vpop.f32.mrb[0].mxu0
        %6981 = vmatprep.mubr.bf16.mxu0 0
        %6982 = vmatmul.mubr.bf16.gmra.mrb[0].mxu0 %v6837
        %v6983 = vpop.f32.mrb[0].mxu0
        %v6984 = vadd.f32 0.0, %v6983
        %v6985 = vpop.f32.mrb[0].mxu0
        %v6986 = vpop.f32.mrb[0].mxu0
        %v6987 = vadd.f32 0.0, %v6986
        %v6988 = vpop.f32.mrb[0].mxu0
        %6989 = vmatprep.mubr.bf16.mxu0 0
        %6990 = vmatmul.mubr.bf16.gmra.mrb[0].mxu0 %v6840
        %v6991 = vpop.f32.mrb[0].mxu0
        %v6992 = vadd.f32 0.0, %v6991
        %v6993 = vpop.f32.mrb[0].mxu0
        %v6994 = vpop.f32.mrb[0].mxu0
        %v6995 = vadd.f32 0.0, %v6994
        %v6996 = vpop.f32.mrb[0].mxu0
        %6997 = vmatprep.mubr.bf16.mxu0 0
        %6998 = vmatmul.mubr.bf16.gmra.mrb[0].mxu0 %v6843
        %v6999 = vpop.f32.mrb[0].mxu0
        %v7000 = vadd.f32 0.0, %v6999
        %v7001 = vpop.f32.mrb[0].mxu0
        %v7002 = vpop.f32.mrb[0].mxu0
        %v7003 = vadd.f32 0.0, %v7002
        %v7004 = vpop.f32.mrb[0].mxu0
        %7005 = vdwg.mxu0
        %v7018 = vunpack.c.l.b16 %v6303
        %v7019 = vunpack.c.l.b16 %v6304
        %v7020 = vunpack.c.l.b16 %v6305
        %v7021 = vunpack.c.l.b16 %v6306
        %v7022 = vunpack.c.l.b16 %v6307
        %v7023 = vunpack.c.l.b16 %v6308
        %v7024 = vunpack.c.l.b16 %v6309
        %v7025 = vunpack.c.l.b16 %v6310
        %v7026 = vunpack.c.l.b16 %v6311
        %v7027 = vunpack.c.l.b16 %v6312
        %v7028 = vunpack.c.l.b16 %v6313
        %v7029 = vunpack.c.l.b16 %v6314
        %v7030 = vpack.c.b16 %v7019, %v7018
        %v7031 = vpack.c.b16 %v7021, %v7020
        %v7032 = vpack.c.b16 %v7023, %v7022
        %v7033 = vpack.c.b16 %v7025, %v7024
        %v7034 = vpack.c.b16 %v7027, %v7026
        %v7035 = vpack.c.b16 %v7029, %v7028
        %v7043 = vsel %vm6796, %v6287, 0
        %v7046 = vsel %vm6796, %v6288, 0
        %v7049 = vsel %vm6796, %v6289, 0
        %v7052 = vsel %vm6796, %v6290, 0
        %v7055 = vsel %vm6796, %v6291, 0
        %v7058 = vsel %vm6796, %v6292, 0
        %v7061 = vsel %vm6796, %v6293, 0
        %v7064 = vsel %vm6796, %v6294, 0
        %v7067 = vsel %vm6796, %v6295, 0
        %v7070 = vsel %vm6796, %v6296, 0
        %v7073 = vsel %vm6796, %v6297, 0
        %v7076 = vsel %vm6796, %v6298, 0
        %v7079 = vsel %vm6796, %v6299, 0
        %v7082 = vsel %vm6796, %v6300, 0
        %v7085 = vsel %vm6796, %v6301, 0
        %v7088 = vsel %vm6796, %v6302, 0
        %7090 = vmatprep.subr.bf16.mxu0 0
        %7091 = vmatpush1.bf16.msra.mxu0 %v7030
        %7092 = vmatprep.subr.bf16.mxu0 0
        %7093 = vmatpush1.bf16.msra.mxu0 %v7031
        %7094 = vmatprep.subr.bf16.mxu0 0
        %7095 = vmatpush1.bf16.msra.mxu0 %v7032
        %7096 = vmatprep.subr.bf16.mxu0 0
        %7097 = vmatpush1.bf16.msra.mxu0 %v7033
        %7098 = vmatprep.subr.bf16.mxu0 0
        %7099 = vmatpush1.bf16.msra.mxu0 %v7034
        %7100 = vmatprep.subr.bf16.mxu0 0
        %7101 = vmatpush1.bf16.msra.mxu0 %v7035
        %7102 = vmatprep.subr.bf16.mxu0 0
        %7103 = vmatpush1.bf16.msra.mxu0 0
        %7104 = vmatprep.subr.bf16.mxu0 0
        %7105 = vmatpush1.bf16.msra.mxu0 0
        %7106 = vmatprep.subr.bf16.mxu0 0
        %7107 = vmatpush1.bf16.msra.mxu0 0
        %7108 = vmatprep.subr.bf16.mxu0 0
        %7109 = vmatpush1.bf16.msra.mxu0 0
        %7110 = vmatprep.subr.bf16.mxu0 0
        %7111 = vmatpush1.bf16.msra.mxu0 0
        %7112 = vmatprep.subr.bf16.mxu0 0
        %7113 = vmatpush1.bf16.msra.mxu0 0
        %7114 = vmatprep.subr.bf16.mxu0 0
        %7115 = vmatpush1.bf16.msra.mxu0 0
        %7116 = vmatprep.subr.bf16.mxu0 0
        %7117 = vmatpush1.bf16.msra.mxu0 0
        %7118 = vmatprep.subr.bf16.mxu0 0
        %7119 = vmatpush1.bf16.msra.mxu0 0
        %7120 = vmatprep.subr.bf16.mxu0 0
        %7121 = vmatpush1.bf16.msra.mxu0 0
        %7122 = vmatprep.mubr.bf16.mxu0 0
        %7123 = vmatmul.mubr.bf16.gmra.mrb[0].mxu0 %v7043
        %v7124 = vpop.f32.mrb[0].mxu0
        %v7125 = vadd.f32 %v6880, %v7124
        %v7126 = vpop.f32.mrb[0].mxu0
        %v7127 = vpop.f32.mrb[0].mxu0
        %v7128 = vadd.f32 %v6883, %v7127
        %v7129 = vpop.f32.mrb[0].mxu0
        %7130 = vmatprep.mubr.bf16.mxu0 0
        %7131 = vmatmul.mubr.bf16.gmra.mrb[0].mxu0 %v7046
        %v7132 = vpop.f32.mrb[0].mxu0
        %v7133 = vadd.f32 %v6888, %v7132
        %v7134 = vpop.f32.mrb[0].mxu0
        %v7135 = vpop.f32.mrb[0].mxu0
        %v7136 = vadd.f32 %v6891, %v7135
        %v7137 = vpop.f32.mrb[0].mxu0
        %7138 = vmatprep.mubr.bf16.mxu0 0
        %7139 = vmatmul.mubr.bf16.gmra.mrb[0].mxu0 %v7049
        %v7140 = vpop.f32.mrb[0].mxu0
        %v7141 = vadd.f32 %v6896, %v7140
        %v7142 = vpop.f32.mrb[0].mxu0
        %v7143 = vpop.f32.mrb[0].mxu0
        %v7144 = vadd.f32 %v6899, %v7143
        %v7145 = vpop.f32.mrb[0].mxu0
        %7146 = vmatprep.mubr.bf16.mxu0 0
        %7147 = vmatmul.mubr.bf16.gmra.mrb[0].mxu0 %v7052
        %v7148 = vpop.f32.mrb[0].mxu0
        %v7149 = vadd.f32 %v6904, %v7148
        %v7150 = vpop.f32.mrb[0].mxu0
        %v7151 = vpop.f32.mrb[0].mxu0
        %v7152 = vadd.f32 %v6907, %v7151
        %v7153 = vpop.f32.mrb[0].mxu0
        %7154 = vmatprep.mubr.bf16.mxu0 0
        %7155 = vmatmul.mubr.bf16.gmra.mrb[0].mxu0 %v7055
        %v7156 = vpop.f32.mrb[0].mxu0
        %v7157 = vadd.f32 %v6912, %v7156
        %v7158 = vpop.f32.mrb[0].mxu0
        %v7159 = vpop.f32.mrb[0].mxu0
        %v7160 = vadd.f32 %v6915, %v7159
        %v7161 = vpop.f32.mrb[0].mxu0
        %7162 = vmatprep.mubr.bf16.mxu0 0
        %7163 = vmatmul.mubr.bf16.gmra.mrb[0].mxu0 %v7058
        %v7164 = vpop.f32.mrb[0].mxu0
        %v7165 = vadd.f32 %v6920, %v7164
        %v7166 = vpop.f32.mrb[0].mxu0
        %v7167 = vpop.f32.mrb[0].mxu0
        %v7168 = vadd.f32 %v6923, %v7167
        %v7169 = vpop.f32.mrb[0].mxu0
        %7170 = vmatprep.mubr.bf16.mxu0 0
        %7171 = vmatmul.mubr.bf16.gmra.mrb[0].mxu0 %v7061
        %v7172 = vpop.f32.mrb[0].mxu0
        %v7173 = vadd.f32 %v6928, %v7172
        %v7174 = vpop.f32.mrb[0].mxu0
        %v7175 = vpop.f32.mrb[0].mxu0
        %v7176 = vadd.f32 %v6931, %v7175
        %v7177 = vpop.f32.mrb[0].mxu0
        %7178 = vmatprep.mubr.bf16.mxu0 0
        %7179 = vmatmul.mubr.bf16.gmra.mrb[0].mxu0 %v7064
        %v7180 = vpop.f32.mrb[0].mxu0
        %v7181 = vadd.f32 %v6936, %v7180
        %v7182 = vpop.f32.mrb[0].mxu0
        %v7183 = vpop.f32.mrb[0].mxu0
        %v7184 = vadd.f32 %v6939, %v7183
        %v7185 = vpop.f32.mrb[0].mxu0
        %7186 = vmatprep.mubr.bf16.mxu0 0
        %7187 = vmatmul.mubr.bf16.gmra.mrb[0].mxu0 %v7067
        %v7188 = vpop.f32.mrb[0].mxu0
        %v7189 = vadd.f32 %v6944, %v7188
        %v7190 = vpop.f32.mrb[0].mxu0
        %v7191 = vpop.f32.mrb[0].mxu0
        %v7192 = vadd.f32 %v6947, %v7191
        %v7193 = vpop.f32.mrb[0].mxu0
        %7194 = vmatprep.mubr.bf16.mxu0 0
        %7195 = vmatmul.mubr.bf16.gmra.mrb[0].mxu0 %v7070
        %v7196 = vpop.f32.mrb[0].mxu0
        %v7197 = vadd.f32 %v6952, %v7196
        %v7198 = vpop.f32.mrb[0].mxu0
        %v7199 = vpop.f32.mrb[0].mxu0
        %v7200 = vadd.f32 %v6955, %v7199
        %v7201 = vpop.f32.mrb[0].mxu0
        %7202 = vmatprep.mubr.bf16.mxu0 0
        %7203 = vmatmul.mubr.bf16.gmra.mrb[0].mxu0 %v7073
        %v7204 = vpop.f32.mrb[0].mxu0
        %v7205 = vadd.f32 %v6960, %v7204
        %v7206 = vpop.f32.mrb[0].mxu0
        %v7207 = vpop.f32.mrb[0].mxu0
        %v7208 = vadd.f32 %v6963, %v7207
        %v7209 = vpop.f32.mrb[0].mxu0
        %7210 = vmatprep.mubr.bf16.mxu0 0
        %7211 = vmatmul.mubr.bf16.gmra.mrb[0].mxu0 %v7076
        %v7212 = vpop.f32.mrb[0].mxu0
        %v7213 = vadd.f32 %v6968, %v7212
        %v7214 = vpop.f32.mrb[0].mxu0
        %v7215 = vpop.f32.mrb[0].mxu0
        %v7216 = vadd.f32 %v6971, %v7215
        %v7217 = vpop.f32.mrb[0].mxu0
        %7218 = vmatprep.mubr.bf16.mxu0 0
        %7219 = vmatmul.mubr.bf16.gmra.mrb[0].mxu0 %v7079
        %v7220 = vpop.f32.mrb[0].mxu0
        %v7221 = vadd.f32 %v6976, %v7220
        %v7222 = vpop.f32.mrb[0].mxu0
        %v7223 = vpop.f32.mrb[0].mxu0
        %v7224 = vadd.f32 %v6979, %v7223
        %v7225 = vpop.f32.mrb[0].mxu0
        %7226 = vmatprep.mubr.bf16.mxu0 0
        %7227 = vmatmul.mubr.bf16.gmra.mrb[0].mxu0 %v7082
        %v7228 = vpop.f32.mrb[0].mxu0
        %v7229 = vadd.f32 %v6984, %v7228
        %v7230 = vpop.f32.mrb[0].mxu0
        %v7231 = vpop.f32.mrb[0].mxu0
        %v7232 = vadd.f32 %v6987, %v7231
        %v7233 = vpop.f32.mrb[0].mxu0
        %7234 = vmatprep.mubr.bf16.mxu0 0
        %7235 = vmatmul.mubr.bf16.gmra.mrb[0].mxu0 %v7085
        %v7236 = vpop.f32.mrb[0].mxu0
        %v7237 = vadd.f32 %v6992, %v7236
        %v7238 = vpop.f32.mrb[0].mxu0
        %v7239 = vpop.f32.mrb[0].mxu0
        %v7240 = vadd.f32 %v6995, %v7239
        %v7241 = vpop.f32.mrb[0].mxu0
        %7242 = vmatprep.mubr.bf16.mxu0 0
        %7243 = vmatmul.mubr.bf16.gmra.mrb[0].mxu0 %v7088
        %v7244 = vpop.f32.mrb[0].mxu0
        %v7245 = vadd.f32 %v7000, %v7244
        %v7246 = vpop.f32.mrb[0].mxu0
        %v7247 = vpop.f32.mrb[0].mxu0
        %v7248 = vadd.f32 %v7003, %v7247
        %v7249 = vpop.f32.mrb[0].mxu0
        %7250 = vdwg.mxu0
        %s7251 = scalar_lea.vmem [#allocation2], 32
        %v7252 = vld [vmem:[%s7251] sm:$0xff]
        %v7253 = vld [vmem:[%s7251 + $0x10] sm:$0xff]
        %v7254 = vld [vmem:[%s7251 + $0x20] sm:$0xff]
        %v7255 = vld [vmem:[%s7251 + $0x30] sm:$0xff]
        %v7256 = vld [vmem:[%s7251 + $0x40] sm:$0xff]
        %v7257 = vld [vmem:[%s7251 + $0x50] sm:$0xff]
        %v7258 = vld [vmem:[%s7251 + $0x60] sm:$0xff]
        %v7259 = vld [vmem:[%s7251 + $0x70] sm:$0xff]
        %v7260 = vld [vmem:[%s7251 + $0xa0] sm:$0xff]
        %v7261 = vld [vmem:[%s7251 + $0xb0] sm:$0xff]
        %v7262 = vld [vmem:[%s7251 + $0xc0] sm:$0xff]
        %v7263 = vld [vmem:[%s7251 + $0xd0] sm:$0xff]
        %v7264 = vld [vmem:[%s7251 + $0xe0] sm:$0xff]
        %v7265 = vld [vmem:[%s7251 + $0xf0] sm:$0xff]
        %v7266 = vld [vmem:[%s7251 + $0x100] sm:$0xff]
        %v7267 = vld [vmem:[%s7251 + $0x110] sm:$0xff]
        %v7268 = vld [vmem:[%s7251 + $0x140] sm:$0xff]
        %v7269 = vld [vmem:[%s7251 + $0x150] sm:$0xff]
        %v7270 = vld [vmem:[%s7251 + $0x160] sm:$0xff]
        %v7271 = vld [vmem:[%s7251 + $0x170] sm:$0xff]
        %v7272 = vld [vmem:[%s7251 + $0x180] sm:$0xff]
        %v7273 = vld [vmem:[%s7251 + $0x190] sm:$0xff]
        %v7274 = vld [vmem:[%s7251 + $0x1a0] sm:$0xff]
        %v7275 = vld [vmem:[%s7251 + $0x1b0] sm:$0xff]
        %v7276 = vld [vmem:[%s7251 + $0x1e0] sm:$0xff]
        %v7277 = vld [vmem:[%s7251 + $0x1f0] sm:$0xff]
        %v7278 = vld [vmem:[%s7251 + $0x200] sm:$0xff]
        %v7279 = vld [vmem:[%s7251 + $0x210] sm:$0xff]
        %v7280 = vld [vmem:[%s7251 + $0x220] sm:$0xff]
        %v7281 = vld [vmem:[%s7251 + $0x230] sm:$0xff]
        %v7282 = vld [vmem:[%s7251 + $0x240] sm:$0xff]
        %v7283 = vld [vmem:[%s7251 + $0x250] sm:$0xff]
        %v7284 = vld [vmem:[%s7251 + $0x1] sm:$0xff]
        %v7285 = vld [vmem:[%s7251 + $0x11] sm:$0xff]
        %v7286 = vld [vmem:[%s7251 + $0x21] sm:$0xff]
        %v7287 = vld [vmem:[%s7251 + $0x31] sm:$0xff]
        %v7288 = vld [vmem:[%s7251 + $0x41] sm:$0xff]
        %v7289 = vld [vmem:[%s7251 + $0x51] sm:$0xff]
        %v7290 = vld [vmem:[%s7251 + $0x61] sm:$0xff]
        %v7291 = vld [vmem:[%s7251 + $0x71] sm:$0xff]
        %v7292 = vld [vmem:[%s7251 + $0xa1] sm:$0xff]
        %v7293 = vld [vmem:[%s7251 + $0xb1] sm:$0xff]
        %v7294 = vld [vmem:[%s7251 + $0xc1] sm:$0xff]
        %v7295 = vld [vmem:[%s7251 + $0xd1] sm:$0xff]
        %v7296 = vld [vmem:[%s7251 + $0xe1] sm:$0xff]
        %v7297 = vld [vmem:[%s7251 + $0xf1] sm:$0xff]
        %v7298 = vld [vmem:[%s7251 + $0x101] sm:$0xff]
        %v7299 = vld [vmem:[%s7251 + $0x111] sm:$0xff]
        %v7300 = vld [vmem:[%s7251 + $0x141] sm:$0xff]
        %v7301 = vld [vmem:[%s7251 + $0x151] sm:$0xff]
        %v7302 = vld [vmem:[%s7251 + $0x161] sm:$0xff]
        %v7303 = vld [vmem:[%s7251 + $0x171] sm:$0xff]
        %v7304 = vld [vmem:[%s7251 + $0x181] sm:$0xff]
        %v7305 = vld [vmem:[%s7251 + $0x191] sm:$0xff]
        %v7306 = vld [vmem:[%s7251 + $0x1a1] sm:$0xff]
        %v7307 = vld [vmem:[%s7251 + $0x1b1] sm:$0xff]
        %v7308 = vld [vmem:[%s7251 + $0x1e1] sm:$0xff]
        %v7309 = vld [vmem:[%s7251 + $0x1f1] sm:$0xff]
        %v7310 = vld [vmem:[%s7251 + $0x201] sm:$0xff]
        %v7311 = vld [vmem:[%s7251 + $0x211] sm:$0xff]
        %v7312 = vld [vmem:[%s7251 + $0x221] sm:$0xff]
        %v7313 = vld [vmem:[%s7251 + $0x231] sm:$0xff]
        %v7314 = vld [vmem:[%s7251 + $0x241] sm:$0xff]
        %v7315 = vld [vmem:[%s7251 + $0x251] sm:$0xff]
        %v7316 = vld [vmem:[%s7251 + $0x2] sm:$0xff]
        %v7317 = vld [vmem:[%s7251 + $0x12] sm:$0xff]
        %v7318 = vld [vmem:[%s7251 + $0x22] sm:$0xff]
        %v7319 = vld [vmem:[%s7251 + $0x32] sm:$0xff]
        %v7320 = vld [vmem:[%s7251 + $0x42] sm:$0xff]
        %v7321 = vld [vmem:[%s7251 + $0x52] sm:$0xff]
        %v7322 = vld [vmem:[%s7251 + $0x62] sm:$0xff]
        %v7323 = vld [vmem:[%s7251 + $0x72] sm:$0xff]
        %v7324 = vld [vmem:[%s7251 + $0xa2] sm:$0xff]
        %v7325 = vld [vmem:[%s7251 + $0xb2] sm:$0xff]
        %v7326 = vld [vmem:[%s7251 + $0xc2] sm:$0xff]
        %v7327 = vld [vmem:[%s7251 + $0xd2] sm:$0xff]
        %v7328 = vld [vmem:[%s7251 + $0xe2] sm:$0xff]
        %v7329 = vld [vmem:[%s7251 + $0xf2] sm:$0xff]
        %v7330 = vld [vmem:[%s7251 + $0x102] sm:$0xff]
        %v7331 = vld [vmem:[%s7251 + $0x112] sm:$0xff]
        %v7332 = vld [vmem:[%s7251 + $0x142] sm:$0xff]
        %v7333 = vld [vmem:[%s7251 + $0x152] sm:$0xff]
        %v7334 = vld [vmem:[%s7251 + $0x162] sm:$0xff]
        %v7335 = vld [vmem:[%s7251 + $0x172] sm:$0xff]
        %v7336 = vld [vmem:[%s7251 + $0x182] sm:$0xff]
        %v7337 = vld [vmem:[%s7251 + $0x192] sm:$0xff]
        %v7338 = vld [vmem:[%s7251 + $0x1a2] sm:$0xff]
        %v7339 = vld [vmem:[%s7251 + $0x1b2] sm:$0xff]
        %v7340 = vld [vmem:[%s7251 + $0x1e2] sm:$0xff]
        %v7341 = vld [vmem:[%s7251 + $0x1f2] sm:$0xff]
        %v7342 = vld [vmem:[%s7251 + $0x202] sm:$0xff]
        %v7343 = vld [vmem:[%s7251 + $0x212] sm:$0xff]
        %v7344 = vld [vmem:[%s7251 + $0x222] sm:$0xff]
        %v7345 = vld [vmem:[%s7251 + $0x232] sm:$0xff]
        %v7346 = vld [vmem:[%s7251 + $0x242] sm:$0xff]
        %v7347 = vld [vmem:[%s7251 + $0x252] sm:$0xff]
        %7380 = vrot.lane.b32.xlu0 %v7284, 32
        %v7381 = vpop.permute.xlu0 %7380
        %7382 = vrot.lane.b32.xlu0 %v7285, 32
        %v7383 = vpop.permute.xlu0 %7382
        %7384 = vrot.lane.b32.xlu0 %v7286, 32
        %v7385 = vpop.permute.xlu0 %7384
        %7386 = vrot.lane.b32.xlu0 %v7287, 32
        %v7387 = vpop.permute.xlu0 %7386
        %7388 = vrot.lane.b32.xlu0 %v7288, 32
        %v7389 = vpop.permute.xlu0 %7388
        %7390 = vrot.lane.b32.xlu0 %v7289, 32
        %v7391 = vpop.permute.xlu0 %7390
        %7392 = vrot.lane.b32.xlu0 %v7290, 32
        %v7393 = vpop.permute.xlu0 %7392
        %7394 = vrot.lane.b32.xlu0 %v7291, 32
        %v7395 = vpop.permute.xlu0 %7394
        %7396 = vrot.lane.b32.xlu0 %v7292, 32
        %v7397 = vpop.permute.xlu0 %7396
        %7398 = vrot.lane.b32.xlu0 %v7293, 32
        %v7399 = vpop.permute.xlu0 %7398
        %7400 = vrot.lane.b32.xlu0 %v7294, 32
        %v7401 = vpop.permute.xlu0 %7400
        %7402 = vrot.lane.b32.xlu0 %v7295, 32
        %v7403 = vpop.permute.xlu0 %7402
        %7404 = vrot.lane.b32.xlu0 %v7296, 32
        %v7405 = vpop.permute.xlu0 %7404
        %7406 = vrot.lane.b32.xlu0 %v7297, 32
        %v7407 = vpop.permute.xlu0 %7406
        %7408 = vrot.lane.b32.xlu0 %v7298, 32
        %v7409 = vpop.permute.xlu0 %7408
        %7410 = vrot.lane.b32.xlu0 %v7299, 32
        %v7411 = vpop.permute.xlu0 %7410
        %7412 = vrot.lane.b32.xlu0 %v7300, 32
        %v7413 = vpop.permute.xlu0 %7412
        %7414 = vrot.lane.b32.xlu0 %v7301, 32
        %v7415 = vpop.permute.xlu0 %7414
        %7416 = vrot.lane.b32.xlu0 %v7302, 32
        %v7417 = vpop.permute.xlu0 %7416
        %7418 = vrot.lane.b32.xlu0 %v7303, 32
        %v7419 = vpop.permute.xlu0 %7418
        %7420 = vrot.lane.b32.xlu0 %v7304, 32
        %v7421 = vpop.permute.xlu0 %7420
        %7422 = vrot.lane.b32.xlu0 %v7305, 32
        %v7423 = vpop.permute.xlu0 %7422
        %7424 = vrot.lane.b32.xlu0 %v7306, 32
        %v7425 = vpop.permute.xlu0 %7424
        %7426 = vrot.lane.b32.xlu0 %v7307, 32
        %v7427 = vpop.permute.xlu0 %7426
        %7428 = vrot.lane.b32.xlu0 %v7308, 32
        %v7429 = vpop.permute.xlu0 %7428
        %7430 = vrot.lane.b32.xlu0 %v7309, 32
        %v7431 = vpop.permute.xlu0 %7430
        %7432 = vrot.lane.b32.xlu0 %v7310, 32
        %v7433 = vpop.permute.xlu0 %7432
        %7434 = vrot.lane.b32.xlu0 %v7311, 32
        %v7435 = vpop.permute.xlu0 %7434
        %7436 = vrot.lane.b32.xlu0 %v7312, 32
        %v7437 = vpop.permute.xlu0 %7436
        %7438 = vrot.lane.b32.xlu0 %v7313, 32
        %v7439 = vpop.permute.xlu0 %7438
        %7440 = vrot.lane.b32.xlu0 %v7314, 32
        %v7441 = vpop.permute.xlu0 %7440
        %7442 = vrot.lane.b32.xlu0 %v7315, 32
        %v7443 = vpop.permute.xlu0 %7442
        %7508 = vrot.lane.b32.xlu0 %v7316, 64
        %v7509 = vpop.permute.xlu0 %7508
        %7510 = vrot.lane.b32.xlu0 %v7317, 64
        %v7511 = vpop.permute.xlu0 %7510
        %7512 = vrot.lane.b32.xlu0 %v7318, 64
        %v7513 = vpop.permute.xlu0 %7512
        %7514 = vrot.lane.b32.xlu0 %v7319, 64
        %v7515 = vpop.permute.xlu0 %7514
        %7516 = vrot.lane.b32.xlu0 %v7320, 64
        %v7517 = vpop.permute.xlu0 %7516
        %7518 = vrot.lane.b32.xlu0 %v7321, 64
        %v7519 = vpop.permute.xlu0 %7518
        %7520 = vrot.lane.b32.xlu0 %v7322, 64
        %v7521 = vpop.permute.xlu0 %7520
        %7522 = vrot.lane.b32.xlu0 %v7323, 64
        %v7523 = vpop.permute.xlu0 %7522
        %7524 = vrot.lane.b32.xlu0 %v7324, 64
        %v7525 = vpop.permute.xlu0 %7524
        %7526 = vrot.lane.b32.xlu0 %v7325, 64
        %v7527 = vpop.permute.xlu0 %7526
        %7528 = vrot.lane.b32.xlu0 %v7326, 64
        %v7529 = vpop.permute.xlu0 %7528
        %7530 = vrot.lane.b32.xlu0 %v7327, 64
        %v7531 = vpop.permute.xlu0 %7530
        %7532 = vrot.lane.b32.xlu0 %v7328, 64
        %v7533 = vpop.permute.xlu0 %7532
        %7534 = vrot.lane.b32.xlu0 %v7329, 64
        %v7535 = vpop.permute.xlu0 %7534
        %7536 = vrot.lane.b32.xlu0 %v7330, 64
        %v7537 = vpop.permute.xlu0 %7536
        %7538 = vrot.lane.b32.xlu0 %v7331, 64
        %v7539 = vpop.permute.xlu0 %7538
        %7540 = vrot.lane.b32.xlu0 %v7332, 64
        %v7541 = vpop.permute.xlu0 %7540
        %7542 = vrot.lane.b32.xlu0 %v7333, 64
        %v7543 = vpop.permute.xlu0 %7542
        %7544 = vrot.lane.b32.xlu0 %v7334, 64
        %v7545 = vpop.permute.xlu0 %7544
        %7546 = vrot.lane.b32.xlu0 %v7335, 64
        %v7547 = vpop.permute.xlu0 %7546
        %7548 = vrot.lane.b32.xlu0 %v7336, 64
        %v7549 = vpop.permute.xlu0 %7548
        %7550 = vrot.lane.b32.xlu0 %v7337, 64
        %v7551 = vpop.permute.xlu0 %7550
        %7552 = vrot.lane.b32.xlu0 %v7338, 64
        %v7553 = vpop.permute.xlu0 %7552
        %7554 = vrot.lane.b32.xlu0 %v7339, 64
        %v7555 = vpop.permute.xlu0 %7554
        %7556 = vrot.lane.b32.xlu0 %v7340, 64
        %v7557 = vpop.permute.xlu0 %7556
        %7558 = vrot.lane.b32.xlu0 %v7341, 64
        %v7559 = vpop.permute.xlu0 %7558
        %7560 = vrot.lane.b32.xlu0 %v7342, 64
        %v7561 = vpop.permute.xlu0 %7560
        %7562 = vrot.lane.b32.xlu0 %v7343, 64
        %v7563 = vpop.permute.xlu0 %7562
        %7564 = vrot.lane.b32.xlu0 %v7344, 64
        %v7565 = vpop.permute.xlu0 %7564
        %7566 = vrot.lane.b32.xlu0 %v7345, 64
        %v7567 = vpop.permute.xlu0 %7566
        %7568 = vrot.lane.b32.xlu0 %v7346, 64
        %v7569 = vpop.permute.xlu0 %7568
        %7570 = vrot.lane.b32.xlu0 %v7347, 64
        %v7571 = vpop.permute.xlu0 %7570
        %v7604 = vsel %vm1842, %v7252, %v7381
        %v7605 = vsel %vm1842, %v7253, %v7383
        %v7606 = vsel %vm1842, %v7254, %v7385
        %v7607 = vsel %vm1842, %v7255, %v7387
        %v7608 = vsel %vm1842, %v7256, %v7389
        %v7609 = vsel %vm1842, %v7257, %v7391
        %v7610 = vsel %vm1842, %v7258, %v7393
        %v7611 = vsel %vm1842, %v7259, %v7395
        %v7612 = vsel %vm1842, %v7260, %v7397
        %v7613 = vsel %vm1842, %v7261, %v7399
        %v7614 = vsel %vm1842, %v7262, %v7401
        %v7615 = vsel %vm1842, %v7263, %v7403
        %v7616 = vsel %vm1842, %v7264, %v7405
        %v7617 = vsel %vm1842, %v7265, %v7407
        %v7618 = vsel %vm1842, %v7266, %v7409
        %v7619 = vsel %vm1842, %v7267, %v7411
        %v7620 = vsel %vm1842, %v7268, %v7413
        %v7621 = vsel %vm1842, %v7269, %v7415
        %v7622 = vsel %vm1842, %v7270, %v7417
        %v7623 = vsel %vm1842, %v7271, %v7419
        %v7624 = vsel %vm1842, %v7272, %v7421
        %v7625 = vsel %vm1842, %v7273, %v7423
        %v7626 = vsel %vm1842, %v7274, %v7425
        %v7627 = vsel %vm1842, %v7275, %v7427
        %v7628 = vsel %vm1842, %v7276, %v7429
        %v7629 = vsel %vm1842, %v7277, %v7431
        %v7630 = vsel %vm1842, %v7278, %v7433
        %v7631 = vsel %vm1842, %v7279, %v7435
        %v7632 = vsel %vm1842, %v7280, %v7437
        %v7633 = vsel %vm1842, %v7281, %v7439
        %v7634 = vsel %vm1842, %v7282, %v7441
        %v7635 = vsel %vm1842, %v7283, %v7443
        %v7636 = vsel %vm6254, %v7604, %v7509
        %v7637 = vsel %vm6254, %v7605, %v7511
        %v7638 = vsel %vm6254, %v7606, %v7513
        %v7639 = vsel %vm6254, %v7607, %v7515
        %v7640 = vsel %vm6254, %v7608, %v7517
        %v7641 = vsel %vm6254, %v7609, %v7519
        %v7642 = vsel %vm6254, %v7610, %v7521
        %v7643 = vsel %vm6254, %v7611, %v7523
        %v7644 = vsel %vm6254, %v7612, %v7525
        %v7645 = vsel %vm6254, %v7613, %v7527
        %v7646 = vsel %vm6254, %v7614, %v7529
        %v7647 = vsel %vm6254, %v7615, %v7531
        %v7648 = vsel %vm6254, %v7616, %v7533
        %v7649 = vsel %vm6254, %v7617, %v7535
        %v7650 = vsel %vm6254, %v7618, %v7537
        %v7651 = vsel %vm6254, %v7619, %v7539
        %v7652 = vsel %vm6254, %v7620, %v7541
        %v7653 = vsel %vm6254, %v7621, %v7543
        %v7654 = vsel %vm6254, %v7622, %v7545
        %v7655 = vsel %vm6254, %v7623, %v7547
        %v7656 = vsel %vm6254, %v7624, %v7549
        %v7657 = vsel %vm6254, %v7625, %v7551
        %v7658 = vsel %vm6254, %v7626, %v7553
        %v7659 = vsel %vm6254, %v7627, %v7555
        %v7660 = vsel %vm6254, %v7628, %v7557
        %v7661 = vsel %vm6254, %v7629, %v7559
        %v7662 = vsel %vm6254, %v7630, %v7561
        %v7663 = vsel %vm6254, %v7631, %v7563
        %v7664 = vsel %vm6254, %v7632, %v7565
        %v7665 = vsel %vm6254, %v7633, %v7567
        %v7666 = vsel %vm6254, %v7634, %v7569
        %v7667 = vsel %vm6254, %v7635, %v7571
        %v7668 = vpack.c.bf16 %v7637, %v7636
        %v7669 = vpack.c.bf16 %v7639, %v7638
        %v7670 = vpack.c.bf16 %v7641, %v7640
        %v7671 = vpack.c.bf16 %v7643, %v7642
        %v7672 = vpack.c.bf16 %v7645, %v7644
        %v7673 = vpack.c.bf16 %v7647, %v7646
        %v7674 = vpack.c.bf16 %v7649, %v7648
        %v7675 = vpack.c.bf16 %v7651, %v7650
        %v7676 = vpack.c.bf16 %v7653, %v7652
        %v7677 = vpack.c.bf16 %v7655, %v7654
        %v7678 = vpack.c.bf16 %v7657, %v7656
        %v7679 = vpack.c.bf16 %v7659, %v7658
        %v7680 = vpack.c.bf16 %v7661, %v7660
        %v7681 = vpack.c.bf16 %v7663, %v7662
        %v7682 = vpack.c.bf16 %v7665, %v7664
        %v7683 = vpack.c.bf16 %v7667, %v7666
        %s7684 = scalar_lea.vmem %s3, 96
        %v7685 = vld [vmem:[%s7684] sm:$0xf]
        %v7686 = vld [vmem:[%s7684 + $0x4] sm:$0xf]
        %v7687 = vld [vmem:[%s7684 + $0x8] sm:$0xf]
        %v7688 = vld [vmem:[%s7684 + $0xc] sm:$0xf]
        %v7689 = vld [vmem:[%s7684 + $0x10] sm:$0xf]
        %v7690 = vld [vmem:[%s7684 + $0x14] sm:$0xf]
        %v7691 = vld [vmem:[%s7684 + $0x18] sm:$0xf]
        %v7692 = vld [vmem:[%s7684 + $0x1c] sm:$0xf]
        %v7693 = vld [vmem:[%s7684 + $0x20] sm:$0xf]
        %v7694 = vld [vmem:[%s7684 + $0x24] sm:$0xf]
        %v7695 = vld [vmem:[%s7684 + $0x28] sm:$0xf]
        %v7696 = vld [vmem:[%s7684 + $0x2c] sm:$0xf]
        %v7709 = vunpack.c.l.b16 %v7685
        %v7710 = vunpack.c.l.b16 %v7686
        %v7711 = vunpack.c.l.b16 %v7687
        %v7712 = vunpack.c.l.b16 %v7688
        %v7713 = vunpack.c.l.b16 %v7689
        %v7714 = vunpack.c.l.b16 %v7690
        %v7715 = vunpack.c.l.b16 %v7691
        %v7716 = vunpack.c.l.b16 %v7692
        %v7717 = vunpack.c.l.b16 %v7693
        %v7718 = vunpack.c.l.b16 %v7694
        %v7719 = vunpack.c.l.b16 %v7695
        %v7720 = vunpack.c.l.b16 %v7696
        %v7721 = vpack.c.b16 %v7710, %v7709
        %v7722 = vpack.c.b16 %v7712, %v7711
        %v7723 = vpack.c.b16 %v7714, %v7713
        %v7724 = vpack.c.b16 %v7716, %v7715
        %v7725 = vpack.c.b16 %v7718, %v7717
        %v7726 = vpack.c.b16 %v7720, %v7719
        %v7734 = vsel %vm6796, %v7668, 0
        %v7737 = vsel %vm6796, %v7669, 0
        %v7740 = vsel %vm6796, %v7670, 0
        %v7743 = vsel %vm6796, %v7671, 0
        %v7746 = vsel %vm6796, %v7672, 0
        %v7749 = vsel %vm6796, %v7673, 0
        %v7752 = vsel %vm6796, %v7674, 0
        %v7755 = vsel %vm6796, %v7675, 0
        %v7758 = vsel %vm6796, %v7676, 0
        %v7761 = vsel %vm6796, %v7677, 0
        %v7764 = vsel %vm6796, %v7678, 0
        %v7767 = vsel %vm6796, %v7679, 0
        %v7770 = vsel %vm6796, %v7680, 0
        %v7773 = vsel %vm6796, %v7681, 0
        %v7776 = vsel %vm6796, %v7682, 0
        %v7779 = vsel %vm6796, %v7683, 0
        %7781 = vmatprep.subr.bf16.mxu0 0
        %7782 = vmatpush1.bf16.msra.mxu0 %v7721
        %7783 = vmatprep.subr.bf16.mxu0 0
        %7784 = vmatpush1.bf16.msra.mxu0 %v7722
        %7785 = vmatprep.subr.bf16.mxu0 0
        %7786 = vmatpush1.bf16.msra.mxu0 %v7723
        %7787 = vmatprep.subr.bf16.mxu0 0
        %7788 = vmatpush1.bf16.msra.mxu0 %v7724
        %7789 = vmatprep.subr.bf16.mxu0 0
        %7790 = vmatpush1.bf16.msra.mxu0 %v7725
        %7791 = vmatprep.subr.bf16.mxu0 0
        %7792 = vmatpush1.bf16.msra.mxu0 %v7726
        %7793 = vmatprep.subr.bf16.mxu0 0
        %7794 = vmatpush1.bf16.msra.mxu0 0
        %7795 = vmatprep.subr.bf16.mxu0 0
        %7796 = vmatpush1.bf16.msra.mxu0 0
        %7797 = vmatprep.subr.bf16.mxu0 0
        %7798 = vmatpush1.bf16.msra.mxu0 0
        %7799 = vmatprep.subr.bf16.mxu0 0
        %7800 = vmatpush1.bf16.msra.mxu0 0
        %7801 = vmatprep.subr.bf16.mxu0 0
        %7802 = vmatpush1.bf16.msra.mxu0 0
        %7803 = vmatprep.subr.bf16.mxu0 0
        %7804 = vmatpush1.bf16.msra.mxu0 0
        %7805 = vmatprep.subr.bf16.mxu0 0
        %7806 = vmatpush1.bf16.msra.mxu0 0
        %7807 = vmatprep.subr.bf16.mxu0 0
        %7808 = vmatpush1.bf16.msra.mxu0 0
        %7809 = vmatprep.subr.bf16.mxu0 0
        %7810 = vmatpush1.bf16.msra.mxu0 0
        %7811 = vmatprep.subr.bf16.mxu0 0
        %7812 = vmatpush1.bf16.msra.mxu0 0
        %7813 = vmatprep.mubr.bf16.mxu0 0
        %7814 = vmatmul.mubr.bf16.gmra.mrb[0].mxu0 %v7734
        %v7815 = vpop.f32.mrb[0].mxu0
        %v7816 = vadd.f32 0.0, %v7815
        %v7817 = vpop.f32.mrb[0].mxu0
        %v7818 = vpop.f32.mrb[0].mxu0
        %v7819 = vadd.f32 0.0, %v7818
        %v7820 = vpop.f32.mrb[0].mxu0
        %7821 = vmatprep.mubr.bf16.mxu0 0
        %7822 = vmatmul.mubr.bf16.gmra.mrb[0].mxu0 %v7737
        %v7823 = vpop.f32.mrb[0].mxu0
        %v7824 = vadd.f32 0.0, %v7823
        %v7825 = vpop.f32.mrb[0].mxu0
        %v7826 = vpop.f32.mrb[0].mxu0
        %v7827 = vadd.f32 0.0, %v7826
        %v7828 = vpop.f32.mrb[0].mxu0
        %7829 = vmatprep.mubr.bf16.mxu0 0
        %7830 = vmatmul.mubr.bf16.gmra.mrb[0].mxu0 %v7740
        %v7831 = vpop.f32.mrb[0].mxu0
        %v7832 = vadd.f32 0.0, %v7831
        %v7833 = vpop.f32.mrb[0].mxu0
        %v7834 = vpop.f32.mrb[0].mxu0
        %v7835 = vadd.f32 0.0, %v7834
        %v7836 = vpop.f32.mrb[0].mxu0
        %7837 = vmatprep.mubr.bf16.mxu0 0
        %7838 = vmatmul.mubr.bf16.gmra.mrb[0].mxu0 %v7743
        %v7839 = vpop.f32.mrb[0].mxu0
        %v7840 = vadd.f32 0.0, %v7839
        %v7841 = vpop.f32.mrb[0].mxu0
        %v7842 = vpop.f32.mrb[0].mxu0
        %v7843 = vadd.f32 0.0, %v7842
        %v7844 = vpop.f32.mrb[0].mxu0
        %7845 = vmatprep.mubr.bf16.mxu0 0
        %7846 = vmatmul.mubr.bf16.gmra.mrb[0].mxu0 %v7746
        %v7847 = vpop.f32.mrb[0].mxu0
        %v7848 = vadd.f32 0.0, %v7847
        %v7849 = vpop.f32.mrb[0].mxu0
        %v7850 = vpop.f32.mrb[0].mxu0
        %v7851 = vadd.f32 0.0, %v7850
        %v7852 = vpop.f32.mrb[0].mxu0
        %7853 = vmatprep.mubr.bf16.mxu0 0
        %7854 = vmatmul.mubr.bf16.gmra.mrb[0].mxu0 %v7749
        %v7855 = vpop.f32.mrb[0].mxu0
        %v7856 = vadd.f32 0.0, %v7855
        %v7857 = vpop.f32.mrb[0].mxu0
        %v7858 = vpop.f32.mrb[0].mxu0
        %v7859 = vadd.f32 0.0, %v7858
        %v7860 = vpop.f32.mrb[0].mxu0
        %7861 = vmatprep.mubr.bf16.mxu0 0
        %7862 = vmatmul.mubr.bf16.gmra.mrb[0].mxu0 %v7752
        %v7863 = vpop.f32.mrb[0].mxu0
        %v7864 = vadd.f32 0.0, %v7863
        %v7865 = vpop.f32.mrb[0].mxu0
        %v7866 = vpop.f32.mrb[0].mxu0
        %v7867 = vadd.f32 0.0, %v7866
        %v7868 = vpop.f32.mrb[0].mxu0
        %7869 = vmatprep.mubr.bf16.mxu0 0
        %7870 = vmatmul.mubr.bf16.gmra.mrb[0].mxu0 %v7755
        %v7871 = vpop.f32.mrb[0].mxu0
        %v7872 = vadd.f32 0.0, %v7871
        %v7873 = vpop.f32.mrb[0].mxu0
        %v7874 = vpop.f32.mrb[0].mxu0
        %v7875 = vadd.f32 0.0, %v7874
        %v7876 = vpop.f32.mrb[0].mxu0
        %7877 = vmatprep.mubr.bf16.mxu0 0
        %7878 = vmatmul.mubr.bf16.gmra.mrb[0].mxu0 %v7758
        %v7879 = vpop.f32.mrb[0].mxu0
        %v7880 = vadd.f32 0.0, %v7879
        %v7881 = vpop.f32.mrb[0].mxu0
        %v7882 = vpop.f32.mrb[0].mxu0
        %v7883 = vadd.f32 0.0, %v7882
        %v7884 = vpop.f32.mrb[0].mxu0
        %7885 = vmatprep.mubr.bf16.mxu0 0
        %7886 = vmatmul.mubr.bf16.gmra.mrb[0].mxu0 %v7761
        %v7887 = vpop.f32.mrb[0].mxu0
        %v7888 = vadd.f32 0.0, %v7887
        %v7889 = vpop.f32.mrb[0].mxu0
        %v7890 = vpop.f32.mrb[0].mxu0
        %v7891 = vadd.f32 0.0, %v7890
        %v7892 = vpop.f32.mrb[0].mxu0
        %7893 = vmatprep.mubr.bf16.mxu0 0
        %7894 = vmatmul.mubr.bf16.gmra.mrb[0].mxu0 %v7764
        %v7895 = vpop.f32.mrb[0].mxu0
        %v7896 = vadd.f32 0.0, %v7895
        %v7897 = vpop.f32.mrb[0].mxu0
        %v7898 = vpop.f32.mrb[0].mxu0
        %v7899 = vadd.f32 0.0, %v7898
        %v7900 = vpop.f32.mrb[0].mxu0
        %7901 = vmatprep.mubr.bf16.mxu0 0
        %7902 = vmatmul.mubr.bf16.gmra.mrb[0].mxu0 %v7767
        %v7903 = vpop.f32.mrb[0].mxu0
        %v7904 = vadd.f32 0.0, %v7903
        %v7905 = vpop.f32.mrb[0].mxu0
        %v7906 = vpop.f32.mrb[0].mxu0
        %v7907 = vadd.f32 0.0, %v7906
        %v7908 = vpop.f32.mrb[0].mxu0
        %7909 = vmatprep.mubr.bf16.mxu0 0
        %7910 = vmatmul.mubr.bf16.gmra.mrb[0].mxu0 %v7770
        %v7911 = vpop.f32.mrb[0].mxu0
        %v7912 = vadd.f32 0.0, %v7911
        %v7913 = vpop.f32.mrb[0].mxu0
        %v7914 = vpop.f32.mrb[0].mxu0
        %v7915 = vadd.f32 0.0, %v7914
        %v7916 = vpop.f32.mrb[0].mxu0
        %7917 = vmatprep.mubr.bf16.mxu0 0
        %7918 = vmatmul.mubr.bf16.gmra.mrb[0].mxu0 %v7773
        %v7919 = vpop.f32.mrb[0].mxu0
        %v7920 = vadd.f32 0.0, %v7919
        %v7921 = vpop.f32.mrb[0].mxu0
        %v7922 = vpop.f32.mrb[0].mxu0
        %v7923 = vadd.f32 0.0, %v7922
        %v7924 = vpop.f32.mrb[0].mxu0
        %7925 = vmatprep.mubr.bf16.mxu0 0
        %7926 = vmatmul.mubr.bf16.gmra.mrb[0].mxu0 %v7776
        %v7927 = vpop.f32.mrb[0].mxu0
        %v7928 = vadd.f32 0.0, %v7927
        %v7929 = vpop.f32.mrb[0].mxu0
        %v7930 = vpop.f32.mrb[0].mxu0
        %v7931 = vadd.f32 0.0, %v7930
        %v7932 = vpop.f32.mrb[0].mxu0
        %7933 = vmatprep.mubr.bf16.mxu0 0
        %7934 = vmatmul.mubr.bf16.gmra.mrb[0].mxu0 %v7779
        %v7935 = vpop.f32.mrb[0].mxu0
        %v7936 = vadd.f32 0.0, %v7935
        %v7937 = vpop.f32.mrb[0].mxu0
        %v7938 = vpop.f32.mrb[0].mxu0
        %v7939 = vadd.f32 0.0, %v7938
        %v7940 = vpop.f32.mrb[0].mxu0
        %7941 = vdwg.mxu0
        %v7942 = vadd.f32 %v7125, %v7816
        %v7943 = vadd.f32 %v7128, %v7819
        %v7944 = vadd.f32 %v7133, %v7824
        %v7945 = vadd.f32 %v7136, %v7827
        %v7946 = vadd.f32 %v7141, %v7832
        %v7947 = vadd.f32 %v7144, %v7835
        %v7948 = vadd.f32 %v7149, %v7840
        %v7949 = vadd.f32 %v7152, %v7843
        %v7950 = vadd.f32 %v7157, %v7848
        %v7951 = vadd.f32 %v7160, %v7851
        %v7952 = vadd.f32 %v7165, %v7856
        %v7953 = vadd.f32 %v7168, %v7859
        %v7954 = vadd.f32 %v7173, %v7864
        %v7955 = vadd.f32 %v7176, %v7867
        %v7956 = vadd.f32 %v7181, %v7872
        %v7957 = vadd.f32 %v7184, %v7875
        %v7958 = vadd.f32 %v7189, %v7880
        %v7959 = vadd.f32 %v7192, %v7883
        %v7960 = vadd.f32 %v7197, %v7888
        %v7961 = vadd.f32 %v7200, %v7891
        %v7962 = vadd.f32 %v7205, %v7896
        %v7963 = vadd.f32 %v7208, %v7899
        %v7964 = vadd.f32 %v7213, %v7904
        %v7965 = vadd.f32 %v7216, %v7907
        %v7966 = vadd.f32 %v7221, %v7912
        %v7967 = vadd.f32 %v7224, %v7915
        %v7968 = vadd.f32 %v7229, %v7920
        %v7969 = vadd.f32 %v7232, %v7923
        %v7970 = vadd.f32 %v7237, %v7928
        %v7971 = vadd.f32 %v7240, %v7931
        %v7972 = vadd.f32 %v7245, %v7936
        %v7973 = vadd.f32 %v7248, %v7939
        %v7974 = vld [vmem:[%s4] sm:$0x1]
        %v7976 = vlaneseq
        %v7977 = vshrl.u32 %v7976, 7
        %v7978 = vsub.s32 0, %v7977
        %v7979 = vrot.slane %v7974, %v7978
        %v7981 = vadd.f32 %v7942, %v7979
        %v7982 = vadd.f32 %v7943, %v7979
        %v7983 = vadd.f32 %v7944, %v7979
        %v7984 = vadd.f32 %v7945, %v7979
        %v7985 = vadd.f32 %v7946, %v7979
        %v7986 = vadd.f32 %v7947, %v7979
        %v7987 = vadd.f32 %v7948, %v7979
        %v7988 = vadd.f32 %v7949, %v7979
        %v7989 = vadd.f32 %v7950, %v7979
        %v7990 = vadd.f32 %v7951, %v7979
        %v7991 = vadd.f32 %v7952, %v7979
        %v7992 = vadd.f32 %v7953, %v7979
        %v7993 = vadd.f32 %v7954, %v7979
        %v7994 = vadd.f32 %v7955, %v7979
        %v7995 = vadd.f32 %v7956, %v7979
        %v7996 = vadd.f32 %v7957, %v7979
        %v7997 = vadd.f32 %v7958, %v7979
        %v7998 = vadd.f32 %v7959, %v7979
        %v7999 = vadd.f32 %v7960, %v7979
        %v8000 = vadd.f32 %v7961, %v7979
        %v8001 = vadd.f32 %v7962, %v7979
        %v8002 = vadd.f32 %v7963, %v7979
        %v8003 = vadd.f32 %v7964, %v7979
        %v8004 = vadd.f32 %v7965, %v7979
        %v8005 = vadd.f32 %v7966, %v7979
        %v8006 = vadd.f32 %v7967, %v7979
        %v8007 = vadd.f32 %v7968, %v7979
        %v8008 = vadd.f32 %v7969, %v7979
        %v8009 = vadd.f32 %v7970, %v7979
        %v8010 = vadd.f32 %v7971, %v7979
        %v8011 = vadd.f32 %v7972, %v7979
        %v8012 = vadd.f32 %v7973, %v7979
        %v8013 = vmax.f32 %v7981, 0.0
        %v8014 = vmax.f32 %v7982, 0.0
        %v8015 = vmax.f32 %v7983, 0.0
        %v8016 = vmax.f32 %v7984, 0.0
        %v8017 = vmax.f32 %v7985, 0.0
        %v8018 = vmax.f32 %v7986, 0.0
        %v8019 = vmax.f32 %v7987, 0.0
        %v8020 = vmax.f32 %v7988, 0.0
        %v8021 = vmax.f32 %v7989, 0.0
        %v8022 = vmax.f32 %v7990, 0.0
        %v8023 = vmax.f32 %v7991, 0.0
        %v8024 = vmax.f32 %v7992, 0.0
        %v8025 = vmax.f32 %v7993, 0.0
        %v8026 = vmax.f32 %v7994, 0.0
        %v8027 = vmax.f32 %v7995, 0.0
        %v8028 = vmax.f32 %v7996, 0.0
        %v8029 = vmax.f32 %v7997, 0.0
        %v8030 = vmax.f32 %v7998, 0.0
        %v8031 = vmax.f32 %v7999, 0.0
        %v8032 = vmax.f32 %v8000, 0.0
        %v8033 = vmax.f32 %v8001, 0.0
        %v8034 = vmax.f32 %v8002, 0.0
        %v8035 = vmax.f32 %v8003, 0.0
        %v8036 = vmax.f32 %v8004, 0.0
        %v8037 = vmax.f32 %v8005, 0.0
        %v8038 = vmax.f32 %v8006, 0.0
        %v8039 = vmax.f32 %v8007, 0.0
        %v8040 = vmax.f32 %v8008, 0.0
        %v8041 = vmax.f32 %v8009, 0.0
        %v8042 = vmax.f32 %v8010, 0.0
        %v8043 = vmax.f32 %v8011, 0.0
        %v8044 = vmax.f32 %v8012, 0.0
        %v8045 = vsel %vm6254, %v8013, -inf
        %v8046 = vsel %vm6254, %v8014, -inf
        %v8047 = vmax.f32 %v8045, %v8046
        %v8048 = vsel %vm6254, %v8015, -inf
        %v8049 = vsel %vm6254, %v8016, -inf
        %v8050 = vmax.f32 %v8048, %v8049
        %v8051 = vsel %vm6254, %v8017, -inf
        %v8052 = vsel %vm6254, %v8018, -inf
        %v8053 = vmax.f32 %v8051, %v8052
        %v8054 = vsel %vm6254, %v8019, -inf
        %v8055 = vsel %vm6254, %v8020, -inf
        %v8056 = vmax.f32 %v8054, %v8055
        %v8057 = vsel %vm6254, %v8021, -inf
        %v8058 = vsel %vm6254, %v8022, -inf
        %v8059 = vmax.f32 %v8057, %v8058
        %v8060 = vsel %vm6254, %v8023, -inf
        %v8061 = vsel %vm6254, %v8024, -inf
        %v8062 = vmax.f32 %v8060, %v8061
        %v8063 = vsel %vm6254, %v8025, -inf
        %v8064 = vsel %vm6254, %v8026, -inf
        %v8065 = vmax.f32 %v8063, %v8064
        %v8066 = vsel %vm6254, %v8027, -inf
        %v8067 = vsel %vm6254, %v8028, -inf
        %v8068 = vmax.f32 %v8066, %v8067
        %v8069 = vsel %vm6254, %v8029, -inf
        %v8070 = vsel %vm6254, %v8030, -inf
        %v8071 = vmax.f32 %v8069, %v8070
        %v8072 = vsel %vm6254, %v8031, -inf
        %v8073 = vsel %vm6254, %v8032, -inf
        %v8074 = vmax.f32 %v8072, %v8073
        %v8075 = vsel %vm6254, %v8033, -inf
        %v8076 = vsel %vm6254, %v8034, -inf
        %v8077 = vmax.f32 %v8075, %v8076
        %v8078 = vsel %vm6254, %v8035, -inf
        %v8079 = vsel %vm6254, %v8036, -inf
        %v8080 = vmax.f32 %v8078, %v8079
        %v8081 = vsel %vm6254, %v8037, -inf
        %v8082 = vsel %vm6254, %v8038, -inf
        %v8083 = vmax.f32 %v8081, %v8082
        %v8084 = vsel %vm6254, %v8039, -inf
        %v8085 = vsel %vm6254, %v8040, -inf
        %v8086 = vmax.f32 %v8084, %v8085
        %v8087 = vsel %vm6254, %v8041, -inf
        %v8088 = vsel %vm6254, %v8042, -inf
        %v8089 = vmax.f32 %v8087, %v8088
        %v8090 = vsel %vm6254, %v8043, -inf
        %v8091 = vsel %vm6254, %v8044, -inf
        %v8092 = vmax.f32 %v8090, %v8091
        %v8109 = vcombine.high %v8047, %v8047
        %v8111 = vunpack.c.l.s4 1983009808
        %v8112 = vunpack.c.0.s8 %v8111
        %v8113 = vlaneseq
        %v8114 = vshrl.u32 %v8113, 7
        %v8115 = vsub.s32 %v8112, %v8114
        %v8116 = vrot.slane %v8047, %v8115
        %v8118 = vunpack.c.l.s4 1983009808
        %v8119 = vunpack.c.0.s8 %v8118
        %v8120 = vlaneseq
        %v8121 = vshrl.u32 %v8120, 7
        %v8122 = vsub.s32 %v8119, %v8121
        %v8123 = vrot.slane %v8109, %v8122
        %v8124 = vcombine.high %v8116, %v8116
        %v8125 = vcombine.high %v8123, %v8123
        %v8126 = vcombine.high %v8050, %v8050
        %v8128 = vunpack.c.l.s4 1983009808
        %v8129 = vunpack.c.0.s8 %v8128
        %v8130 = vlaneseq
        %v8131 = vshrl.u32 %v8130, 7
        %v8132 = vsub.s32 %v8129, %v8131
        %v8133 = vrot.slane %v8050, %v8132
        %v8135 = vunpack.c.l.s4 1983009808
        %v8136 = vunpack.c.0.s8 %v8135
        %v8137 = vlaneseq
        %v8138 = vshrl.u32 %v8137, 7
        %v8139 = vsub.s32 %v8136, %v8138
        %v8140 = vrot.slane %v8126, %v8139
        %v8141 = vcombine.high %v8133, %v8133
        %v8142 = vcombine.high %v8140, %v8140
        %v8143 = vcombine.high %v8053, %v8053
        %v8145 = vunpack.c.l.s4 1983009808
        %v8146 = vunpack.c.0.s8 %v8145
        %v8147 = vlaneseq
        %v8148 = vshrl.u32 %v8147, 7
        %v8149 = vsub.s32 %v8146, %v8148
        %v8150 = vrot.slane %v8053, %v8149
        %v8152 = vunpack.c.l.s4 1983009808
        %v8153 = vunpack.c.0.s8 %v8152
        %v8154 = vlaneseq
        %v8155 = vshrl.u32 %v8154, 7
        %v8156 = vsub.s32 %v8153, %v8155
        %v8157 = vrot.slane %v8143, %v8156
        %v8158 = vcombine.high %v8150, %v8150
        %v8159 = vcombine.high %v8157, %v8157
        %v8160 = vcombine.high %v8056, %v8056
        %v8162 = vunpack.c.l.s4 1983009808
        %v8163 = vunpack.c.0.s8 %v8162
        %v8164 = vlaneseq
        %v8165 = vshrl.u32 %v8164, 7
        %v8166 = vsub.s32 %v8163, %v8165
        %v8167 = vrot.slane %v8056, %v8166
        %v8169 = vunpack.c.l.s4 1983009808
        %v8170 = vunpack.c.0.s8 %v8169
        %v8171 = vlaneseq
        %v8172 = vshrl.u32 %v8171, 7
        %v8173 = vsub.s32 %v8170, %v8172
        %v8174 = vrot.slane %v8160, %v8173
        %v8175 = vcombine.high %v8167, %v8167
        %v8176 = vcombine.high %v8174, %v8174
        %v8177 = vcombine.high %v8059, %v8059
        %v8179 = vunpack.c.l.s4 1983009808
        %v8180 = vunpack.c.0.s8 %v8179
        %v8181 = vlaneseq
        %v8182 = vshrl.u32 %v8181, 7
        %v8183 = vsub.s32 %v8180, %v8182
        %v8184 = vrot.slane %v8059, %v8183
        %v8186 = vunpack.c.l.s4 1983009808
        %v8187 = vunpack.c.0.s8 %v8186
        %v8188 = vlaneseq
        %v8189 = vshrl.u32 %v8188, 7
        %v8190 = vsub.s32 %v8187, %v8189
        %v8191 = vrot.slane %v8177, %v8190
        %v8192 = vcombine.high %v8184, %v8184
        %v8193 = vcombine.high %v8191, %v8191
        %v8194 = vcombine.high %v8062, %v8062
        %v8196 = vunpack.c.l.s4 1983009808
        %v8197 = vunpack.c.0.s8 %v8196
        %v8198 = vlaneseq
        %v8199 = vshrl.u32 %v8198, 7
        %v8200 = vsub.s32 %v8197, %v8199
        %v8201 = vrot.slane %v8062, %v8200
        %v8203 = vunpack.c.l.s4 1983009808
        %v8204 = vunpack.c.0.s8 %v8203
        %v8205 = vlaneseq
        %v8206 = vshrl.u32 %v8205, 7
        %v8207 = vsub.s32 %v8204, %v8206
        %v8208 = vrot.slane %v8194, %v8207
        %v8209 = vcombine.high %v8201, %v8201
        %v8210 = vcombine.high %v8208, %v8208
        %v8211 = vcombine.high %v8065, %v8065
        %v8213 = vunpack.c.l.s4 1983009808
        %v8214 = vunpack.c.0.s8 %v8213
        %v8215 = vlaneseq
        %v8216 = vshrl.u32 %v8215, 7
        %v8217 = vsub.s32 %v8214, %v8216
        %v8218 = vrot.slane %v8065, %v8217
        %v8220 = vunpack.c.l.s4 1983009808
        %v8221 = vunpack.c.0.s8 %v8220
        %v8222 = vlaneseq
        %v8223 = vshrl.u32 %v8222, 7
        %v8224 = vsub.s32 %v8221, %v8223
        %v8225 = vrot.slane %v8211, %v8224
        %v8226 = vcombine.high %v8218, %v8218
        %v8227 = vcombine.high %v8225, %v8225
        %v8228 = vcombine.high %v8068, %v8068
        %v8230 = vunpack.c.l.s4 1983009808
        %v8231 = vunpack.c.0.s8 %v8230
        %v8232 = vlaneseq
        %v8233 = vshrl.u32 %v8232, 7
        %v8234 = vsub.s32 %v8231, %v8233
        %v8235 = vrot.slane %v8068, %v8234
        %v8237 = vunpack.c.l.s4 1983009808
        %v8238 = vunpack.c.0.s8 %v8237
        %v8239 = vlaneseq
        %v8240 = vshrl.u32 %v8239, 7
        %v8241 = vsub.s32 %v8238, %v8240
        %v8242 = vrot.slane %v8228, %v8241
        %v8243 = vcombine.high %v8235, %v8235
        %v8244 = vcombine.high %v8242, %v8242
        %v8245 = vcombine.high %v8071, %v8071
        %v8247 = vunpack.c.l.s4 1983009808
        %v8248 = vunpack.c.0.s8 %v8247
        %v8249 = vlaneseq
        %v8250 = vshrl.u32 %v8249, 7
        %v8251 = vsub.s32 %v8248, %v8250
        %v8252 = vrot.slane %v8071, %v8251
        %v8254 = vunpack.c.l.s4 1983009808
        %v8255 = vunpack.c.0.s8 %v8254
        %v8256 = vlaneseq
        %v8257 = vshrl.u32 %v8256, 7
        %v8258 = vsub.s32 %v8255, %v8257
        %v8259 = vrot.slane %v8245, %v8258
        %v8260 = vcombine.high %v8252, %v8252
        %v8261 = vcombine.high %v8259, %v8259
        %v8262 = vcombine.high %v8074, %v8074
        %v8264 = vunpack.c.l.s4 1983009808
        %v8265 = vunpack.c.0.s8 %v8264
        %v8266 = vlaneseq
        %v8267 = vshrl.u32 %v8266, 7
        %v8268 = vsub.s32 %v8265, %v8267
        %v8269 = vrot.slane %v8074, %v8268
        %v8271 = vunpack.c.l.s4 1983009808
        %v8272 = vunpack.c.0.s8 %v8271
        %v8273 = vlaneseq
        %v8274 = vshrl.u32 %v8273, 7
        %v8275 = vsub.s32 %v8272, %v8274
        %v8276 = vrot.slane %v8262, %v8275
        %v8277 = vcombine.high %v8269, %v8269
        %v8278 = vcombine.high %v8276, %v8276
        %v8279 = vcombine.high %v8077, %v8077
        %v8281 = vunpack.c.l.s4 1983009808
        %v8282 = vunpack.c.0.s8 %v8281
        %v8283 = vlaneseq
        %v8284 = vshrl.u32 %v8283, 7
        %v8285 = vsub.s32 %v8282, %v8284
        %v8286 = vrot.slane %v8077, %v8285
        %v8288 = vunpack.c.l.s4 1983009808
        %v8289 = vunpack.c.0.s8 %v8288
        %v8290 = vlaneseq
        %v8291 = vshrl.u32 %v8290, 7
        %v8292 = vsub.s32 %v8289, %v8291
        %v8293 = vrot.slane %v8279, %v8292
        %v8294 = vcombine.high %v8286, %v8286
        %v8295 = vcombine.high %v8293, %v8293
        %v8296 = vcombine.high %v8080, %v8080
        %v8298 = vunpack.c.l.s4 1983009808
        %v8299 = vunpack.c.0.s8 %v8298
        %v8300 = vlaneseq
        %v8301 = vshrl.u32 %v8300, 7
        %v8302 = vsub.s32 %v8299, %v8301
        %v8303 = vrot.slane %v8080, %v8302
        %v8305 = vunpack.c.l.s4 1983009808
        %v8306 = vunpack.c.0.s8 %v8305
        %v8307 = vlaneseq
        %v8308 = vshrl.u32 %v8307, 7
        %v8309 = vsub.s32 %v8306, %v8308
        %v8310 = vrot.slane %v8296, %v8309
        %v8311 = vcombine.high %v8303, %v8303
        %v8312 = vcombine.high %v8310, %v8310
        %v8313 = vcombine.high %v8083, %v8083
        %v8315 = vunpack.c.l.s4 1983009808
        %v8316 = vunpack.c.0.s8 %v8315
        %v8317 = vlaneseq
        %v8318 = vshrl.u32 %v8317, 7
        %v8319 = vsub.s32 %v8316, %v8318
        %v8320 = vrot.slane %v8083, %v8319
        %v8322 = vunpack.c.l.s4 1983009808
        %v8323 = vunpack.c.0.s8 %v8322
        %v8324 = vlaneseq
        %v8325 = vshrl.u32 %v8324, 7
        %v8326 = vsub.s32 %v8323, %v8325
        %v8327 = vrot.slane %v8313, %v8326
        %v8328 = vcombine.high %v8320, %v8320
        %v8329 = vcombine.high %v8327, %v8327
        %v8330 = vcombine.high %v8086, %v8086
        %v8332 = vunpack.c.l.s4 1983009808
        %v8333 = vunpack.c.0.s8 %v8332
        %v8334 = vlaneseq
        %v8335 = vshrl.u32 %v8334, 7
        %v8336 = vsub.s32 %v8333, %v8335
        %v8337 = vrot.slane %v8086, %v8336
        %v8339 = vunpack.c.l.s4 1983009808
        %v8340 = vunpack.c.0.s8 %v8339
        %v8341 = vlaneseq
        %v8342 = vshrl.u32 %v8341, 7
        %v8343 = vsub.s32 %v8340, %v8342
        %v8344 = vrot.slane %v8330, %v8343
        %v8345 = vcombine.high %v8337, %v8337
        %v8346 = vcombine.high %v8344, %v8344
        %v8347 = vcombine.high %v8089, %v8089
        %v8349 = vunpack.c.l.s4 1983009808
        %v8350 = vunpack.c.0.s8 %v8349
        %v8351 = vlaneseq
        %v8352 = vshrl.u32 %v8351, 7
        %v8353 = vsub.s32 %v8350, %v8352
        %v8354 = vrot.slane %v8089, %v8353
        %v8356 = vunpack.c.l.s4 1983009808
        %v8357 = vunpack.c.0.s8 %v8356
        %v8358 = vlaneseq
        %v8359 = vshrl.u32 %v8358, 7
        %v8360 = vsub.s32 %v8357, %v8359
        %v8361 = vrot.slane %v8347, %v8360
        %v8362 = vcombine.high %v8354, %v8354
        %v8363 = vcombine.high %v8361, %v8361
        %v8364 = vcombine.high %v8092, %v8092
        %v8366 = vunpack.c.l.s4 1983009808
        %v8367 = vunpack.c.0.s8 %v8366
        %v8368 = vlaneseq
        %v8369 = vshrl.u32 %v8368, 7
        %v8370 = vsub.s32 %v8367, %v8369
        %v8371 = vrot.slane %v8092, %v8370
        %v8373 = vunpack.c.l.s4 1983009808
        %v8374 = vunpack.c.0.s8 %v8373
        %v8375 = vlaneseq
        %v8376 = vshrl.u32 %v8375, 7
        %v8377 = vsub.s32 %v8374, %v8376
        %v8378 = vrot.slane %v8364, %v8377
        %v8379 = vcombine.high %v8371, %v8371
        %v8380 = vcombine.high %v8378, %v8378
        %vm8445 = vcmask 517120
        %v8446 = vsel %vm8445, %v8116, -inf
        %v8447 = vrot.slane %v8446, 4
        %v8448 = vmax.f32 %v8446, %v8447
        %v8449 = vrot.slane %v8448, 2
        %v8450 = vmax.f32 %v8448, %v8449
        %v8451 = vrot.slane %v8450, 1
        %v8452 = vmax.f32 %v8450, %v8451
        %v8453 = vsel %vm8445, %v8124, -inf
        %v8454 = vrot.slane %v8453, 4
        %v8455 = vmax.f32 %v8453, %v8454
        %v8456 = vrot.slane %v8455, 2
        %v8457 = vmax.f32 %v8455, %v8456
        %v8458 = vrot.slane %v8457, 1
        %v8459 = vmax.f32 %v8457, %v8458
        %v8460 = vsel %vm8445, %v8123, -inf
        %v8461 = vrot.slane %v8460, 4
        %v8462 = vmax.f32 %v8460, %v8461
        %v8463 = vrot.slane %v8462, 2
        %v8464 = vmax.f32 %v8462, %v8463
        %v8465 = vrot.slane %v8464, 1
        %v8466 = vmax.f32 %v8464, %v8465
        %v8467 = vsel %vm8445, %v8125, -inf
        %v8468 = vrot.slane %v8467, 4
        %v8469 = vmax.f32 %v8467, %v8468
        %v8470 = vrot.slane %v8469, 2
        %v8471 = vmax.f32 %v8469, %v8470
        %v8472 = vrot.slane %v8471, 1
        %v8473 = vmax.f32 %v8471, %v8472
        %v8474 = vsel %vm8445, %v8133, -inf
        %v8475 = vrot.slane %v8474, 4
        %v8476 = vmax.f32 %v8474, %v8475
        %v8477 = vrot.slane %v8476, 2
        %v8478 = vmax.f32 %v8476, %v8477
        %v8479 = vrot.slane %v8478, 1
        %v8480 = vmax.f32 %v8478, %v8479
        %v8481 = vsel %vm8445, %v8141, -inf
        %v8482 = vrot.slane %v8481, 4
        %v8483 = vmax.f32 %v8481, %v8482
        %v8484 = vrot.slane %v8483, 2
        %v8485 = vmax.f32 %v8483, %v8484
        %v8486 = vrot.slane %v8485, 1
        %v8487 = vmax.f32 %v8485, %v8486
        %v8488 = vsel %vm8445, %v8140, -inf
        %v8489 = vrot.slane %v8488, 4
        %v8490 = vmax.f32 %v8488, %v8489
        %v8491 = vrot.slane %v8490, 2
        %v8492 = vmax.f32 %v8490, %v8491
        %v8493 = vrot.slane %v8492, 1
        %v8494 = vmax.f32 %v8492, %v8493
        %v8495 = vsel %vm8445, %v8142, -inf
        %v8496 = vrot.slane %v8495, 4
        %v8497 = vmax.f32 %v8495, %v8496
        %v8498 = vrot.slane %v8497, 2
        %v8499 = vmax.f32 %v8497, %v8498
        %v8500 = vrot.slane %v8499, 1
        %v8501 = vmax.f32 %v8499, %v8500
        %v8502 = vsel %vm8445, %v8150, -inf
        %v8503 = vrot.slane %v8502, 4
        %v8504 = vmax.f32 %v8502, %v8503
        %v8505 = vrot.slane %v8504, 2
        %v8506 = vmax.f32 %v8504, %v8505
        %v8507 = vrot.slane %v8506, 1
        %v8508 = vmax.f32 %v8506, %v8507
        %v8509 = vsel %vm8445, %v8158, -inf
        %v8510 = vrot.slane %v8509, 4
        %v8511 = vmax.f32 %v8509, %v8510
        %v8512 = vrot.slane %v8511, 2
        %v8513 = vmax.f32 %v8511, %v8512
        %v8514 = vrot.slane %v8513, 1
        %v8515 = vmax.f32 %v8513, %v8514
        %v8516 = vsel %vm8445, %v8157, -inf
        %v8517 = vrot.slane %v8516, 4
        %v8518 = vmax.f32 %v8516, %v8517
        %v8519 = vrot.slane %v8518, 2
        %v8520 = vmax.f32 %v8518, %v8519
        %v8521 = vrot.slane %v8520, 1
        %v8522 = vmax.f32 %v8520, %v8521
        %v8523 = vsel %vm8445, %v8159, -inf
        %v8524 = vrot.slane %v8523, 4
        %v8525 = vmax.f32 %v8523, %v8524
        %v8526 = vrot.slane %v8525, 2
        %v8527 = vmax.f32 %v8525, %v8526
        %v8528 = vrot.slane %v8527, 1
        %v8529 = vmax.f32 %v8527, %v8528
        %v8530 = vsel %vm8445, %v8167, -inf
        %v8531 = vrot.slane %v8530, 4
        %v8532 = vmax.f32 %v8530, %v8531
        %v8533 = vrot.slane %v8532, 2
        %v8534 = vmax.f32 %v8532, %v8533
        %v8535 = vrot.slane %v8534, 1
        %v8536 = vmax.f32 %v8534, %v8535
        %v8537 = vsel %vm8445, %v8175, -inf
        %v8538 = vrot.slane %v8537, 4
        %v8539 = vmax.f32 %v8537, %v8538
        %v8540 = vrot.slane %v8539, 2
        %v8541 = vmax.f32 %v8539, %v8540
        %v8542 = vrot.slane %v8541, 1
        %v8543 = vmax.f32 %v8541, %v8542
        %v8544 = vsel %vm8445, %v8174, -inf
        %v8545 = vrot.slane %v8544, 4
        %v8546 = vmax.f32 %v8544, %v8545
        %v8547 = vrot.slane %v8546, 2
        %v8548 = vmax.f32 %v8546, %v8547
        %v8549 = vrot.slane %v8548, 1
        %v8550 = vmax.f32 %v8548, %v8549
        %v8551 = vsel %vm8445, %v8176, -inf
        %v8552 = vrot.slane %v8551, 4
        %v8553 = vmax.f32 %v8551, %v8552
        %v8554 = vrot.slane %v8553, 2
        %v8555 = vmax.f32 %v8553, %v8554
        %v8556 = vrot.slane %v8555, 1
        %v8557 = vmax.f32 %v8555, %v8556
        %v8558 = vsel %vm8445, %v8184, -inf
        %v8559 = vrot.slane %v8558, 4
        %v8560 = vmax.f32 %v8558, %v8559
        %v8561 = vrot.slane %v8560, 2
        %v8562 = vmax.f32 %v8560, %v8561
        %v8563 = vrot.slane %v8562, 1
        %v8564 = vmax.f32 %v8562, %v8563
        %v8565 = vsel %vm8445, %v8192, -inf
        %v8566 = vrot.slane %v8565, 4
        %v8567 = vmax.f32 %v8565, %v8566
        %v8568 = vrot.slane %v8567, 2
        %v8569 = vmax.f32 %v8567, %v8568
        %v8570 = vrot.slane %v8569, 1
        %v8571 = vmax.f32 %v8569, %v8570
        %v8572 = vsel %vm8445, %v8191, -inf
        %v8573 = vrot.slane %v8572, 4
        %v8574 = vmax.f32 %v8572, %v8573
        %v8575 = vrot.slane %v8574, 2
        %v8576 = vmax.f32 %v8574, %v8575
        %v8577 = vrot.slane %v8576, 1
        %v8578 = vmax.f32 %v8576, %v8577
        %v8579 = vsel %vm8445, %v8193, -inf
        %v8580 = vrot.slane %v8579, 4
        %v8581 = vmax.f32 %v8579, %v8580
        %v8582 = vrot.slane %v8581, 2
        %v8583 = vmax.f32 %v8581, %v8582
        %v8584 = vrot.slane %v8583, 1
        %v8585 = vmax.f32 %v8583, %v8584
        %v8586 = vsel %vm8445, %v8201, -inf
        %v8587 = vrot.slane %v8586, 4
        %v8588 = vmax.f32 %v8586, %v8587
        %v8589 = vrot.slane %v8588, 2
        %v8590 = vmax.f32 %v8588, %v8589
        %v8591 = vrot.slane %v8590, 1
        %v8592 = vmax.f32 %v8590, %v8591
        %v8593 = vsel %vm8445, %v8209, -inf
        %v8594 = vrot.slane %v8593, 4
        %v8595 = vmax.f32 %v8593, %v8594
        %v8596 = vrot.slane %v8595, 2
        %v8597 = vmax.f32 %v8595, %v8596
        %v8598 = vrot.slane %v8597, 1
        %v8599 = vmax.f32 %v8597, %v8598
        %v8600 = vsel %vm8445, %v8208, -inf
        %v8601 = vrot.slane %v8600, 4
        %v8602 = vmax.f32 %v8600, %v8601
        %v8603 = vrot.slane %v8602, 2
        %v8604 = vmax.f32 %v8602, %v8603
        %v8605 = vrot.slane %v8604, 1
        %v8606 = vmax.f32 %v8604, %v8605
        %v8607 = vsel %vm8445, %v8210, -inf
        %v8608 = vrot.slane %v8607, 4
        %v8609 = vmax.f32 %v8607, %v8608
        %v8610 = vrot.slane %v8609, 2
        %v8611 = vmax.f32 %v8609, %v8610
        %v8612 = vrot.slane %v8611, 1
        %v8613 = vmax.f32 %v8611, %v8612
        %v8614 = vsel %vm8445, %v8218, -inf
        %v8615 = vrot.slane %v8614, 4
        %v8616 = vmax.f32 %v8614, %v8615
        %v8617 = vrot.slane %v8616, 2
        %v8618 = vmax.f32 %v8616, %v8617
        %v8619 = vrot.slane %v8618, 1
        %v8620 = vmax.f32 %v8618, %v8619
        %v8621 = vsel %vm8445, %v8226, -inf
        %v8622 = vrot.slane %v8621, 4
        %v8623 = vmax.f32 %v8621, %v8622
        %v8624 = vrot.slane %v8623, 2
        %v8625 = vmax.f32 %v8623, %v8624
        %v8626 = vrot.slane %v8625, 1
        %v8627 = vmax.f32 %v8625, %v8626
        %v8628 = vsel %vm8445, %v8225, -inf
        %v8629 = vrot.slane %v8628, 4
        %v8630 = vmax.f32 %v8628, %v8629
        %v8631 = vrot.slane %v8630, 2
        %v8632 = vmax.f32 %v8630, %v8631
        %v8633 = vrot.slane %v8632, 1
        %v8634 = vmax.f32 %v8632, %v8633
        %v8635 = vsel %vm8445, %v8227, -inf
        %v8636 = vrot.slane %v8635, 4
        %v8637 = vmax.f32 %v8635, %v8636
        %v8638 = vrot.slane %v8637, 2
        %v8639 = vmax.f32 %v8637, %v8638
        %v8640 = vrot.slane %v8639, 1
        %v8641 = vmax.f32 %v8639, %v8640
        %v8642 = vsel %vm8445, %v8235, -inf
        %v8643 = vrot.slane %v8642, 4
        %v8644 = vmax.f32 %v8642, %v8643
        %v8645 = vrot.slane %v8644, 2
        %v8646 = vmax.f32 %v8644, %v8645
        %v8647 = vrot.slane %v8646, 1
        %v8648 = vmax.f32 %v8646, %v8647
        %v8649 = vsel %vm8445, %v8243, -inf
        %v8650 = vrot.slane %v8649, 4
        %v8651 = vmax.f32 %v8649, %v8650
        %v8652 = vrot.slane %v8651, 2
        %v8653 = vmax.f32 %v8651, %v8652
        %v8654 = vrot.slane %v8653, 1
        %v8655 = vmax.f32 %v8653, %v8654
        %v8656 = vsel %vm8445, %v8242, -inf
        %v8657 = vrot.slane %v8656, 4
        %v8658 = vmax.f32 %v8656, %v8657
        %v8659 = vrot.slane %v8658, 2
        %v8660 = vmax.f32 %v8658, %v8659
        %v8661 = vrot.slane %v8660, 1
        %v8662 = vmax.f32 %v8660, %v8661
        %v8663 = vsel %vm8445, %v8244, -inf
        %v8664 = vrot.slane %v8663, 4
        %v8665 = vmax.f32 %v8663, %v8664
        %v8666 = vrot.slane %v8665, 2
        %v8667 = vmax.f32 %v8665, %v8666
        %v8668 = vrot.slane %v8667, 1
        %v8669 = vmax.f32 %v8667, %v8668
        %v8670 = vsel %vm8445, %v8252, -inf
        %v8671 = vrot.slane %v8670, 4
        %v8672 = vmax.f32 %v8670, %v8671
        %v8673 = vrot.slane %v8672, 2
        %v8674 = vmax.f32 %v8672, %v8673
        %v8675 = vrot.slane %v8674, 1
        %v8676 = vmax.f32 %v8674, %v8675
        %v8677 = vsel %vm8445, %v8260, -inf
        %v8678 = vrot.slane %v8677, 4
        %v8679 = vmax.f32 %v8677, %v8678
        %v8680 = vrot.slane %v8679, 2
        %v8681 = vmax.f32 %v8679, %v8680
        %v8682 = vrot.slane %v8681, 1
        %v8683 = vmax.f32 %v8681, %v8682
        %v8684 = vsel %vm8445, %v8259, -inf
        %v8685 = vrot.slane %v8684, 4
        %v8686 = vmax.f32 %v8684, %v8685
        %v8687 = vrot.slane %v8686, 2
        %v8688 = vmax.f32 %v8686, %v8687
        %v8689 = vrot.slane %v8688, 1
        %v8690 = vmax.f32 %v8688, %v8689
        %v8691 = vsel %vm8445, %v8261, -inf
        %v8692 = vrot.slane %v8691, 4
        %v8693 = vmax.f32 %v8691, %v8692
        %v8694 = vrot.slane %v8693, 2
        %v8695 = vmax.f32 %v8693, %v8694
        %v8696 = vrot.slane %v8695, 1
        %v8697 = vmax.f32 %v8695, %v8696
        %v8698 = vsel %vm8445, %v8269, -inf
        %v8699 = vrot.slane %v8698, 4
        %v8700 = vmax.f32 %v8698, %v8699
        %v8701 = vrot.slane %v8700, 2
        %v8702 = vmax.f32 %v8700, %v8701
        %v8703 = vrot.slane %v8702, 1
        %v8704 = vmax.f32 %v8702, %v8703
        %v8705 = vsel %vm8445, %v8277, -inf
        %v8706 = vrot.slane %v8705, 4
        %v8707 = vmax.f32 %v8705, %v8706
        %v8708 = vrot.slane %v8707, 2
        %v8709 = vmax.f32 %v8707, %v8708
        %v8710 = vrot.slane %v8709, 1
        %v8711 = vmax.f32 %v8709, %v8710
        %v8712 = vsel %vm8445, %v8276, -inf
        %v8713 = vrot.slane %v8712, 4
        %v8714 = vmax.f32 %v8712, %v8713
        %v8715 = vrot.slane %v8714, 2
        %v8716 = vmax.f32 %v8714, %v8715
        %v8717 = vrot.slane %v8716, 1
        %v8718 = vmax.f32 %v8716, %v8717
        %v8719 = vsel %vm8445, %v8278, -inf
        %v8720 = vrot.slane %v8719, 4
        %v8721 = vmax.f32 %v8719, %v8720
        %v8722 = vrot.slane %v8721, 2
        %v8723 = vmax.f32 %v8721, %v8722
        %v8724 = vrot.slane %v8723, 1
        %v8725 = vmax.f32 %v8723, %v8724
        %v8726 = vsel %vm8445, %v8286, -inf
        %v8727 = vrot.slane %v8726, 4
        %v8728 = vmax.f32 %v8726, %v8727
        %v8729 = vrot.slane %v8728, 2
        %v8730 = vmax.f32 %v8728, %v8729
        %v8731 = vrot.slane %v8730, 1
        %v8732 = vmax.f32 %v8730, %v8731
        %v8733 = vsel %vm8445, %v8294, -inf
        %v8734 = vrot.slane %v8733, 4
        %v8735 = vmax.f32 %v8733, %v8734
        %v8736 = vrot.slane %v8735, 2
        %v8737 = vmax.f32 %v8735, %v8736
        %v8738 = vrot.slane %v8737, 1
        %v8739 = vmax.f32 %v8737, %v8738
        %v8740 = vsel %vm8445, %v8293, -inf
        %v8741 = vrot.slane %v8740, 4
        %v8742 = vmax.f32 %v8740, %v8741
        %v8743 = vrot.slane %v8742, 2
        %v8744 = vmax.f32 %v8742, %v8743
        %v8745 = vrot.slane %v8744, 1
        %v8746 = vmax.f32 %v8744, %v8745
        %v8747 = vsel %vm8445, %v8295, -inf
        %v8748 = vrot.slane %v8747, 4
        %v8749 = vmax.f32 %v8747, %v8748
        %v8750 = vrot.slane %v8749, 2
        %v8751 = vmax.f32 %v8749, %v8750
        %v8752 = vrot.slane %v8751, 1
        %v8753 = vmax.f32 %v8751, %v8752
        %v8754 = vsel %vm8445, %v8303, -inf
        %v8755 = vrot.slane %v8754, 4
        %v8756 = vmax.f32 %v8754, %v8755
        %v8757 = vrot.slane %v8756, 2
        %v8758 = vmax.f32 %v8756, %v8757
        %v8759 = vrot.slane %v8758, 1
        %v8760 = vmax.f32 %v8758, %v8759
        %v8761 = vsel %vm8445, %v8311, -inf
        %v8762 = vrot.slane %v8761, 4
        %v8763 = vmax.f32 %v8761, %v8762
        %v8764 = vrot.slane %v8763, 2
        %v8765 = vmax.f32 %v8763, %v8764
        %v8766 = vrot.slane %v8765, 1
        %v8767 = vmax.f32 %v8765, %v8766
        %v8768 = vsel %vm8445, %v8310, -inf
        %v8769 = vrot.slane %v8768, 4
        %v8770 = vmax.f32 %v8768, %v8769
        %v8771 = vrot.slane %v8770, 2
        %v8772 = vmax.f32 %v8770, %v8771
        %v8773 = vrot.slane %v8772, 1
        %v8774 = vmax.f32 %v8772, %v8773
        %v8775 = vsel %vm8445, %v8312, -inf
        %v8776 = vrot.slane %v8775, 4
        %v8777 = vmax.f32 %v8775, %v8776
        %v8778 = vrot.slane %v8777, 2
        %v8779 = vmax.f32 %v8777, %v8778
        %v8780 = vrot.slane %v8779, 1
        %v8781 = vmax.f32 %v8779, %v8780
        %v8782 = vsel %vm8445, %v8320, -inf
        %v8783 = vrot.slane %v8782, 4
        %v8784 = vmax.f32 %v8782, %v8783
        %v8785 = vrot.slane %v8784, 2
        %v8786 = vmax.f32 %v8784, %v8785
        %v8787 = vrot.slane %v8786, 1
        %v8788 = vmax.f32 %v8786, %v8787
        %v8789 = vsel %vm8445, %v8328, -inf
        %v8790 = vrot.slane %v8789, 4
        %v8791 = vmax.f32 %v8789, %v8790
        %v8792 = vrot.slane %v8791, 2
        %v8793 = vmax.f32 %v8791, %v8792
        %v8794 = vrot.slane %v8793, 1
        %v8795 = vmax.f32 %v8793, %v8794
        %v8796 = vsel %vm8445, %v8327, -inf
        %v8797 = vrot.slane %v8796, 4
        %v8798 = vmax.f32 %v8796, %v8797
        %v8799 = vrot.slane %v8798, 2
        %v8800 = vmax.f32 %v8798, %v8799
        %v8801 = vrot.slane %v8800, 1
        %v8802 = vmax.f32 %v8800, %v8801
        %v8803 = vsel %vm8445, %v8329, -inf
        %v8804 = vrot.slane %v8803, 4
        %v8805 = vmax.f32 %v8803, %v8804
        %v8806 = vrot.slane %v8805, 2
        %v8807 = vmax.f32 %v8805, %v8806
        %v8808 = vrot.slane %v8807, 1
        %v8809 = vmax.f32 %v8807, %v8808
        %v8810 = vsel %vm8445, %v8337, -inf
        %v8811 = vrot.slane %v8810, 4
        %v8812 = vmax.f32 %v8810, %v8811
        %v8813 = vrot.slane %v8812, 2
        %v8814 = vmax.f32 %v8812, %v8813
        %v8815 = vrot.slane %v8814, 1
        %v8816 = vmax.f32 %v8814, %v8815
        %v8817 = vsel %vm8445, %v8345, -inf
        %v8818 = vrot.slane %v8817, 4
        %v8819 = vmax.f32 %v8817, %v8818
        %v8820 = vrot.slane %v8819, 2
        %v8821 = vmax.f32 %v8819, %v8820
        %v8822 = vrot.slane %v8821, 1
        %v8823 = vmax.f32 %v8821, %v8822
        %v8824 = vsel %vm8445, %v8344, -inf
        %v8825 = vrot.slane %v8824, 4
        %v8826 = vmax.f32 %v8824, %v8825
        %v8827 = vrot.slane %v8826, 2
        %v8828 = vmax.f32 %v8826, %v8827
        %v8829 = vrot.slane %v8828, 1
        %v8830 = vmax.f32 %v8828, %v8829
        %v8831 = vsel %vm8445, %v8346, -inf
        %v8832 = vrot.slane %v8831, 4
        %v8833 = vmax.f32 %v8831, %v8832
        %v8834 = vrot.slane %v8833, 2
        %v8835 = vmax.f32 %v8833, %v8834
        %v8836 = vrot.slane %v8835, 1
        %v8837 = vmax.f32 %v8835, %v8836
        %v8838 = vsel %vm8445, %v8354, -inf
        %v8839 = vrot.slane %v8838, 4
        %v8840 = vmax.f32 %v8838, %v8839
        %v8841 = vrot.slane %v8840, 2
        %v8842 = vmax.f32 %v8840, %v8841
        %v8843 = vrot.slane %v8842, 1
        %v8844 = vmax.f32 %v8842, %v8843
        %v8845 = vsel %vm8445, %v8362, -inf
        %v8846 = vrot.slane %v8845, 4
        %v8847 = vmax.f32 %v8845, %v8846
        %v8848 = vrot.slane %v8847, 2
        %v8849 = vmax.f32 %v8847, %v8848
        %v8850 = vrot.slane %v8849, 1
        %v8851 = vmax.f32 %v8849, %v8850
        %v8852 = vsel %vm8445, %v8361, -inf
        %v8853 = vrot.slane %v8852, 4
        %v8854 = vmax.f32 %v8852, %v8853
        %v8855 = vrot.slane %v8854, 2
        %v8856 = vmax.f32 %v8854, %v8855
        %v8857 = vrot.slane %v8856, 1
        %v8858 = vmax.f32 %v8856, %v8857
        %v8859 = vsel %vm8445, %v8363, -inf
        %v8860 = vrot.slane %v8859, 4
        %v8861 = vmax.f32 %v8859, %v8860
        %v8862 = vrot.slane %v8861, 2
        %v8863 = vmax.f32 %v8861, %v8862
        %v8864 = vrot.slane %v8863, 1
        %v8865 = vmax.f32 %v8863, %v8864
        %v8866 = vsel %vm8445, %v8371, -inf
        %v8867 = vrot.slane %v8866, 4
        %v8868 = vmax.f32 %v8866, %v8867
        %v8869 = vrot.slane %v8868, 2
        %v8870 = vmax.f32 %v8868, %v8869
        %v8871 = vrot.slane %v8870, 1
        %v8872 = vmax.f32 %v8870, %v8871
        %v8873 = vsel %vm8445, %v8379, -inf
        %v8874 = vrot.slane %v8873, 4
        %v8875 = vmax.f32 %v8873, %v8874
        %v8876 = vrot.slane %v8875, 2
        %v8877 = vmax.f32 %v8875, %v8876
        %v8878 = vrot.slane %v8877, 1
        %v8879 = vmax.f32 %v8877, %v8878
        %v8880 = vsel %vm8445, %v8378, -inf
        %v8881 = vrot.slane %v8880, 4
        %v8882 = vmax.f32 %v8880, %v8881
        %v8883 = vrot.slane %v8882, 2
        %v8884 = vmax.f32 %v8882, %v8883
        %v8885 = vrot.slane %v8884, 1
        %v8886 = vmax.f32 %v8884, %v8885
        %v8887 = vsel %vm8445, %v8380, -inf
        %v8888 = vrot.slane %v8887, 4
        %v8889 = vmax.f32 %v8887, %v8888
        %v8890 = vrot.slane %v8889, 2
        %v8891 = vmax.f32 %v8889, %v8890
        %v8892 = vrot.slane %v8891, 1
        %v8893 = vmax.f32 %v8891, %v8892
        %v8958 = vsel %vm5492, %v8459, %v8452
        %v8959 = vsel %vm5494, %v8466, %v8958
        %v8960 = vsel %vm5496, %v8473, %v8959
        %v8961 = vsel %vm5492, %v8487, %v8480
        %v8962 = vsel %vm5494, %v8494, %v8961
        %v8963 = vsel %vm5496, %v8501, %v8962
        %v8964 = vsel %vm5492, %v8515, %v8508
        %v8965 = vsel %vm5494, %v8522, %v8964
        %v8966 = vsel %vm5496, %v8529, %v8965
        %v8967 = vsel %vm5492, %v8543, %v8536
        %v8968 = vsel %vm5494, %v8550, %v8967
        %v8969 = vsel %vm5496, %v8557, %v8968
        %v8970 = vsel %vm5492, %v8571, %v8564
        %v8971 = vsel %vm5494, %v8578, %v8970
        %v8972 = vsel %vm5496, %v8585, %v8971
        %v8973 = vsel %vm5492, %v8599, %v8592
        %v8974 = vsel %vm5494, %v8606, %v8973
        %v8975 = vsel %vm5496, %v8613, %v8974
        %v8976 = vsel %vm5492, %v8627, %v8620
        %v8977 = vsel %vm5494, %v8634, %v8976
        %v8978 = vsel %vm5496, %v8641, %v8977
        %v8979 = vsel %vm5492, %v8655, %v8648
        %v8980 = vsel %vm5494, %v8662, %v8979
        %v8981 = vsel %vm5496, %v8669, %v8980
        %v8982 = vsel %vm5492, %v8683, %v8676
        %v8983 = vsel %vm5494, %v8690, %v8982
        %v8984 = vsel %vm5496, %v8697, %v8983
        %v8985 = vsel %vm5492, %v8711, %v8704
        %v8986 = vsel %vm5494, %v8718, %v8985
        %v8987 = vsel %vm5496, %v8725, %v8986
        %v8988 = vsel %vm5492, %v8739, %v8732
        %v8989 = vsel %vm5494, %v8746, %v8988
        %v8990 = vsel %vm5496, %v8753, %v8989
        %v8991 = vsel %vm5492, %v8767, %v8760
        %v8992 = vsel %vm5494, %v8774, %v8991
        %v8993 = vsel %vm5496, %v8781, %v8992
        %v8994 = vsel %vm5492, %v8795, %v8788
        %v8995 = vsel %vm5494, %v8802, %v8994
        %v8996 = vsel %vm5496, %v8809, %v8995
        %v8997 = vsel %vm5492, %v8823, %v8816
        %v8998 = vsel %vm5494, %v8830, %v8997
        %v8999 = vsel %vm5496, %v8837, %v8998
        %v9000 = vsel %vm5492, %v8851, %v8844
        %v9001 = vsel %vm5494, %v8858, %v9000
        %v9002 = vsel %vm5496, %v8865, %v9001
        %v9003 = vsel %vm5492, %v8879, %v8872
        %v9004 = vsel %vm5494, %v8886, %v9003
        %v9005 = vsel %vm5496, %v8893, %v9004
        %s9022 = scalar_lea.vmem [#allocation3], 8
        %vm9023 = vcmask 519168
        %9024 = vst.msk [vmem:[%s9022 + $0x1] sm:$0xf] %vm9023, %v8960
        %9025 = vst.msk [vmem:[%s9022 + $0x9] sm:$0xf] %vm9023, %v8963
        %9026 = vst.msk [vmem:[%s9022 + $0x11] sm:$0xf] %vm9023, %v8966
        %9027 = vst.msk [vmem:[%s9022 + $0x19] sm:$0xf] %vm9023, %v8969
        %9028 = vst.msk [vmem:[%s9022 + $0x31] sm:$0xf] %vm9023, %v8972
        %9029 = vst.msk [vmem:[%s9022 + $0x39] sm:$0xf] %vm9023, %v8975
        %9030 = vst.msk [vmem:[%s9022 + $0x41] sm:$0xf] %vm9023, %v8978
        %9031 = vst.msk [vmem:[%s9022 + $0x49] sm:$0xf] %vm9023, %v8981
        %9032 = vst.msk [vmem:[%s9022 + $0x61] sm:$0xf] %vm9023, %v8984
        %9033 = vst.msk [vmem:[%s9022 + $0x69] sm:$0xf] %vm9023, %v8987
        %9034 = vst.msk [vmem:[%s9022 + $0x71] sm:$0xf] %vm9023, %v8990
        %9035 = vst.msk [vmem:[%s9022 + $0x79] sm:$0xf] %vm9023, %v8993
        %9036 = vst.msk [vmem:[%s9022 + $0x91] sm:$0xf] %vm9023, %v8996
        %9037 = vst.msk [vmem:[%s9022 + $0x99] sm:$0xf] %vm9023, %v8999
        %9038 = vst.msk [vmem:[%s9022 + $0xa1] sm:$0xf] %vm9023, %v9002
        %9039 = vst.msk [vmem:[%s9022 + $0xa9] sm:$0xf] %vm9023, %v9005
        %vm9040 = vcmask 521216
        %9041 = vst.msk [vmem:[#allocation3] sm:$0x3f] %vm9040, 0.0
        %9042 = vst.msk [vmem:[#allocation3 + $0x30] sm:$0x3f] %vm9040, 0.0
        %9043 = vst.msk [vmem:[#allocation3 + $0x60] sm:$0x3f] %vm9040, 0.0
        %9044 = vst.msk [vmem:[#allocation3 + $0x90] sm:$0x3f] %vm9040, 0.0
        %s9045 = scalar_lea.vmem [#allocation3], 40
        %9046 = vst.msk [vmem:[%s9045] sm:$0x3f] %vm9040, 0.0
        %9047 = vst.msk [vmem:[%s9045 + $0x30] sm:$0x3f] %vm9040, 0.0
        %9048 = vst.msk [vmem:[%s9045 + $0x60] sm:$0x3f] %vm9040, 0.0
        %9049 = vst.msk [vmem:[%s9045 + $0x90] sm:$0x3f] %vm9040, 0.0
        %vm9050 = vcmask 516096
        %9051 = vst.msk [vmem:[%s9022] sm:$0x1] %vm9050, 0.0
        %9052 = vst.msk [vmem:[%s9022 + $0x8] sm:$0x1] %vm9050, 0.0
        %9053 = vst.msk [vmem:[%s9022 + $0x10] sm:$0x1] %vm9050, 0.0
        %9054 = vst.msk [vmem:[%s9022 + $0x18] sm:$0x1] %vm9050, 0.0
        %9055 = vst.msk [vmem:[%s9022 + $0x30] sm:$0x1] %vm9050, 0.0
        %9056 = vst.msk [vmem:[%s9022 + $0x38] sm:$0x1] %vm9050, 0.0
        %9057 = vst.msk [vmem:[%s9022 + $0x40] sm:$0x1] %vm9050, 0.0
        %9058 = vst.msk [vmem:[%s9022 + $0x48] sm:$0x1] %vm9050, 0.0
        %9059 = vst.msk [vmem:[%s9022 + $0x60] sm:$0x1] %vm9050, 0.0
        %9060 = vst.msk [vmem:[%s9022 + $0x68] sm:$0x1] %vm9050, 0.0
        %9061 = vst.msk [vmem:[%s9022 + $0x70] sm:$0x1] %vm9050, 0.0
        %9062 = vst.msk [vmem:[%s9022 + $0x78] sm:$0x1] %vm9050, 0.0
        %9063 = vst.msk [vmem:[%s9022 + $0x90] sm:$0x1] %vm9050, 0.0
        %9064 = vst.msk [vmem:[%s9022 + $0x98] sm:$0x1] %vm9050, 0.0
        %9065 = vst.msk [vmem:[%s9022 + $0xa0] sm:$0x1] %vm9050, 0.0
        %9066 = vst.msk [vmem:[%s9022 + $0xa8] sm:$0x1] %vm9050, 0.0
        %9067 = vst.msk [vmem:[%s9022 + $0x5] sm:$0x1] %vm9050, 0.0
        %9068 = vst.msk [vmem:[%s9022 + $0xd] sm:$0x1] %vm9050, 0.0
        %9069 = vst.msk [vmem:[%s9022 + $0x15] sm:$0x1] %vm9050, 0.0
        %9070 = vst.msk [vmem:[%s9022 + $0x1d] sm:$0x1] %vm9050, 0.0
        %9071 = vst.msk [vmem:[%s9022 + $0x35] sm:$0x1] %vm9050, 0.0
        %9072 = vst.msk [vmem:[%s9022 + $0x3d] sm:$0x1] %vm9050, 0.0
        %9073 = vst.msk [vmem:[%s9022 + $0x45] sm:$0x1] %vm9050, 0.0
        %9074 = vst.msk [vmem:[%s9022 + $0x4d] sm:$0x1] %vm9050, 0.0
        %9075 = vst.msk [vmem:[%s9022 + $0x65] sm:$0x1] %vm9050, 0.0
        %9076 = vst.msk [vmem:[%s9022 + $0x6d] sm:$0x1] %vm9050, 0.0
        %9077 = vst.msk [vmem:[%s9022 + $0x75] sm:$0x1] %vm9050, 0.0
        %9078 = vst.msk [vmem:[%s9022 + $0x7d] sm:$0x1] %vm9050, 0.0
        %9079 = vst.msk [vmem:[%s9022 + $0x95] sm:$0x1] %vm9050, 0.0
        %9080 = vst.msk [vmem:[%s9022 + $0x9d] sm:$0x1] %vm9050, 0.0
        %9081 = vst.msk [vmem:[%s9022 + $0xa5] sm:$0x1] %vm9050, 0.0
        %9082 = vst.msk [vmem:[%s9022 + $0xad] sm:$0x1] %vm9050, 0.0
        %v9083 = vld [vmem:[#allocation3] sm:$0xf]
        %v9084 = vld [vmem:[#allocation3 + $0x8] sm:$0xf]
        %v9085 = vld [vmem:[#allocation3 + $0x10] sm:$0xf]
        %v9086 = vld [vmem:[#allocation3 + $0x18] sm:$0xf]
        %v9087 = vld [vmem:[#allocation3 + $0x30] sm:$0xf]
        %v9088 = vld [vmem:[#allocation3 + $0x38] sm:$0xf]
        %v9089 = vld [vmem:[#allocation3 + $0x40] sm:$0xf]
        %v9090 = vld [vmem:[#allocation3 + $0x48] sm:$0xf]
        %v9091 = vld [vmem:[#allocation3 + $0x60] sm:$0xf]
        %v9092 = vld [vmem:[#allocation3 + $0x68] sm:$0xf]
        %v9093 = vld [vmem:[#allocation3 + $0x70] sm:$0xf]
        %v9094 = vld [vmem:[#allocation3 + $0x78] sm:$0xf]
        %v9095 = vld [vmem:[#allocation3 + $0x90] sm:$0xf]
        %v9096 = vld [vmem:[#allocation3 + $0x98] sm:$0xf]
        %v9097 = vld [vmem:[#allocation3 + $0xa0] sm:$0xf]
        %v9098 = vld [vmem:[#allocation3 + $0xa8] sm:$0xf]
        %v9099 = vld [vmem:[#allocation3 + $0x1] sm:$0xf]
        %v9100 = vld [vmem:[#allocation3 + $0x9] sm:$0xf]
        %v9101 = vld [vmem:[#allocation3 + $0x11] sm:$0xf]
        %v9102 = vld [vmem:[#allocation3 + $0x19] sm:$0xf]
        %v9103 = vld [vmem:[#allocation3 + $0x31] sm:$0xf]
        %v9104 = vld [vmem:[#allocation3 + $0x39] sm:$0xf]
        %v9105 = vld [vmem:[#allocation3 + $0x41] sm:$0xf]
        %v9106 = vld [vmem:[#allocation3 + $0x49] sm:$0xf]
        %v9107 = vld [vmem:[#allocation3 + $0x61] sm:$0xf]
        %v9108 = vld [vmem:[#allocation3 + $0x69] sm:$0xf]
        %v9109 = vld [vmem:[#allocation3 + $0x71] sm:$0xf]
        %v9110 = vld [vmem:[#allocation3 + $0x79] sm:$0xf]
        %v9111 = vld [vmem:[#allocation3 + $0x91] sm:$0xf]
        %v9112 = vld [vmem:[#allocation3 + $0x99] sm:$0xf]
        %v9113 = vld [vmem:[#allocation3 + $0xa1] sm:$0xf]
        %v9114 = vld [vmem:[#allocation3 + $0xa9] sm:$0xf]
        %v9115 = vld [vmem:[#allocation3 + $0x2] sm:$0xf]
        %v9116 = vld [vmem:[#allocation3 + $0xa] sm:$0xf]
        %v9117 = vld [vmem:[#allocation3 + $0x12] sm:$0xf]
        %v9118 = vld [vmem:[#allocation3 + $0x1a] sm:$0xf]
        %v9119 = vld [vmem:[#allocation3 + $0x32] sm:$0xf]
        %v9120 = vld [vmem:[#allocation3 + $0x3a] sm:$0xf]
        %v9121 = vld [vmem:[#allocation3 + $0x42] sm:$0xf]
        %v9122 = vld [vmem:[#allocation3 + $0x4a] sm:$0xf]
        %v9123 = vld [vmem:[#allocation3 + $0x62] sm:$0xf]
        %v9124 = vld [vmem:[#allocation3 + $0x6a] sm:$0xf]
        %v9125 = vld [vmem:[#allocation3 + $0x72] sm:$0xf]
        %v9126 = vld [vmem:[#allocation3 + $0x7a] sm:$0xf]
        %v9127 = vld [vmem:[#allocation3 + $0x92] sm:$0xf]
        %v9128 = vld [vmem:[#allocation3 + $0x9a] sm:$0xf]
        %v9129 = vld [vmem:[#allocation3 + $0xa2] sm:$0xf]
        %v9130 = vld [vmem:[#allocation3 + $0xaa] sm:$0xf]
        %v9147 = vcombine.low %v9083, %v9084
        %v9148 = vcombine.low %v9085, %v9086
        %v9149 = vcombine.low %v9087, %v9088
        %v9150 = vcombine.low %v9089, %v9090
        %v9151 = vcombine.low %v9091, %v9092
        %v9152 = vcombine.low %v9093, %v9094
        %v9153 = vcombine.low %v9095, %v9096
        %v9154 = vcombine.low %v9097, %v9098
        %v9179 = vcombine.low %v9099, %v9100
        %v9180 = vcombine.low %v9101, %v9102
        %v9181 = vcombine.low %v9103, %v9104
        %v9182 = vcombine.low %v9105, %v9106
        %v9183 = vcombine.low %v9107, %v9108
        %v9184 = vcombine.low %v9109, %v9110
        %v9185 = vcombine.low %v9111, %v9112
        %v9186 = vcombine.low %v9113, %v9114
        %9187 = vrot.lane.b32.xlu0 %v9179, 64
        %v9188 = vpop.permute.xlu0 %9187
        %9189 = vrot.lane.b32.xlu0 %v9180, 64
        %v9190 = vpop.permute.xlu0 %9189
        %9191 = vrot.lane.b32.xlu0 %v9181, 64
        %v9192 = vpop.permute.xlu0 %9191
        %9193 = vrot.lane.b32.xlu0 %v9182, 64
        %v9194 = vpop.permute.xlu0 %9193
        %9195 = vrot.lane.b32.xlu0 %v9183, 64
        %v9196 = vpop.permute.xlu0 %9195
        %9197 = vrot.lane.b32.xlu0 %v9184, 64
        %v9198 = vpop.permute.xlu0 %9197
        %9199 = vrot.lane.b32.xlu0 %v9185, 64
        %v9200 = vpop.permute.xlu0 %9199
        %9201 = vrot.lane.b32.xlu0 %v9186, 64
        %v9202 = vpop.permute.xlu0 %9201
        %v9227 = vcombine.low %v9115, %v9116
        %v9228 = vcombine.low %v9117, %v9118
        %v9229 = vcombine.low %v9119, %v9120
        %v9230 = vcombine.low %v9121, %v9122
        %v9231 = vcombine.low %v9123, %v9124
        %v9232 = vcombine.low %v9125, %v9126
        %v9233 = vcombine.low %v9127, %v9128
        %v9234 = vcombine.low %v9129, %v9130
        %v9243 = vsel %vm6254, %v9147, %v9188
        %v9244 = vsel %vm6254, %v9148, %v9190
        %v9245 = vsel %vm6254, %v9149, %v9192
        %v9246 = vsel %vm6254, %v9150, %v9194
        %v9247 = vsel %vm6254, %v9151, %v9196
        %v9248 = vsel %vm6254, %v9152, %v9198
        %v9249 = vsel %vm6254, %v9153, %v9200
        %v9250 = vsel %vm6254, %v9154, %v9202
        %v9251 = vpack.c.bf16 %v9244, %v9243
        %v9252 = vpack.c.bf16 %v9228, %v9227
        %v9253 = vpack.c.bf16 %v9246, %v9245
        %v9254 = vpack.c.bf16 %v9230, %v9229
        %v9255 = vpack.c.bf16 %v9248, %v9247
        %v9256 = vpack.c.bf16 %v9232, %v9231
        %v9257 = vpack.c.bf16 %v9250, %v9249
        %v9258 = vpack.c.bf16 %v9234, %v9233
        %v9259 = vld [vmem:[%s5] sm:$0xf]
        %v9260 = vld [vmem:[%s5 + $0x4] sm:$0xf]
        %v9261 = vld [vmem:[%s5 + $0x8] sm:$0xf]
        %v9262 = vld [vmem:[%s5 + $0xc] sm:$0xf]
        %v9263 = vld [vmem:[%s5 + $0x10] sm:$0xf]
        %v9264 = vld [vmem:[%s5 + $0x14] sm:$0xf]
        %v9265 = vld [vmem:[%s5 + $0x18] sm:$0xf]
        %v9266 = vld [vmem:[%s5 + $0x1c] sm:$0xf]
        %v9267 = vld [vmem:[%s5 + $0x20] sm:$0xf]
        %v9268 = vld [vmem:[%s5 + $0x24] sm:$0xf]
        %v9269 = vld [vmem:[%s5 + $0x28] sm:$0xf]
        %v9270 = vld [vmem:[%s5 + $0x2c] sm:$0xf]
        %v9271 = vld [vmem:[%s5 + $0x30] sm:$0xf]
        %v9272 = vld [vmem:[%s5 + $0x34] sm:$0xf]
        %v9273 = vld [vmem:[%s5 + $0x38] sm:$0xf]
        %v9274 = vld [vmem:[%s5 + $0x3c] sm:$0xf]
        %v9275 = vld [vmem:[%s5 + $0x40] sm:$0xf]
        %v9276 = vld [vmem:[%s5 + $0x44] sm:$0xf]
        %v9277 = vld [vmem:[%s5 + $0x48] sm:$0xf]
        %v9278 = vld [vmem:[%s5 + $0x4c] sm:$0xf]
        %v9279 = vld [vmem:[%s5 + $0x50] sm:$0xf]
        %v9280 = vld [vmem:[%s5 + $0x54] sm:$0xf]
        %v9281 = vld [vmem:[%s5 + $0x58] sm:$0xf]
        %v9282 = vld [vmem:[%s5 + $0x5c] sm:$0xf]
        %v9283 = vld [vmem:[%s9022] sm:$0xf]
        %v9284 = vld [vmem:[%s9022 + $0x8] sm:$0xf]
        %v9285 = vld [vmem:[%s9022 + $0x10] sm:$0xf]
        %v9286 = vld [vmem:[%s9022 + $0x18] sm:$0xf]
        %v9287 = vld [vmem:[%s9022 + $0x30] sm:$0xf]
        %v9288 = vld [vmem:[%s9022 + $0x38] sm:$0xf]
        %v9289 = vld [vmem:[%s9022 + $0x40] sm:$0xf]
        %v9290 = vld [vmem:[%s9022 + $0x48] sm:$0xf]
        %v9291 = vld [vmem:[%s9022 + $0x60] sm:$0xf]
        %v9292 = vld [vmem:[%s9022 + $0x68] sm:$0xf]
        %v9293 = vld [vmem:[%s9022 + $0x70] sm:$0xf]
        %v9294 = vld [vmem:[%s9022 + $0x78] sm:$0xf]
        %v9295 = vld [vmem:[%s9022 + $0x90] sm:$0xf]
        %v9296 = vld [vmem:[%s9022 + $0x98] sm:$0xf]
        %v9297 = vld [vmem:[%s9022 + $0xa0] sm:$0xf]
        %v9298 = vld [vmem:[%s9022 + $0xa8] sm:$0xf]
        %v9299 = vld [vmem:[%s9022 + $0x1] sm:$0xf]
        %v9300 = vld [vmem:[%s9022 + $0x9] sm:$0xf]
        %v9301 = vld [vmem:[%s9022 + $0x11] sm:$0xf]
        %v9302 = vld [vmem:[%s9022 + $0x19] sm:$0xf]
        %v9303 = vld [vmem:[%s9022 + $0x31] sm:$0xf]
        %v9304 = vld [vmem:[%s9022 + $0x39] sm:$0xf]
        %v9305 = vld [vmem:[%s9022 + $0x41] sm:$0xf]
        %v9306 = vld [vmem:[%s9022 + $0x49] sm:$0xf]
        %v9307 = vld [vmem:[%s9022 + $0x61] sm:$0xf]
        %v9308 = vld [vmem:[%s9022 + $0x69] sm:$0xf]
        %v9309 = vld [vmem:[%s9022 + $0x71] sm:$0xf]
        %v9310 = vld [vmem:[%s9022 + $0x79] sm:$0xf]
        %v9311 = vld [vmem:[%s9022 + $0x91] sm:$0xf]
        %v9312 = vld [vmem:[%s9022 + $0x99] sm:$0xf]
        %v9313 = vld [vmem:[%s9022 + $0xa1] sm:$0xf]
        %v9314 = vld [vmem:[%s9022 + $0xa9] sm:$0xf]
        %v9315 = vld [vmem:[%s9022 + $0x2] sm:$0xf]
        %v9316 = vld [vmem:[%s9022 + $0xa] sm:$0xf]
        %v9317 = vld [vmem:[%s9022 + $0x12] sm:$0xf]
        %v9318 = vld [vmem:[%s9022 + $0x1a] sm:$0xf]
        %v9319 = vld [vmem:[%s9022 + $0x32] sm:$0xf]
        %v9320 = vld [vmem:[%s9022 + $0x3a] sm:$0xf]
        %v9321 = vld [vmem:[%s9022 + $0x42] sm:$0xf]
        %v9322 = vld [vmem:[%s9022 + $0x4a] sm:$0xf]
        %v9323 = vld [vmem:[%s9022 + $0x62] sm:$0xf]
        %v9324 = vld [vmem:[%s9022 + $0x6a] sm:$0xf]
        %v9325 = vld [vmem:[%s9022 + $0x72] sm:$0xf]
        %v9326 = vld [vmem:[%s9022 + $0x7a] sm:$0xf]
        %v9327 = vld [vmem:[%s9022 + $0x92] sm:$0xf]
        %v9328 = vld [vmem:[%s9022 + $0x9a] sm:$0xf]
        %v9329 = vld [vmem:[%s9022 + $0xa2] sm:$0xf]
        %v9330 = vld [vmem:[%s9022 + $0xaa] sm:$0xf]
        %v9347 = vcombine.low %v9283, %v9284
        %v9348 = vcombine.low %v9285, %v9286
        %v9349 = vcombine.low %v9287, %v9288
        %v9350 = vcombine.low %v9289, %v9290
        %v9351 = vcombine.low %v9291, %v9292
        %v9352 = vcombine.low %v9293, %v9294
        %v9353 = vcombine.low %v9295, %v9296
        %v9354 = vcombine.low %v9297, %v9298
        %v9379 = vcombine.low %v9299, %v9300
        %v9380 = vcombine.low %v9301, %v9302
        %v9381 = vcombine.low %v9303, %v9304
        %v9382 = vcombine.low %v9305, %v9306
        %v9383 = vcombine.low %v9307, %v9308
        %v9384 = vcombine.low %v9309, %v9310
        %v9385 = vcombine.low %v9311, %v9312
        %v9386 = vcombine.low %v9313, %v9314
        %9387 = vrot.lane.b32.xlu0 %v9379, 64
        %v9388 = vpop.permute.xlu0 %9387
        %9389 = vrot.lane.b32.xlu0 %v9380, 64
        %v9390 = vpop.permute.xlu0 %9389
        %9391 = vrot.lane.b32.xlu0 %v9381, 64
        %v9392 = vpop.permute.xlu0 %9391
        %9393 = vrot.lane.b32.xlu0 %v9382, 64
        %v9394 = vpop.permute.xlu0 %9393
        %9395 = vrot.lane.b32.xlu0 %v9383, 64
        %v9396 = vpop.permute.xlu0 %9395
        %9397 = vrot.lane.b32.xlu0 %v9384, 64
        %v9398 = vpop.permute.xlu0 %9397
        %9399 = vrot.lane.b32.xlu0 %v9385, 64
        %v9400 = vpop.permute.xlu0 %9399
        %9401 = vrot.lane.b32.xlu0 %v9386, 64
        %v9402 = vpop.permute.xlu0 %9401
        %v9427 = vcombine.low %v9315, %v9316
        %v9428 = vcombine.low %v9317, %v9318
        %v9429 = vcombine.low %v9319, %v9320
        %v9430 = vcombine.low %v9321, %v9322
        %v9431 = vcombine.low %v9323, %v9324
        %v9432 = vcombine.low %v9325, %v9326
        %v9433 = vcombine.low %v9327, %v9328
        %v9434 = vcombine.low %v9329, %v9330
        %v9443 = vsel %vm6254, %v9347, %v9388
        %v9444 = vsel %vm6254, %v9348, %v9390
        %v9445 = vsel %vm6254, %v9349, %v9392
        %v9446 = vsel %vm6254, %v9350, %v9394
        %v9447 = vsel %vm6254, %v9351, %v9396
        %v9448 = vsel %vm6254, %v9352, %v9398
        %v9449 = vsel %vm6254, %v9353, %v9400
        %v9450 = vsel %vm6254, %v9354, %v9402
        %v9451 = vpack.c.bf16 %v9444, %v9443
        %v9452 = vpack.c.bf16 %v9428, %v9427
        %v9453 = vpack.c.bf16 %v9446, %v9445
        %v9454 = vpack.c.bf16 %v9430, %v9429
        %v9455 = vpack.c.bf16 %v9448, %v9447
        %v9456 = vpack.c.bf16 %v9432, %v9431
        %v9457 = vpack.c.bf16 %v9450, %v9449
        %v9458 = vpack.c.bf16 %v9434, %v9433
        %s9459 = scalar_lea.vmem %s5, 96
        %v9460 = vld [vmem:[%s9459] sm:$0xf]
        %v9461 = vld [vmem:[%s9459 + $0x4] sm:$0xf]
        %v9462 = vld [vmem:[%s9459 + $0x8] sm:$0xf]
        %v9463 = vld [vmem:[%s9459 + $0xc] sm:$0xf]
        %v9464 = vld [vmem:[%s9459 + $0x10] sm:$0xf]
        %v9465 = vld [vmem:[%s9459 + $0x14] sm:$0xf]
        %v9466 = vld [vmem:[%s9459 + $0x18] sm:$0xf]
        %v9467 = vld [vmem:[%s9459 + $0x1c] sm:$0xf]
        %v9468 = vld [vmem:[%s9459 + $0x20] sm:$0xf]
        %v9469 = vld [vmem:[%s9459 + $0x24] sm:$0xf]
        %v9470 = vld [vmem:[%s9459 + $0x28] sm:$0xf]
        %v9471 = vld [vmem:[%s9459 + $0x2c] sm:$0xf]
        %v9472 = vld [vmem:[%s9459 + $0x30] sm:$0xf]
        %v9473 = vld [vmem:[%s9459 + $0x34] sm:$0xf]
        %v9474 = vld [vmem:[%s9459 + $0x38] sm:$0xf]
        %v9475 = vld [vmem:[%s9459 + $0x3c] sm:$0xf]
        %v9476 = vld [vmem:[%s9459 + $0x40] sm:$0xf]
        %v9477 = vld [vmem:[%s9459 + $0x44] sm:$0xf]
        %v9478 = vld [vmem:[%s9459 + $0x48] sm:$0xf]
        %v9479 = vld [vmem:[%s9459 + $0x4c] sm:$0xf]
        %v9480 = vld [vmem:[%s9459 + $0x50] sm:$0xf]
        %v9481 = vld [vmem:[%s9459 + $0x54] sm:$0xf]
        %v9482 = vld [vmem:[%s9459 + $0x58] sm:$0xf]
        %v9483 = vld [vmem:[%s9459 + $0x5c] sm:$0xf]
        %v9508 = vunpack.c.l.b16 %v9460
        %v9509 = vunpack.c.l.b16 %v9461
        %v9510 = vunpack.c.l.b16 %v9462
        %v9511 = vunpack.c.l.b16 %v9463
        %v9512 = vunpack.c.l.b16 %v9464
        %v9513 = vunpack.c.l.b16 %v9465
        %v9514 = vunpack.c.l.b16 %v9466
        %v9515 = vunpack.c.l.b16 %v9467
        %v9516 = vunpack.c.l.b16 %v9468
        %v9517 = vunpack.c.l.b16 %v9469
        %v9518 = vunpack.c.l.b16 %v9470
        %v9519 = vunpack.c.l.b16 %v9471
        %v9520 = vunpack.c.l.b16 %v9472
        %v9521 = vunpack.c.l.b16 %v9473
        %v9522 = vunpack.c.l.b16 %v9474
        %v9523 = vunpack.c.l.b16 %v9475
        %v9524 = vunpack.c.l.b16 %v9476
        %v9525 = vunpack.c.l.b16 %v9477
        %v9526 = vunpack.c.l.b16 %v9478
        %v9527 = vunpack.c.l.b16 %v9479
        %v9528 = vunpack.c.l.b16 %v9480
        %v9529 = vunpack.c.l.b16 %v9481
        %v9530 = vunpack.c.l.b16 %v9482
        %v9531 = vunpack.c.l.b16 %v9483
        %v9532 = vpack.c.b16 %v9509, %v9508
        %v9533 = vpack.c.b16 %v9511, %v9510
        %v9534 = vpack.c.b16 %v9513, %v9512
        %v9535 = vpack.c.b16 %v9515, %v9514
        %v9536 = vpack.c.b16 %v9517, %v9516
        %v9537 = vpack.c.b16 %v9519, %v9518
        %v9538 = vpack.c.b16 %v9521, %v9520
        %v9539 = vpack.c.b16 %v9523, %v9522
        %v9540 = vpack.c.b16 %v9525, %v9524
        %v9541 = vpack.c.b16 %v9527, %v9526
        %v9542 = vpack.c.b16 %v9529, %v9528
        %v9543 = vpack.c.b16 %v9531, %v9530
        %v9557 = vsel %vm6254, %v9452, 0
        %v9560 = vsel %vm6254, %v9454, 0
        %v9563 = vsel %vm6254, %v9456, 0
        %v9566 = vsel %vm6254, %v9458, 0
        %9568 = vmatprep.subr.bf16.mxu0 0
        %9569 = vmatpush1.bf16.msra.mxu0 %v9532
        %9570 = vmatprep.subr.bf16.mxu0 0
        %9571 = vmatpush1.bf16.msra.mxu0 %v9533
        %9572 = vmatprep.subr.bf16.mxu0 0
        %9573 = vmatpush1.bf16.msra.mxu0 %v9534
        %9574 = vmatprep.subr.bf16.mxu0 0
        %9575 = vmatpush1.bf16.msra.mxu0 %v9535
        %9576 = vmatprep.subr.bf16.mxu0 0
        %9577 = vmatpush1.bf16.msra.mxu0 %v9536
        %9578 = vmatprep.subr.bf16.mxu0 0
        %9579 = vmatpush1.bf16.msra.mxu0 %v9537
        %9580 = vmatprep.subr.bf16.mxu0 0
        %9581 = vmatpush1.bf16.msra.mxu0 %v9538
        %9582 = vmatprep.subr.bf16.mxu0 0
        %9583 = vmatpush1.bf16.msra.mxu0 %v9539
        %9584 = vmatprep.subr.bf16.mxu0 0
        %9585 = vmatpush1.bf16.msra.mxu0 %v9540
        %9586 = vmatprep.subr.bf16.mxu0 0
        %9587 = vmatpush1.bf16.msra.mxu0 %v9541
        %9588 = vmatprep.subr.bf16.mxu0 0
        %9589 = vmatpush1.bf16.msra.mxu0 %v9542
        %9590 = vmatprep.subr.bf16.mxu0 0
        %9591 = vmatpush1.bf16.msra.mxu0 %v9543
        %9592 = vmatprep.subr.bf16.mxu0 0
        %9593 = vmatpush1.bf16.msra.mxu0 0
        %9594 = vmatprep.subr.bf16.mxu0 0
        %9595 = vmatpush1.bf16.msra.mxu0 0
        %9596 = vmatprep.subr.bf16.mxu0 0
        %9597 = vmatpush1.bf16.msra.mxu0 0
        %9598 = vmatprep.subr.bf16.mxu0 0
        %9599 = vmatpush1.bf16.msra.mxu0 0
        %9600 = vmatprep.mubr.bf16.mxu0 %v9557
        %9601 = vmatmul.mubr.bf16.gmra.mrb[0].mxu0 %v9451
        %v9602 = vpop.f32.mrb[0].mxu0
        %v9603 = vadd.f32 0.0, %v9602
        %v9604 = vpop.f32.mrb[0].mxu0
        %v9605 = vpop.f32.mrb[0].mxu0
        %v9606 = vadd.f32 0.0, %v9605
        %v9607 = vpop.f32.mrb[0].mxu0
        %9608 = vmatprep.mubr.bf16.mxu0 %v9560
        %9609 = vmatmul.mubr.bf16.gmra.mrb[0].mxu0 %v9453
        %v9610 = vpop.f32.mrb[0].mxu0
        %v9611 = vadd.f32 0.0, %v9610
        %v9612 = vpop.f32.mrb[0].mxu0
        %v9613 = vpop.f32.mrb[0].mxu0
        %v9614 = vadd.f32 0.0, %v9613
        %v9615 = vpop.f32.mrb[0].mxu0
        %9616 = vmatprep.mubr.bf16.mxu0 %v9563
        %9617 = vmatmul.mubr.bf16.gmra.mrb[0].mxu0 %v9455
        %v9618 = vpop.f32.mrb[0].mxu0
        %v9619 = vadd.f32 0.0, %v9618
        %v9620 = vpop.f32.mrb[0].mxu0
        %v9621 = vpop.f32.mrb[0].mxu0
        %v9622 = vadd.f32 0.0, %v9621
        %v9623 = vpop.f32.mrb[0].mxu0
        %9624 = vmatprep.mubr.bf16.mxu0 %v9566
        %9625 = vmatmul.mubr.bf16.gmra.mrb[0].mxu0 %v9457
        %v9626 = vpop.f32.mrb[0].mxu0
        %v9627 = vadd.f32 0.0, %v9626
        %v9628 = vpop.f32.mrb[0].mxu0
        %v9629 = vpop.f32.mrb[0].mxu0
        %v9630 = vadd.f32 0.0, %v9629
        %v9631 = vpop.f32.mrb[0].mxu0
        %9632 = vdwg.mxu0
        %v9657 = vunpack.c.l.b16 %v9259
        %v9658 = vunpack.c.l.b16 %v9260
        %v9659 = vunpack.c.l.b16 %v9261
        %v9660 = vunpack.c.l.b16 %v9262
        %v9661 = vunpack.c.l.b16 %v9263
        %v9662 = vunpack.c.l.b16 %v9264
        %v9663 = vunpack.c.l.b16 %v9265
        %v9664 = vunpack.c.l.b16 %v9266
        %v9665 = vunpack.c.l.b16 %v9267
        %v9666 = vunpack.c.l.b16 %v9268
        %v9667 = vunpack.c.l.b16 %v9269
        %v9668 = vunpack.c.l.b16 %v9270
        %v9669 = vunpack.c.l.b16 %v9271
        %v9670 = vunpack.c.l.b16 %v9272
        %v9671 = vunpack.c.l.b16 %v9273
        %v9672 = vunpack.c.l.b16 %v9274
        %v9673 = vunpack.c.l.b16 %v9275
        %v9674 = vunpack.c.l.b16 %v9276
        %v9675 = vunpack.c.l.b16 %v9277
        %v9676 = vunpack.c.l.b16 %v9278
        %v9677 = vunpack.c.l.b16 %v9279
        %v9678 = vunpack.c.l.b16 %v9280
        %v9679 = vunpack.c.l.b16 %v9281
        %v9680 = vunpack.c.l.b16 %v9282
        %v9681 = vpack.c.b16 %v9658, %v9657
        %v9682 = vpack.c.b16 %v9660, %v9659
        %v9683 = vpack.c.b16 %v9662, %v9661
        %v9684 = vpack.c.b16 %v9664, %v9663
        %v9685 = vpack.c.b16 %v9666, %v9665
        %v9686 = vpack.c.b16 %v9668, %v9667
        %v9687 = vpack.c.b16 %v9670, %v9669
        %v9688 = vpack.c.b16 %v9672, %v9671
        %v9689 = vpack.c.b16 %v9674, %v9673
        %v9690 = vpack.c.b16 %v9676, %v9675
        %v9691 = vpack.c.b16 %v9678, %v9677
        %v9692 = vpack.c.b16 %v9680, %v9679
        %v9706 = vsel %vm6254, %v9252, 0
        %v9709 = vsel %vm6254, %v9254, 0
        %v9712 = vsel %vm6254, %v9256, 0
        %v9715 = vsel %vm6254, %v9258, 0
        %9717 = vmatprep.subr.bf16.mxu0 0
        %9718 = vmatpush1.bf16.msra.mxu0 %v9681
        %9719 = vmatprep.subr.bf16.mxu0 0
        %9720 = vmatpush1.bf16.msra.mxu0 %v9682
        %9721 = vmatprep.subr.bf16.mxu0 0
        %9722 = vmatpush1.bf16.msra.mxu0 %v9683
        %9723 = vmatprep.subr.bf16.mxu0 0
        %9724 = vmatpush1.bf16.msra.mxu0 %v9684
        %9725 = vmatprep.subr.bf16.mxu0 0
        %9726 = vmatpush1.bf16.msra.mxu0 %v9685
        %9727 = vmatprep.subr.bf16.mxu0 0
        %9728 = vmatpush1.bf16.msra.mxu0 %v9686
        %9729 = vmatprep.subr.bf16.mxu0 0
        %9730 = vmatpush1.bf16.msra.mxu0 %v9687
        %9731 = vmatprep.subr.bf16.mxu0 0
        %9732 = vmatpush1.bf16.msra.mxu0 %v9688
        %9733 = vmatprep.subr.bf16.mxu0 0
        %9734 = vmatpush1.bf16.msra.mxu0 %v9689
        %9735 = vmatprep.subr.bf16.mxu0 0
        %9736 = vmatpush1.bf16.msra.mxu0 %v9690
        %9737 = vmatprep.subr.bf16.mxu0 0
        %9738 = vmatpush1.bf16.msra.mxu0 %v9691
        %9739 = vmatprep.subr.bf16.mxu0 0
        %9740 = vmatpush1.bf16.msra.mxu0 %v9692
        %9741 = vmatprep.subr.bf16.mxu0 0
        %9742 = vmatpush1.bf16.msra.mxu0 0
        %9743 = vmatprep.subr.bf16.mxu0 0
        %9744 = vmatpush1.bf16.msra.mxu0 0
        %9745 = vmatprep.subr.bf16.mxu0 0
        %9746 = vmatpush1.bf16.msra.mxu0 0
        %9747 = vmatprep.subr.bf16.mxu0 0
        %9748 = vmatpush1.bf16.msra.mxu0 0
        %9749 = vmatprep.mubr.bf16.mxu0 %v9706
        %9750 = vmatmul.mubr.bf16.gmra.mrb[0].mxu0 %v9251
        %v9751 = vpop.f32.mrb[0].mxu0
        %v9752 = vadd.f32 %v9603, %v9751
        %v9753 = vpop.f32.mrb[0].mxu0
        %v9754 = vpop.f32.mrb[0].mxu0
        %v9755 = vadd.f32 %v9606, %v9754
        %v9756 = vpop.f32.mrb[0].mxu0
        %9757 = vmatprep.mubr.bf16.mxu0 %v9709
        %9758 = vmatmul.mubr.bf16.gmra.mrb[0].mxu0 %v9253
        %v9759 = vpop.f32.mrb[0].mxu0
        %v9760 = vadd.f32 %v9611, %v9759
        %v9761 = vpop.f32.mrb[0].mxu0
        %v9762 = vpop.f32.mrb[0].mxu0
        %v9763 = vadd.f32 %v9614, %v9762
        %v9764 = vpop.f32.mrb[0].mxu0
        %9765 = vmatprep.mubr.bf16.mxu0 %v9712
        %9766 = vmatmul.mubr.bf16.gmra.mrb[0].mxu0 %v9255
        %v9767 = vpop.f32.mrb[0].mxu0
        %v9768 = vadd.f32 %v9619, %v9767
        %v9769 = vpop.f32.mrb[0].mxu0
        %v9770 = vpop.f32.mrb[0].mxu0
        %v9771 = vadd.f32 %v9622, %v9770
        %v9772 = vpop.f32.mrb[0].mxu0
        %9773 = vmatprep.mubr.bf16.mxu0 %v9715
        %9774 = vmatmul.mubr.bf16.gmra.mrb[0].mxu0 %v9257
        %v9775 = vpop.f32.mrb[0].mxu0
        %v9776 = vadd.f32 %v9627, %v9775
        %v9777 = vpop.f32.mrb[0].mxu0
        %v9778 = vpop.f32.mrb[0].mxu0
        %v9779 = vadd.f32 %v9630, %v9778
        %v9780 = vpop.f32.mrb[0].mxu0
        %9781 = vdwg.mxu0
        %s9782 = scalar_lea.vmem [#allocation3], 16
        %v9783 = vld [vmem:[%s9782] sm:$0xf]
        %v9784 = vld [vmem:[%s9782 + $0x8] sm:$0xf]
        %v9785 = vld [vmem:[%s9782 + $0x10] sm:$0xf]
        %v9786 = vld [vmem:[%s9782 + $0x18] sm:$0xf]
        %v9787 = vld [vmem:[%s9782 + $0x30] sm:$0xf]
        %v9788 = vld [vmem:[%s9782 + $0x38] sm:$0xf]
        %v9789 = vld [vmem:[%s9782 + $0x40] sm:$0xf]
        %v9790 = vld [vmem:[%s9782 + $0x48] sm:$0xf]
        %v9791 = vld [vmem:[%s9782 + $0x60] sm:$0xf]
        %v9792 = vld [vmem:[%s9782 + $0x68] sm:$0xf]
        %v9793 = vld [vmem:[%s9782 + $0x70] sm:$0xf]
        %v9794 = vld [vmem:[%s9782 + $0x78] sm:$0xf]
        %v9795 = vld [vmem:[%s9782 + $0x90] sm:$0xf]
        %v9796 = vld [vmem:[%s9782 + $0x98] sm:$0xf]
        %v9797 = vld [vmem:[%s9782 + $0xa0] sm:$0xf]
        %v9798 = vld [vmem:[%s9782 + $0xa8] sm:$0xf]
        %v9799 = vld [vmem:[%s9782 + $0x1] sm:$0xf]
        %v9800 = vld [vmem:[%s9782 + $0x9] sm:$0xf]
        %v9801 = vld [vmem:[%s9782 + $0x11] sm:$0xf]
        %v9802 = vld [vmem:[%s9782 + $0x19] sm:$0xf]
        %v9803 = vld [vmem:[%s9782 + $0x31] sm:$0xf]
        %v9804 = vld [vmem:[%s9782 + $0x39] sm:$0xf]
        %v9805 = vld [vmem:[%s9782 + $0x41] sm:$0xf]
        %v9806 = vld [vmem:[%s9782 + $0x49] sm:$0xf]
        %v9807 = vld [vmem:[%s9782 + $0x61] sm:$0xf]
        %v9808 = vld [vmem:[%s9782 + $0x69] sm:$0xf]
        %v9809 = vld [vmem:[%s9782 + $0x71] sm:$0xf]
        %v9810 = vld [vmem:[%s9782 + $0x79] sm:$0xf]
        %v9811 = vld [vmem:[%s9782 + $0x91] sm:$0xf]
        %v9812 = vld [vmem:[%s9782 + $0x99] sm:$0xf]
        %v9813 = vld [vmem:[%s9782 + $0xa1] sm:$0xf]
        %v9814 = vld [vmem:[%s9782 + $0xa9] sm:$0xf]
        %v9815 = vld [vmem:[%s9782 + $0x2] sm:$0xf]
        %v9816 = vld [vmem:[%s9782 + $0xa] sm:$0xf]
        %v9817 = vld [vmem:[%s9782 + $0x12] sm:$0xf]
        %v9818 = vld [vmem:[%s9782 + $0x1a] sm:$0xf]
        %v9819 = vld [vmem:[%s9782 + $0x32] sm:$0xf]
        %v9820 = vld [vmem:[%s9782 + $0x3a] sm:$0xf]
        %v9821 = vld [vmem:[%s9782 + $0x42] sm:$0xf]
        %v9822 = vld [vmem:[%s9782 + $0x4a] sm:$0xf]
        %v9823 = vld [vmem:[%s9782 + $0x62] sm:$0xf]
        %v9824 = vld [vmem:[%s9782 + $0x6a] sm:$0xf]
        %v9825 = vld [vmem:[%s9782 + $0x72] sm:$0xf]
        %v9826 = vld [vmem:[%s9782 + $0x7a] sm:$0xf]
        %v9827 = vld [vmem:[%s9782 + $0x92] sm:$0xf]
        %v9828 = vld [vmem:[%s9782 + $0x9a] sm:$0xf]
        %v9829 = vld [vmem:[%s9782 + $0xa2] sm:$0xf]
        %v9830 = vld [vmem:[%s9782 + $0xaa] sm:$0xf]
        %v9847 = vcombine.low %v9783, %v9784
        %v9848 = vcombine.low %v9785, %v9786
        %v9849 = vcombine.low %v9787, %v9788
        %v9850 = vcombine.low %v9789, %v9790
        %v9851 = vcombine.low %v9791, %v9792
        %v9852 = vcombine.low %v9793, %v9794
        %v9853 = vcombine.low %v9795, %v9796
        %v9854 = vcombine.low %v9797, %v9798
        %v9879 = vcombine.low %v9799, %v9800
        %v9880 = vcombine.low %v9801, %v9802
        %v9881 = vcombine.low %v9803, %v9804
        %v9882 = vcombine.low %v9805, %v9806
        %v9883 = vcombine.low %v9807, %v9808
        %v9884 = vcombine.low %v9809, %v9810
        %v9885 = vcombine.low %v9811, %v9812
        %v9886 = vcombine.low %v9813, %v9814
        %9887 = vrot.lane.b32.xlu0 %v9879, 64
        %v9888 = vpop.permute.xlu0 %9887
        %9889 = vrot.lane.b32.xlu0 %v9880, 64
        %v9890 = vpop.permute.xlu0 %9889
        %9891 = vrot.lane.b32.xlu0 %v9881, 64
        %v9892 = vpop.permute.xlu0 %9891
        %9893 = vrot.lane.b32.xlu0 %v9882, 64
        %v9894 = vpop.permute.xlu0 %9893
        %9895 = vrot.lane.b32.xlu0 %v9883, 64
        %v9896 = vpop.permute.xlu0 %9895
        %9897 = vrot.lane.b32.xlu0 %v9884, 64
        %v9898 = vpop.permute.xlu0 %9897
        %9899 = vrot.lane.b32.xlu0 %v9885, 64
        %v9900 = vpop.permute.xlu0 %9899
        %9901 = vrot.lane.b32.xlu0 %v9886, 64
        %v9902 = vpop.permute.xlu0 %9901
        %v9927 = vcombine.low %v9815, %v9816
        %v9928 = vcombine.low %v9817, %v9818
        %v9929 = vcombine.low %v9819, %v9820
        %v9930 = vcombine.low %v9821, %v9822
        %v9931 = vcombine.low %v9823, %v9824
        %v9932 = vcombine.low %v9825, %v9826
        %v9933 = vcombine.low %v9827, %v9828
        %v9934 = vcombine.low %v9829, %v9830
        %v9943 = vsel %vm6254, %v9847, %v9888
        %v9944 = vsel %vm6254, %v9848, %v9890
        %v9945 = vsel %vm6254, %v9849, %v9892
        %v9946 = vsel %vm6254, %v9850, %v9894
        %v9947 = vsel %vm6254, %v9851, %v9896
        %v9948 = vsel %vm6254, %v9852, %v9898
        %v9949 = vsel %vm6254, %v9853, %v9900
        %v9950 = vsel %vm6254, %v9854, %v9902
        %v9951 = vpack.c.bf16 %v9944, %v9943
        %v9952 = vpack.c.bf16 %v9928, %v9927
        %v9953 = vpack.c.bf16 %v9946, %v9945
        %v9954 = vpack.c.bf16 %v9930, %v9929
        %v9955 = vpack.c.bf16 %v9948, %v9947
        %v9956 = vpack.c.bf16 %v9932, %v9931
        %v9957 = vpack.c.bf16 %v9950, %v9949
        %v9958 = vpack.c.bf16 %v9934, %v9933
        %s9959 = scalar_lea.vmem %s5, 192
        %v9960 = vld [vmem:[%s9959] sm:$0xf]
        %v9961 = vld [vmem:[%s9959 + $0x4] sm:$0xf]
        %v9962 = vld [vmem:[%s9959 + $0x8] sm:$0xf]
        %v9963 = vld [vmem:[%s9959 + $0xc] sm:$0xf]
        %v9964 = vld [vmem:[%s9959 + $0x10] sm:$0xf]
        %v9965 = vld [vmem:[%s9959 + $0x14] sm:$0xf]
        %v9966 = vld [vmem:[%s9959 + $0x18] sm:$0xf]
        %v9967 = vld [vmem:[%s9959 + $0x1c] sm:$0xf]
        %v9968 = vld [vmem:[%s9959 + $0x20] sm:$0xf]
        %v9969 = vld [vmem:[%s9959 + $0x24] sm:$0xf]
        %v9970 = vld [vmem:[%s9959 + $0x28] sm:$0xf]
        %v9971 = vld [vmem:[%s9959 + $0x2c] sm:$0xf]
        %v9972 = vld [vmem:[%s9959 + $0x30] sm:$0xf]
        %v9973 = vld [vmem:[%s9959 + $0x34] sm:$0xf]
        %v9974 = vld [vmem:[%s9959 + $0x38] sm:$0xf]
        %v9975 = vld [vmem:[%s9959 + $0x3c] sm:$0xf]
        %v9976 = vld [vmem:[%s9959 + $0x40] sm:$0xf]
        %v9977 = vld [vmem:[%s9959 + $0x44] sm:$0xf]
        %v9978 = vld [vmem:[%s9959 + $0x48] sm:$0xf]
        %v9979 = vld [vmem:[%s9959 + $0x4c] sm:$0xf]
        %v9980 = vld [vmem:[%s9959 + $0x50] sm:$0xf]
        %v9981 = vld [vmem:[%s9959 + $0x54] sm:$0xf]
        %v9982 = vld [vmem:[%s9959 + $0x58] sm:$0xf]
        %v9983 = vld [vmem:[%s9959 + $0x5c] sm:$0xf]
        %v10008 = vunpack.c.l.b16 %v9960
        %v10009 = vunpack.c.l.b16 %v9961
        %v10010 = vunpack.c.l.b16 %v9962
        %v10011 = vunpack.c.l.b16 %v9963
        %v10012 = vunpack.c.l.b16 %v9964
        %v10013 = vunpack.c.l.b16 %v9965
        %v10014 = vunpack.c.l.b16 %v9966
        %v10015 = vunpack.c.l.b16 %v9967
        %v10016 = vunpack.c.l.b16 %v9968
        %v10017 = vunpack.c.l.b16 %v9969
        %v10018 = vunpack.c.l.b16 %v9970
        %v10019 = vunpack.c.l.b16 %v9971
        %v10020 = vunpack.c.l.b16 %v9972
        %v10021 = vunpack.c.l.b16 %v9973
        %v10022 = vunpack.c.l.b16 %v9974
        %v10023 = vunpack.c.l.b16 %v9975
        %v10024 = vunpack.c.l.b16 %v9976
        %v10025 = vunpack.c.l.b16 %v9977
        %v10026 = vunpack.c.l.b16 %v9978
        %v10027 = vunpack.c.l.b16 %v9979
        %v10028 = vunpack.c.l.b16 %v9980
        %v10029 = vunpack.c.l.b16 %v9981
        %v10030 = vunpack.c.l.b16 %v9982
        %v10031 = vunpack.c.l.b16 %v9983
        %v10032 = vpack.c.b16 %v10009, %v10008
        %v10033 = vpack.c.b16 %v10011, %v10010
        %v10034 = vpack.c.b16 %v10013, %v10012
        %v10035 = vpack.c.b16 %v10015, %v10014
        %v10036 = vpack.c.b16 %v10017, %v10016
        %v10037 = vpack.c.b16 %v10019, %v10018
        %v10038 = vpack.c.b16 %v10021, %v10020
        %v10039 = vpack.c.b16 %v10023, %v10022
        %v10040 = vpack.c.b16 %v10025, %v10024
        %v10041 = vpack.c.b16 %v10027, %v10026
        %v10042 = vpack.c.b16 %v10029, %v10028
        %v10043 = vpack.c.b16 %v10031, %v10030
        %v10057 = vsel %vm6254, %v9952, 0
        %v10060 = vsel %vm6254, %v9954, 0
        %v10063 = vsel %vm6254, %v9956, 0
        %v10066 = vsel %vm6254, %v9958, 0
        %10068 = vmatprep.subr.bf16.mxu0 0
        %10069 = vmatpush1.bf16.msra.mxu0 %v10032
        %10070 = vmatprep.subr.bf16.mxu0 0
        %10071 = vmatpush1.bf16.msra.mxu0 %v10033
        %10072 = vmatprep.subr.bf16.mxu0 0
        %10073 = vmatpush1.bf16.msra.mxu0 %v10034
        %10074 = vmatprep.subr.bf16.mxu0 0
        %10075 = vmatpush1.bf16.msra.mxu0 %v10035
        %10076 = vmatprep.subr.bf16.mxu0 0
        %10077 = vmatpush1.bf16.msra.mxu0 %v10036
        %10078 = vmatprep.subr.bf16.mxu0 0
        %10079 = vmatpush1.bf16.msra.mxu0 %v10037
        %10080 = vmatprep.subr.bf16.mxu0 0
        %10081 = vmatpush1.bf16.msra.mxu0 %v10038
        %10082 = vmatprep.subr.bf16.mxu0 0
        %10083 = vmatpush1.bf16.msra.mxu0 %v10039
        %10084 = vmatprep.subr.bf16.mxu0 0
        %10085 = vmatpush1.bf16.msra.mxu0 %v10040
        %10086 = vmatprep.subr.bf16.mxu0 0
        %10087 = vmatpush1.bf16.msra.mxu0 %v10041
        %10088 = vmatprep.subr.bf16.mxu0 0
        %10089 = vmatpush1.bf16.msra.mxu0 %v10042
        %10090 = vmatprep.subr.bf16.mxu0 0
        %10091 = vmatpush1.bf16.msra.mxu0 %v10043
        %10092 = vmatprep.subr.bf16.mxu0 0
        %10093 = vmatpush1.bf16.msra.mxu0 0
        %10094 = vmatprep.subr.bf16.mxu0 0
        %10095 = vmatpush1.bf16.msra.mxu0 0
        %10096 = vmatprep.subr.bf16.mxu0 0
        %10097 = vmatpush1.bf16.msra.mxu0 0
        %10098 = vmatprep.subr.bf16.mxu0 0
        %10099 = vmatpush1.bf16.msra.mxu0 0
        %10100 = vmatprep.mubr.bf16.mxu0 %v10057
        %10101 = vmatmul.mubr.bf16.gmra.mrb[0].mxu0 %v9951
        %v10102 = vpop.f32.mrb[0].mxu0
        %v10103 = vadd.f32 0.0, %v10102
        %v10104 = vpop.f32.mrb[0].mxu0
        %v10105 = vpop.f32.mrb[0].mxu0
        %v10106 = vadd.f32 0.0, %v10105
        %v10107 = vpop.f32.mrb[0].mxu0
        %10108 = vmatprep.mubr.bf16.mxu0 %v10060
        %10109 = vmatmul.mubr.bf16.gmra.mrb[0].mxu0 %v9953
        %v10110 = vpop.f32.mrb[0].mxu0
        %v10111 = vadd.f32 0.0, %v10110
        %v10112 = vpop.f32.mrb[0].mxu0
        %v10113 = vpop.f32.mrb[0].mxu0
        %v10114 = vadd.f32 0.0, %v10113
        %v10115 = vpop.f32.mrb[0].mxu0
        %10116 = vmatprep.mubr.bf16.mxu0 %v10063
        %10117 = vmatmul.mubr.bf16.gmra.mrb[0].mxu0 %v9955
        %v10118 = vpop.f32.mrb[0].mxu0
        %v10119 = vadd.f32 0.0, %v10118
        %v10120 = vpop.f32.mrb[0].mxu0
        %v10121 = vpop.f32.mrb[0].mxu0
        %v10122 = vadd.f32 0.0, %v10121
        %v10123 = vpop.f32.mrb[0].mxu0
        %10124 = vmatprep.mubr.bf16.mxu0 %v10066
        %10125 = vmatmul.mubr.bf16.gmra.mrb[0].mxu0 %v9957
        %v10126 = vpop.f32.mrb[0].mxu0
        %v10127 = vadd.f32 0.0, %v10126
        %v10128 = vpop.f32.mrb[0].mxu0
        %v10129 = vpop.f32.mrb[0].mxu0
        %v10130 = vadd.f32 0.0, %v10129
        %v10131 = vpop.f32.mrb[0].mxu0
        %10132 = vdwg.mxu0
        %v10133 = vadd.f32 %v9752, %v10103
        %v10134 = vadd.f32 %v9755, %v10106
        %v10135 = vadd.f32 %v9760, %v10111
        %v10136 = vadd.f32 %v9763, %v10114
        %v10137 = vadd.f32 %v9768, %v10119
        %v10138 = vadd.f32 %v9771, %v10122
        %v10139 = vadd.f32 %v9776, %v10127
        %v10140 = vadd.f32 %v9779, %v10130
        %v10141 = vld [vmem:[%s6] sm:$0x1]
        %v10143 = vlaneseq
        %v10144 = vshrl.u32 %v10143, 7
        %v10145 = vsub.s32 0, %v10144
        %v10146 = vrot.slane %v10141, %v10145
        %v10148 = vadd.f32 %v10133, %v10146
        %v10149 = vadd.f32 %v10134, %v10146
        %v10150 = vadd.f32 %v10135, %v10146
        %v10151 = vadd.f32 %v10136, %v10146
        %v10152 = vadd.f32 %v10137, %v10146
        %v10153 = vadd.f32 %v10138, %v10146
        %v10154 = vadd.f32 %v10139, %v10146
        %v10155 = vadd.f32 %v10140, %v10146
        %v10156 = vmax.f32 %v10148, 0.0
        %v10157 = vmax.f32 %v10149, 0.0
        %v10158 = vmax.f32 %v10150, 0.0
        %v10159 = vmax.f32 %v10151, 0.0
        %v10160 = vmax.f32 %v10152, 0.0
        %v10161 = vmax.f32 %v10153, 0.0
        %v10162 = vmax.f32 %v10154, 0.0
        %v10163 = vmax.f32 %v10155, 0.0
        %v10172 = vcombine.high %v10156, %v10156
        %v10173 = vcombine.high %v10157, %v10157
        %v10174 = vcombine.high %v10158, %v10158
        %v10175 = vcombine.high %v10159, %v10159
        %v10176 = vcombine.high %v10160, %v10160
        %v10177 = vcombine.high %v10161, %v10161
        %v10178 = vcombine.high %v10162, %v10162
        %v10179 = vcombine.high %v10163, %v10163
        %vm10188 = vcmask 1043456
        %v10189 = vsel %vm10188, %v10156, -inf
        %v10190 = vsel %vm10188, %v10172, -inf
        %v10191 = vmax.f32 %v10189, %v10190
        %v10192 = vsel %vm10188, %v10157, -inf
        %v10193 = vsel %vm10188, %v10173, -inf
        %v10194 = vmax.f32 %v10192, %v10193
        %v10195 = vsel %vm10188, %v10158, -inf
        %v10196 = vsel %vm10188, %v10174, -inf
        %v10197 = vmax.f32 %v10195, %v10196
        %v10198 = vsel %vm10188, %v10159, -inf
        %v10199 = vsel %vm10188, %v10175, -inf
        %v10200 = vmax.f32 %v10198, %v10199
        %v10201 = vsel %vm10188, %v10160, -inf
        %v10202 = vsel %vm10188, %v10176, -inf
        %v10203 = vmax.f32 %v10201, %v10202
        %v10204 = vsel %vm10188, %v10161, -inf
        %v10205 = vsel %vm10188, %v10177, -inf
        %v10206 = vmax.f32 %v10204, %v10205
        %v10207 = vsel %vm10188, %v10162, -inf
        %v10208 = vsel %vm10188, %v10178, -inf
        %v10209 = vmax.f32 %v10207, %v10208
        %v10210 = vsel %vm10188, %v10163, -inf
        %v10211 = vsel %vm10188, %v10179, -inf
        %v10212 = vmax.f32 %v10210, %v10211
        %v10222 = vunpack.c.l.s4 1983009808
        %v10223 = vunpack.c.0.s8 %v10222
        %v10224 = vlaneseq
        %v10225 = vshrl.u32 %v10224, 7
        %v10226 = vsub.s32 %v10223, %v10225
        %v10227 = vrot.slane %v10191, %v10226
        %v10228 = vcombine.high %v10227, %v10227
        %v10230 = vunpack.c.l.s4 1983009808
        %v10231 = vunpack.c.0.s8 %v10230
        %v10232 = vlaneseq
        %v10233 = vshrl.u32 %v10232, 7
        %v10234 = vsub.s32 %v10231, %v10233
        %v10235 = vrot.slane %v10194, %v10234
        %v10236 = vcombine.high %v10235, %v10235
        %v10238 = vunpack.c.l.s4 1983009808
        %v10239 = vunpack.c.0.s8 %v10238
        %v10240 = vlaneseq
        %v10241 = vshrl.u32 %v10240, 7
        %v10242 = vsub.s32 %v10239, %v10241
        %v10243 = vrot.slane %v10197, %v10242
        %v10244 = vcombine.high %v10243, %v10243
        %v10246 = vunpack.c.l.s4 1983009808
        %v10247 = vunpack.c.0.s8 %v10246
        %v10248 = vlaneseq
        %v10249 = vshrl.u32 %v10248, 7
        %v10250 = vsub.s32 %v10247, %v10249
        %v10251 = vrot.slane %v10200, %v10250
        %v10252 = vcombine.high %v10251, %v10251
        %v10254 = vunpack.c.l.s4 1983009808
        %v10255 = vunpack.c.0.s8 %v10254
        %v10256 = vlaneseq
        %v10257 = vshrl.u32 %v10256, 7
        %v10258 = vsub.s32 %v10255, %v10257
        %v10259 = vrot.slane %v10203, %v10258
        %v10260 = vcombine.high %v10259, %v10259
        %v10262 = vunpack.c.l.s4 1983009808
        %v10263 = vunpack.c.0.s8 %v10262
        %v10264 = vlaneseq
        %v10265 = vshrl.u32 %v10264, 7
        %v10266 = vsub.s32 %v10263, %v10265
        %v10267 = vrot.slane %v10206, %v10266
        %v10268 = vcombine.high %v10267, %v10267
        %v10270 = vunpack.c.l.s4 1983009808
        %v10271 = vunpack.c.0.s8 %v10270
        %v10272 = vlaneseq
        %v10273 = vshrl.u32 %v10272, 7
        %v10274 = vsub.s32 %v10271, %v10273
        %v10275 = vrot.slane %v10209, %v10274
        %v10276 = vcombine.high %v10275, %v10275
        %v10278 = vunpack.c.l.s4 1983009808
        %v10279 = vunpack.c.0.s8 %v10278
        %v10280 = vlaneseq
        %v10281 = vshrl.u32 %v10280, 7
        %v10282 = vsub.s32 %v10279, %v10281
        %v10283 = vrot.slane %v10212, %v10282
        %v10284 = vcombine.high %v10283, %v10283
        %vm10301 = vcmask 1041408
        %v10302 = vsel %vm10301, %v10227, -inf
        %v10303 = vrot.slane %v10302, 4
        %v10304 = vmax.f32 %v10302, %v10303
        %v10305 = vrot.slane %v10304, 2
        %v10306 = vmax.f32 %v10304, %v10305
        %v10307 = vrot.slane %v10306, 1
        %v10308 = vmax.f32 %v10306, %v10307
        %v10309 = vsel %vm10301, %v10228, -inf
        %v10310 = vrot.slane %v10309, 4
        %v10311 = vmax.f32 %v10309, %v10310
        %v10312 = vrot.slane %v10311, 2
        %v10313 = vmax.f32 %v10311, %v10312
        %v10314 = vrot.slane %v10313, 1
        %v10315 = vmax.f32 %v10313, %v10314
        %v10316 = vsel %vm10301, %v10235, -inf
        %v10317 = vrot.slane %v10316, 4
        %v10318 = vmax.f32 %v10316, %v10317
        %v10319 = vrot.slane %v10318, 2
        %v10320 = vmax.f32 %v10318, %v10319
        %v10321 = vrot.slane %v10320, 1
        %v10322 = vmax.f32 %v10320, %v10321
        %v10323 = vsel %vm10301, %v10236, -inf
        %v10324 = vrot.slane %v10323, 4
        %v10325 = vmax.f32 %v10323, %v10324
        %v10326 = vrot.slane %v10325, 2
        %v10327 = vmax.f32 %v10325, %v10326
        %v10328 = vrot.slane %v10327, 1
        %v10329 = vmax.f32 %v10327, %v10328
        %v10330 = vsel %vm10301, %v10243, -inf
        %v10331 = vrot.slane %v10330, 4
        %v10332 = vmax.f32 %v10330, %v10331
        %v10333 = vrot.slane %v10332, 2
        %v10334 = vmax.f32 %v10332, %v10333
        %v10335 = vrot.slane %v10334, 1
        %v10336 = vmax.f32 %v10334, %v10335
        %v10337 = vsel %vm10301, %v10244, -inf
        %v10338 = vrot.slane %v10337, 4
        %v10339 = vmax.f32 %v10337, %v10338
        %v10340 = vrot.slane %v10339, 2
        %v10341 = vmax.f32 %v10339, %v10340
        %v10342 = vrot.slane %v10341, 1
        %v10343 = vmax.f32 %v10341, %v10342
        %v10344 = vsel %vm10301, %v10251, -inf
        %v10345 = vrot.slane %v10344, 4
        %v10346 = vmax.f32 %v10344, %v10345
        %v10347 = vrot.slane %v10346, 2
        %v10348 = vmax.f32 %v10346, %v10347
        %v10349 = vrot.slane %v10348, 1
        %v10350 = vmax.f32 %v10348, %v10349
        %v10351 = vsel %vm10301, %v10252, -inf
        %v10352 = vrot.slane %v10351, 4
        %v10353 = vmax.f32 %v10351, %v10352
        %v10354 = vrot.slane %v10353, 2
        %v10355 = vmax.f32 %v10353, %v10354
        %v10356 = vrot.slane %v10355, 1
        %v10357 = vmax.f32 %v10355, %v10356
        %v10358 = vsel %vm10301, %v10259, -inf
        %v10359 = vrot.slane %v10358, 4
        %v10360 = vmax.f32 %v10358, %v10359
        %v10361 = vrot.slane %v10360, 2
        %v10362 = vmax.f32 %v10360, %v10361
        %v10363 = vrot.slane %v10362, 1
        %v10364 = vmax.f32 %v10362, %v10363
        %v10365 = vsel %vm10301, %v10260, -inf
        %v10366 = vrot.slane %v10365, 4
        %v10367 = vmax.f32 %v10365, %v10366
        %v10368 = vrot.slane %v10367, 2
        %v10369 = vmax.f32 %v10367, %v10368
        %v10370 = vrot.slane %v10369, 1
        %v10371 = vmax.f32 %v10369, %v10370
        %v10372 = vsel %vm10301, %v10267, -inf
        %v10373 = vrot.slane %v10372, 4
        %v10374 = vmax.f32 %v10372, %v10373
        %v10375 = vrot.slane %v10374, 2
        %v10376 = vmax.f32 %v10374, %v10375
        %v10377 = vrot.slane %v10376, 1
        %v10378 = vmax.f32 %v10376, %v10377
        %v10379 = vsel %vm10301, %v10268, -inf
        %v10380 = vrot.slane %v10379, 4
        %v10381 = vmax.f32 %v10379, %v10380
        %v10382 = vrot.slane %v10381, 2
        %v10383 = vmax.f32 %v10381, %v10382
        %v10384 = vrot.slane %v10383, 1
        %v10385 = vmax.f32 %v10383, %v10384
        %v10386 = vsel %vm10301, %v10275, -inf
        %v10387 = vrot.slane %v10386, 4
        %v10388 = vmax.f32 %v10386, %v10387
        %v10389 = vrot.slane %v10388, 2
        %v10390 = vmax.f32 %v10388, %v10389
        %v10391 = vrot.slane %v10390, 1
        %v10392 = vmax.f32 %v10390, %v10391
        %v10393 = vsel %vm10301, %v10276, -inf
        %v10394 = vrot.slane %v10393, 4
        %v10395 = vmax.f32 %v10393, %v10394
        %v10396 = vrot.slane %v10395, 2
        %v10397 = vmax.f32 %v10395, %v10396
        %v10398 = vrot.slane %v10397, 1
        %v10399 = vmax.f32 %v10397, %v10398
        %v10400 = vsel %vm10301, %v10283, -inf
        %v10401 = vrot.slane %v10400, 4
        %v10402 = vmax.f32 %v10400, %v10401
        %v10403 = vrot.slane %v10402, 2
        %v10404 = vmax.f32 %v10402, %v10403
        %v10405 = vrot.slane %v10404, 1
        %v10406 = vmax.f32 %v10404, %v10405
        %v10407 = vsel %vm10301, %v10284, -inf
        %v10408 = vrot.slane %v10407, 4
        %v10409 = vmax.f32 %v10407, %v10408
        %v10410 = vrot.slane %v10409, 2
        %v10411 = vmax.f32 %v10409, %v10410
        %v10412 = vrot.slane %v10411, 1
        %v10413 = vmax.f32 %v10411, %v10412
        %v10414 = vpack.c.bf16 %v10308, %v10308
        %v10415 = vpack.c.bf16 %v10315, %v10315
        %v10416 = vpack.c.bf16 %v10322, %v10322
        %v10417 = vpack.c.bf16 %v10329, %v10329
        %v10418 = vpack.c.bf16 %v10336, %v10336
        %v10419 = vpack.c.bf16 %v10343, %v10343
        %v10420 = vpack.c.bf16 %v10350, %v10350
        %v10421 = vpack.c.bf16 %v10357, %v10357
        %v10422 = vpack.c.bf16 %v10364, %v10364
        %v10423 = vpack.c.bf16 %v10371, %v10371
        %v10424 = vpack.c.bf16 %v10378, %v10378
        %v10425 = vpack.c.bf16 %v10385, %v10385
        %v10426 = vpack.c.bf16 %v10392, %v10392
        %v10427 = vpack.c.bf16 %v10399, %v10399
        %v10428 = vpack.c.bf16 %v10406, %v10406
        %v10429 = vpack.c.bf16 %v10413, %v10413
        %v10434 = vunpack.c.l.b16 %v10414
        %v10435 = vunpack.c.l.b16 %v10418
        %v10436 = vunpack.c.l.b16 %v10422
        %v10437 = vunpack.c.l.b16 %v10426
        %v10438 = vsel %vm5492, %v10435, %v10434
        %v10439 = vsel %vm5494, %v10436, %v10438
        %v10440 = vsel %vm5496, %v10437, %v10439
        %v10441 = vpack.c.b16 %v10440, %v10440
        %v10447 = vunpack.c.l.b16 %v10415
        %v10448 = vunpack.c.l.b16 %v10419
        %v10449 = vunpack.c.l.b16 %v10423
        %v10450 = vunpack.c.l.b16 %v10427
        %v10451 = vsel %vm5492, %v10448, %v10447
        %v10452 = vsel %vm5494, %v10449, %v10451
        %v10453 = vsel %vm5496, %v10450, %v10452
        %v10454 = vpack.c.b16 %v10453, %v10453
        %v10460 = vunpack.c.l.b16 %v10416
        %v10461 = vunpack.c.l.b16 %v10420
        %v10462 = vunpack.c.l.b16 %v10424
        %v10463 = vunpack.c.l.b16 %v10428
        %v10464 = vsel %vm5492, %v10461, %v10460
        %v10465 = vsel %vm5494, %v10462, %v10464
        %v10466 = vsel %vm5496, %v10463, %v10465
        %v10467 = vpack.c.b16 %v10466, %v10466
        %v10473 = vunpack.c.l.b16 %v10417
        %v10474 = vunpack.c.l.b16 %v10421
        %v10475 = vunpack.c.l.b16 %v10425
        %v10476 = vunpack.c.l.b16 %v10429
        %v10477 = vsel %vm5492, %v10474, %v10473
        %v10478 = vsel %vm5494, %v10475, %v10477
        %v10479 = vsel %vm5496, %v10476, %v10478
        %v10480 = vpack.c.b16 %v10479, %v10479
        %v10482 = vld [vmem:[%s7] sm:$0xf]
        %v10483 = vld [vmem:[%s7 + $0x4] sm:$0xf]
        %v10484 = vld [vmem:[%s7 + $0x8] sm:$0xf]
        %v10485 = vld [vmem:[%s7 + $0xc] sm:$0xf]
        %v10486 = vld [vmem:[%s7 + $0x10] sm:$0xf]
        %v10487 = vld [vmem:[%s7 + $0x14] sm:$0xf]
        %v10488 = vld [vmem:[%s7 + $0x18] sm:$0xf]
        %v10489 = vld [vmem:[%s7 + $0x1c] sm:$0xf]
        %v10490 = vld [vmem:[%s7 + $0x20] sm:$0xf]
        %v10491 = vld [vmem:[%s7 + $0x24] sm:$0xf]
        %v10492 = vld [vmem:[%s7 + $0x28] sm:$0xf]
        %v10493 = vld [vmem:[%s7 + $0x2c] sm:$0xf]
        %v10494 = vld [vmem:[%s7 + $0x30] sm:$0xf]
        %v10495 = vld [vmem:[%s7 + $0x34] sm:$0xf]
        %v10496 = vld [vmem:[%s7 + $0x38] sm:$0xf]
        %v10497 = vld [vmem:[%s7 + $0x3c] sm:$0xf]
        %v10498 = vld [vmem:[%s7 + $0x40] sm:$0xf]
        %v10499 = vld [vmem:[%s7 + $0x44] sm:$0xf]
        %v10500 = vld [vmem:[%s7 + $0x48] sm:$0xf]
        %v10501 = vld [vmem:[%s7 + $0x4c] sm:$0xf]
        %v10502 = vld [vmem:[%s7 + $0x50] sm:$0xf]
        %v10503 = vld [vmem:[%s7 + $0x54] sm:$0xf]
        %v10504 = vld [vmem:[%s7 + $0x58] sm:$0xf]
        %v10505 = vld [vmem:[%s7 + $0x5c] sm:$0xf]
        %v10506 = vld [vmem:[%s7 + $0x60] sm:$0xf]
        %v10507 = vld [vmem:[%s7 + $0x64] sm:$0xf]
        %v10508 = vld [vmem:[%s7 + $0x68] sm:$0xf]
        %v10509 = vld [vmem:[%s7 + $0x6c] sm:$0xf]
        %v10510 = vld [vmem:[%s7 + $0x70] sm:$0xf]
        %v10511 = vld [vmem:[%s7 + $0x74] sm:$0xf]
        %v10512 = vld [vmem:[%s7 + $0x78] sm:$0xf]
        %v10513 = vld [vmem:[%s7 + $0x7c] sm:$0xf]
        %v10514 = vld [vmem:[%s7 + $0x80] sm:$0xf]
        %v10515 = vld [vmem:[%s7 + $0x84] sm:$0xf]
        %v10516 = vld [vmem:[%s7 + $0x88] sm:$0xf]
        %v10517 = vld [vmem:[%s7 + $0x8c] sm:$0xf]
        %v10518 = vld [vmem:[%s7 + $0x90] sm:$0xf]
        %v10519 = vld [vmem:[%s7 + $0x94] sm:$0xf]
        %v10520 = vld [vmem:[%s7 + $0x98] sm:$0xf]
        %v10521 = vld [vmem:[%s7 + $0x9c] sm:$0xf]
        %v10522 = vld [vmem:[%s7 + $0xa0] sm:$0xf]
        %v10523 = vld [vmem:[%s7 + $0xa4] sm:$0xf]
        %v10524 = vld [vmem:[%s7 + $0xa8] sm:$0xf]
        %v10525 = vld [vmem:[%s7 + $0xac] sm:$0xf]
        %v10526 = vld [vmem:[%s7 + $0xb0] sm:$0xf]
        %v10527 = vld [vmem:[%s7 + $0xb4] sm:$0xf]
        %v10528 = vld [vmem:[%s7 + $0xb8] sm:$0xf]
        %v10529 = vld [vmem:[%s7 + $0xbc] sm:$0xf]
        %v10530 = vld [vmem:[%s7 + $0xc0] sm:$0xf]
        %v10531 = vld [vmem:[%s7 + $0xc4] sm:$0xf]
        %v10532 = vld [vmem:[%s7 + $0xc8] sm:$0xf]
        %v10533 = vld [vmem:[%s7 + $0xcc] sm:$0xf]
        %v10534 = vld [vmem:[%s7 + $0xd0] sm:$0xf]
        %v10535 = vld [vmem:[%s7 + $0xd4] sm:$0xf]
        %v10536 = vld [vmem:[%s7 + $0xd8] sm:$0xf]
        %v10537 = vld [vmem:[%s7 + $0xdc] sm:$0xf]
        %v10538 = vld [vmem:[%s7 + $0xe0] sm:$0xf]
        %v10539 = vld [vmem:[%s7 + $0xe4] sm:$0xf]
        %v10540 = vld [vmem:[%s7 + $0xe8] sm:$0xf]
        %v10541 = vld [vmem:[%s7 + $0xec] sm:$0xf]
        %v10542 = vld [vmem:[%s7 + $0xf0] sm:$0xf]
        %v10543 = vld [vmem:[%s7 + $0xf4] sm:$0xf]
        %v10544 = vld [vmem:[%s7 + $0xf8] sm:$0xf]
        %v10545 = vld [vmem:[%s7 + $0xfc] sm:$0xf]
        %v10546 = vld [vmem:[%s8] sm:$0x1]
        %v10548 = vlaneseq
        %v10549 = vshrl.u32 %v10548, 7
        %v10550 = vsub.s32 0, %v10549
        %v10551 = vrot.slane %v10546, %v10550
        %v10617 = vunpack.c.l.b16 %v10482
        %v10618 = vunpack.c.l.b16 %v10483
        %v10619 = vunpack.c.l.b16 %v10484
        %v10620 = vunpack.c.l.b16 %v10485
        %v10621 = vunpack.c.l.b16 %v10486
        %v10622 = vunpack.c.l.b16 %v10487
        %v10623 = vunpack.c.l.b16 %v10488
        %v10624 = vunpack.c.l.b16 %v10489
        %v10625 = vunpack.c.l.b16 %v10490
        %v10626 = vunpack.c.l.b16 %v10491
        %v10627 = vunpack.c.l.b16 %v10492
        %v10628 = vunpack.c.l.b16 %v10493
        %v10629 = vunpack.c.l.b16 %v10494
        %v10630 = vunpack.c.l.b16 %v10495
        %v10631 = vunpack.c.l.b16 %v10496
        %v10632 = vunpack.c.l.b16 %v10497
        %v10633 = vunpack.c.l.b16 %v10498
        %v10634 = vunpack.c.l.b16 %v10499
        %v10635 = vunpack.c.l.b16 %v10500
        %v10636 = vunpack.c.l.b16 %v10501
        %v10637 = vunpack.c.l.b16 %v10502
        %v10638 = vunpack.c.l.b16 %v10503
        %v10639 = vunpack.c.l.b16 %v10504
        %v10640 = vunpack.c.l.b16 %v10505
        %v10641 = vunpack.c.l.b16 %v10506
        %v10642 = vunpack.c.l.b16 %v10507
        %v10643 = vunpack.c.l.b16 %v10508
        %v10644 = vunpack.c.l.b16 %v10509
        %v10645 = vunpack.c.l.b16 %v10510
        %v10646 = vunpack.c.l.b16 %v10511
        %v10647 = vunpack.c.l.b16 %v10512
        %v10648 = vunpack.c.l.b16 %v10513
        %v10649 = vunpack.c.l.b16 %v10514
        %v10650 = vunpack.c.l.b16 %v10515
        %v10651 = vunpack.c.l.b16 %v10516
        %v10652 = vunpack.c.l.b16 %v10517
        %v10653 = vunpack.c.l.b16 %v10518
        %v10654 = vunpack.c.l.b16 %v10519
        %v10655 = vunpack.c.l.b16 %v10520
        %v10656 = vunpack.c.l.b16 %v10521
        %v10657 = vunpack.c.l.b16 %v10522
        %v10658 = vunpack.c.l.b16 %v10523
        %v10659 = vunpack.c.l.b16 %v10524
        %v10660 = vunpack.c.l.b16 %v10525
        %v10661 = vunpack.c.l.b16 %v10526
        %v10662 = vunpack.c.l.b16 %v10527
        %v10663 = vunpack.c.l.b16 %v10528
        %v10664 = vunpack.c.l.b16 %v10529
        %v10665 = vunpack.c.l.b16 %v10530
        %v10666 = vunpack.c.l.b16 %v10531
        %v10667 = vunpack.c.l.b16 %v10532
        %v10668 = vunpack.c.l.b16 %v10533
        %v10669 = vunpack.c.l.b16 %v10534
        %v10670 = vunpack.c.l.b16 %v10535
        %v10671 = vunpack.c.l.b16 %v10536
        %v10672 = vunpack.c.l.b16 %v10537
        %v10673 = vunpack.c.l.b16 %v10538
        %v10674 = vunpack.c.l.b16 %v10539
        %v10675 = vunpack.c.l.b16 %v10540
        %v10676 = vunpack.c.l.b16 %v10541
        %v10677 = vunpack.c.l.b16 %v10542
        %v10678 = vunpack.c.l.b16 %v10543
        %v10679 = vunpack.c.l.b16 %v10544
        %v10680 = vunpack.c.l.b16 %v10545
        %v10681 = vpack.c.b16 %v10618, %v10617
        %v10682 = vpack.c.b16 %v10620, %v10619
        %v10683 = vpack.c.b16 %v10622, %v10621
        %v10684 = vpack.c.b16 %v10624, %v10623
        %v10685 = vpack.c.b16 %v10626, %v10625
        %v10686 = vpack.c.b16 %v10628, %v10627
        %v10687 = vpack.c.b16 %v10630, %v10629
        %v10688 = vpack.c.b16 %v10632, %v10631
        %v10689 = vpack.c.b16 %v10634, %v10633
        %v10690 = vpack.c.b16 %v10636, %v10635
        %v10691 = vpack.c.b16 %v10638, %v10637
        %v10692 = vpack.c.b16 %v10640, %v10639
        %v10693 = vpack.c.b16 %v10642, %v10641
        %v10694 = vpack.c.b16 %v10644, %v10643
        %v10695 = vpack.c.b16 %v10646, %v10645
        %v10696 = vpack.c.b16 %v10648, %v10647
        %v10697 = vpack.c.b16 %v10650, %v10649
        %v10698 = vpack.c.b16 %v10652, %v10651
        %v10699 = vpack.c.b16 %v10654, %v10653
        %v10700 = vpack.c.b16 %v10656, %v10655
        %v10701 = vpack.c.b16 %v10658, %v10657
        %v10702 = vpack.c.b16 %v10660, %v10659
        %v10703 = vpack.c.b16 %v10662, %v10661
        %v10704 = vpack.c.b16 %v10664, %v10663
        %v10705 = vpack.c.b16 %v10666, %v10665
        %v10706 = vpack.c.b16 %v10668, %v10667
        %v10707 = vpack.c.b16 %v10670, %v10669
        %v10708 = vpack.c.b16 %v10672, %v10671
        %v10709 = vpack.c.b16 %v10674, %v10673
        %v10710 = vpack.c.b16 %v10676, %v10675
        %v10711 = vpack.c.b16 %v10678, %v10677
        %v10712 = vpack.c.b16 %v10680, %v10679
        %10745 = vmatprep.subr.bf16.mxu0 0
        %10746 = vmatpush1.bf16.msra.mxu0 %v10681
        %10747 = vmatprep.subr.bf16.mxu0 0
        %10748 = vmatpush1.bf16.msra.mxu0 %v10682
        %10749 = vmatprep.subr.bf16.mxu0 0
        %10750 = vmatpush1.bf16.msra.mxu0 %v10683
        %10751 = vmatprep.subr.bf16.mxu0 0
        %10752 = vmatpush1.bf16.msra.mxu0 %v10684
        %10753 = vmatprep.subr.bf16.mxu0 0
        %10754 = vmatpush1.bf16.msra.mxu0 %v10685
        %10755 = vmatprep.subr.bf16.mxu0 0
        %10756 = vmatpush1.bf16.msra.mxu0 %v10686
        %10757 = vmatprep.subr.bf16.mxu0 0
        %10758 = vmatpush1.bf16.msra.mxu0 %v10687
        %10759 = vmatprep.subr.bf16.mxu0 0
        %10760 = vmatpush1.bf16.msra.mxu0 %v10688
        %10761 = vmatprep.subr.bf16.mxu0 0
        %10762 = vmatpush1.bf16.msra.mxu0 %v10689
        %10763 = vmatprep.subr.bf16.mxu0 0
        %10764 = vmatpush1.bf16.msra.mxu0 %v10690
        %10765 = vmatprep.subr.bf16.mxu0 0
        %10766 = vmatpush1.bf16.msra.mxu0 %v10691
        %10767 = vmatprep.subr.bf16.mxu0 0
        %10768 = vmatpush1.bf16.msra.mxu0 %v10692
        %10769 = vmatprep.subr.bf16.mxu0 0
        %10770 = vmatpush1.bf16.msra.mxu0 %v10693
        %10771 = vmatprep.subr.bf16.mxu0 0
        %10772 = vmatpush1.bf16.msra.mxu0 %v10694
        %10773 = vmatprep.subr.bf16.mxu0 0
        %10774 = vmatpush1.bf16.msra.mxu0 %v10695
        %10775 = vmatprep.subr.bf16.mxu0 0
        %10776 = vmatpush1.bf16.msra.mxu0 %v10696
        %10777 = vmatprep.mubr.bf16.mxu0 %v10454
        %10778 = vmatmul.mubr.bf16.gmra.mrb[0].mxu0 %v10441
        %v10779 = vpop.f32.mrb[0].mxu0
        %v10780 = vadd.f32 %v10551, %v10779
        %v10781 = vpop.f32.mrb[0].mxu0
        %v10782 = vpop.f32.mrb[0].mxu0
        %v10783 = vpop.f32.mrb[0].mxu0
        %10784 = vdwg.mxu0
        %10785 = vmatprep.subr.bf16.mxu0 0
        %10786 = vmatpush1.bf16.msra.mxu0 %v10697
        %10787 = vmatprep.subr.bf16.mxu0 0
        %10788 = vmatpush1.bf16.msra.mxu0 %v10698
        %10789 = vmatprep.subr.bf16.mxu0 0
        %10790 = vmatpush1.bf16.msra.mxu0 %v10699
        %10791 = vmatprep.subr.bf16.mxu0 0
        %10792 = vmatpush1.bf16.msra.mxu0 %v10700
        %10793 = vmatprep.subr.bf16.mxu0 0
        %10794 = vmatpush1.bf16.msra.mxu0 %v10701
        %10795 = vmatprep.subr.bf16.mxu0 0
        %10796 = vmatpush1.bf16.msra.mxu0 %v10702
        %10797 = vmatprep.subr.bf16.mxu0 0
        %10798 = vmatpush1.bf16.msra.mxu0 %v10703
        %10799 = vmatprep.subr.bf16.mxu0 0
        %10800 = vmatpush1.bf16.msra.mxu0 %v10704
        %10801 = vmatprep.subr.bf16.mxu0 0
        %10802 = vmatpush1.bf16.msra.mxu0 %v10705
        %10803 = vmatprep.subr.bf16.mxu0 0
        %10804 = vmatpush1.bf16.msra.mxu0 %v10706
        %10805 = vmatprep.subr.bf16.mxu0 0
        %10806 = vmatpush1.bf16.msra.mxu0 %v10707
        %10807 = vmatprep.subr.bf16.mxu0 0
        %10808 = vmatpush1.bf16.msra.mxu0 %v10708
        %10809 = vmatprep.subr.bf16.mxu0 0
        %10810 = vmatpush1.bf16.msra.mxu0 %v10709
        %10811 = vmatprep.subr.bf16.mxu0 0
        %10812 = vmatpush1.bf16.msra.mxu0 %v10710
        %10813 = vmatprep.subr.bf16.mxu0 0
        %10814 = vmatpush1.bf16.msra.mxu0 %v10711
        %10815 = vmatprep.subr.bf16.mxu0 0
        %10816 = vmatpush1.bf16.msra.mxu0 %v10712
        %10817 = vmatprep.mubr.bf16.mxu0 %v10480
        %10818 = vmatmul.mubr.bf16.gmra.mrb[0].mxu0 %v10467
        %v10819 = vpop.f32.mrb[0].mxu0
        %v10820 = vadd.f32 %v10780, %v10819
        %v10821 = vpop.f32.mrb[0].mxu0
        %v10822 = vpop.f32.mrb[0].mxu0
        %v10823 = vpop.f32.mrb[0].mxu0
        %10824 = vdwg.mxu0
        %v10825 = vmax.f32 %v10820, 0.0
        %v10826 = vpack.c.bf16 %v10825, %v10825
        %v10827 = vld [vmem:[%s9] sm:$0xf]
        %v10828 = vld [vmem:[%s9 + $0x4] sm:$0xf]
        %v10829 = vld [vmem:[%s9 + $0x8] sm:$0xf]
        %v10830 = vld [vmem:[%s9 + $0xc] sm:$0xf]
        %v10831 = vld [vmem:[%s9 + $0x10] sm:$0xf]
        %v10832 = vld [vmem:[%s9 + $0x14] sm:$0xf]
        %v10833 = vld [vmem:[%s9 + $0x18] sm:$0xf]
        %v10834 = vld [vmem:[%s9 + $0x1c] sm:$0xf]
        %v10835 = vld [vmem:[%s9 + $0x20] sm:$0xf]
        %v10836 = vld [vmem:[%s9 + $0x24] sm:$0xf]
        %v10837 = vld [vmem:[%s9 + $0x28] sm:$0xf]
        %v10838 = vld [vmem:[%s9 + $0x2c] sm:$0xf]
        %v10839 = vld [vmem:[%s9 + $0x30] sm:$0xf]
        %v10840 = vld [vmem:[%s9 + $0x34] sm:$0xf]
        %v10841 = vld [vmem:[%s9 + $0x38] sm:$0xf]
        %v10842 = vld [vmem:[%s9 + $0x3c] sm:$0xf]
        %v10843 = vld [vmem:[%s10] sm:$0x1]
        %v10845 = vlaneseq
        %v10846 = vshrl.u32 %v10845, 7
        %v10847 = vsub.s32 0, %v10846
        %v10848 = vrot.slane %v10843, %v10847
        %v10866 = vunpack.c.l.b16 %v10827
        %v10867 = vunpack.c.l.b16 %v10828
        %v10868 = vunpack.c.l.b16 %v10829
        %v10869 = vunpack.c.l.b16 %v10830
        %v10870 = vunpack.c.l.b16 %v10831
        %v10871 = vunpack.c.l.b16 %v10832
        %v10872 = vunpack.c.l.b16 %v10833
        %v10873 = vunpack.c.l.b16 %v10834
        %v10874 = vunpack.c.l.b16 %v10835
        %v10875 = vunpack.c.l.b16 %v10836
        %v10876 = vunpack.c.l.b16 %v10837
        %v10877 = vunpack.c.l.b16 %v10838
        %v10878 = vunpack.c.l.b16 %v10839
        %v10879 = vunpack.c.l.b16 %v10840
        %v10880 = vunpack.c.l.b16 %v10841
        %v10881 = vunpack.c.l.b16 %v10842
        %v10882 = vpack.c.b16 %v10867, %v10866
        %v10883 = vpack.c.b16 %v10869, %v10868
        %v10884 = vpack.c.b16 %v10871, %v10870
        %v10885 = vpack.c.b16 %v10873, %v10872
        %v10886 = vpack.c.b16 %v10875, %v10874
        %v10887 = vpack.c.b16 %v10877, %v10876
        %v10888 = vpack.c.b16 %v10879, %v10878
        %v10889 = vpack.c.b16 %v10881, %v10880
        %10898 = vmatprep.subr.bf16.mxu0 0
        %10899 = vmatpush1.bf16.msra.mxu0 %v10882
        %10900 = vmatprep.subr.bf16.mxu0 0
        %10901 = vmatpush1.bf16.msra.mxu0 %v10883
        %10902 = vmatprep.subr.bf16.mxu0 0
        %10903 = vmatpush1.bf16.msra.mxu0 %v10884
        %10904 = vmatprep.subr.bf16.mxu0 0
        %10905 = vmatpush1.bf16.msra.mxu0 %v10885
        %10906 = vmatprep.subr.bf16.mxu0 0
        %10907 = vmatpush1.bf16.msra.mxu0 %v10886
        %10908 = vmatprep.subr.bf16.mxu0 0
        %10909 = vmatpush1.bf16.msra.mxu0 %v10887
        %10910 = vmatprep.subr.bf16.mxu0 0
        %10911 = vmatpush1.bf16.msra.mxu0 %v10888
        %10912 = vmatprep.subr.bf16.mxu0 0
        %10913 = vmatpush1.bf16.msra.mxu0 %v10889
        %10914 = vmatprep.subr.bf16.mxu0 0
        %10915 = vmatpush1.bf16.msra.mxu0 0
        %10916 = vmatprep.subr.bf16.mxu0 0
        %10917 = vmatpush1.bf16.msra.mxu0 0
        %10918 = vmatprep.subr.bf16.mxu0 0
        %10919 = vmatpush1.bf16.msra.mxu0 0
        %10920 = vmatprep.subr.bf16.mxu0 0
        %10921 = vmatpush1.bf16.msra.mxu0 0
        %10922 = vmatprep.subr.bf16.mxu0 0
        %10923 = vmatpush1.bf16.msra.mxu0 0
        %10924 = vmatprep.subr.bf16.mxu0 0
        %10925 = vmatpush1.bf16.msra.mxu0 0
        %10926 = vmatprep.subr.bf16.mxu0 0
        %10927 = vmatpush1.bf16.msra.mxu0 0
        %10928 = vmatprep.subr.bf16.mxu0 0
        %10929 = vmatpush1.bf16.msra.mxu0 0
        %10930 = vmatprep.mubr.bf16.mxu0 0
        %10931 = vmatmul.mubr.bf16.gmra.mrb[0].mxu0 %v10826
        %v10932 = vpop.f32.mrb[0].mxu0
        %v10933 = vadd.f32 %v10848, %v10932
        %v10934 = vpop.f32.mrb[0].mxu0
        %v10935 = vpop.f32.mrb[0].mxu0
        %v10936 = vpop.f32.mrb[0].mxu0
        %10937 = vdwg.mxu0
        %v10938 = vmax.f32 %v10933, 0.0
        %v10939 = vpack.c.bf16 %v10938, %v10938
        %v10940 = vld [vmem:[%s11] sm:$0xf]
        %v10941 = vld [vmem:[%s11 + $0x4] sm:$0xf]
        %v10942 = vld [vmem:[%s11 + $0x8] sm:$0xf]
        %v10943 = vld [vmem:[%s11 + $0xc] sm:$0xf]
        %v10944 = vld [vmem:[%s11 + $0x10] sm:$0xf]
        %v10945 = vld [vmem:[%s11 + $0x14] sm:$0xf]
        %v10946 = vld [vmem:[%s11 + $0x18] sm:$0xf]
        %v10947 = vld [vmem:[%s11 + $0x1c] sm:$0xf]
        %v10948 = vld [vmem:[%s11 + $0x20] sm:$0xf]
        %v10949 = vld [vmem:[%s11 + $0x24] sm:$0xf]
        %v10950 = vld [vmem:[%s11 + $0x28] sm:$0xf]
        %v10951 = vld [vmem:[%s11 + $0x2c] sm:$0xf]
        %v10952 = vld [vmem:[%s11 + $0x30] sm:$0xf]
        %v10953 = vld [vmem:[%s11 + $0x34] sm:$0xf]
        %v10954 = vld [vmem:[%s11 + $0x38] sm:$0xf]
        %v10955 = vld [vmem:[%s11 + $0x3c] sm:$0xf]
        %v10956 = vld [vmem:[%s12] sm:$0x1]
        %v10958 = vlaneseq
        %v10959 = vshrl.u32 %v10958, 7
        %v10960 = vsub.s32 0, %v10959
        %v10961 = vrot.slane %v10956, %v10960
        %v10979 = vunpack.c.l.b16 %v10940
        %v10980 = vunpack.c.l.b16 %v10941
        %v10981 = vunpack.c.l.b16 %v10942
        %v10982 = vunpack.c.l.b16 %v10943
        %v10983 = vunpack.c.l.b16 %v10944
        %v10984 = vunpack.c.l.b16 %v10945
        %v10985 = vunpack.c.l.b16 %v10946
        %v10986 = vunpack.c.l.b16 %v10947
        %v10987 = vunpack.c.l.b16 %v10948
        %v10988 = vunpack.c.l.b16 %v10949
        %v10989 = vunpack.c.l.b16 %v10950
        %v10990 = vunpack.c.l.b16 %v10951
        %v10991 = vunpack.c.l.b16 %v10952
        %v10992 = vunpack.c.l.b16 %v10953
        %v10993 = vunpack.c.l.b16 %v10954
        %v10994 = vunpack.c.l.b16 %v10955
        %v10995 = vpack.c.b16 %v10980, %v10979
        %v10996 = vpack.c.b16 %v10982, %v10981
        %v10997 = vpack.c.b16 %v10984, %v10983
        %v10998 = vpack.c.b16 %v10986, %v10985
        %v10999 = vpack.c.b16 %v10988, %v10987
        %v11000 = vpack.c.b16 %v10990, %v10989
        %v11001 = vpack.c.b16 %v10992, %v10991
        %v11002 = vpack.c.b16 %v10994, %v10993
        %11011 = vmatprep.subr.bf16.mxu0 0
        %11012 = vmatpush1.bf16.msra.mxu0 %v10995
        %11013 = vmatprep.subr.bf16.mxu0 0
        %11014 = vmatpush1.bf16.msra.mxu0 %v10996
        %11015 = vmatprep.subr.bf16.mxu0 0
        %11016 = vmatpush1.bf16.msra.mxu0 %v10997
        %11017 = vmatprep.subr.bf16.mxu0 0
        %11018 = vmatpush1.bf16.msra.mxu0 %v10998
        %11019 = vmatprep.subr.bf16.mxu0 0
        %11020 = vmatpush1.bf16.msra.mxu0 %v10999
        %11021 = vmatprep.subr.bf16.mxu0 0
        %11022 = vmatpush1.bf16.msra.mxu0 %v11000
        %11023 = vmatprep.subr.bf16.mxu0 0
        %11024 = vmatpush1.bf16.msra.mxu0 %v11001
        %11025 = vmatprep.subr.bf16.mxu0 0
        %11026 = vmatpush1.bf16.msra.mxu0 %v11002
        %11027 = vmatprep.subr.bf16.mxu0 0
        %11028 = vmatpush1.bf16.msra.mxu0 0
        %11029 = vmatprep.subr.bf16.mxu0 0
        %11030 = vmatpush1.bf16.msra.mxu0 0
        %11031 = vmatprep.subr.bf16.mxu0 0
        %11032 = vmatpush1.bf16.msra.mxu0 0
        %11033 = vmatprep.subr.bf16.mxu0 0
        %11034 = vmatpush1.bf16.msra.mxu0 0
        %11035 = vmatprep.subr.bf16.mxu0 0
        %11036 = vmatpush1.bf16.msra.mxu0 0
        %11037 = vmatprep.subr.bf16.mxu0 0
        %11038 = vmatpush1.bf16.msra.mxu0 0
        %11039 = vmatprep.subr.bf16.mxu0 0
        %11040 = vmatpush1.bf16.msra.mxu0 0
        %11041 = vmatprep.subr.bf16.mxu0 0
        %11042 = vmatpush1.bf16.msra.mxu0 0
        %11043 = vmatprep.mubr.bf16.mxu0 0
        %11044 = vmatmul.mubr.bf16.gmra.mrb[0].mxu0 %v10939
        %v11045 = vpop.f32.mrb[0].mxu0
        %v11046 = vadd.f32 %v10961, %v11045
        %v11047 = vpop.f32.mrb[0].mxu0
        %v11048 = vpop.f32.mrb[0].mxu0
        %v11049 = vpop.f32.mrb[0].mxu0
        %11050 = vdwg.mxu0
        %v11051 = vmax.f32 %v11046, 0.0
        %v11052 = vpack.c.bf16 %v11051, %v11051
        %v11053 = vld [vmem:[%s13] sm:$0xf]
        %v11054 = vld [vmem:[%s13 + $0x4] sm:$0xf]
        %v11055 = vld [vmem:[%s13 + $0x8] sm:$0xf]
        %v11056 = vld [vmem:[%s13 + $0xc] sm:$0xf]
        %v11057 = vld [vmem:[%s13 + $0x10] sm:$0xf]
        %v11058 = vld [vmem:[%s13 + $0x14] sm:$0xf]
        %v11059 = vld [vmem:[%s13 + $0x18] sm:$0xf]
        %v11060 = vld [vmem:[%s13 + $0x1c] sm:$0xf]
        %v11061 = vld [vmem:[%s13 + $0x20] sm:$0xf]
        %v11062 = vld [vmem:[%s13 + $0x24] sm:$0xf]
        %v11063 = vld [vmem:[%s13 + $0x28] sm:$0xf]
        %v11064 = vld [vmem:[%s13 + $0x2c] sm:$0xf]
        %v11065 = vld [vmem:[%s13 + $0x30] sm:$0xf]
        %v11066 = vld [vmem:[%s13 + $0x34] sm:$0xf]
        %v11067 = vld [vmem:[%s13 + $0x38] sm:$0xf]
        %v11068 = vld [vmem:[%s13 + $0x3c] sm:$0xf]
        %v11069 = vld [vmem:[%s14] sm:$0x1]
        %v11071 = vlaneseq
        %v11072 = vshrl.u32 %v11071, 7
        %v11073 = vsub.s32 0, %v11072
        %v11074 = vrot.slane %v11069, %v11073
        %v11092 = vunpack.c.l.b16 %v11053
        %v11093 = vunpack.c.l.b16 %v11054
        %v11094 = vunpack.c.l.b16 %v11055
        %v11095 = vunpack.c.l.b16 %v11056
        %v11096 = vunpack.c.l.b16 %v11057
        %v11097 = vunpack.c.l.b16 %v11058
        %v11098 = vunpack.c.l.b16 %v11059
        %v11099 = vunpack.c.l.b16 %v11060
        %v11100 = vunpack.c.l.b16 %v11061
        %v11101 = vunpack.c.l.b16 %v11062
        %v11102 = vunpack.c.l.b16 %v11063
        %v11103 = vunpack.c.l.b16 %v11064
        %v11104 = vunpack.c.l.b16 %v11065
        %v11105 = vunpack.c.l.b16 %v11066
        %v11106 = vunpack.c.l.b16 %v11067
        %v11107 = vunpack.c.l.b16 %v11068
        %v11108 = vpack.c.b16 %v11093, %v11092
        %v11109 = vpack.c.b16 %v11095, %v11094
        %v11110 = vpack.c.b16 %v11097, %v11096
        %v11111 = vpack.c.b16 %v11099, %v11098
        %v11112 = vpack.c.b16 %v11101, %v11100
        %v11113 = vpack.c.b16 %v11103, %v11102
        %v11114 = vpack.c.b16 %v11105, %v11104
        %v11115 = vpack.c.b16 %v11107, %v11106
        %11124 = vmatprep.subr.bf16.mxu0 0
        %11125 = vmatpush1.bf16.msra.mxu0 %v11108
        %11126 = vmatprep.subr.bf16.mxu0 0
        %11127 = vmatpush1.bf16.msra.mxu0 %v11109
        %11128 = vmatprep.subr.bf16.mxu0 0
        %11129 = vmatpush1.bf16.msra.mxu0 %v11110
        %11130 = vmatprep.subr.bf16.mxu0 0
        %11131 = vmatpush1.bf16.msra.mxu0 %v11111
        %11132 = vmatprep.subr.bf16.mxu0 0
        %11133 = vmatpush1.bf16.msra.mxu0 %v11112
        %11134 = vmatprep.subr.bf16.mxu0 0
        %11135 = vmatpush1.bf16.msra.mxu0 %v11113
        %11136 = vmatprep.subr.bf16.mxu0 0
        %11137 = vmatpush1.bf16.msra.mxu0 %v11114
        %11138 = vmatprep.subr.bf16.mxu0 0
        %11139 = vmatpush1.bf16.msra.mxu0 %v11115
        %11140 = vmatprep.subr.bf16.mxu0 0
        %11141 = vmatpush1.bf16.msra.mxu0 0
        %11142 = vmatprep.subr.bf16.mxu0 0
        %11143 = vmatpush1.bf16.msra.mxu0 0
        %11144 = vmatprep.subr.bf16.mxu0 0
        %11145 = vmatpush1.bf16.msra.mxu0 0
        %11146 = vmatprep.subr.bf16.mxu0 0
        %11147 = vmatpush1.bf16.msra.mxu0 0
        %11148 = vmatprep.subr.bf16.mxu0 0
        %11149 = vmatpush1.bf16.msra.mxu0 0
        %11150 = vmatprep.subr.bf16.mxu0 0
        %11151 = vmatpush1.bf16.msra.mxu0 0
        %11152 = vmatprep.subr.bf16.mxu0 0
        %11153 = vmatpush1.bf16.msra.mxu0 0
        %11154 = vmatprep.subr.bf16.mxu0 0
        %11155 = vmatpush1.bf16.msra.mxu0 0
        %11156 = vmatprep.mubr.bf16.mxu0 0
        %11157 = vmatmul.mubr.bf16.gmra.mrb[0].mxu0 %v11052
        %v11158 = vpop.f32.mrb[0].mxu0
        %v11159 = vadd.f32 %v11074, %v11158
        %v11160 = vpop.f32.mrb[0].mxu0
        %v11161 = vpop.f32.mrb[0].mxu0
        %v11162 = vpop.f32.mrb[0].mxu0
        %11163 = vdwg.mxu0
        %vm11164 = vcmask 76800
        %11165 = vst.msk [vmem:[%s490] sm:$0xf] %vm11164, %v11159
        %s11166 = sand.u32 %s357, 1
        %s11167 = scalar_lea.sflag [#allocation5], %s11166
        %s11168 = sand.u32 %s357, 1
        %s11169 = smul.addr %s11168, 4
        %s11170 = scalar_lea.vmem [#allocation4], %s11169
        // Predicated region
        $region81: #{cnn_forward.1} parent=79 // pred_check
          %p11171 = pneg %p367
        $region82: #{cnn_forward.1} parent=79 // pred_check_branch
          %11173 = sbr.rel (%p11171) target = $region84
        $region83: #{cnn_forward.1} parent=79 // pred_region
          %s11175 = ssub.s32 64, 64
          %11176 = vsyncadd %s11167, %s11175
          %s11177 = smul.addr %s29, 64
          %s11178 = scalar_lea.hbm %s15, %s11177
          %s11180 = sshll.u32 %s11170, 4
          %s11181 = int_to_ptr.vmem [resolvable:$true] %s11180
          %11183 = dma.vmem_to_hbm [thread:$0]  %s11181, 64, %s11178, %s11167
        $region84: #{cnn_forward.1} parent=79 // pred_fallthru
          _
      $region80: #{cnn_forward.1} parent=5 // pred_fallthru
        _
      %p11184 = scmp.le.s32.totalorder 2, %s24
      // Predicated region
      $region85: #{cnn_forward.1} parent=5 // pred_check
        %p11185 = pneg %p11184
      $region86: #{cnn_forward.1} parent=5 // pred_check_branch
        %11187 = sbr.rel (%p11185) target = $region88
      $region87: #{cnn_forward.1} parent=5 // pred_region
        %s11188 = ssub.s32 %s24, 2
        // Predicated region
        $region89: #{cnn_forward.1} parent=87 // pred_check
          %p11189 = pneg %p373
        $region90: #{cnn_forward.1} parent=87 // pred_check_branch
          %11191 = sbr.rel (%p11189) target = $region92
        $region91: #{cnn_forward.1} parent=87 // pred_region
          %s11192 = sand.u32 %s358, 1
          %s11193 = scalar_lea.sflag [#allocation5], %s11192
          %s11194 = sand.u32 %s358, 1
          %s11195 = smul.addr %s11194, 4
          %s11196 = scalar_lea.vmem [#allocation4], %s11195
          %11197 = dma.done %s11193, 64
        $region92: #{cnn_forward.1} parent=87 // pred_fallthru
          _
      $region88: #{cnn_forward.1} parent=5 // pred_fallthru
        _
    $region6: #{cnn_forward.1} parent=1 // loop_footer
      %s28 = sadd.s32 1, %s24
    $region7: #{cnn_forward.1} parent=1 // loop_footer_branch
      %23 = sbr.rel target = $region3
    $region8: #{cnn_forward.1} parent=1 // loop_exit
      _
    %11198 = vsyncpa [#allocation5], 1
    %s11199 = scalar_lea.sflag [#allocation5], 1
    %11200 = vsyncpa %s11199, 1

</llo_original>
